<compile_context>
chip_gen: v6e
topology: v6e:2x2x1
jax: 0.10.0
libtpu: 0.0.40
codegen_flags: <defaults>
</compile_context>

<pallas_src>
import functools

import jax
import jax.numpy as jnp
from jax import lax
from jax.experimental import pallas as pl
from jax.experimental.pallas import tpu as pltpu


def _round_up(v, m):
    return ((v + m - 1) // m) * m


def _fused_gat_stack_kernel(x_ref, adj_ref, wbuf_ref, bnbuf_ref, out_ref, *,
                            layer_meta, g_blk, n_nodes):
    """Whole MultiLayersGAT forward for a block of `g_blk` graphs.

    x_ref    : (G, N, Din)   f32
    adj_ref  : (G, N, N)     int8 (0/1, self-loops guaranteed by the caller)
    wbuf_ref : (Rw, C)       bf16 packed [w | a_l | a_r] per layer (static row offsets)
    bnbuf_ref: (Rb, C)       f32  packed BatchNorm scale/shift rows per layer
    out_ref  : (G, N, n_classes) f32
    """
    gn = g_blk * n_nodes
    n_layers = len(layer_meta)

    # Additive attention mask, built once per grid step (int8 -> f32 convert, then compare).
    adj_f = adj_ref[...].astype(jnp.float32)                       # (G, N, N)
    mask_bias = jnp.where(adj_f > 0.0, 0.0, -1e30)                 # 0 on edges, -1e30 off-edge

    h_cur = x_ref[...].reshape(gn, layer_meta[0][0])               # (G*N, Din) f32

    for li, (din, width, heads, feats, w_off, al_off, ar_off, bn_off) in enumerate(layer_meta):
        # Resident packed parameters, static slices (zero-cost ref views).
        w_bf = wbuf_ref[w_off:w_off + din, :width]                 # (Din, W) bf16
        al_bf = wbuf_ref[al_off:al_off + heads, :width]            # (H, W)   bf16
        ar_bf = wbuf_ref[ar_off:ar_off + width, :heads]            # (W, H)   bf16
        scale = bnbuf_ref[bn_off:bn_off + 1, :width]               # (1, W)   f32
        shift = bnbuf_ref[bn_off + 1:bn_off + 2, :width]           # (1, W)   f32

        # fc(h): one big MXU matmul over all graphs in the block (M = G*N), bf16 x bf16 -> f32.
        h_bf = h_cur.astype(jnp.bfloat16)
        z = jnp.dot(h_bf, w_bf, preferred_element_type=jnp.float32)        # (G*N, W) f32
        z_bf = z.astype(jnp.bfloat16)
        z3_bf = z_bf.reshape(g_blk, n_nodes, width)                        # free split

        # Attention logits for all heads.
        #  er (dst side): plain 2D matmul, column layout per graph.
        er3 = jnp.dot(z_bf, ar_bf, preferred_element_type=jnp.float32
                      ).reshape(g_blk, n_nodes, heads)                     # (G, N, H)
        #  el (src side): batched matmul -> N lands on lanes (row layout), no transpose.
        al_b = jnp.broadcast_to(al_bf, (g_blk, heads, width))
        el3 = lax.dot_general(al_b, z3_bf,
                              dimension_numbers=(((2,), (2,)), ((0,), (0,))),
                              preferred_element_type=jnp.float32)          # (G, H, N)

        outs = []
        for hd in range(heads):
            # DGL GATConv: e = LeakyReLU(el_src + er_dst), edge-softmax over incoming edges.
            e = er3[:, :, hd:hd + 1] + el3[:, hd:hd + 1, :]                # (G, N, N)
            e = jnp.where(e > 0.0, e, 0.2 * e) + mask_bias                 # LeakyReLU + mask
            m = jnp.max(e, axis=-1, keepdims=True)                         # self-loops -> finite
            p = jnp.exp(e - m)
            s = jnp.sum(p, axis=-1, keepdims=True)
            r = pl.reciprocal(s, approx=True)                              # EUP slot
            r = r * (2.0 - s * r)                                          # one Newton step
            alpha = (p * r).astype(jnp.bfloat16)

            zh = z3_bf[:, :, hd * feats:(hd + 1) * feats]                  # (G, N, F)
            outs.append(lax.dot_general(alpha, zh,
                                        dimension_numbers=(((2,), (1,)), ((0,), (0,))),
                                        preferred_element_type=jnp.float32))   # (G, N, F)

        y = outs[0] if heads == 1 else jnp.concatenate(outs, axis=-1)      # (G, N, W)
        y = y.reshape(gn, width)
        # GATConv bias + BatchNorm (eval, folded) + Dropout (identity) + ReLU.
        y = jnp.maximum(y * scale + shift, 0.0)

        if li == n_layers - 1:
            # Final softmax over classes (exact division keeps row sums exact).
            m2 = jnp.max(y, axis=-1, keepdims=True)
            p2 = jnp.exp(y - m2)
            probs = p2 / jnp.sum(p2, axis=-1, keepdims=True)
            out_ref[...] = probs.reshape(g_blk, n_nodes, width)
        else:
            h_cur = y


def pack_params(params):
    """Pack per-layer (w, a_l, a_r) into one bf16 buffer and (scale, shift) into one f32
    buffer, with 16-row-aligned static offsets. Returns (wbuf, bnbuf, meta)."""
    cmax = max(p["w"].shape[1] for p in params)
    meta = []
    rw = rb = 0
    for p in params:
        din, width = p["w"].shape
        heads = int(p["heads"])
        feats = int(p["feats"])
        w_off = rw
        rw += _round_up(din, 16)
        al_off = rw
        rw += _round_up(heads, 16)
        ar_off = rw
        rw += _round_up(width, 16)
        bn_off = rb
        rb += 8
        meta.append((din, width, heads, feats, w_off, al_off, ar_off, bn_off))

    wbuf = jnp.zeros((rw, cmax), jnp.bfloat16)
    bnbuf = jnp.zeros((rb, cmax), jnp.float32)
    for p, (din, width, heads, feats, w_off, al_off, ar_off, bn_off) in zip(params, meta):
        wbuf = wbuf.at[w_off:w_off + din, :width].set(p["w"].astype(jnp.bfloat16))
        wbuf = wbuf.at[al_off:al_off + heads, :width].set(p["a_l"].astype(jnp.bfloat16))
        wbuf = wbuf.at[ar_off:ar_off + width, :heads].set(p["a_r"].astype(jnp.bfloat16))
        bnbuf = bnbuf.at[bn_off, :width].set(p["scale"].reshape(-1))
        bnbuf = bnbuf.at[bn_off + 1, :width].set(p["shift"].reshape(-1))
    return wbuf, bnbuf, tuple(meta)


def multilayers_gat_forward(x, adj, params, *, graphs_per_block=8):
    """x: (B, N, Din) f32, adj: (B, N, N) int8 (with self-loops), one graph per batch entry."""
    b, n, din = x.shape
    assert adj.shape == (b, n, n)
    assert b % graphs_per_block == 0, "batch must be divisible by graphs_per_block"

    wbuf, bnbuf, meta = pack_params(params)
    assert meta[0][0] == din
    n_classes = meta[-1][1]
    g = graphs_per_block

    kernel = functools.partial(_fused_gat_stack_kernel,
                               layer_meta=meta, g_blk=g, n_nodes=n)
    return pl.pallas_call(
        kernel,
        out_shape=jax.ShapeDtypeStruct((b, n, n_classes), jnp.float32),
        grid=(b // g,),
        in_specs=[
            pl.BlockSpec((g, n, din), lambda i: (i, 0, 0)),
            pl.BlockSpec((g, n, n), lambda i: (i, 0, 0)),
            pl.BlockSpec(wbuf.shape, lambda i: (0, 0)),    # constant block -> stays resident
            pl.BlockSpec(bnbuf.shape, lambda i: (0, 0)),   # constant block -> stays resident
        ],
        out_specs=pl.BlockSpec((g, n, n_classes), lambda i: (i, 0, 0)),
        compiler_params=pltpu.CompilerParams(dimension_semantics=("parallel",)),
    )(x, adj, wbuf, bnbuf)


def init_params(key, in_feats, hidden_feats_list, num_heads_list, n_classes):
    """Deterministic synthetic parameters matching MultiLayersGAT.__init__ shapes
    (GATConv bias and BatchNorm running stats folded into per-channel scale/shift)."""
    n_layers = len(hidden_feats_list) + 1
    params = []
    eps = 1e-5
    for i in range(-1, n_layers - 1):
        din = in_feats if i == -1 else hidden_feats_list[i] * num_heads_list[i]
        fout = n_classes if i == n_layers - 2 else hidden_feats_list[i + 1]
        heads = 1 if i == n_layers - 2 else num_heads_list[i + 1]
        width = heads * fout

        key, k1, k2, k3, k4, k5 = jax.random.split(key, 6)
        w = jax.random.normal(k1, (din, width), jnp.float32) / jnp.sqrt(jnp.float32(din))
        attn_l = 0.1 * jax.random.normal(k2, (heads, fout), jnp.float32)
        attn_r = 0.1 * jax.random.normal(k3, (heads, fout), jnp.float32)
        bias = jnp.zeros((width,), jnp.float32)   # GATConv bias (flattened over heads)

        # Block-diagonal attention projectors: one matmul produces all heads' el / er.
        a_l = jnp.zeros((heads, width), jnp.float32)
        a_r = jnp.zeros((width, heads), jnp.float32)
        for h in range(heads):
            a_l = a_l.at[h, h * fout:(h + 1) * fout].set(attn_l[h])
            a_r = a_r.at[h * fout:(h + 1) * fout, h].set(attn_r[h])

        gamma = 1.0 + 0.1 * jax.random.normal(k4, (width,), jnp.float32)
        beta = 0.1 * jax.random.normal(k5, (width,), jnp.float32)
        running_mean = jnp.zeros((width,), jnp.float32)
        running_var = jnp.ones((width,), jnp.float32)
        scale = gamma / jnp.sqrt(running_var + eps)
        shift = beta + (bias - running_mean) * scale    # fold bias + BN mean

        params.append(dict(w=w, a_l=a_l, a_r=a_r, scale=scale, shift=shift,
                           heads=heads, feats=fout))
    return params


def reference_forward(x, adj, params):
    """Pure-JAX reference with the same bf16-operand / f32-accumulate precision."""
    mask = adj != 0
    h = x
    for p in params:
        heads, feats = int(p["heads"]), int(p["feats"])
        width = heads * feats
        w_bf = p["w"].astype(jnp.bfloat16)
        al_bf = p["a_l"].astype(jnp.bfloat16)
        ar_bf = p["a_r"].astype(jnp.bfloat16)
        z = jnp.einsum("bnd,dw->bnw", h.astype(jnp.bfloat16), w_bf,
                       preferred_element_type=jnp.float32)
        z_bf = z.astype(jnp.bfloat16)
        el = jnp.einsum("hw,bnw->bhn", al_bf, z_bf, preferred_element_type=jnp.float32)
        er = jnp.einsum("bnw,wh->bnh", z_bf, ar_bf, preferred_element_type=jnp.float32)
        outs = []
        for hd in range(heads):
            e = er[:, :, hd:hd + 1] + el[:, hd:hd + 1, :]
            e = jnp.where(e > 0.0, e, 0.2 * e)
            e = jnp.where(mask, e, -1e30)
            e = e - jnp.max(e, axis=-1, keepdims=True)
            pe = jnp.exp(e)
            alpha = (pe / jnp.sum(pe, axis=-1, keepdims=True)).astype(jnp.bfloat16)
            zh = z_bf[:, :, hd * feats:(hd + 1) * feats]
            outs.append(jnp.einsum("bij,bjf->bif", alpha, zh,
                                   preferred_element_type=jnp.float32))
        y = outs[0] if heads == 1 else jnp.concatenate(outs, axis=-1)
        h = jnp.maximum(y * p["scale"].reshape(1, 1, width)
                        + p["shift"].reshape(1, 1, width), 0.0)
    m = jnp.max(h, axis=-1, keepdims=True)
    pe = jnp.exp(h - m)
    return pe / jnp.sum(pe, axis=-1, keepdims=True)


if __name__ == "__main__":
    B, N = 32, 32                    # 32 independent graphs of 32 nodes
    in_feats = 16
    hidden_feats_list = [8, 8]
    num_heads_list = [2, 2]
    n_classes = 4

    key = jax.random.PRNGKey(0)
    kx, ka, kp = jax.random.split(key, 3)

    x = jax.random.normal(kx, (B, N, in_feats), jnp.float32)
    adj = jax.random.bernoulli(ka, 0.3, (B, N, N))
    adj = jnp.logical_or(adj, jnp.eye(N, dtype=bool)[None, :, :])   # self-loops required
    adj = adj.astype(jnp.int8)

    params = init_params(kp, in_feats, hidden_feats_list, num_heads_list, n_classes)

    y = multilayers_gat_forward(x, adj, params, graphs_per_block=8)
    y = jax.block_until_ready(y)

    assert y.shape == (B, N, n_classes), y.shape
    assert bool(jnp.all(jnp.isfinite(y)))
    assert bool(jnp.allclose(jnp.sum(y, axis=-1), 1.0, atol=1e-4))   # softmax rows

    y_ref = reference_forward(x, adj, params)
    assert bool(jnp.allclose(y, y_ref, atol=5e-3)), float(jnp.max(jnp.abs(y - y_ref)))

    print("KERNEL_OK")
</pallas_src>

<mosaic_0001>
module attributes {stable_mosaic.version = 11 : i64} {
  func.func @_fused_gat_stack_kernel(%arg0: i32, %arg1: memref<8x32x16xf32, #tpu.memory_space<vmem>>, %arg2: memref<8x32x32xi8, #tpu.memory_space<vmem>>, %arg3: memref<144x16xbf16, #tpu.memory_space<vmem>>, %arg4: memref<24x16xf32, #tpu.memory_space<vmem>>, %arg5: memref<8x32x4xf32, #tpu.memory_space<vmem>>) attributes {dimension_semantics = [#tpu.dimension_semantics<parallel>], iteration_bounds = array<i64: 4>, scalar_prefetch = 0 : i64, scratch_operands = 0 : i64, tpu.core_type = #tpu.core_type<tc>, window_params = [{transform_indices = @transform_0, window_bounds = array<i64: 8, 32, 16>}, {transform_indices = @transform_1, window_bounds = array<i64: 8, 32, 32>}, {pipeline_mode = #tpu.pipeline_mode<synchronous>, transform_indices = @transform_2, window_bounds = array<i64: 144, 16>}, {pipeline_mode = #tpu.pipeline_mode<synchronous>, transform_indices = @transform_3, window_bounds = array<i64: 24, 16>}, {transform_indices = @transform_4, window_bounds = array<i64: 8, 32, 4>}]} {
    %c0 = arith.constant 0 : index
    %c0_0 = arith.constant 0 : index
    %c0_1 = arith.constant 0 : index
    %0 = vector.load %arg2[%c0, %c0_0, %c0_1] : memref<8x32x32xi8, #tpu.memory_space<vmem>>, vector<8x32x32xi8>
    %1 = arith.sitofp %0 : vector<8x32x32xi8> to vector<8x32x32xf32>
    %cst = arith.constant 0.000000e+00 : f32
    %2 = vector.broadcast %cst : f32 to vector<8x32x32xf32>
    %3 = arith.cmpf ogt, %1, %2 : vector<8x32x32xf32>
    %cst_2 = arith.constant 0.000000e+00 : f32
    %cst_3 = arith.constant -1.000000e+30 : f32
    %4 = vector.broadcast %cst_2 : f32 to vector<8x32x32xf32>
    %5 = vector.broadcast %cst_3 : f32 to vector<8x32x32xf32>
    %6 = arith.select %3, %4, %5 : vector<8x32x32xi1>, vector<8x32x32xf32>
    %c0_4 = arith.constant 0 : index
    %c0_5 = arith.constant 0 : index
    %c0_6 = arith.constant 0 : index
    %7 = vector.load %arg1[%c0_4, %c0_5, %c0_6] : memref<8x32x16xf32, #tpu.memory_space<vmem>>, vector<8x32x16xf32>
    %8 = vector.shape_cast %7 : vector<8x32x16xf32> to vector<256x16xf32>
    %c0_7 = arith.constant 0 : index
    %c0_8 = arith.constant 0 : index
    %9 = vector.load %arg3[%c0_7, %c0_8] : memref<144x16xbf16, #tpu.memory_space<vmem>>, vector<16x16xbf16>
    %c16 = arith.constant 16 : index
    %c0_9 = arith.constant 0 : index
    %10 = vector.load %arg3[%c16, %c0_9] : memref<144x16xbf16, #tpu.memory_space<vmem>>, vector<2x16xbf16>
    %c32 = arith.constant 32 : index
    %c0_10 = arith.constant 0 : index
    %11 = vector.load %arg3[%c32, %c0_10] : memref<144x16xbf16, #tpu.memory_space<vmem>>, vector<16x2xbf16>
    %c0_11 = arith.constant 0 : index
    %c0_12 = arith.constant 0 : index
    %12 = vector.load %arg4[%c0_11, %c0_12] : memref<24x16xf32, #tpu.memory_space<vmem>>, vector<1x16xf32>
    %c1 = arith.constant 1 : index
    %c0_13 = arith.constant 0 : index
    %13 = vector.load %arg4[%c1, %c0_13] : memref<24x16xf32, #tpu.memory_space<vmem>>, vector<1x16xf32>
    %14 = arith.truncf %8 : vector<256x16xf32> to vector<256x16xbf16>
    %cst_14 = arith.constant dense<0.000000e+00> : vector<256x16xf32>
    %15 = tpu.matmul %14, %9, %cst_14 {dimension_numbers = #tpu.dot_dimension_numbers<[1], [0], [0], [1], [0, 0, 1, 1], [], []>} : vector<256x16xbf16>, vector<16x16xbf16>, vector<256x16xf32> -> vector<256x16xf32>
    %16 = arith.truncf %15 : vector<256x16xf32> to vector<256x16xbf16>
    %17 = vector.shape_cast %16 : vector<256x16xbf16> to vector<8x32x16xbf16>
    %cst_15 = arith.constant dense<0.000000e+00> : vector<256x2xf32>
    %18 = tpu.matmul %16, %11, %cst_15 {dimension_numbers = #tpu.dot_dimension_numbers<[1], [0], [0], [1], [0, 0, 1, 1], [], []>} : vector<256x16xbf16>, vector<16x2xbf16>, vector<256x2xf32> -> vector<256x2xf32>
    %19 = vector.shape_cast %18 : vector<256x2xf32> to vector<8x32x2xf32>
    %20 = vector.shape_cast %10 : vector<2x16xbf16> to vector<1x2x16xbf16>
    %21 = vector.broadcast %20 : vector<1x2x16xbf16> to vector<8x2x16xbf16>
    %cst_16 = arith.constant dense<0.000000e+00> : vector<8x2x32xf32>
    %22 = tpu.matmul %21, %17, %cst_16 {dimension_numbers = #tpu.dot_dimension_numbers<[2], [2], [1], [1], [0, 0, 0, 1, 1, 1], [0], [0]>} : vector<8x2x16xbf16>, vector<8x32x16xbf16>, vector<8x2x32xf32> -> vector<8x2x32xf32>
    %23 = vector.extract_strided_slice %19 {offsets = [0, 0, 0], sizes = [8, 32, 1], strides = [1, 1, 1]} : vector<8x32x2xf32> to vector<8x32x1xf32>
    %24 = vector.extract_strided_slice %22 {offsets = [0, 0, 0], sizes = [8, 1, 32], strides = [1, 1, 1]} : vector<8x2x32xf32> to vector<8x1x32xf32>
    %25 = vector.broadcast %23 : vector<8x32x1xf32> to vector<8x32x32xf32>
    %26 = vector.broadcast %24 : vector<8x1x32xf32> to vector<8x32x32xf32>
    %27 = arith.addf %25, %26 : vector<8x32x32xf32>
    %cst_17 = arith.constant 0.000000e+00 : f32
    %28 = vector.broadcast %cst_17 : f32 to vector<8x32x32xf32>
    %29 = arith.cmpf ogt, %27, %28 : vector<8x32x32xf32>
    %cst_18 = arith.constant 2.000000e-01 : f32
    %30 = vector.broadcast %cst_18 : f32 to vector<8x32x32xf32>
    %31 = arith.mulf %30, %27 : vector<8x32x32xf32>
    %32 = arith.select %29, %27, %31 : vector<8x32x32xi1>, vector<8x32x32xf32>
    %33 = arith.addf %32, %6 : vector<8x32x32xf32>
    %cst_19 = arith.constant dense<0xFF800000> : vector<8x32xf32>
    %34 = vector.multi_reduction <maximumf>, %33, %cst_19 [2] : vector<8x32x32xf32> to vector<8x32xf32>
    %35 = vector.shape_cast %34 : vector<8x32xf32> to vector<8x32x1xf32>
    %36 = vector.broadcast %35 : vector<8x32x1xf32> to vector<8x32x32xf32>
    %37 = arith.subf %33, %36 : vector<8x32x32xf32>
    %38 = math.exp %37 : vector<8x32x32xf32>
    %cst_20 = arith.constant dense<0.000000e+00> : vector<8x32xf32>
    %39 = vector.multi_reduction <add>, %38, %cst_20 [2] : vector<8x32x32xf32> to vector<8x32xf32>
    %40 = vector.shape_cast %39 : vector<8x32xf32> to vector<8x32x1xf32>
    %41 = tpu.reciprocal %40 {approx = true} : vector<8x32x1xf32> -> vector<8x32x1xf32>
    %42 = arith.mulf %40, %41 : vector<8x32x1xf32>
    %cst_21 = arith.constant 2.000000e+00 : f32
    %43 = vector.broadcast %cst_21 : f32 to vector<8x32x1xf32>
    %44 = arith.subf %43, %42 : vector<8x32x1xf32>
    %45 = arith.mulf %41, %44 : vector<8x32x1xf32>
    %46 = vector.broadcast %45 : vector<8x32x1xf32> to vector<8x32x32xf32>
    %47 = arith.mulf %38, %46 : vector<8x32x32xf32>
    %48 = arith.truncf %47 : vector<8x32x32xf32> to vector<8x32x32xbf16>
    %49 = vector.extract_strided_slice %17 {offsets = [0, 0, 0], sizes = [8, 32, 8], strides = [1, 1, 1]} : vector<8x32x16xbf16> to vector<8x32x8xbf16>
    %cst_22 = arith.constant dense<0.000000e+00> : vector<8x32x8xf32>
    %50 = tpu.matmul %48, %49, %cst_22 {dimension_numbers = #tpu.dot_dimension_numbers<[2], [1], [1], [2], [0, 0, 0, 1, 1, 2], [0], [0]>} : vector<8x32x32xbf16>, vector<8x32x8xbf16>, vector<8x32x8xf32> -> vector<8x32x8xf32>
    %51 = vector.extract_strided_slice %19 {offsets = [0, 0, 1], sizes = [8, 32, 1], strides = [1, 1, 1]} : vector<8x32x2xf32> to vector<8x32x1xf32>
    %52 = vector.extract_strided_slice %22 {offsets = [0, 1, 0], sizes = [8, 1, 32], strides = [1, 1, 1]} : vector<8x2x32xf32> to vector<8x1x32xf32>
    %53 = vector.broadcast %51 : vector<8x32x1xf32> to vector<8x32x32xf32>
    %54 = vector.broadcast %52 : vector<8x1x32xf32> to vector<8x32x32xf32>
    %55 = arith.addf %53, %54 : vector<8x32x32xf32>
    %cst_23 = arith.constant 0.000000e+00 : f32
    %56 = vector.broadcast %cst_23 : f32 to vector<8x32x32xf32>
    %57 = arith.cmpf ogt, %55, %56 : vector<8x32x32xf32>
    %cst_24 = arith.constant 2.000000e-01 : f32
    %58 = vector.broadcast %cst_24 : f32 to vector<8x32x32xf32>
    %59 = arith.mulf %58, %55 : vector<8x32x32xf32>
    %60 = arith.select %57, %55, %59 : vector<8x32x32xi1>, vector<8x32x32xf32>
    %61 = arith.addf %60, %6 : vector<8x32x32xf32>
    %cst_25 = arith.constant dense<0xFF800000> : vector<8x32xf32>
    %62 = vector.multi_reduction <maximumf>, %61, %cst_25 [2] : vector<8x32x32xf32> to vector<8x32xf32>
    %63 = vector.shape_cast %62 : vector<8x32xf32> to vector<8x32x1xf32>
    %64 = vector.broadcast %63 : vector<8x32x1xf32> to vector<8x32x32xf32>
    %65 = arith.subf %61, %64 : vector<8x32x32xf32>
    %66 = math.exp %65 : vector<8x32x32xf32>
    %cst_26 = arith.constant dense<0.000000e+00> : vector<8x32xf32>
    %67 = vector.multi_reduction <add>, %66, %cst_26 [2] : vector<8x32x32xf32> to vector<8x32xf32>
    %68 = vector.shape_cast %67 : vector<8x32xf32> to vector<8x32x1xf32>
    %69 = tpu.reciprocal %68 {approx = true} : vector<8x32x1xf32> -> vector<8x32x1xf32>
    %70 = arith.mulf %68, %69 : vector<8x32x1xf32>
    %cst_27 = arith.constant 2.000000e+00 : f32
    %71 = vector.broadcast %cst_27 : f32 to vector<8x32x1xf32>
    %72 = arith.subf %71, %70 : vector<8x32x1xf32>
    %73 = arith.mulf %69, %72 : vector<8x32x1xf32>
    %74 = vector.broadcast %73 : vector<8x32x1xf32> to vector<8x32x32xf32>
    %75 = arith.mulf %66, %74 : vector<8x32x32xf32>
    %76 = arith.truncf %75 : vector<8x32x32xf32> to vector<8x32x32xbf16>
    %77 = vector.extract_strided_slice %17 {offsets = [0, 0, 8], sizes = [8, 32, 8], strides = [1, 1, 1]} : vector<8x32x16xbf16> to vector<8x32x8xbf16>
    %cst_28 = arith.constant dense<0.000000e+00> : vector<8x32x8xf32>
    %78 = tpu.matmul %76, %77, %cst_28 {dimension_numbers = #tpu.dot_dimension_numbers<[2], [1], [1], [2], [0, 0, 0, 1, 1, 2], [0], [0]>} : vector<8x32x32xbf16>, vector<8x32x8xbf16>, vector<8x32x8xf32> -> vector<8x32x8xf32>
    %79 = tpu.concatenate %50, %78 in 2 : vector<8x32x8xf32>, vector<8x32x8xf32> -> vector<8x32x16xf32>
    %80 = vector.shape_cast %79 : vector<8x32x16xf32> to vector<256x16xf32>
    %81 = vector.broadcast %12 : vector<1x16xf32> to vector<256x16xf32>
    %82 = arith.mulf %80, %81 : vector<256x16xf32>
    %83 = vector.broadcast %13 : vector<1x16xf32> to vector<256x16xf32>
    %84 = arith.addf %82, %83 : vector<256x16xf32>
    %cst_29 = arith.constant 0.000000e+00 : f32
    %85 = vector.broadcast %cst_29 : f32 to vector<256x16xf32>
    %86 = arith.maximumf %84, %85 : vector<256x16xf32>
    %c48 = arith.constant 48 : index
    %c0_30 = arith.constant 0 : index
    %87 = vector.load %arg3[%c48, %c0_30] : memref<144x16xbf16, #tpu.memory_space<vmem>>, vector<16x16xbf16>
    %c64 = arith.constant 64 : index
    %c0_31 = arith.constant 0 : index
    %88 = vector.load %arg3[%c64, %c0_31] : memref<144x16xbf16, #tpu.memory_space<vmem>>, vector<2x16xbf16>
    %c80 = arith.constant 80 : index
    %c0_32 = arith.constant 0 : index
    %89 = vector.load %arg3[%c80, %c0_32] : memref<144x16xbf16, #tpu.memory_space<vmem>>, vector<16x2xbf16>
    %c8 = arith.constant 8 : index
    %c0_33 = arith.constant 0 : index
    %90 = vector.load %arg4[%c8, %c0_33] : memref<24x16xf32, #tpu.memory_space<vmem>>, vector<1x16xf32>
    %c9 = arith.constant 9 : index
    %c0_34 = arith.constant 0 : index
    %91 = vector.load %arg4[%c9, %c0_34] : memref<24x16xf32, #tpu.memory_space<vmem>>, vector<1x16xf32>
    %92 = arith.truncf %86 : vector<256x16xf32> to vector<256x16xbf16>
    %cst_35 = arith.constant dense<0.000000e+00> : vector<256x16xf32>
    %93 = tpu.matmul %92, %87, %cst_35 {dimension_numbers = #tpu.dot_dimension_numbers<[1], [0], [0], [1], [0, 0, 1, 1], [], []>} : vector<256x16xbf16>, vector<16x16xbf16>, vector<256x16xf32> -> vector<256x16xf32>
    %94 = arith.truncf %93 : vector<256x16xf32> to vector<256x16xbf16>
    %95 = vector.shape_cast %94 : vector<256x16xbf16> to vector<8x32x16xbf16>
    %cst_36 = arith.constant dense<0.000000e+00> : vector<256x2xf32>
    %96 = tpu.matmul %94, %89, %cst_36 {dimension_numbers = #tpu.dot_dimension_numbers<[1], [0], [0], [1], [0, 0, 1, 1], [], []>} : vector<256x16xbf16>, vector<16x2xbf16>, vector<256x2xf32> -> vector<256x2xf32>
    %97 = vector.shape_cast %96 : vector<256x2xf32> to vector<8x32x2xf32>
    %98 = vector.shape_cast %88 : vector<2x16xbf16> to vector<1x2x16xbf16>
    %99 = vector.broadcast %98 : vector<1x2x16xbf16> to vector<8x2x16xbf16>
    %cst_37 = arith.constant dense<0.000000e+00> : vector<8x2x32xf32>
    %100 = tpu.matmul %99, %95, %cst_37 {dimension_numbers = #tpu.dot_dimension_numbers<[2], [2], [1], [1], [0, 0, 0, 1, 1, 1], [0], [0]>} : vector<8x2x16xbf16>, vector<8x32x16xbf16>, vector<8x2x32xf32> -> vector<8x2x32xf32>
    %101 = vector.extract_strided_slice %97 {offsets = [0, 0, 0], sizes = [8, 32, 1], strides = [1, 1, 1]} : vector<8x32x2xf32> to vector<8x32x1xf32>
    %102 = vector.extract_strided_slice %100 {offsets = [0, 0, 0], sizes = [8, 1, 32], strides = [1, 1, 1]} : vector<8x2x32xf32> to vector<8x1x32xf32>
    %103 = vector.broadcast %101 : vector<8x32x1xf32> to vector<8x32x32xf32>
    %104 = vector.broadcast %102 : vector<8x1x32xf32> to vector<8x32x32xf32>
    %105 = arith.addf %103, %104 : vector<8x32x32xf32>
    %cst_38 = arith.constant 0.000000e+00 : f32
    %106 = vector.broadcast %cst_38 : f32 to vector<8x32x32xf32>
    %107 = arith.cmpf ogt, %105, %106 : vector<8x32x32xf32>
    %cst_39 = arith.constant 2.000000e-01 : f32
    %108 = vector.broadcast %cst_39 : f32 to vector<8x32x32xf32>
    %109 = arith.mulf %108, %105 : vector<8x32x32xf32>
    %110 = arith.select %107, %105, %109 : vector<8x32x32xi1>, vector<8x32x32xf32>
    %111 = arith.addf %110, %6 : vector<8x32x32xf32>
    %cst_40 = arith.constant dense<0xFF800000> : vector<8x32xf32>
    %112 = vector.multi_reduction <maximumf>, %111, %cst_40 [2] : vector<8x32x32xf32> to vector<8x32xf32>
    %113 = vector.shape_cast %112 : vector<8x32xf32> to vector<8x32x1xf32>
    %114 = vector.broadcast %113 : vector<8x32x1xf32> to vector<8x32x32xf32>
    %115 = arith.subf %111, %114 : vector<8x32x32xf32>
    %116 = math.exp %115 : vector<8x32x32xf32>
    %cst_41 = arith.constant dense<0.000000e+00> : vector<8x32xf32>
    %117 = vector.multi_reduction <add>, %116, %cst_41 [2] : vector<8x32x32xf32> to vector<8x32xf32>
    %118 = vector.shape_cast %117 : vector<8x32xf32> to vector<8x32x1xf32>
    %119 = tpu.reciprocal %118 {approx = true} : vector<8x32x1xf32> -> vector<8x32x1xf32>
    %120 = arith.mulf %118, %119 : vector<8x32x1xf32>
    %cst_42 = arith.constant 2.000000e+00 : f32
    %121 = vector.broadcast %cst_42 : f32 to vector<8x32x1xf32>
    %122 = arith.subf %121, %120 : vector<8x32x1xf32>
    %123 = arith.mulf %119, %122 : vector<8x32x1xf32>
    %124 = vector.broadcast %123 : vector<8x32x1xf32> to vector<8x32x32xf32>
    %125 = arith.mulf %116, %124 : vector<8x32x32xf32>
    %126 = arith.truncf %125 : vector<8x32x32xf32> to vector<8x32x32xbf16>
    %127 = vector.extract_strided_slice %95 {offsets = [0, 0, 0], sizes = [8, 32, 8], strides = [1, 1, 1]} : vector<8x32x16xbf16> to vector<8x32x8xbf16>
    %cst_43 = arith.constant dense<0.000000e+00> : vector<8x32x8xf32>
    %128 = tpu.matmul %126, %127, %cst_43 {dimension_numbers = #tpu.dot_dimension_numbers<[2], [1], [1], [2], [0, 0, 0, 1, 1, 2], [0], [0]>} : vector<8x32x32xbf16>, vector<8x32x8xbf16>, vector<8x32x8xf32> -> vector<8x32x8xf32>
    %129 = vector.extract_strided_slice %97 {offsets = [0, 0, 1], sizes = [8, 32, 1], strides = [1, 1, 1]} : vector<8x32x2xf32> to vector<8x32x1xf32>
    %130 = vector.extract_strided_slice %100 {offsets = [0, 1, 0], sizes = [8, 1, 32], strides = [1, 1, 1]} : vector<8x2x32xf32> to vector<8x1x32xf32>
    %131 = vector.broadcast %129 : vector<8x32x1xf32> to vector<8x32x32xf32>
    %132 = vector.broadcast %130 : vector<8x1x32xf32> to vector<8x32x32xf32>
    %133 = arith.addf %131, %132 : vector<8x32x32xf32>
    %cst_44 = arith.constant 0.000000e+00 : f32
    %134 = vector.broadcast %cst_44 : f32 to vector<8x32x32xf32>
    %135 = arith.cmpf ogt, %133, %134 : vector<8x32x32xf32>
    %cst_45 = arith.constant 2.000000e-01 : f32
    %136 = vector.broadcast %cst_45 : f32 to vector<8x32x32xf32>
    %137 = arith.mulf %136, %133 : vector<8x32x32xf32>
    %138 = arith.select %135, %133, %137 : vector<8x32x32xi1>, vector<8x32x32xf32>
    %139 = arith.addf %138, %6 : vector<8x32x32xf32>
    %cst_46 = arith.constant dense<0xFF800000> : vector<8x32xf32>
    %140 = vector.multi_reduction <maximumf>, %139, %cst_46 [2] : vector<8x32x32xf32> to vector<8x32xf32>
    %141 = vector.shape_cast %140 : vector<8x32xf32> to vector<8x32x1xf32>
    %142 = vector.broadcast %141 : vector<8x32x1xf32> to vector<8x32x32xf32>
    %143 = arith.subf %139, %142 : vector<8x32x32xf32>
    %144 = math.exp %143 : vector<8x32x32xf32>
    %cst_47 = arith.constant dense<0.000000e+00> : vector<8x32xf32>
    %145 = vector.multi_reduction <add>, %144, %cst_47 [2] : vector<8x32x32xf32> to vector<8x32xf32>
    %146 = vector.shape_cast %145 : vector<8x32xf32> to vector<8x32x1xf32>
    %147 = tpu.reciprocal %146 {approx = true} : vector<8x32x1xf32> -> vector<8x32x1xf32>
    %148 = arith.mulf %146, %147 : vector<8x32x1xf32>
    %cst_48 = arith.constant 2.000000e+00 : f32
    %149 = vector.broadcast %cst_48 : f32 to vector<8x32x1xf32>
    %150 = arith.subf %149, %148 : vector<8x32x1xf32>
    %151 = arith.mulf %147, %150 : vector<8x32x1xf32>
    %152 = vector.broadcast %151 : vector<8x32x1xf32> to vector<8x32x32xf32>
    %153 = arith.mulf %144, %152 : vector<8x32x32xf32>
    %154 = arith.truncf %153 : vector<8x32x32xf32> to vector<8x32x32xbf16>
    %155 = vector.extract_strided_slice %95 {offsets = [0, 0, 8], sizes = [8, 32, 8], strides = [1, 1, 1]} : vector<8x32x16xbf16> to vector<8x32x8xbf16>
    %cst_49 = arith.constant dense<0.000000e+00> : vector<8x32x8xf32>
    %156 = tpu.matmul %154, %155, %cst_49 {dimension_numbers = #tpu.dot_dimension_numbers<[2], [1], [1], [2], [0, 0, 0, 1, 1, 2], [0], [0]>} : vector<8x32x32xbf16>, vector<8x32x8xbf16>, vector<8x32x8xf32> -> vector<8x32x8xf32>
    %157 = tpu.concatenate %128, %156 in 2 : vector<8x32x8xf32>, vector<8x32x8xf32> -> vector<8x32x16xf32>
    %158 = vector.shape_cast %157 : vector<8x32x16xf32> to vector<256x16xf32>
    %159 = vector.broadcast %90 : vector<1x16xf32> to vector<256x16xf32>
    %160 = arith.mulf %158, %159 : vector<256x16xf32>
    %161 = vector.broadcast %91 : vector<1x16xf32> to vector<256x16xf32>
    %162 = arith.addf %160, %161 : vector<256x16xf32>
    %cst_50 = arith.constant 0.000000e+00 : f32
    %163 = vector.broadcast %cst_50 : f32 to vector<256x16xf32>
    %164 = arith.maximumf %162, %163 : vector<256x16xf32>
    %c96 = arith.constant 96 : index
    %c0_51 = arith.constant 0 : index
    %165 = vector.load %arg3[%c96, %c0_51] : memref<144x16xbf16, #tpu.memory_space<vmem>>, vector<16x4xbf16>
    %c112 = arith.constant 112 : index
    %c0_52 = arith.constant 0 : index
    %166 = vector.load %arg3[%c112, %c0_52] : memref<144x16xbf16, #tpu.memory_space<vmem>>, vector<1x4xbf16>
    %c128 = arith.constant 128 : index
    %c0_53 = arith.constant 0 : index
    %167 = vector.load %arg3[%c128, %c0_53] : memref<144x16xbf16, #tpu.memory_space<vmem>>, vector<4x1xbf16>
    %c16_54 = arith.constant 16 : index
    %c0_55 = arith.constant 0 : index
    %168 = vector.load %arg4[%c16_54, %c0_55] : memref<24x16xf32, #tpu.memory_space<vmem>>, vector<1x4xf32>
    %c17 = arith.constant 17 : index
    %c0_56 = arith.constant 0 : index
    %169 = vector.load %arg4[%c17, %c0_56] : memref<24x16xf32, #tpu.memory_space<vmem>>, vector<1x4xf32>
    %170 = arith.truncf %164 : vector<256x16xf32> to vector<256x16xbf16>
    %cst_57 = arith.constant dense<0.000000e+00> : vector<256x4xf32>
    %171 = tpu.matmul %170, %165, %cst_57 {dimension_numbers = #tpu.dot_dimension_numbers<[1], [0], [0], [1], [0, 0, 1, 1], [], []>} : vector<256x16xbf16>, vector<16x4xbf16>, vector<256x4xf32> -> vector<256x4xf32>
    %172 = arith.truncf %171 : vector<256x4xf32> to vector<256x4xbf16>
    %173 = vector.shape_cast %172 : vector<256x4xbf16> to vector<8x32x4xbf16>
    %cst_58 = arith.constant dense<0.000000e+00> : vector<256x1xf32>
    %174 = tpu.matmul %172, %167, %cst_58 {dimension_numbers = #tpu.dot_dimension_numbers<[1], [0], [0], [1], [0, 0, 1, 1], [], []>} : vector<256x4xbf16>, vector<4x1xbf16>, vector<256x1xf32> -> vector<256x1xf32>
    %175 = vector.shape_cast %174 : vector<256x1xf32> to vector<8x32x1xf32>
    %176 = vector.shape_cast %166 : vector<1x4xbf16> to vector<1x1x4xbf16>
    %177 = vector.broadcast %176 : vector<1x1x4xbf16> to vector<8x1x4xbf16>
    %cst_59 = arith.constant dense<0.000000e+00> : vector<8x1x32xf32>
    %178 = tpu.matmul %177, %173, %cst_59 {dimension_numbers = #tpu.dot_dimension_numbers<[2], [2], [1], [1], [0, 0, 0, 1, 1, 1], [0], [0]>} : vector<8x1x4xbf16>, vector<8x32x4xbf16>, vector<8x1x32xf32> -> vector<8x1x32xf32>
    %179 = vector.broadcast %175 : vector<8x32x1xf32> to vector<8x32x32xf32>
    %180 = vector.broadcast %178 : vector<8x1x32xf32> to vector<8x32x32xf32>
    %181 = arith.addf %179, %180 : vector<8x32x32xf32>
    %cst_60 = arith.constant 0.000000e+00 : f32
    %182 = vector.broadcast %cst_60 : f32 to vector<8x32x32xf32>
    %183 = arith.cmpf ogt, %181, %182 : vector<8x32x32xf32>
    %cst_61 = arith.constant 2.000000e-01 : f32
    %184 = vector.broadcast %cst_61 : f32 to vector<8x32x32xf32>
    %185 = arith.mulf %184, %181 : vector<8x32x32xf32>
    %186 = arith.select %183, %181, %185 : vector<8x32x32xi1>, vector<8x32x32xf32>
    %187 = arith.addf %186, %6 : vector<8x32x32xf32>
    %cst_62 = arith.constant dense<0xFF800000> : vector<8x32xf32>
    %188 = vector.multi_reduction <maximumf>, %187, %cst_62 [2] : vector<8x32x32xf32> to vector<8x32xf32>
    %189 = vector.shape_cast %188 : vector<8x32xf32> to vector<8x32x1xf32>
    %190 = vector.broadcast %189 : vector<8x32x1xf32> to vector<8x32x32xf32>
    %191 = arith.subf %187, %190 : vector<8x32x32xf32>
    %192 = math.exp %191 : vector<8x32x32xf32>
    %cst_63 = arith.constant dense<0.000000e+00> : vector<8x32xf32>
    %193 = vector.multi_reduction <add>, %192, %cst_63 [2] : vector<8x32x32xf32> to vector<8x32xf32>
    %194 = vector.shape_cast %193 : vector<8x32xf32> to vector<8x32x1xf32>
    %195 = tpu.reciprocal %194 {approx = true} : vector<8x32x1xf32> -> vector<8x32x1xf32>
    %196 = arith.mulf %194, %195 : vector<8x32x1xf32>
    %cst_64 = arith.constant 2.000000e+00 : f32
    %197 = vector.broadcast %cst_64 : f32 to vector<8x32x1xf32>
    %198 = arith.subf %197, %196 : vector<8x32x1xf32>
    %199 = arith.mulf %195, %198 : vector<8x32x1xf32>
    %200 = vector.broadcast %199 : vector<8x32x1xf32> to vector<8x32x32xf32>
    %201 = arith.mulf %192, %200 : vector<8x32x32xf32>
    %202 = arith.truncf %201 : vector<8x32x32xf32> to vector<8x32x32xbf16>
    %cst_65 = arith.constant dense<0.000000e+00> : vector<8x32x4xf32>
    %203 = tpu.matmul %202, %173, %cst_65 {dimension_numbers = #tpu.dot_dimension_numbers<[2], [1], [1], [2], [0, 0, 0, 1, 1, 2], [0], [0]>} : vector<8x32x32xbf16>, vector<8x32x4xbf16>, vector<8x32x4xf32> -> vector<8x32x4xf32>
    %204 = vector.shape_cast %203 : vector<8x32x4xf32> to vector<256x4xf32>
    %205 = vector.broadcast %168 : vector<1x4xf32> to vector<256x4xf32>
    %206 = arith.mulf %204, %205 : vector<256x4xf32>
    %207 = vector.broadcast %169 : vector<1x4xf32> to vector<256x4xf32>
    %208 = arith.addf %206, %207 : vector<256x4xf32>
    %cst_66 = arith.constant 0.000000e+00 : f32
    %209 = vector.broadcast %cst_66 : f32 to vector<256x4xf32>
    %210 = arith.maximumf %208, %209 : vector<256x4xf32>
    %cst_67 = arith.constant dense<0xFF800000> : vector<256xf32>
    %211 = vector.multi_reduction <maximumf>, %210, %cst_67 [1] : vector<256x4xf32> to vector<256xf32>
    %212 = vector.shape_cast %211 : vector<256xf32> to vector<256x1xf32>
    %213 = vector.broadcast %212 : vector<256x1xf32> to vector<256x4xf32>
    %214 = arith.subf %210, %213 : vector<256x4xf32>
    %215 = math.exp %214 : vector<256x4xf32>
    %cst_68 = arith.constant dense<0.000000e+00> : vector<256xf32>
    %216 = vector.multi_reduction <add>, %215, %cst_68 [1] : vector<256x4xf32> to vector<256xf32>
    %217 = vector.shape_cast %216 : vector<256xf32> to vector<256x1xf32>
    %218 = vector.broadcast %217 : vector<256x1xf32> to vector<256x4xf32>
    %219 = arith.divf %215, %218 : vector<256x4xf32>
    %220 = vector.shape_cast %219 : vector<256x4xf32> to vector<8x32x4xf32>
    %c0_69 = arith.constant 0 : index
    %c0_70 = arith.constant 0 : index
    %c0_71 = arith.constant 0 : index
    %221 = vector.load %arg5[%c0_69, %c0_70, %c0_71] : memref<8x32x4xf32, #tpu.memory_space<vmem>>, vector<8x32x4xf32>
    tpu.vector_store %arg5[%c0_69, %c0_70, %c0_71], %220 {strides = array<i32>} : memref<8x32x4xf32, #tpu.memory_space<vmem>>, vector<8x32x4xf32>,
    return
  }
  func.func @transform_0(%arg0: i32) -> (i32, i32, i32) {
    %c0_i32 = arith.constant 0 : i32
    %c0_i32_0 = arith.constant 0 : i32
    %c0_i32_1 = arith.constant 0 : i32
    return %arg0, %c0_i32, %c0_i32_0 : i32, i32, i32
  }
  func.func @transform_1(%arg0: i32) -> (i32, i32, i32) {
    %c0_i32 = arith.constant 0 : i32
    %c0_i32_0 = arith.constant 0 : i32
    %c0_i32_1 = arith.constant 0 : i32
    return %arg0, %c0_i32, %c0_i32_0 : i32, i32, i32
  }
  func.func @transform_2(%arg0: i32) -> (i32, i32) {
    %c0_i32 = arith.constant 0 : i32
    %c0_i32_0 = arith.constant 0 : i32
    %c0_i32_1 = arith.constant 0 : i32
    return %c0_i32, %c0_i32_0 : i32, i32
  }
  func.func @transform_3(%arg0: i32) -> (i32, i32) {
    %c0_i32 = arith.constant 0 : i32
    %c0_i32_0 = arith.constant 0 : i32
    %c0_i32_1 = arith.constant 0 : i32
    return %c0_i32, %c0_i32_0 : i32, i32
  }
  func.func @transform_4(%arg0: i32) -> (i32, i32, i32) {
    %c0_i32 = arith.constant 0 : i32
    %c0_i32_0 = arith.constant 0 : i32
    %c0_i32_1 = arith.constant 0 : i32
    return %arg0, %c0_i32, %c0_i32_0 : i32, i32, i32
  }
}

</mosaic_0001>

<llo_original>
// kernel: tpu_custom_call.1
$region0: #{tpu_custom_call.1}
  #allocation0 [shape = 'u32[]', space=smem, size = 0x4, offset = 0x4, fixed_abs, tag = 'smem constant byte address 0x4 - core index']
  #allocation1 [shape = 'u32[144,128]{1,0:T(1,128)}', space=vmem, size = 0x12000, scoped, tag = 'internal scratch']
  %s0 = inlined_call_operand.vmem [shape: f32[32,32,16], index: 0, kind: input, shape index: {}]
  %s1 = inlined_call_operand.vmem [shape: s8[32,32,32], index: 1, kind: input, shape index: {}]
  %s2 = inlined_call_operand.vmem [shape: bf16[144,16], index: 2, kind: input, shape index: {}]
  %s3 = inlined_call_operand.vmem [shape: f32[24,16], index: 3, kind: input, shape index: {}]
  %s4 = inlined_call_operand.vmem [shape: f32[32,32,4], index: 4, kind: output, shape index: {}]
  %s5 = sld [smem:[#allocation0]]
  $region49: #{tpu_custom_call.1} parent=0
    _
  %s7 = ssub.s32 1, %s5
  %s8 = scalar_select 0, %s7, %s5
  loop: start=0, step=1, limit=6
  $region2: #{tpu_custom_call.1} parent=0 // loop_pre_header
    _
  $region3: #{tpu_custom_call.1} parent=0 // loop_header
    %s10 = sphi 0, %s14
    %p11 = scmp.ge.s32.totalorder %s10, 6
    %s20 = sphi 0, %s22
    %s23 = sphi 0, %s20
    %s24 = sphi 0, %s23
    %s40 = sphi 0, %s24
    %s46 = sphi 0, %s48
    %s49 = sphi 0, %s46
    %s50 = sphi 0, %s49
    %s66 = sphi 0, %s50
    %s70 = sphi 0, %s70
    %s72 = sphi 0, %s70
    %s73 = sphi 0, %s72
    %s87 = sphi 0, %s73
    %s91 = sphi 0, %s91
    %s93 = sphi 0, %s91
    %s94 = sphi 0, %s93
    %s108 = sphi 0, %s94
    %s114 = sphi 0, %s116
    %s117 = sphi 0, %s114
    %s118 = sphi 0, %s117
    %s134 = sphi 0, %s118
  $region4: #{tpu_custom_call.1} parent=0 // loop_header_branch
    %13 = sbr.rel (%p11) target = $region8
  $region5: #{tpu_custom_call.1} parent=0 // loop_body
    %s15 = ssub.s32 %s10, 1
    %s16 = ssub.s32 %s10, 2
    %s17 = sadd.s32 %s10, 1
    %s18 = ssub.s32 %s10, %s17
    %p19 = scmp.eq.s32.totalorder %s18, 0
    %s21 = sadd.s32 %s20, 1
    %s22 = scalar_select %p19, %s20, %s21
    %p25 = pneg %p19
    %p26 = scmp.eq.s32.totalorder %s10, 3
    %p27 = por %p25, %p26
    %p28 = scmp.ne.s32.totalorder %s20, %s23
    %p29 = scmp.eq.s32.totalorder %s10, 0
    %p30 = por %p28, %p29
    %p31 = scmp.ne.s32.totalorder %s20, %s23
    %p32 = scmp.eq.s32.totalorder %s15, 3
    %p33 = por %p31, %p32
    %p34 = scmp.ne.s32.totalorder %s23, %s24
    %p35 = scmp.eq.s32.totalorder %s15, 0
    %p36 = por %p34, %p35
    %p37 = scmp.ne.s32.totalorder %s23, %s24
    %p38 = scmp.eq.s32.totalorder %s16, 3
    %p39 = por %p37, %p38
    %p41 = scmp.ne.s32.totalorder %s24, %s40
    %p42 = scmp.eq.s32.totalorder %s16, 0
    %p43 = por %p41, %p42
    %s44 = ssub.s32 %s10, %s17
    %p45 = scmp.eq.s32.totalorder %s44, 0
    %s47 = sadd.s32 %s46, 1
    %s48 = scalar_select %p45, %s46, %s47
    %p51 = pneg %p45
    %p52 = scmp.eq.s32.totalorder %s10, 3
    %p53 = por %p51, %p52
    %p54 = scmp.ne.s32.totalorder %s46, %s49
    %p55 = scmp.eq.s32.totalorder %s10, 0
    %p56 = por %p54, %p55
    %p57 = scmp.ne.s32.totalorder %s46, %s49
    %p58 = scmp.eq.s32.totalorder %s15, 3
    %p59 = por %p57, %p58
    %p60 = scmp.ne.s32.totalorder %s49, %s50
    %p61 = scmp.eq.s32.totalorder %s15, 0
    %p62 = por %p60, %p61
    %p63 = scmp.ne.s32.totalorder %s49, %s50
    %p64 = scmp.eq.s32.totalorder %s16, 3
    %p65 = por %p63, %p64
    %p67 = scmp.ne.s32.totalorder %s50, %s66
    %p68 = scmp.eq.s32.totalorder %s16, 0
    %p69 = por %p67, %p68
    %s71 = sadd.s32 %s70, 1
    %p74 = scmp.eq.s32.totalorder %s10, 3
    %p75 = scmp.ne.s32.totalorder %s70, %s72
    %p76 = scmp.eq.s32.totalorder %s10, 0
    %p77 = por %p75, %p76
    %p78 = scmp.ne.s32.totalorder %s70, %s72
    %p79 = scmp.eq.s32.totalorder %s15, 3
    %p80 = por %p78, %p79
    %p81 = scmp.ne.s32.totalorder %s72, %s73
    %p82 = scmp.eq.s32.totalorder %s15, 0
    %p83 = por %p81, %p82
    %p84 = scmp.ne.s32.totalorder %s72, %s73
    %p85 = scmp.eq.s32.totalorder %s16, 3
    %p86 = por %p84, %p85
    %p88 = scmp.ne.s32.totalorder %s73, %s87
    %p89 = scmp.eq.s32.totalorder %s16, 0
    %p90 = por %p88, %p89
    %s92 = sadd.s32 %s91, 1
    %p95 = scmp.eq.s32.totalorder %s10, 3
    %p96 = scmp.ne.s32.totalorder %s91, %s93
    %p97 = scmp.eq.s32.totalorder %s10, 0
    %p98 = por %p96, %p97
    %p99 = scmp.ne.s32.totalorder %s91, %s93
    %p100 = scmp.eq.s32.totalorder %s15, 3
    %p101 = por %p99, %p100
    %p102 = scmp.ne.s32.totalorder %s93, %s94
    %p103 = scmp.eq.s32.totalorder %s15, 0
    %p104 = por %p102, %p103
    %p105 = scmp.ne.s32.totalorder %s93, %s94
    %p106 = scmp.eq.s32.totalorder %s16, 3
    %p107 = por %p105, %p106
    %p109 = scmp.ne.s32.totalorder %s94, %s108
    %p110 = scmp.eq.s32.totalorder %s16, 0
    %p111 = por %p109, %p110
    %s112 = ssub.s32 %s10, %s17
    %p113 = scmp.eq.s32.totalorder %s112, 0
    %s115 = sadd.s32 %s114, 1
    %s116 = scalar_select %p113, %s114, %s115
    %p119 = pneg %p113
    %p120 = scmp.eq.s32.totalorder %s10, 3
    %p121 = por %p119, %p120
    %p122 = scmp.ne.s32.totalorder %s114, %s117
    %p123 = scmp.eq.s32.totalorder %s10, 0
    %p124 = por %p122, %p123
    %p125 = scmp.ne.s32.totalorder %s114, %s117
    %p126 = scmp.eq.s32.totalorder %s15, 3
    %p127 = por %p125, %p126
    %p128 = scmp.ne.s32.totalorder %s117, %s118
    %p129 = scmp.eq.s32.totalorder %s15, 0
    %p130 = por %p128, %p129
    %p131 = scmp.ne.s32.totalorder %s117, %s118
    %p132 = scmp.eq.s32.totalorder %s16, 3
    %p133 = por %p131, %p132
    %p135 = scmp.ne.s32.totalorder %s118, %s134
    %p136 = scmp.eq.s32.totalorder %s16, 0
    %p137 = por %p135, %p136
    %p138 = scmp.le.s32.totalorder 1, %s10
    %p139 = scmp.lt.s32.totalorder %s10, 5
    %p140 = pnand %p138, %p139
    %p141 = pneg %p140
    // Predicated region
    $region9: #{tpu_custom_call.1} parent=5 // pred_check
      _
    $region10: #{tpu_custom_call.1} parent=5 // pred_check_branch
      %143 = sbr.rel (%p140) target = $region12
    $region11: #{tpu_custom_call.1} parent=5 // pred_region
      %s144 = ssub.s32 %s10, 1
      // Predicated region
      $region13: #{tpu_custom_call.1} parent=11 // pred_check
        %p145 = pneg %p83
      $region14: #{tpu_custom_call.1} parent=11 // pred_check_branch
        %147 = sbr.rel (%p145) target = $region16
      $region15: #{tpu_custom_call.1} parent=11 // pred_region
        _
      $region16: #{tpu_custom_call.1} parent=11 // pred_fallthru
        _
      // Predicated region
      $region17: #{tpu_custom_call.1} parent=11 // pred_check
        %p148 = pneg %p104
      $region18: #{tpu_custom_call.1} parent=11 // pred_check_branch
        %150 = sbr.rel (%p148) target = $region20
      $region19: #{tpu_custom_call.1} parent=11 // pred_region
        _
      $region20: #{tpu_custom_call.1} parent=11 // pred_fallthru
        _
    $region12: #{tpu_custom_call.1} parent=5 // pred_fallthru
      _
    %p151 = scmp.lt.s32.totalorder %s10, 4
    // Predicated region
    $region21: #{tpu_custom_call.1} parent=5 // pred_check
      %p152 = pneg %p151
    $region22: #{tpu_custom_call.1} parent=5 // pred_check_branch
      %154 = sbr.rel (%p152) target = $region24
    $region23: #{tpu_custom_call.1} parent=5 // pred_region
      // Predicated region
      $region25: #{tpu_custom_call.1} parent=23 // pred_check
        %p155 = pneg %p30
      $region26: #{tpu_custom_call.1} parent=23 // pred_check_branch
        %157 = sbr.rel (%p155) target = $region28
      $region27: #{tpu_custom_call.1} parent=23 // pred_region
        %s158 = smul.u32 8, %s10
        %p159 = scmp.lt.s32.totalorder %s158, 31
        %s160 = scalar_select %p159, %s158, 31
        %s161 = smul.addr %s160, 4
        %s162 = smul.addr %s161, 8
        %s163 = scalar_lea.vmem %s0, %s162
        %s164 = smul.u32 8, %s10
      $region28: #{tpu_custom_call.1} parent=23 // pred_fallthru
        _
      // Predicated region
      $region29: #{tpu_custom_call.1} parent=23 // pred_check
        %p165 = pneg %p56
      $region30: #{tpu_custom_call.1} parent=23 // pred_check_branch
        %167 = sbr.rel (%p165) target = $region32
      $region31: #{tpu_custom_call.1} parent=23 // pred_region
        %s168 = smul.u32 8, %s10
        %p169 = scmp.lt.s32.totalorder %s168, 31
        %s170 = scalar_select %p169, %s168, 31
        %s171 = smul.addr %s170, 8
        %s172 = scalar_lea.vmem %s1, %s171
        %s173 = smul.u32 8, %s10
      $region32: #{tpu_custom_call.1} parent=23 // pred_fallthru
        _
    $region24: #{tpu_custom_call.1} parent=5 // pred_fallthru
      _
    %p174 = scmp.le.s32.totalorder 1, %s10
    %p175 = scmp.lt.s32.totalorder %s10, 5
    %p176 = pnand %p174, %p175
    %p177 = pneg %p176
    // Predicated region
    $region33: #{tpu_custom_call.1} parent=5 // pred_check
      _
    $region34: #{tpu_custom_call.1} parent=5 // pred_check_branch
      %179 = sbr.rel (%p176) target = $region36
    $region35: #{tpu_custom_call.1} parent=5 // pred_region
      %s180 = ssub.s32 %s10, 1
      %s181 = smul.u32 8, %s15
      %p182 = scmp.lt.s32.totalorder %s181, 31
      %s183 = scalar_select %p182, %s181, 31
      %s184 = smul.addr %s183, 4
      %s185 = smul.addr %s184, 8
      %s186 = scalar_lea.vmem %s0, %s185
      %p187 = pneg %p36
      %p188 = pneg %p33
      %s189 = smul.u32 8, %s15
      %p190 = scmp.lt.s32.totalorder %s189, 31
      %s191 = scalar_select %p190, %s189, 31
      %s192 = smul.addr %s191, 8
      %s193 = scalar_lea.vmem %s1, %s192
      %p194 = pneg %p62
      %p195 = pneg %p59
      %p196 = pneg %p83
      %p197 = pneg %p80
      %p198 = pneg %p104
      %p199 = pneg %p101
      %p200 = pneg %p130
      %p201 = pneg %p127
      %s202 = smul.u32 8, %s15
      %p203 = scmp.lt.s32.totalorder %s202, 31
      %s204 = scalar_select %p203, %s202, 31
      %s205 = smul.addr %s204, 4
      %s206 = smul.addr %s205, 8
      %s207 = scalar_lea.vmem %s4, %s206
      %s208 = smul.u32 8, %s15
      %p209 = scmp.lt.s32.totalorder %s208, 31
      %s210 = scalar_select %p209, %s208, 31
      %s211 = smul.addr %s210, 4
      %s212 = smul.addr %s211, 8
      %s213 = scalar_lea.vmem %s0, %s212
      %s214 = smul.u32 8, %s15
      %s215 = smul.u32 8, %s15
      %p216 = scmp.lt.s32.totalorder %s215, 31
      %s217 = scalar_select %p216, %s215, 31
      %s218 = smul.addr %s217, 8
      %s219 = scalar_lea.vmem %s1, %s218
      %s220 = smul.u32 8, %s15
      %s221 = smul.u32 8, %s15
      %p222 = scmp.lt.s32.totalorder %s221, 31
      %s223 = scalar_select %p222, %s221, 31
      %s224 = smul.addr %s223, 4
      %s225 = smul.addr %s224, 8
      %s226 = scalar_lea.vmem %s4, %s225
      %s227 = smul.u32 8, %s15
      %v229 = vld [vmem:[%s219] sm:$0xff]
      %v230 = vld [vmem:[%s219 + $0x8] sm:$0xff]
      %v231 = vld [vmem:[%s219 + $0x10] sm:$0xff]
      %v232 = vld [vmem:[%s219 + $0x18] sm:$0xff]
      %v233 = vld [vmem:[%s219 + $0x20] sm:$0xff]
      %v234 = vld [vmem:[%s219 + $0x28] sm:$0xff]
      %v235 = vld [vmem:[%s219 + $0x30] sm:$0xff]
      %v236 = vld [vmem:[%s219 + $0x38] sm:$0xff]
      %v237 = vunpack.c.0.s8 %v229
      %v238 = vunpack.c.1.s8 %v229
      %v239 = vunpack.c.2.s8 %v229
      %v240 = vunpack.c.3.s8 %v229
      %v241 = vunpack.c.0.s8 %v230
      %v242 = vunpack.c.1.s8 %v230
      %v243 = vunpack.c.2.s8 %v230
      %v244 = vunpack.c.3.s8 %v230
      %v245 = vunpack.c.0.s8 %v231
      %v246 = vunpack.c.1.s8 %v231
      %v247 = vunpack.c.2.s8 %v231
      %v248 = vunpack.c.3.s8 %v231
      %v249 = vunpack.c.0.s8 %v232
      %v250 = vunpack.c.1.s8 %v232
      %v251 = vunpack.c.2.s8 %v232
      %v252 = vunpack.c.3.s8 %v232
      %v253 = vunpack.c.0.s8 %v233
      %v254 = vunpack.c.1.s8 %v233
      %v255 = vunpack.c.2.s8 %v233
      %v256 = vunpack.c.3.s8 %v233
      %v257 = vunpack.c.0.s8 %v234
      %v258 = vunpack.c.1.s8 %v234
      %v259 = vunpack.c.2.s8 %v234
      %v260 = vunpack.c.3.s8 %v234
      %v261 = vunpack.c.0.s8 %v235
      %v262 = vunpack.c.1.s8 %v235
      %v263 = vunpack.c.2.s8 %v235
      %v264 = vunpack.c.3.s8 %v235
      %v265 = vunpack.c.0.s8 %v236
      %v266 = vunpack.c.1.s8 %v236
      %v267 = vunpack.c.2.s8 %v236
      %v268 = vunpack.c.3.s8 %v236
      %v269 = vcvt.s32.f32 %v237
      %v270 = vcvt.s32.f32 %v238
      %v271 = vcvt.s32.f32 %v239
      %v272 = vcvt.s32.f32 %v240
      %v273 = vcvt.s32.f32 %v241
      %v274 = vcvt.s32.f32 %v242
      %v275 = vcvt.s32.f32 %v243
      %v276 = vcvt.s32.f32 %v244
      %v277 = vcvt.s32.f32 %v245
      %v278 = vcvt.s32.f32 %v246
      %v279 = vcvt.s32.f32 %v247
      %v280 = vcvt.s32.f32 %v248
      %v281 = vcvt.s32.f32 %v249
      %v282 = vcvt.s32.f32 %v250
      %v283 = vcvt.s32.f32 %v251
      %v284 = vcvt.s32.f32 %v252
      %v285 = vcvt.s32.f32 %v253
      %v286 = vcvt.s32.f32 %v254
      %v287 = vcvt.s32.f32 %v255
      %v288 = vcvt.s32.f32 %v256
      %v289 = vcvt.s32.f32 %v257
      %v290 = vcvt.s32.f32 %v258
      %v291 = vcvt.s32.f32 %v259
      %v292 = vcvt.s32.f32 %v260
      %v293 = vcvt.s32.f32 %v261
      %v294 = vcvt.s32.f32 %v262
      %v295 = vcvt.s32.f32 %v263
      %v296 = vcvt.s32.f32 %v264
      %v297 = vcvt.s32.f32 %v265
      %v298 = vcvt.s32.f32 %v266
      %v299 = vcvt.s32.f32 %v267
      %v300 = vcvt.s32.f32 %v268
      %vm301 = vcmp.gt.f32.partialorder %v269, 0.0
      %vm302 = vcmp.gt.f32.partialorder %v270, 0.0
      %vm303 = vcmp.gt.f32.partialorder %v271, 0.0
      %vm304 = vcmp.gt.f32.partialorder %v272, 0.0
      %vm305 = vcmp.gt.f32.partialorder %v273, 0.0
      %vm306 = vcmp.gt.f32.partialorder %v274, 0.0
      %vm307 = vcmp.gt.f32.partialorder %v275, 0.0
      %vm308 = vcmp.gt.f32.partialorder %v276, 0.0
      %vm309 = vcmp.gt.f32.partialorder %v277, 0.0
      %vm310 = vcmp.gt.f32.partialorder %v278, 0.0
      %vm311 = vcmp.gt.f32.partialorder %v279, 0.0
      %vm312 = vcmp.gt.f32.partialorder %v280, 0.0
      %vm313 = vcmp.gt.f32.partialorder %v281, 0.0
      %vm314 = vcmp.gt.f32.partialorder %v282, 0.0
      %vm315 = vcmp.gt.f32.partialorder %v283, 0.0
      %vm316 = vcmp.gt.f32.partialorder %v284, 0.0
      %vm317 = vcmp.gt.f32.partialorder %v285, 0.0
      %vm318 = vcmp.gt.f32.partialorder %v286, 0.0
      %vm319 = vcmp.gt.f32.partialorder %v287, 0.0
      %vm320 = vcmp.gt.f32.partialorder %v288, 0.0
      %vm321 = vcmp.gt.f32.partialorder %v289, 0.0
      %vm322 = vcmp.gt.f32.partialorder %v290, 0.0
      %vm323 = vcmp.gt.f32.partialorder %v291, 0.0
      %vm324 = vcmp.gt.f32.partialorder %v292, 0.0
      %vm325 = vcmp.gt.f32.partialorder %v293, 0.0
      %vm326 = vcmp.gt.f32.partialorder %v294, 0.0
      %vm327 = vcmp.gt.f32.partialorder %v295, 0.0
      %vm328 = vcmp.gt.f32.partialorder %v296, 0.0
      %vm329 = vcmp.gt.f32.partialorder %v297, 0.0
      %vm330 = vcmp.gt.f32.partialorder %v298, 0.0
      %vm331 = vcmp.gt.f32.partialorder %v299, 0.0
      %vm332 = vcmp.gt.f32.partialorder %v300, 0.0
      %v333 = vsel %vm301, 0.0, -1e+30
      %v334 = vsel %vm302, 0.0, -1e+30
      %v335 = vsel %vm303, 0.0, -1e+30
      %v336 = vsel %vm304, 0.0, -1e+30
      %v337 = vsel %vm305, 0.0, -1e+30
      %v338 = vsel %vm306, 0.0, -1e+30
      %v339 = vsel %vm307, 0.0, -1e+30
      %v340 = vsel %vm308, 0.0, -1e+30
      %v341 = vsel %vm309, 0.0, -1e+30
      %v342 = vsel %vm310, 0.0, -1e+30
      %v343 = vsel %vm311, 0.0, -1e+30
      %v344 = vsel %vm312, 0.0, -1e+30
      %v345 = vsel %vm313, 0.0, -1e+30
      %v346 = vsel %vm314, 0.0, -1e+30
      %v347 = vsel %vm315, 0.0, -1e+30
      %v348 = vsel %vm316, 0.0, -1e+30
      %v349 = vsel %vm317, 0.0, -1e+30
      %v350 = vsel %vm318, 0.0, -1e+30
      %v351 = vsel %vm319, 0.0, -1e+30
      %v352 = vsel %vm320, 0.0, -1e+30
      %v353 = vsel %vm321, 0.0, -1e+30
      %v354 = vsel %vm322, 0.0, -1e+30
      %v355 = vsel %vm323, 0.0, -1e+30
      %v356 = vsel %vm324, 0.0, -1e+30
      %v357 = vsel %vm325, 0.0, -1e+30
      %v358 = vsel %vm326, 0.0, -1e+30
      %v359 = vsel %vm327, 0.0, -1e+30
      %v360 = vsel %vm328, 0.0, -1e+30
      %v361 = vsel %vm329, 0.0, -1e+30
      %v362 = vsel %vm330, 0.0, -1e+30
      %v363 = vsel %vm331, 0.0, -1e+30
      %v364 = vsel %vm332, 0.0, -1e+30
      %v365 = vld [vmem:[%s213] sm:$0xff]
      %v366 = vld [vmem:[%s213 + $0x8] sm:$0xff]
      %v367 = vld [vmem:[%s213 + $0x10] sm:$0xff]
      %v368 = vld [vmem:[%s213 + $0x18] sm:$0xff]
      %v369 = vld [vmem:[%s213 + $0x20] sm:$0xff]
      %v370 = vld [vmem:[%s213 + $0x28] sm:$0xff]
      %v371 = vld [vmem:[%s213 + $0x30] sm:$0xff]
      %v372 = vld [vmem:[%s213 + $0x38] sm:$0xff]
      %v373 = vld [vmem:[%s213 + $0x40] sm:$0xff]
      %v374 = vld [vmem:[%s213 + $0x48] sm:$0xff]
      %v375 = vld [vmem:[%s213 + $0x50] sm:$0xff]
      %v376 = vld [vmem:[%s213 + $0x58] sm:$0xff]
      %v377 = vld [vmem:[%s213 + $0x60] sm:$0xff]
      %v378 = vld [vmem:[%s213 + $0x68] sm:$0xff]
      %v379 = vld [vmem:[%s213 + $0x70] sm:$0xff]
      %v380 = vld [vmem:[%s213 + $0x78] sm:$0xff]
      %v381 = vld [vmem:[%s213 + $0x80] sm:$0xff]
      %v382 = vld [vmem:[%s213 + $0x88] sm:$0xff]
      %v383 = vld [vmem:[%s213 + $0x90] sm:$0xff]
      %v384 = vld [vmem:[%s213 + $0x98] sm:$0xff]
      %v385 = vld [vmem:[%s213 + $0xa0] sm:$0xff]
      %v386 = vld [vmem:[%s213 + $0xa8] sm:$0xff]
      %v387 = vld [vmem:[%s213 + $0xb0] sm:$0xff]
      %v388 = vld [vmem:[%s213 + $0xb8] sm:$0xff]
      %v389 = vld [vmem:[%s213 + $0xc0] sm:$0xff]
      %v390 = vld [vmem:[%s213 + $0xc8] sm:$0xff]
      %v391 = vld [vmem:[%s213 + $0xd0] sm:$0xff]
      %v392 = vld [vmem:[%s213 + $0xd8] sm:$0xff]
      %v393 = vld [vmem:[%s213 + $0xe0] sm:$0xff]
      %v394 = vld [vmem:[%s213 + $0xe8] sm:$0xff]
      %v395 = vld [vmem:[%s213 + $0xf0] sm:$0xff]
      %v396 = vld [vmem:[%s213 + $0xf8] sm:$0xff]
      %v397 = vld [vmem:[%s2] sm:$0xf]
      %v398 = vld [vmem:[%s2 + $0x4] sm:$0xf]
      %v399 = vld [vmem:[%s2 + $0x8] sm:$0x1]
      %v400 = vld [vmem:[%s2 + $0x10] sm:$0xf]
      %v401 = vld [vmem:[%s2 + $0x14] sm:$0xf]
      %v402 = vld [vmem:[%s3] sm:$0x1]
      %v403 = vld [vmem:[%s3 + $0x1] sm:$0x1]
      %v404 = vpack.c.bf16 %v366, %v365
      %v405 = vpack.c.bf16 %v368, %v367
      %v406 = vpack.c.bf16 %v370, %v369
      %v407 = vpack.c.bf16 %v372, %v371
      %v408 = vpack.c.bf16 %v374, %v373
      %v409 = vpack.c.bf16 %v376, %v375
      %v410 = vpack.c.bf16 %v378, %v377
      %v411 = vpack.c.bf16 %v380, %v379
      %v412 = vpack.c.bf16 %v382, %v381
      %v413 = vpack.c.bf16 %v384, %v383
      %v414 = vpack.c.bf16 %v386, %v385
      %v415 = vpack.c.bf16 %v388, %v387
      %v416 = vpack.c.bf16 %v390, %v389
      %v417 = vpack.c.bf16 %v392, %v391
      %v418 = vpack.c.bf16 %v394, %v393
      %v419 = vpack.c.bf16 %v396, %v395
      %v422 = vunpack.c.l.b16 %v397
      %v423 = vunpack.c.l.b16 %v398
      %v424 = vpack.c.b16 %v423, %v422
      %vm426 = vcmask 130048
      %v428 = vsel %vm426, %v404, 0
      %v431 = vsel %vm426, %v405, 0
      %v434 = vsel %vm426, %v406, 0
      %v437 = vsel %vm426, %v407, 0
      %v440 = vsel %vm426, %v408, 0
      %v443 = vsel %vm426, %v409, 0
      %v446 = vsel %vm426, %v410, 0
      %v449 = vsel %vm426, %v411, 0
      %v452 = vsel %vm426, %v412, 0
      %v455 = vsel %vm426, %v413, 0
      %v458 = vsel %vm426, %v414, 0
      %v461 = vsel %vm426, %v415, 0
      %v464 = vsel %vm426, %v416, 0
      %v467 = vsel %vm426, %v417, 0
      %v470 = vsel %vm426, %v418, 0
      %v473 = vsel %vm426, %v419, 0
      %475 = vmatprep.subr.bf16.mxu0 0
      %476 = vmatpush1.bf16.msra.mxu0 0
      %477 = vmatprep.subr.bf16.mxu0 0
      %478 = vmatpush1.bf16.msra.mxu0 0
      %479 = vmatprep.subr.bf16.mxu0 0
      %480 = vmatpush1.bf16.msra.mxu0 0
      %481 = vmatprep.subr.bf16.mxu0 0
      %482 = vmatpush1.bf16.msra.mxu0 0
      %483 = vmatprep.subr.bf16.mxu0 0
      %484 = vmatpush1.bf16.msra.mxu0 0
      %485 = vmatprep.subr.bf16.mxu0 0
      %486 = vmatpush1.bf16.msra.mxu0 0
      %487 = vmatprep.subr.bf16.mxu0 0
      %488 = vmatpush1.bf16.msra.mxu0 0
      %489 = vmatprep.subr.bf16.mxu0 0
      %490 = vmatpush1.bf16.msra.mxu0 %v424
      %491 = vmatprep.subr.bf16.mxu0 0
      %492 = vmatpush2.bf16.msra.mxu0 0
      %493 = vmatprep.subr.bf16.mxu0 0
      %494 = vmatpush2.bf16.msra.mxu0 0
      %495 = vmatprep.subr.bf16.mxu0 0
      %496 = vmatpush2.bf16.msra.mxu0 0
      %497 = vmatprep.subr.bf16.mxu0 0
      %498 = vmatpush2.bf16.msra.mxu0 0
      %499 = vmatprep.subr.bf16.mxu0 0
      %500 = vmatpush2.bf16.msra.mxu0 0
      %501 = vmatprep.subr.bf16.mxu0 0
      %502 = vmatpush2.bf16.msra.mxu0 0
      %503 = vmatprep.subr.bf16.mxu0 0
      %504 = vmatpush2.bf16.msra.mxu0 0
      %505 = vmatprep.subr.bf16.mxu0 0
      %506 = vmatpush2.bf16.msra.mxu0 0
      %507 = vmatprep.mubr.bf16.mxu0 0
      %508 = vmatmul.mubr.bf16.gmra.mxu0 %v428
      %v509 = vpop.f32.mrf.mxu0
      %v510 = vadd.f32 0.0, %v509
      %v511 = vpop.f32.mrf.mxu0
      %v512 = vpop.f32.mrf.mxu0
      %v513 = vadd.f32 0.0, %v512
      %v514 = vpop.f32.mrf.mxu0
      %515 = vmatprep.mubr.bf16.mxu0 0
      %516 = vmatmul.mubr.bf16.gmra.mxu0 %v431
      %v517 = vpop.f32.mrf.mxu0
      %v518 = vadd.f32 0.0, %v517
      %v519 = vpop.f32.mrf.mxu0
      %v520 = vpop.f32.mrf.mxu0
      %v521 = vadd.f32 0.0, %v520
      %v522 = vpop.f32.mrf.mxu0
      %523 = vmatprep.mubr.bf16.mxu0 0
      %524 = vmatmul.mubr.bf16.gmra.mxu0 %v434
      %v525 = vpop.f32.mrf.mxu0
      %v526 = vadd.f32 0.0, %v525
      %v527 = vpop.f32.mrf.mxu0
      %v528 = vpop.f32.mrf.mxu0
      %v529 = vadd.f32 0.0, %v528
      %v530 = vpop.f32.mrf.mxu0
      %531 = vmatprep.mubr.bf16.mxu0 0
      %532 = vmatmul.mubr.bf16.gmra.mxu0 %v437
      %v533 = vpop.f32.mrf.mxu0
      %v534 = vadd.f32 0.0, %v533
      %v535 = vpop.f32.mrf.mxu0
      %v536 = vpop.f32.mrf.mxu0
      %v537 = vadd.f32 0.0, %v536
      %v538 = vpop.f32.mrf.mxu0
      %539 = vmatprep.mubr.bf16.mxu0 0
      %540 = vmatmul.mubr.bf16.gmra.mxu0 %v440
      %v541 = vpop.f32.mrf.mxu0
      %v542 = vadd.f32 0.0, %v541
      %v543 = vpop.f32.mrf.mxu0
      %v544 = vpop.f32.mrf.mxu0
      %v545 = vadd.f32 0.0, %v544
      %v546 = vpop.f32.mrf.mxu0
      %547 = vmatprep.mubr.bf16.mxu0 0
      %548 = vmatmul.mubr.bf16.gmra.mxu0 %v443
      %v549 = vpop.f32.mrf.mxu0
      %v550 = vadd.f32 0.0, %v549
      %v551 = vpop.f32.mrf.mxu0
      %v552 = vpop.f32.mrf.mxu0
      %v553 = vadd.f32 0.0, %v552
      %v554 = vpop.f32.mrf.mxu0
      %555 = vmatprep.mubr.bf16.mxu0 0
      %556 = vmatmul.mubr.bf16.gmra.mxu0 %v446
      %v557 = vpop.f32.mrf.mxu0
      %v558 = vadd.f32 0.0, %v557
      %v559 = vpop.f32.mrf.mxu0
      %v560 = vpop.f32.mrf.mxu0
      %v561 = vadd.f32 0.0, %v560
      %v562 = vpop.f32.mrf.mxu0
      %563 = vmatprep.mubr.bf16.mxu0 0
      %564 = vmatmul.mubr.bf16.gmra.mxu0 %v449
      %v565 = vpop.f32.mrf.mxu0
      %v566 = vadd.f32 0.0, %v565
      %v567 = vpop.f32.mrf.mxu0
      %v568 = vpop.f32.mrf.mxu0
      %v569 = vadd.f32 0.0, %v568
      %v570 = vpop.f32.mrf.mxu0
      %571 = vmatprep.mubr.bf16.mxu0 0
      %572 = vmatmul.mubr.bf16.gmra.mxu0 %v452
      %v573 = vpop.f32.mrf.mxu0
      %v574 = vadd.f32 0.0, %v573
      %v575 = vpop.f32.mrf.mxu0
      %v576 = vpop.f32.mrf.mxu0
      %v577 = vadd.f32 0.0, %v576
      %v578 = vpop.f32.mrf.mxu0
      %579 = vmatprep.mubr.bf16.mxu0 0
      %580 = vmatmul.mubr.bf16.gmra.mxu0 %v455
      %v581 = vpop.f32.mrf.mxu0
      %v582 = vadd.f32 0.0, %v581
      %v583 = vpop.f32.mrf.mxu0
      %v584 = vpop.f32.mrf.mxu0
      %v585 = vadd.f32 0.0, %v584
      %v586 = vpop.f32.mrf.mxu0
      %587 = vmatprep.mubr.bf16.mxu0 0
      %588 = vmatmul.mubr.bf16.gmra.mxu0 %v458
      %v589 = vpop.f32.mrf.mxu0
      %v590 = vadd.f32 0.0, %v589
      %v591 = vpop.f32.mrf.mxu0
      %v592 = vpop.f32.mrf.mxu0
      %v593 = vadd.f32 0.0, %v592
      %v594 = vpop.f32.mrf.mxu0
      %595 = vmatprep.mubr.bf16.mxu0 0
      %596 = vmatmul.mubr.bf16.gmra.mxu0 %v461
      %v597 = vpop.f32.mrf.mxu0
      %v598 = vadd.f32 0.0, %v597
      %v599 = vpop.f32.mrf.mxu0
      %v600 = vpop.f32.mrf.mxu0
      %v601 = vadd.f32 0.0, %v600
      %v602 = vpop.f32.mrf.mxu0
      %603 = vmatprep.mubr.bf16.mxu0 0
      %604 = vmatmul.mubr.bf16.gmra.mxu0 %v464
      %v605 = vpop.f32.mrf.mxu0
      %v606 = vadd.f32 0.0, %v605
      %v607 = vpop.f32.mrf.mxu0
      %v608 = vpop.f32.mrf.mxu0
      %v609 = vadd.f32 0.0, %v608
      %v610 = vpop.f32.mrf.mxu0
      %611 = vmatprep.mubr.bf16.mxu0 0
      %612 = vmatmul.mubr.bf16.gmra.mxu0 %v467
      %v613 = vpop.f32.mrf.mxu0
      %v614 = vadd.f32 0.0, %v613
      %v615 = vpop.f32.mrf.mxu0
      %v616 = vpop.f32.mrf.mxu0
      %v617 = vadd.f32 0.0, %v616
      %v618 = vpop.f32.mrf.mxu0
      %619 = vmatprep.mubr.bf16.mxu0 0
      %620 = vmatmul.mubr.bf16.gmra.mxu0 %v470
      %v621 = vpop.f32.mrf.mxu0
      %v622 = vadd.f32 0.0, %v621
      %v623 = vpop.f32.mrf.mxu0
      %v624 = vpop.f32.mrf.mxu0
      %v625 = vadd.f32 0.0, %v624
      %v626 = vpop.f32.mrf.mxu0
      %627 = vmatprep.mubr.bf16.mxu0 0
      %628 = vmatmul.mubr.bf16.gmra.mxu0 %v473
      %v629 = vpop.f32.mrf.mxu0
      %v630 = vadd.f32 0.0, %v629
      %v631 = vpop.f32.mrf.mxu0
      %v632 = vpop.f32.mrf.mxu0
      %v633 = vadd.f32 0.0, %v632
      %v634 = vpop.f32.mrf.mxu0
      %635 = vdwg.mxu0
      %v636 = vpack.c.bf16 %v513, %v510
      %v637 = vpack.c.bf16 %v521, %v518
      %v638 = vpack.c.bf16 %v529, %v526
      %v639 = vpack.c.bf16 %v537, %v534
      %v640 = vpack.c.bf16 %v545, %v542
      %v641 = vpack.c.bf16 %v553, %v550
      %v642 = vpack.c.bf16 %v561, %v558
      %v643 = vpack.c.bf16 %v569, %v566
      %v644 = vpack.c.bf16 %v577, %v574
      %v645 = vpack.c.bf16 %v585, %v582
      %v646 = vpack.c.bf16 %v593, %v590
      %v647 = vpack.c.bf16 %v601, %v598
      %v648 = vpack.c.bf16 %v609, %v606
      %v649 = vpack.c.bf16 %v617, %v614
      %v650 = vpack.c.bf16 %v625, %v622
      %v651 = vpack.c.bf16 %v633, %v630
      %v654 = vunpack.c.l.b16 %v400
      %v655 = vunpack.c.l.b16 %v401
      %v656 = vpack.c.b16 %v655, %v654
      %v659 = vsel %vm426, %v636, 0
      %v662 = vsel %vm426, %v637, 0
      %v665 = vsel %vm426, %v638, 0
      %v668 = vsel %vm426, %v639, 0
      %v671 = vsel %vm426, %v640, 0
      %v674 = vsel %vm426, %v641, 0
      %v677 = vsel %vm426, %v642, 0
      %v680 = vsel %vm426, %v643, 0
      %v683 = vsel %vm426, %v644, 0
      %v686 = vsel %vm426, %v645, 0
      %v689 = vsel %vm426, %v646, 0
      %v692 = vsel %vm426, %v647, 0
      %v695 = vsel %vm426, %v648, 0
      %v698 = vsel %vm426, %v649, 0
      %v701 = vsel %vm426, %v650, 0
      %v704 = vsel %vm426, %v651, 0
      %706 = vmatprep.subr.bf16.mxu0 0
      %707 = vmatpush1.bf16.msra.mxu0 0
      %708 = vmatprep.subr.bf16.mxu0 0
      %709 = vmatpush1.bf16.msra.mxu0 0
      %710 = vmatprep.subr.bf16.mxu0 0
      %711 = vmatpush1.bf16.msra.mxu0 0
      %712 = vmatprep.subr.bf16.mxu0 0
      %713 = vmatpush1.bf16.msra.mxu0 0
      %714 = vmatprep.subr.bf16.mxu0 0
      %715 = vmatpush1.bf16.msra.mxu0 0
      %716 = vmatprep.subr.bf16.mxu0 0
      %717 = vmatpush1.bf16.msra.mxu0 0
      %718 = vmatprep.subr.bf16.mxu0 0
      %719 = vmatpush1.bf16.msra.mxu0 0
      %720 = vmatprep.subr.bf16.mxu0 0
      %721 = vmatpush1.bf16.msra.mxu0 %v656
      %722 = vmatprep.subr.bf16.mxu0 0
      %723 = vmatpush2.bf16.msra.mxu0 0
      %724 = vmatprep.subr.bf16.mxu0 0
      %725 = vmatpush2.bf16.msra.mxu0 0
      %726 = vmatprep.subr.bf16.mxu0 0
      %727 = vmatpush2.bf16.msra.mxu0 0
      %728 = vmatprep.subr.bf16.mxu0 0
      %729 = vmatpush2.bf16.msra.mxu0 0
      %730 = vmatprep.subr.bf16.mxu0 0
      %731 = vmatpush2.bf16.msra.mxu0 0
      %732 = vmatprep.subr.bf16.mxu0 0
      %733 = vmatpush2.bf16.msra.mxu0 0
      %734 = vmatprep.subr.bf16.mxu0 0
      %735 = vmatpush2.bf16.msra.mxu0 0
      %736 = vmatprep.subr.bf16.mxu0 0
      %737 = vmatpush2.bf16.msra.mxu0 0
      %738 = vmatprep.mubr.bf16.mxu0 0
      %739 = vmatmul.mubr.bf16.gmra.mxu0 %v659
      %v740 = vpop.f32.mrf.mxu0
      %v741 = vadd.f32 0.0, %v740
      %v742 = vpop.f32.mrf.mxu0
      %v743 = vpop.f32.mrf.mxu0
      %v744 = vadd.f32 0.0, %v743
      %v745 = vpop.f32.mrf.mxu0
      %746 = vmatprep.mubr.bf16.mxu0 0
      %747 = vmatmul.mubr.bf16.gmra.mxu0 %v662
      %v748 = vpop.f32.mrf.mxu0
      %v749 = vadd.f32 0.0, %v748
      %v750 = vpop.f32.mrf.mxu0
      %v751 = vpop.f32.mrf.mxu0
      %v752 = vadd.f32 0.0, %v751
      %v753 = vpop.f32.mrf.mxu0
      %754 = vmatprep.mubr.bf16.mxu0 0
      %755 = vmatmul.mubr.bf16.gmra.mxu0 %v665
      %v756 = vpop.f32.mrf.mxu0
      %v757 = vadd.f32 0.0, %v756
      %v758 = vpop.f32.mrf.mxu0
      %v759 = vpop.f32.mrf.mxu0
      %v760 = vadd.f32 0.0, %v759
      %v761 = vpop.f32.mrf.mxu0
      %762 = vmatprep.mubr.bf16.mxu0 0
      %763 = vmatmul.mubr.bf16.gmra.mxu0 %v668
      %v764 = vpop.f32.mrf.mxu0
      %v765 = vadd.f32 0.0, %v764
      %v766 = vpop.f32.mrf.mxu0
      %v767 = vpop.f32.mrf.mxu0
      %v768 = vadd.f32 0.0, %v767
      %v769 = vpop.f32.mrf.mxu0
      %770 = vmatprep.mubr.bf16.mxu0 0
      %771 = vmatmul.mubr.bf16.gmra.mxu0 %v671
      %v772 = vpop.f32.mrf.mxu0
      %v773 = vadd.f32 0.0, %v772
      %v774 = vpop.f32.mrf.mxu0
      %v775 = vpop.f32.mrf.mxu0
      %v776 = vadd.f32 0.0, %v775
      %v777 = vpop.f32.mrf.mxu0
      %778 = vmatprep.mubr.bf16.mxu0 0
      %779 = vmatmul.mubr.bf16.gmra.mxu0 %v674
      %v780 = vpop.f32.mrf.mxu0
      %v781 = vadd.f32 0.0, %v780
      %v782 = vpop.f32.mrf.mxu0
      %v783 = vpop.f32.mrf.mxu0
      %v784 = vadd.f32 0.0, %v783
      %v785 = vpop.f32.mrf.mxu0
      %786 = vmatprep.mubr.bf16.mxu0 0
      %787 = vmatmul.mubr.bf16.gmra.mxu0 %v677
      %v788 = vpop.f32.mrf.mxu0
      %v789 = vadd.f32 0.0, %v788
      %v790 = vpop.f32.mrf.mxu0
      %v791 = vpop.f32.mrf.mxu0
      %v792 = vadd.f32 0.0, %v791
      %v793 = vpop.f32.mrf.mxu0
      %794 = vmatprep.mubr.bf16.mxu0 0
      %795 = vmatmul.mubr.bf16.gmra.mxu0 %v680
      %v796 = vpop.f32.mrf.mxu0
      %v797 = vadd.f32 0.0, %v796
      %v798 = vpop.f32.mrf.mxu0
      %v799 = vpop.f32.mrf.mxu0
      %v800 = vadd.f32 0.0, %v799
      %v801 = vpop.f32.mrf.mxu0
      %802 = vmatprep.mubr.bf16.mxu0 0
      %803 = vmatmul.mubr.bf16.gmra.mxu0 %v683
      %v804 = vpop.f32.mrf.mxu0
      %v805 = vadd.f32 0.0, %v804
      %v806 = vpop.f32.mrf.mxu0
      %v807 = vpop.f32.mrf.mxu0
      %v808 = vadd.f32 0.0, %v807
      %v809 = vpop.f32.mrf.mxu0
      %810 = vmatprep.mubr.bf16.mxu0 0
      %811 = vmatmul.mubr.bf16.gmra.mxu0 %v686
      %v812 = vpop.f32.mrf.mxu0
      %v813 = vadd.f32 0.0, %v812
      %v814 = vpop.f32.mrf.mxu0
      %v815 = vpop.f32.mrf.mxu0
      %v816 = vadd.f32 0.0, %v815
      %v817 = vpop.f32.mrf.mxu0
      %818 = vmatprep.mubr.bf16.mxu0 0
      %819 = vmatmul.mubr.bf16.gmra.mxu0 %v689
      %v820 = vpop.f32.mrf.mxu0
      %v821 = vadd.f32 0.0, %v820
      %v822 = vpop.f32.mrf.mxu0
      %v823 = vpop.f32.mrf.mxu0
      %v824 = vadd.f32 0.0, %v823
      %v825 = vpop.f32.mrf.mxu0
      %826 = vmatprep.mubr.bf16.mxu0 0
      %827 = vmatmul.mubr.bf16.gmra.mxu0 %v692
      %v828 = vpop.f32.mrf.mxu0
      %v829 = vadd.f32 0.0, %v828
      %v830 = vpop.f32.mrf.mxu0
      %v831 = vpop.f32.mrf.mxu0
      %v832 = vadd.f32 0.0, %v831
      %v833 = vpop.f32.mrf.mxu0
      %834 = vmatprep.mubr.bf16.mxu0 0
      %835 = vmatmul.mubr.bf16.gmra.mxu0 %v695
      %v836 = vpop.f32.mrf.mxu0
      %v837 = vadd.f32 0.0, %v836
      %v838 = vpop.f32.mrf.mxu0
      %v839 = vpop.f32.mrf.mxu0
      %v840 = vadd.f32 0.0, %v839
      %v841 = vpop.f32.mrf.mxu0
      %842 = vmatprep.mubr.bf16.mxu0 0
      %843 = vmatmul.mubr.bf16.gmra.mxu0 %v698
      %v844 = vpop.f32.mrf.mxu0
      %v845 = vadd.f32 0.0, %v844
      %v846 = vpop.f32.mrf.mxu0
      %v847 = vpop.f32.mrf.mxu0
      %v848 = vadd.f32 0.0, %v847
      %v849 = vpop.f32.mrf.mxu0
      %850 = vmatprep.mubr.bf16.mxu0 0
      %851 = vmatmul.mubr.bf16.gmra.mxu0 %v701
      %v852 = vpop.f32.mrf.mxu0
      %v853 = vadd.f32 0.0, %v852
      %v854 = vpop.f32.mrf.mxu0
      %v855 = vpop.f32.mrf.mxu0
      %v856 = vadd.f32 0.0, %v855
      %v857 = vpop.f32.mrf.mxu0
      %858 = vmatprep.mubr.bf16.mxu0 0
      %859 = vmatmul.mubr.bf16.gmra.mxu0 %v704
      %v860 = vpop.f32.mrf.mxu0
      %v861 = vadd.f32 0.0, %v860
      %v862 = vpop.f32.mrf.mxu0
      %v863 = vpop.f32.mrf.mxu0
      %v864 = vadd.f32 0.0, %v863
      %v865 = vpop.f32.mrf.mxu0
      %866 = vdwg.mxu0
      %v868 = vsel %vm426, %v399, 0
      %870 = vmatprep.subr.bf16.mxu0 0
      %871 = vmatpush1.bf16.xpose.msra.mxu0 0
      %872 = vmatprep.subr.bf16.mxu0 0
      %873 = vmatpush1.bf16.xpose.msra.mxu0 0
      %874 = vmatprep.subr.bf16.mxu0 0
      %875 = vmatpush1.bf16.xpose.msra.mxu0 0
      %876 = vmatprep.subr.bf16.mxu0 0
      %877 = vmatpush1.bf16.xpose.msra.mxu0 0
      %878 = vmatprep.subr.bf16.mxu0 0
      %879 = vmatpush1.bf16.xpose.msra.mxu0 0
      %880 = vmatprep.subr.bf16.mxu0 0
      %881 = vmatpush1.bf16.xpose.msra.mxu0 0
      %882 = vmatprep.subr.bf16.mxu0 0
      %883 = vmatpush1.bf16.xpose.msra.mxu0 %v662
      %884 = vmatprep.subr.bf16.mxu0 0
      %885 = vmatpush1.bf16.xpose.msra.mxu0 %v659
      %886 = vmatprep.subr.bf16.mxu0 0
      %887 = vmatpush2.bf16.xpose.msra.mxu0 0
      %888 = vmatprep.subr.bf16.mxu0 0
      %889 = vmatpush2.bf16.xpose.msra.mxu0 0
      %890 = vmatprep.subr.bf16.mxu0 0
      %891 = vmatpush2.bf16.xpose.msra.mxu0 0
      %892 = vmatprep.subr.bf16.mxu0 0
      %893 = vmatpush2.bf16.xpose.msra.mxu0 0
      %894 = vmatprep.subr.bf16.mxu0 0
      %895 = vmatpush2.bf16.xpose.msra.mxu0 0
      %896 = vmatprep.subr.bf16.mxu0 0
      %897 = vmatpush2.bf16.xpose.msra.mxu0 0
      %898 = vmatprep.subr.bf16.mxu0 0
      %899 = vmatpush2.bf16.xpose.msra.mxu0 0
      %900 = vmatprep.subr.bf16.mxu0 0
      %901 = vmatpush2.bf16.xpose.msra.mxu0 0
      %902 = vmatprep.mubr.bf16.mxu0 0
      %903 = vmatmul.mubr.bf16.gmra.mxu0 %v868
      %v904 = vpop.f32.mrf.mxu0
      %v905 = vadd.f32 0.0, %v904
      %v906 = vpop.f32.mrf.mxu0
      %v907 = vpop.f32.mrf.mxu0
      %v908 = vpop.f32.mrf.mxu0
      %909 = vdwg.mxu0
      %910 = vmatprep.subr.bf16.mxu0 0
      %911 = vmatpush1.bf16.xpose.msra.mxu0 0
      %912 = vmatprep.subr.bf16.mxu0 0
      %913 = vmatpush1.bf16.xpose.msra.mxu0 0
      %914 = vmatprep.subr.bf16.mxu0 0
      %915 = vmatpush1.bf16.xpose.msra.mxu0 0
      %916 = vmatprep.subr.bf16.mxu0 0
      %917 = vmatpush1.bf16.xpose.msra.mxu0 0
      %918 = vmatprep.subr.bf16.mxu0 0
      %919 = vmatpush1.bf16.xpose.msra.mxu0 0
      %920 = vmatprep.subr.bf16.mxu0 0
      %921 = vmatpush1.bf16.xpose.msra.mxu0 0
      %922 = vmatprep.subr.bf16.mxu0 0
      %923 = vmatpush1.bf16.xpose.msra.mxu0 %v668
      %924 = vmatprep.subr.bf16.mxu0 0
      %925 = vmatpush1.bf16.xpose.msra.mxu0 %v665
      %926 = vmatprep.subr.bf16.mxu0 0
      %927 = vmatpush2.bf16.xpose.msra.mxu0 0
      %928 = vmatprep.subr.bf16.mxu0 0
      %929 = vmatpush2.bf16.xpose.msra.mxu0 0
      %930 = vmatprep.subr.bf16.mxu0 0
      %931 = vmatpush2.bf16.xpose.msra.mxu0 0
      %932 = vmatprep.subr.bf16.mxu0 0
      %933 = vmatpush2.bf16.xpose.msra.mxu0 0
      %934 = vmatprep.subr.bf16.mxu0 0
      %935 = vmatpush2.bf16.xpose.msra.mxu0 0
      %936 = vmatprep.subr.bf16.mxu0 0
      %937 = vmatpush2.bf16.xpose.msra.mxu0 0
      %938 = vmatprep.subr.bf16.mxu0 0
      %939 = vmatpush2.bf16.xpose.msra.mxu0 0
      %940 = vmatprep.subr.bf16.mxu0 0
      %941 = vmatpush2.bf16.xpose.msra.mxu0 0
      %942 = vmatprep.mubr.bf16.mxu0 0
      %943 = vmatmul.mubr.bf16.gmra.mxu0 %v868
      %v944 = vpop.f32.mrf.mxu0
      %v945 = vadd.f32 0.0, %v944
      %v946 = vpop.f32.mrf.mxu0
      %v947 = vpop.f32.mrf.mxu0
      %v948 = vpop.f32.mrf.mxu0
      %949 = vdwg.mxu0
      %950 = vmatprep.subr.bf16.mxu0 0
      %951 = vmatpush1.bf16.xpose.msra.mxu0 0
      %952 = vmatprep.subr.bf16.mxu0 0
      %953 = vmatpush1.bf16.xpose.msra.mxu0 0
      %954 = vmatprep.subr.bf16.mxu0 0
      %955 = vmatpush1.bf16.xpose.msra.mxu0 0
      %956 = vmatprep.subr.bf16.mxu0 0
      %957 = vmatpush1.bf16.xpose.msra.mxu0 0
      %958 = vmatprep.subr.bf16.mxu0 0
      %959 = vmatpush1.bf16.xpose.msra.mxu0 0
      %960 = vmatprep.subr.bf16.mxu0 0
      %961 = vmatpush1.bf16.xpose.msra.mxu0 0
      %962 = vmatprep.subr.bf16.mxu0 0
      %963 = vmatpush1.bf16.xpose.msra.mxu0 %v674
      %964 = vmatprep.subr.bf16.mxu0 0
      %965 = vmatpush1.bf16.xpose.msra.mxu0 %v671
      %966 = vmatprep.subr.bf16.mxu0 0
      %967 = vmatpush2.bf16.xpose.msra.mxu0 0
      %968 = vmatprep.subr.bf16.mxu0 0
      %969 = vmatpush2.bf16.xpose.msra.mxu0 0
      %970 = vmatprep.subr.bf16.mxu0 0
      %971 = vmatpush2.bf16.xpose.msra.mxu0 0
      %972 = vmatprep.subr.bf16.mxu0 0
      %973 = vmatpush2.bf16.xpose.msra.mxu0 0
      %974 = vmatprep.subr.bf16.mxu0 0
      %975 = vmatpush2.bf16.xpose.msra.mxu0 0
      %976 = vmatprep.subr.bf16.mxu0 0
      %977 = vmatpush2.bf16.xpose.msra.mxu0 0
      %978 = vmatprep.subr.bf16.mxu0 0
      %979 = vmatpush2.bf16.xpose.msra.mxu0 0
      %980 = vmatprep.subr.bf16.mxu0 0
      %981 = vmatpush2.bf16.xpose.msra.mxu0 0
      %982 = vmatprep.mubr.bf16.mxu0 0
      %983 = vmatmul.mubr.bf16.gmra.mxu0 %v868
      %v984 = vpop.f32.mrf.mxu0
      %v985 = vadd.f32 0.0, %v984
      %v986 = vpop.f32.mrf.mxu0
      %v987 = vpop.f32.mrf.mxu0
      %v988 = vpop.f32.mrf.mxu0
      %989 = vdwg.mxu0
      %990 = vmatprep.subr.bf16.mxu0 0
      %991 = vmatpush1.bf16.xpose.msra.mxu0 0
      %992 = vmatprep.subr.bf16.mxu0 0
      %993 = vmatpush1.bf16.xpose.msra.mxu0 0
      %994 = vmatprep.subr.bf16.mxu0 0
      %995 = vmatpush1.bf16.xpose.msra.mxu0 0
      %996 = vmatprep.subr.bf16.mxu0 0
      %997 = vmatpush1.bf16.xpose.msra.mxu0 0
      %998 = vmatprep.subr.bf16.mxu0 0
      %999 = vmatpush1.bf16.xpose.msra.mxu0 0
      %1000 = vmatprep.subr.bf16.mxu0 0
      %1001 = vmatpush1.bf16.xpose.msra.mxu0 0
      %1002 = vmatprep.subr.bf16.mxu0 0
      %1003 = vmatpush1.bf16.xpose.msra.mxu0 %v680
      %1004 = vmatprep.subr.bf16.mxu0 0
      %1005 = vmatpush1.bf16.xpose.msra.mxu0 %v677
      %1006 = vmatprep.subr.bf16.mxu0 0
      %1007 = vmatpush2.bf16.xpose.msra.mxu0 0
      %1008 = vmatprep.subr.bf16.mxu0 0
      %1009 = vmatpush2.bf16.xpose.msra.mxu0 0
      %1010 = vmatprep.subr.bf16.mxu0 0
      %1011 = vmatpush2.bf16.xpose.msra.mxu0 0
      %1012 = vmatprep.subr.bf16.mxu0 0
      %1013 = vmatpush2.bf16.xpose.msra.mxu0 0
      %1014 = vmatprep.subr.bf16.mxu0 0
      %1015 = vmatpush2.bf16.xpose.msra.mxu0 0
      %1016 = vmatprep.subr.bf16.mxu0 0
      %1017 = vmatpush2.bf16.xpose.msra.mxu0 0
      %1018 = vmatprep.subr.bf16.mxu0 0
      %1019 = vmatpush2.bf16.xpose.msra.mxu0 0
      %1020 = vmatprep.subr.bf16.mxu0 0
      %1021 = vmatpush2.bf16.xpose.msra.mxu0 0
      %1022 = vmatprep.mubr.bf16.mxu0 0
      %1023 = vmatmul.mubr.bf16.gmra.mxu0 %v868
      %v1024 = vpop.f32.mrf.mxu0
      %v1025 = vadd.f32 0.0, %v1024
      %v1026 = vpop.f32.mrf.mxu0
      %v1027 = vpop.f32.mrf.mxu0
      %v1028 = vpop.f32.mrf.mxu0
      %1029 = vdwg.mxu0
      %1030 = vmatprep.subr.bf16.mxu0 0
      %1031 = vmatpush1.bf16.xpose.msra.mxu0 0
      %1032 = vmatprep.subr.bf16.mxu0 0
      %1033 = vmatpush1.bf16.xpose.msra.mxu0 0
      %1034 = vmatprep.subr.bf16.mxu0 0
      %1035 = vmatpush1.bf16.xpose.msra.mxu0 0
      %1036 = vmatprep.subr.bf16.mxu0 0
      %1037 = vmatpush1.bf16.xpose.msra.mxu0 0
      %1038 = vmatprep.subr.bf16.mxu0 0
      %1039 = vmatpush1.bf16.xpose.msra.mxu0 0
      %1040 = vmatprep.subr.bf16.mxu0 0
      %1041 = vmatpush1.bf16.xpose.msra.mxu0 0
      %1042 = vmatprep.subr.bf16.mxu0 0
      %1043 = vmatpush1.bf16.xpose.msra.mxu0 %v686
      %1044 = vmatprep.subr.bf16.mxu0 0
      %1045 = vmatpush1.bf16.xpose.msra.mxu0 %v683
      %1046 = vmatprep.subr.bf16.mxu0 0
      %1047 = vmatpush2.bf16.xpose.msra.mxu0 0
      %1048 = vmatprep.subr.bf16.mxu0 0
      %1049 = vmatpush2.bf16.xpose.msra.mxu0 0
      %1050 = vmatprep.subr.bf16.mxu0 0
      %1051 = vmatpush2.bf16.xpose.msra.mxu0 0
      %1052 = vmatprep.subr.bf16.mxu0 0
      %1053 = vmatpush2.bf16.xpose.msra.mxu0 0
      %1054 = vmatprep.subr.bf16.mxu0 0
      %1055 = vmatpush2.bf16.xpose.msra.mxu0 0
      %1056 = vmatprep.subr.bf16.mxu0 0
      %1057 = vmatpush2.bf16.xpose.msra.mxu0 0
      %1058 = vmatprep.subr.bf16.mxu0 0
      %1059 = vmatpush2.bf16.xpose.msra.mxu0 0
      %1060 = vmatprep.subr.bf16.mxu0 0
      %1061 = vmatpush2.bf16.xpose.msra.mxu0 0
      %1062 = vmatprep.mubr.bf16.mxu0 0
      %1063 = vmatmul.mubr.bf16.gmra.mxu0 %v868
      %v1064 = vpop.f32.mrf.mxu0
      %v1065 = vadd.f32 0.0, %v1064
      %v1066 = vpop.f32.mrf.mxu0
      %v1067 = vpop.f32.mrf.mxu0
      %v1068 = vpop.f32.mrf.mxu0
      %1069 = vdwg.mxu0
      %1070 = vmatprep.subr.bf16.mxu0 0
      %1071 = vmatpush1.bf16.xpose.msra.mxu0 0
      %1072 = vmatprep.subr.bf16.mxu0 0
      %1073 = vmatpush1.bf16.xpose.msra.mxu0 0
      %1074 = vmatprep.subr.bf16.mxu0 0
      %1075 = vmatpush1.bf16.xpose.msra.mxu0 0
      %1076 = vmatprep.subr.bf16.mxu0 0
      %1077 = vmatpush1.bf16.xpose.msra.mxu0 0
      %1078 = vmatprep.subr.bf16.mxu0 0
      %1079 = vmatpush1.bf16.xpose.msra.mxu0 0
      %1080 = vmatprep.subr.bf16.mxu0 0
      %1081 = vmatpush1.bf16.xpose.msra.mxu0 0
      %1082 = vmatprep.subr.bf16.mxu0 0
      %1083 = vmatpush1.bf16.xpose.msra.mxu0 %v692
      %1084 = vmatprep.subr.bf16.mxu0 0
      %1085 = vmatpush1.bf16.xpose.msra.mxu0 %v689
      %1086 = vmatprep.subr.bf16.mxu0 0
      %1087 = vmatpush2.bf16.xpose.msra.mxu0 0
      %1088 = vmatprep.subr.bf16.mxu0 0
      %1089 = vmatpush2.bf16.xpose.msra.mxu0 0
      %1090 = vmatprep.subr.bf16.mxu0 0
      %1091 = vmatpush2.bf16.xpose.msra.mxu0 0
      %1092 = vmatprep.subr.bf16.mxu0 0
      %1093 = vmatpush2.bf16.xpose.msra.mxu0 0
      %1094 = vmatprep.subr.bf16.mxu0 0
      %1095 = vmatpush2.bf16.xpose.msra.mxu0 0
      %1096 = vmatprep.subr.bf16.mxu0 0
      %1097 = vmatpush2.bf16.xpose.msra.mxu0 0
      %1098 = vmatprep.subr.bf16.mxu0 0
      %1099 = vmatpush2.bf16.xpose.msra.mxu0 0
      %1100 = vmatprep.subr.bf16.mxu0 0
      %1101 = vmatpush2.bf16.xpose.msra.mxu0 0
      %1102 = vmatprep.mubr.bf16.mxu0 0
      %1103 = vmatmul.mubr.bf16.gmra.mxu0 %v868
      %v1104 = vpop.f32.mrf.mxu0
      %v1105 = vadd.f32 0.0, %v1104
      %v1106 = vpop.f32.mrf.mxu0
      %v1107 = vpop.f32.mrf.mxu0
      %v1108 = vpop.f32.mrf.mxu0
      %1109 = vdwg.mxu0
      %1110 = vmatprep.subr.bf16.mxu0 0
      %1111 = vmatpush1.bf16.xpose.msra.mxu0 0
      %1112 = vmatprep.subr.bf16.mxu0 0
      %1113 = vmatpush1.bf16.xpose.msra.mxu0 0
      %1114 = vmatprep.subr.bf16.mxu0 0
      %1115 = vmatpush1.bf16.xpose.msra.mxu0 0
      %1116 = vmatprep.subr.bf16.mxu0 0
      %1117 = vmatpush1.bf16.xpose.msra.mxu0 0
      %1118 = vmatprep.subr.bf16.mxu0 0
      %1119 = vmatpush1.bf16.xpose.msra.mxu0 0
      %1120 = vmatprep.subr.bf16.mxu0 0
      %1121 = vmatpush1.bf16.xpose.msra.mxu0 0
      %1122 = vmatprep.subr.bf16.mxu0 0
      %1123 = vmatpush1.bf16.xpose.msra.mxu0 %v698
      %1124 = vmatprep.subr.bf16.mxu0 0
      %1125 = vmatpush1.bf16.xpose.msra.mxu0 %v695
      %1126 = vmatprep.subr.bf16.mxu0 0
      %1127 = vmatpush2.bf16.xpose.msra.mxu0 0
      %1128 = vmatprep.subr.bf16.mxu0 0
      %1129 = vmatpush2.bf16.xpose.msra.mxu0 0
      %1130 = vmatprep.subr.bf16.mxu0 0
      %1131 = vmatpush2.bf16.xpose.msra.mxu0 0
      %1132 = vmatprep.subr.bf16.mxu0 0
      %1133 = vmatpush2.bf16.xpose.msra.mxu0 0
      %1134 = vmatprep.subr.bf16.mxu0 0
      %1135 = vmatpush2.bf16.xpose.msra.mxu0 0
      %1136 = vmatprep.subr.bf16.mxu0 0
      %1137 = vmatpush2.bf16.xpose.msra.mxu0 0
      %1138 = vmatprep.subr.bf16.mxu0 0
      %1139 = vmatpush2.bf16.xpose.msra.mxu0 0
      %1140 = vmatprep.subr.bf16.mxu0 0
      %1141 = vmatpush2.bf16.xpose.msra.mxu0 0
      %1142 = vmatprep.mubr.bf16.mxu0 0
      %1143 = vmatmul.mubr.bf16.gmra.mxu0 %v868
      %v1144 = vpop.f32.mrf.mxu0
      %v1145 = vadd.f32 0.0, %v1144
      %v1146 = vpop.f32.mrf.mxu0
      %v1147 = vpop.f32.mrf.mxu0
      %v1148 = vpop.f32.mrf.mxu0
      %1149 = vdwg.mxu0
      %1150 = vmatprep.subr.bf16.mxu0 0
      %1151 = vmatpush1.bf16.xpose.msra.mxu0 0
      %1152 = vmatprep.subr.bf16.mxu0 0
      %1153 = vmatpush1.bf16.xpose.msra.mxu0 0
      %1154 = vmatprep.subr.bf16.mxu0 0
      %1155 = vmatpush1.bf16.xpose.msra.mxu0 0
      %1156 = vmatprep.subr.bf16.mxu0 0
      %1157 = vmatpush1.bf16.xpose.msra.mxu0 0
      %1158 = vmatprep.subr.bf16.mxu0 0
      %1159 = vmatpush1.bf16.xpose.msra.mxu0 0
      %1160 = vmatprep.subr.bf16.mxu0 0
      %1161 = vmatpush1.bf16.xpose.msra.mxu0 0
      %1162 = vmatprep.subr.bf16.mxu0 0
      %1163 = vmatpush1.bf16.xpose.msra.mxu0 %v704
      %1164 = vmatprep.subr.bf16.mxu0 0
      %1165 = vmatpush1.bf16.xpose.msra.mxu0 %v701
      %1166 = vmatprep.subr.bf16.mxu0 0
      %1167 = vmatpush2.bf16.xpose.msra.mxu0 0
      %1168 = vmatprep.subr.bf16.mxu0 0
      %1169 = vmatpush2.bf16.xpose.msra.mxu0 0
      %1170 = vmatprep.subr.bf16.mxu0 0
      %1171 = vmatpush2.bf16.xpose.msra.mxu0 0
      %1172 = vmatprep.subr.bf16.mxu0 0
      %1173 = vmatpush2.bf16.xpose.msra.mxu0 0
      %1174 = vmatprep.subr.bf16.mxu0 0
      %1175 = vmatpush2.bf16.xpose.msra.mxu0 0
      %1176 = vmatprep.subr.bf16.mxu0 0
      %1177 = vmatpush2.bf16.xpose.msra.mxu0 0
      %1178 = vmatprep.subr.bf16.mxu0 0
      %1179 = vmatpush2.bf16.xpose.msra.mxu0 0
      %1180 = vmatprep.subr.bf16.mxu0 0
      %1181 = vmatpush2.bf16.xpose.msra.mxu0 0
      %1182 = vmatprep.mubr.bf16.mxu0 0
      %1183 = vmatmul.mubr.bf16.gmra.mxu0 %v868
      %v1184 = vpop.f32.mrf.mxu0
      %v1185 = vadd.f32 0.0, %v1184
      %v1186 = vpop.f32.mrf.mxu0
      %v1187 = vpop.f32.mrf.mxu0
      %v1188 = vpop.f32.mrf.mxu0
      %1189 = vdwg.mxu0
      %1191 = vset.pattern.permute.xlu0 0
      %1192 = vperm.xlu0 %1191, %v741
      %v1193 = vpop.permute.xlu0 %1192
      %1196 = vset.pattern.permute.xlu0 0
      %1197 = vperm.xlu0 %1196, %v744
      %v1198 = vpop.permute.xlu0 %1197
      %1201 = vset.pattern.permute.xlu0 0
      %1202 = vperm.xlu0 %1201, %v749
      %v1203 = vpop.permute.xlu0 %1202
      %1206 = vset.pattern.permute.xlu0 0
      %1207 = vperm.xlu0 %1206, %v752
      %v1208 = vpop.permute.xlu0 %1207
      %1211 = vset.pattern.permute.xlu0 0
      %1212 = vperm.xlu0 %1211, %v757
      %v1213 = vpop.permute.xlu0 %1212
      %1216 = vset.pattern.permute.xlu0 0
      %1217 = vperm.xlu0 %1216, %v760
      %v1218 = vpop.permute.xlu0 %1217
      %1221 = vset.pattern.permute.xlu0 0
      %1222 = vperm.xlu0 %1221, %v765
      %v1223 = vpop.permute.xlu0 %1222
      %1226 = vset.pattern.permute.xlu0 0
      %1227 = vperm.xlu0 %1226, %v768
      %v1228 = vpop.permute.xlu0 %1227
      %1231 = vset.pattern.permute.xlu0 0
      %1232 = vperm.xlu0 %1231, %v773
      %v1233 = vpop.permute.xlu0 %1232
      %1236 = vset.pattern.permute.xlu0 0
      %1237 = vperm.xlu0 %1236, %v776
      %v1238 = vpop.permute.xlu0 %1237
      %1241 = vset.pattern.permute.xlu0 0
      %1242 = vperm.xlu0 %1241, %v781
      %v1243 = vpop.permute.xlu0 %1242
      %1246 = vset.pattern.permute.xlu0 0
      %1247 = vperm.xlu0 %1246, %v784
      %v1248 = vpop.permute.xlu0 %1247
      %1251 = vset.pattern.permute.xlu0 0
      %1252 = vperm.xlu0 %1251, %v789
      %v1253 = vpop.permute.xlu0 %1252
      %1256 = vset.pattern.permute.xlu0 0
      %1257 = vperm.xlu0 %1256, %v792
      %v1258 = vpop.permute.xlu0 %1257
      %1261 = vset.pattern.permute.xlu0 0
      %1262 = vperm.xlu0 %1261, %v797
      %v1263 = vpop.permute.xlu0 %1262
      %1266 = vset.pattern.permute.xlu0 0
      %1267 = vperm.xlu0 %1266, %v800
      %v1268 = vpop.permute.xlu0 %1267
      %1271 = vset.pattern.permute.xlu0 0
      %1272 = vperm.xlu0 %1271, %v805
      %v1273 = vpop.permute.xlu0 %1272
      %1276 = vset.pattern.permute.xlu0 0
      %1277 = vperm.xlu0 %1276, %v808
      %v1278 = vpop.permute.xlu0 %1277
      %1281 = vset.pattern.permute.xlu0 0
      %1282 = vperm.xlu0 %1281, %v813
      %v1283 = vpop.permute.xlu0 %1282
      %1286 = vset.pattern.permute.xlu0 0
      %1287 = vperm.xlu0 %1286, %v816
      %v1288 = vpop.permute.xlu0 %1287
      %1291 = vset.pattern.permute.xlu0 0
      %1292 = vperm.xlu0 %1291, %v821
      %v1293 = vpop.permute.xlu0 %1292
      %1296 = vset.pattern.permute.xlu0 0
      %1297 = vperm.xlu0 %1296, %v824
      %v1298 = vpop.permute.xlu0 %1297
      %1301 = vset.pattern.permute.xlu0 0
      %1302 = vperm.xlu0 %1301, %v829
      %v1303 = vpop.permute.xlu0 %1302
      %1306 = vset.pattern.permute.xlu0 0
      %1307 = vperm.xlu0 %1306, %v832
      %v1308 = vpop.permute.xlu0 %1307
      %1311 = vset.pattern.permute.xlu0 0
      %1312 = vperm.xlu0 %1311, %v837
      %v1313 = vpop.permute.xlu0 %1312
      %1316 = vset.pattern.permute.xlu0 0
      %1317 = vperm.xlu0 %1316, %v840
      %v1318 = vpop.permute.xlu0 %1317
      %1321 = vset.pattern.permute.xlu0 0
      %1322 = vperm.xlu0 %1321, %v845
      %v1323 = vpop.permute.xlu0 %1322
      %1326 = vset.pattern.permute.xlu0 0
      %1327 = vperm.xlu0 %1326, %v848
      %v1328 = vpop.permute.xlu0 %1327
      %1331 = vset.pattern.permute.xlu0 0
      %1332 = vperm.xlu0 %1331, %v853
      %v1333 = vpop.permute.xlu0 %1332
      %1336 = vset.pattern.permute.xlu0 0
      %1337 = vperm.xlu0 %1336, %v856
      %v1338 = vpop.permute.xlu0 %1337
      %1341 = vset.pattern.permute.xlu0 0
      %1342 = vperm.xlu0 %1341, %v861
      %v1343 = vpop.permute.xlu0 %1342
      %1346 = vset.pattern.permute.xlu0 0
      %1347 = vperm.xlu0 %1346, %v864
      %v1348 = vpop.permute.xlu0 %1347
      %v1350 = vlaneseq
      %v1351 = vshrl.u32 %v1350, 7
      %v1352 = vsub.s32 0, %v1351
      %v1353 = vrot.slane %v905, %v1352
      %v1354 = vlaneseq
      %v1355 = vshrl.u32 %v1354, 7
      %v1356 = vsub.s32 0, %v1355
      %v1357 = vrot.slane %v945, %v1356
      %v1358 = vlaneseq
      %v1359 = vshrl.u32 %v1358, 7
      %v1360 = vsub.s32 0, %v1359
      %v1361 = vrot.slane %v985, %v1360
      %v1362 = vlaneseq
      %v1363 = vshrl.u32 %v1362, 7
      %v1364 = vsub.s32 0, %v1363
      %v1365 = vrot.slane %v1025, %v1364
      %v1366 = vlaneseq
      %v1367 = vshrl.u32 %v1366, 7
      %v1368 = vsub.s32 0, %v1367
      %v1369 = vrot.slane %v1065, %v1368
      %v1370 = vlaneseq
      %v1371 = vshrl.u32 %v1370, 7
      %v1372 = vsub.s32 0, %v1371
      %v1373 = vrot.slane %v1105, %v1372
      %v1374 = vlaneseq
      %v1375 = vshrl.u32 %v1374, 7
      %v1376 = vsub.s32 0, %v1375
      %v1377 = vrot.slane %v1145, %v1376
      %v1378 = vlaneseq
      %v1379 = vshrl.u32 %v1378, 7
      %v1380 = vsub.s32 0, %v1379
      %v1381 = vrot.slane %v1185, %v1380
      %v1382 = vadd.f32 %v1193, %v1353
      %v1383 = vadd.f32 %v1198, %v1353
      %v1384 = vadd.f32 %v1203, %v1353
      %v1385 = vadd.f32 %v1208, %v1353
      %v1386 = vadd.f32 %v1213, %v1357
      %v1387 = vadd.f32 %v1218, %v1357
      %v1388 = vadd.f32 %v1223, %v1357
      %v1389 = vadd.f32 %v1228, %v1357
      %v1390 = vadd.f32 %v1233, %v1361
      %v1391 = vadd.f32 %v1238, %v1361
      %v1392 = vadd.f32 %v1243, %v1361
      %v1393 = vadd.f32 %v1248, %v1361
      %v1394 = vadd.f32 %v1253, %v1365
      %v1395 = vadd.f32 %v1258, %v1365
      %v1396 = vadd.f32 %v1263, %v1365
      %v1397 = vadd.f32 %v1268, %v1365
      %v1398 = vadd.f32 %v1273, %v1369
      %v1399 = vadd.f32 %v1278, %v1369
      %v1400 = vadd.f32 %v1283, %v1369
      %v1401 = vadd.f32 %v1288, %v1369
      %v1402 = vadd.f32 %v1293, %v1373
      %v1403 = vadd.f32 %v1298, %v1373
      %v1404 = vadd.f32 %v1303, %v1373
      %v1405 = vadd.f32 %v1308, %v1373
      %v1406 = vadd.f32 %v1313, %v1377
      %v1407 = vadd.f32 %v1318, %v1377
      %v1408 = vadd.f32 %v1323, %v1377
      %v1409 = vadd.f32 %v1328, %v1377
      %v1410 = vadd.f32 %v1333, %v1381
      %v1411 = vadd.f32 %v1338, %v1381
      %v1412 = vadd.f32 %v1343, %v1381
      %v1413 = vadd.f32 %v1348, %v1381
      %vm1414 = vcmp.gt.f32.partialorder %v1382, 0.0
      %vm1415 = vcmp.gt.f32.partialorder %v1383, 0.0
      %vm1416 = vcmp.gt.f32.partialorder %v1384, 0.0
      %vm1417 = vcmp.gt.f32.partialorder %v1385, 0.0
      %vm1418 = vcmp.gt.f32.partialorder %v1386, 0.0
      %vm1419 = vcmp.gt.f32.partialorder %v1387, 0.0
      %vm1420 = vcmp.gt.f32.partialorder %v1388, 0.0
      %vm1421 = vcmp.gt.f32.partialorder %v1389, 0.0
      %vm1422 = vcmp.gt.f32.partialorder %v1390, 0.0
      %vm1423 = vcmp.gt.f32.partialorder %v1391, 0.0
      %vm1424 = vcmp.gt.f32.partialorder %v1392, 0.0
      %vm1425 = vcmp.gt.f32.partialorder %v1393, 0.0
      %vm1426 = vcmp.gt.f32.partialorder %v1394, 0.0
      %vm1427 = vcmp.gt.f32.partialorder %v1395, 0.0
      %vm1428 = vcmp.gt.f32.partialorder %v1396, 0.0
      %vm1429 = vcmp.gt.f32.partialorder %v1397, 0.0
      %vm1430 = vcmp.gt.f32.partialorder %v1398, 0.0
      %vm1431 = vcmp.gt.f32.partialorder %v1399, 0.0
      %vm1432 = vcmp.gt.f32.partialorder %v1400, 0.0
      %vm1433 = vcmp.gt.f32.partialorder %v1401, 0.0
      %vm1434 = vcmp.gt.f32.partialorder %v1402, 0.0
      %vm1435 = vcmp.gt.f32.partialorder %v1403, 0.0
      %vm1436 = vcmp.gt.f32.partialorder %v1404, 0.0
      %vm1437 = vcmp.gt.f32.partialorder %v1405, 0.0
      %vm1438 = vcmp.gt.f32.partialorder %v1406, 0.0
      %vm1439 = vcmp.gt.f32.partialorder %v1407, 0.0
      %vm1440 = vcmp.gt.f32.partialorder %v1408, 0.0
      %vm1441 = vcmp.gt.f32.partialorder %v1409, 0.0
      %vm1442 = vcmp.gt.f32.partialorder %v1410, 0.0
      %vm1443 = vcmp.gt.f32.partialorder %v1411, 0.0
      %vm1444 = vcmp.gt.f32.partialorder %v1412, 0.0
      %vm1445 = vcmp.gt.f32.partialorder %v1413, 0.0
      %v1446 = vmul.f32 %v1382, 0.2
      %v1447 = vmul.f32 %v1383, 0.2
      %v1448 = vmul.f32 %v1384, 0.2
      %v1449 = vmul.f32 %v1385, 0.2
      %v1450 = vmul.f32 %v1386, 0.2
      %v1451 = vmul.f32 %v1387, 0.2
      %v1452 = vmul.f32 %v1388, 0.2
      %v1453 = vmul.f32 %v1389, 0.2
      %v1454 = vmul.f32 %v1390, 0.2
      %v1455 = vmul.f32 %v1391, 0.2
      %v1456 = vmul.f32 %v1392, 0.2
      %v1457 = vmul.f32 %v1393, 0.2
      %v1458 = vmul.f32 %v1394, 0.2
      %v1459 = vmul.f32 %v1395, 0.2
      %v1460 = vmul.f32 %v1396, 0.2
      %v1461 = vmul.f32 %v1397, 0.2
      %v1462 = vmul.f32 %v1398, 0.2
      %v1463 = vmul.f32 %v1399, 0.2
      %v1464 = vmul.f32 %v1400, 0.2
      %v1465 = vmul.f32 %v1401, 0.2
      %v1466 = vmul.f32 %v1402, 0.2
      %v1467 = vmul.f32 %v1403, 0.2
      %v1468 = vmul.f32 %v1404, 0.2
      %v1469 = vmul.f32 %v1405, 0.2
      %v1470 = vmul.f32 %v1406, 0.2
      %v1471 = vmul.f32 %v1407, 0.2
      %v1472 = vmul.f32 %v1408, 0.2
      %v1473 = vmul.f32 %v1409, 0.2
      %v1474 = vmul.f32 %v1410, 0.2
      %v1475 = vmul.f32 %v1411, 0.2
      %v1476 = vmul.f32 %v1412, 0.2
      %v1477 = vmul.f32 %v1413, 0.2
      %v1478 = vsel %vm1414, %v1382, %v1446
      %v1479 = vsel %vm1415, %v1383, %v1447
      %v1480 = vsel %vm1416, %v1384, %v1448
      %v1481 = vsel %vm1417, %v1385, %v1449
      %v1482 = vsel %vm1418, %v1386, %v1450
      %v1483 = vsel %vm1419, %v1387, %v1451
      %v1484 = vsel %vm1420, %v1388, %v1452
      %v1485 = vsel %vm1421, %v1389, %v1453
      %v1486 = vsel %vm1422, %v1390, %v1454
      %v1487 = vsel %vm1423, %v1391, %v1455
      %v1488 = vsel %vm1424, %v1392, %v1456
      %v1489 = vsel %vm1425, %v1393, %v1457
      %v1490 = vsel %vm1426, %v1394, %v1458
      %v1491 = vsel %vm1427, %v1395, %v1459
      %v1492 = vsel %vm1428, %v1396, %v1460
      %v1493 = vsel %vm1429, %v1397, %v1461
      %v1494 = vsel %vm1430, %v1398, %v1462
      %v1495 = vsel %vm1431, %v1399, %v1463
      %v1496 = vsel %vm1432, %v1400, %v1464
      %v1497 = vsel %vm1433, %v1401, %v1465
      %v1498 = vsel %vm1434, %v1402, %v1466
      %v1499 = vsel %vm1435, %v1403, %v1467
      %v1500 = vsel %vm1436, %v1404, %v1468
      %v1501 = vsel %vm1437, %v1405, %v1469
      %v1502 = vsel %vm1438, %v1406, %v1470
      %v1503 = vsel %vm1439, %v1407, %v1471
      %v1504 = vsel %vm1440, %v1408, %v1472
      %v1505 = vsel %vm1441, %v1409, %v1473
      %v1506 = vsel %vm1442, %v1410, %v1474
      %v1507 = vsel %vm1443, %v1411, %v1475
      %v1508 = vsel %vm1444, %v1412, %v1476
      %v1509 = vsel %vm1445, %v1413, %v1477
      %v1510 = vadd.f32 %v1478, %v333
      %v1511 = vadd.f32 %v1479, %v334
      %v1512 = vadd.f32 %v1480, %v335
      %v1513 = vadd.f32 %v1481, %v336
      %v1514 = vadd.f32 %v1482, %v337
      %v1515 = vadd.f32 %v1483, %v338
      %v1516 = vadd.f32 %v1484, %v339
      %v1517 = vadd.f32 %v1485, %v340
      %v1518 = vadd.f32 %v1486, %v341
      %v1519 = vadd.f32 %v1487, %v342
      %v1520 = vadd.f32 %v1488, %v343
      %v1521 = vadd.f32 %v1489, %v344
      %v1522 = vadd.f32 %v1490, %v345
      %v1523 = vadd.f32 %v1491, %v346
      %v1524 = vadd.f32 %v1492, %v347
      %v1525 = vadd.f32 %v1493, %v348
      %v1526 = vadd.f32 %v1494, %v349
      %v1527 = vadd.f32 %v1495, %v350
      %v1528 = vadd.f32 %v1496, %v351
      %v1529 = vadd.f32 %v1497, %v352
      %v1530 = vadd.f32 %v1498, %v353
      %v1531 = vadd.f32 %v1499, %v354
      %v1532 = vadd.f32 %v1500, %v355
      %v1533 = vadd.f32 %v1501, %v356
      %v1534 = vadd.f32 %v1502, %v357
      %v1535 = vadd.f32 %v1503, %v358
      %v1536 = vadd.f32 %v1504, %v359
      %v1537 = vadd.f32 %v1505, %v360
      %v1538 = vadd.f32 %v1506, %v361
      %v1539 = vadd.f32 %v1507, %v362
      %v1540 = vadd.f32 %v1508, %v363
      %v1541 = vadd.f32 %v1509, %v364
      %vm1542 = vcmask 261120
      %v1543 = vsel %vm1542, %v1510, -inf
      %1544 = vmax.xlane.f32.xlu0 %v1543
      %v1545 = vpop.xlane.xlu0 %1544
      %v1546 = vsel %vm1542, %v1511, -inf
      %1547 = vmax.xlane.f32.xlu0 %v1546
      %v1548 = vpop.xlane.xlu0 %1547
      %v1549 = vsel %vm1542, %v1512, -inf
      %1550 = vmax.xlane.f32.xlu0 %v1549
      %v1551 = vpop.xlane.xlu0 %1550
      %v1552 = vsel %vm1542, %v1513, -inf
      %1553 = vmax.xlane.f32.xlu0 %v1552
      %v1554 = vpop.xlane.xlu0 %1553
      %v1555 = vsel %vm1542, %v1514, -inf
      %1556 = vmax.xlane.f32.xlu0 %v1555
      %v1557 = vpop.xlane.xlu0 %1556
      %v1558 = vsel %vm1542, %v1515, -inf
      %1559 = vmax.xlane.f32.xlu0 %v1558
      %v1560 = vpop.xlane.xlu0 %1559
      %v1561 = vsel %vm1542, %v1516, -inf
      %1562 = vmax.xlane.f32.xlu0 %v1561
      %v1563 = vpop.xlane.xlu0 %1562
      %v1564 = vsel %vm1542, %v1517, -inf
      %1565 = vmax.xlane.f32.xlu0 %v1564
      %v1566 = vpop.xlane.xlu0 %1565
      %v1567 = vsel %vm1542, %v1518, -inf
      %1568 = vmax.xlane.f32.xlu0 %v1567
      %v1569 = vpop.xlane.xlu0 %1568
      %v1570 = vsel %vm1542, %v1519, -inf
      %1571 = vmax.xlane.f32.xlu0 %v1570
      %v1572 = vpop.xlane.xlu0 %1571
      %v1573 = vsel %vm1542, %v1520, -inf
      %1574 = vmax.xlane.f32.xlu0 %v1573
      %v1575 = vpop.xlane.xlu0 %1574
      %v1576 = vsel %vm1542, %v1521, -inf
      %1577 = vmax.xlane.f32.xlu0 %v1576
      %v1578 = vpop.xlane.xlu0 %1577
      %v1579 = vsel %vm1542, %v1522, -inf
      %1580 = vmax.xlane.f32.xlu0 %v1579
      %v1581 = vpop.xlane.xlu0 %1580
      %v1582 = vsel %vm1542, %v1523, -inf
      %1583 = vmax.xlane.f32.xlu0 %v1582
      %v1584 = vpop.xlane.xlu0 %1583
      %v1585 = vsel %vm1542, %v1524, -inf
      %1586 = vmax.xlane.f32.xlu0 %v1585
      %v1587 = vpop.xlane.xlu0 %1586
      %v1588 = vsel %vm1542, %v1525, -inf
      %1589 = vmax.xlane.f32.xlu0 %v1588
      %v1590 = vpop.xlane.xlu0 %1589
      %v1591 = vsel %vm1542, %v1526, -inf
      %1592 = vmax.xlane.f32.xlu0 %v1591
      %v1593 = vpop.xlane.xlu0 %1592
      %v1594 = vsel %vm1542, %v1527, -inf
      %1595 = vmax.xlane.f32.xlu0 %v1594
      %v1596 = vpop.xlane.xlu0 %1595
      %v1597 = vsel %vm1542, %v1528, -inf
      %1598 = vmax.xlane.f32.xlu0 %v1597
      %v1599 = vpop.xlane.xlu0 %1598
      %v1600 = vsel %vm1542, %v1529, -inf
      %1601 = vmax.xlane.f32.xlu0 %v1600
      %v1602 = vpop.xlane.xlu0 %1601
      %v1603 = vsel %vm1542, %v1530, -inf
      %1604 = vmax.xlane.f32.xlu0 %v1603
      %v1605 = vpop.xlane.xlu0 %1604
      %v1606 = vsel %vm1542, %v1531, -inf
      %1607 = vmax.xlane.f32.xlu0 %v1606
      %v1608 = vpop.xlane.xlu0 %1607
      %v1609 = vsel %vm1542, %v1532, -inf
      %1610 = vmax.xlane.f32.xlu0 %v1609
      %v1611 = vpop.xlane.xlu0 %1610
      %v1612 = vsel %vm1542, %v1533, -inf
      %1613 = vmax.xlane.f32.xlu0 %v1612
      %v1614 = vpop.xlane.xlu0 %1613
      %v1615 = vsel %vm1542, %v1534, -inf
      %1616 = vmax.xlane.f32.xlu0 %v1615
      %v1617 = vpop.xlane.xlu0 %1616
      %v1618 = vsel %vm1542, %v1535, -inf
      %1619 = vmax.xlane.f32.xlu0 %v1618
      %v1620 = vpop.xlane.xlu0 %1619
      %v1621 = vsel %vm1542, %v1536, -inf
      %1622 = vmax.xlane.f32.xlu0 %v1621
      %v1623 = vpop.xlane.xlu0 %1622
      %v1624 = vsel %vm1542, %v1537, -inf
      %1625 = vmax.xlane.f32.xlu0 %v1624
      %v1626 = vpop.xlane.xlu0 %1625
      %v1627 = vsel %vm1542, %v1538, -inf
      %1628 = vmax.xlane.f32.xlu0 %v1627
      %v1629 = vpop.xlane.xlu0 %1628
      %v1630 = vsel %vm1542, %v1539, -inf
      %1631 = vmax.xlane.f32.xlu0 %v1630
      %v1632 = vpop.xlane.xlu0 %1631
      %v1633 = vsel %vm1542, %v1540, -inf
      %1634 = vmax.xlane.f32.xlu0 %v1633
      %v1635 = vpop.xlane.xlu0 %1634
      %v1636 = vsel %vm1542, %v1541, -inf
      %1637 = vmax.xlane.f32.xlu0 %v1636
      %v1638 = vpop.xlane.xlu0 %1637
      %v1639 = vsub.f32 %v1510, %v1545
      %v1640 = vsub.f32 %v1511, %v1548
      %v1641 = vsub.f32 %v1512, %v1551
      %v1642 = vsub.f32 %v1513, %v1554
      %v1643 = vsub.f32 %v1514, %v1557
      %v1644 = vsub.f32 %v1515, %v1560
      %v1645 = vsub.f32 %v1516, %v1563
      %v1646 = vsub.f32 %v1517, %v1566
      %v1647 = vsub.f32 %v1518, %v1569
      %v1648 = vsub.f32 %v1519, %v1572
      %v1649 = vsub.f32 %v1520, %v1575
      %v1650 = vsub.f32 %v1521, %v1578
      %v1651 = vsub.f32 %v1522, %v1581
      %v1652 = vsub.f32 %v1523, %v1584
      %v1653 = vsub.f32 %v1524, %v1587
      %v1654 = vsub.f32 %v1525, %v1590
      %v1655 = vsub.f32 %v1526, %v1593
      %v1656 = vsub.f32 %v1527, %v1596
      %v1657 = vsub.f32 %v1528, %v1599
      %v1658 = vsub.f32 %v1529, %v1602
      %v1659 = vsub.f32 %v1530, %v1605
      %v1660 = vsub.f32 %v1531, %v1608
      %v1661 = vsub.f32 %v1532, %v1611
      %v1662 = vsub.f32 %v1533, %v1614
      %v1663 = vsub.f32 %v1534, %v1617
      %v1664 = vsub.f32 %v1535, %v1620
      %v1665 = vsub.f32 %v1536, %v1623
      %v1666 = vsub.f32 %v1537, %v1626
      %v1667 = vsub.f32 %v1538, %v1629
      %v1668 = vsub.f32 %v1539, %v1632
      %v1669 = vsub.f32 %v1540, %v1635
      %v1670 = vsub.f32 %v1541, %v1638
      %v1671 = vmul.f32 %v1639, 1.442695
      %v1672 = vpow.pop %v1671
      %v1673 = vmul.f32 %v1640, 1.442695
      %v1674 = vpow.pop %v1673
      %v1675 = vmul.f32 %v1641, 1.442695
      %v1676 = vpow.pop %v1675
      %v1677 = vmul.f32 %v1642, 1.442695
      %v1678 = vpow.pop %v1677
      %v1679 = vmul.f32 %v1643, 1.442695
      %v1680 = vpow.pop %v1679
      %v1681 = vmul.f32 %v1644, 1.442695
      %v1682 = vpow.pop %v1681
      %v1683 = vmul.f32 %v1645, 1.442695
      %v1684 = vpow.pop %v1683
      %v1685 = vmul.f32 %v1646, 1.442695
      %v1686 = vpow.pop %v1685
      %v1687 = vmul.f32 %v1647, 1.442695
      %v1688 = vpow.pop %v1687
      %v1689 = vmul.f32 %v1648, 1.442695
      %v1690 = vpow.pop %v1689
      %v1691 = vmul.f32 %v1649, 1.442695
      %v1692 = vpow.pop %v1691
      %v1693 = vmul.f32 %v1650, 1.442695
      %v1694 = vpow.pop %v1693
      %v1695 = vmul.f32 %v1651, 1.442695
      %v1696 = vpow.pop %v1695
      %v1697 = vmul.f32 %v1652, 1.442695
      %v1698 = vpow.pop %v1697
      %v1699 = vmul.f32 %v1653, 1.442695
      %v1700 = vpow.pop %v1699
      %v1701 = vmul.f32 %v1654, 1.442695
      %v1702 = vpow.pop %v1701
      %v1703 = vmul.f32 %v1655, 1.442695
      %v1704 = vpow.pop %v1703
      %v1705 = vmul.f32 %v1656, 1.442695
      %v1706 = vpow.pop %v1705
      %v1707 = vmul.f32 %v1657, 1.442695
      %v1708 = vpow.pop %v1707
      %v1709 = vmul.f32 %v1658, 1.442695
      %v1710 = vpow.pop %v1709
      %v1711 = vmul.f32 %v1659, 1.442695
      %v1712 = vpow.pop %v1711
      %v1713 = vmul.f32 %v1660, 1.442695
      %v1714 = vpow.pop %v1713
      %v1715 = vmul.f32 %v1661, 1.442695
      %v1716 = vpow.pop %v1715
      %v1717 = vmul.f32 %v1662, 1.442695
      %v1718 = vpow.pop %v1717
      %v1719 = vmul.f32 %v1663, 1.442695
      %v1720 = vpow.pop %v1719
      %v1721 = vmul.f32 %v1664, 1.442695
      %v1722 = vpow.pop %v1721
      %v1723 = vmul.f32 %v1665, 1.442695
      %v1724 = vpow.pop %v1723
      %v1725 = vmul.f32 %v1666, 1.442695
      %v1726 = vpow.pop %v1725
      %v1727 = vmul.f32 %v1667, 1.442695
      %v1728 = vpow.pop %v1727
      %v1729 = vmul.f32 %v1668, 1.442695
      %v1730 = vpow.pop %v1729
      %v1731 = vmul.f32 %v1669, 1.442695
      %v1732 = vpow.pop %v1731
      %v1733 = vmul.f32 %v1670, 1.442695
      %v1734 = vpow.pop %v1733
      %v1735 = vsel %vm1542, %v1672, 0.0
      %1736 = vadd.xlane.f32.xlu0 %v1735
      %v1737 = vpop.xlane.xlu0 %1736
      %v1738 = vsel %vm1542, %v1674, 0.0
      %1739 = vadd.xlane.f32.xlu0 %v1738
      %v1740 = vpop.xlane.xlu0 %1739
      %v1741 = vsel %vm1542, %v1676, 0.0
      %1742 = vadd.xlane.f32.xlu0 %v1741
      %v1743 = vpop.xlane.xlu0 %1742
      %v1744 = vsel %vm1542, %v1678, 0.0
      %1745 = vadd.xlane.f32.xlu0 %v1744
      %v1746 = vpop.xlane.xlu0 %1745
      %v1747 = vsel %vm1542, %v1680, 0.0
      %1748 = vadd.xlane.f32.xlu0 %v1747
      %v1749 = vpop.xlane.xlu0 %1748
      %v1750 = vsel %vm1542, %v1682, 0.0
      %1751 = vadd.xlane.f32.xlu0 %v1750
      %v1752 = vpop.xlane.xlu0 %1751
      %v1753 = vsel %vm1542, %v1684, 0.0
      %1754 = vadd.xlane.f32.xlu0 %v1753
      %v1755 = vpop.xlane.xlu0 %1754
      %v1756 = vsel %vm1542, %v1686, 0.0
      %1757 = vadd.xlane.f32.xlu0 %v1756
      %v1758 = vpop.xlane.xlu0 %1757
      %v1759 = vsel %vm1542, %v1688, 0.0
      %1760 = vadd.xlane.f32.xlu0 %v1759
      %v1761 = vpop.xlane.xlu0 %1760
      %v1762 = vsel %vm1542, %v1690, 0.0
      %1763 = vadd.xlane.f32.xlu0 %v1762
      %v1764 = vpop.xlane.xlu0 %1763
      %v1765 = vsel %vm1542, %v1692, 0.0
      %1766 = vadd.xlane.f32.xlu0 %v1765
      %v1767 = vpop.xlane.xlu0 %1766
      %v1768 = vsel %vm1542, %v1694, 0.0
      %1769 = vadd.xlane.f32.xlu0 %v1768
      %v1770 = vpop.xlane.xlu0 %1769
      %v1771 = vsel %vm1542, %v1696, 0.0
      %1772 = vadd.xlane.f32.xlu0 %v1771
      %v1773 = vpop.xlane.xlu0 %1772
      %v1774 = vsel %vm1542, %v1698, 0.0
      %1775 = vadd.xlane.f32.xlu0 %v1774
      %v1776 = vpop.xlane.xlu0 %1775
      %v1777 = vsel %vm1542, %v1700, 0.0
      %1778 = vadd.xlane.f32.xlu0 %v1777
      %v1779 = vpop.xlane.xlu0 %1778
      %v1780 = vsel %vm1542, %v1702, 0.0
      %1781 = vadd.xlane.f32.xlu0 %v1780
      %v1782 = vpop.xlane.xlu0 %1781
      %v1783 = vsel %vm1542, %v1704, 0.0
      %1784 = vadd.xlane.f32.xlu0 %v1783
      %v1785 = vpop.xlane.xlu0 %1784
      %v1786 = vsel %vm1542, %v1706, 0.0
      %1787 = vadd.xlane.f32.xlu0 %v1786
      %v1788 = vpop.xlane.xlu0 %1787
      %v1789 = vsel %vm1542, %v1708, 0.0
      %1790 = vadd.xlane.f32.xlu0 %v1789
      %v1791 = vpop.xlane.xlu0 %1790
      %v1792 = vsel %vm1542, %v1710, 0.0
      %1793 = vadd.xlane.f32.xlu0 %v1792
      %v1794 = vpop.xlane.xlu0 %1793
      %v1795 = vsel %vm1542, %v1712, 0.0
      %1796 = vadd.xlane.f32.xlu0 %v1795
      %v1797 = vpop.xlane.xlu0 %1796
      %v1798 = vsel %vm1542, %v1714, 0.0
      %1799 = vadd.xlane.f32.xlu0 %v1798
      %v1800 = vpop.xlane.xlu0 %1799
      %v1801 = vsel %vm1542, %v1716, 0.0
      %1802 = vadd.xlane.f32.xlu0 %v1801
      %v1803 = vpop.xlane.xlu0 %1802
      %v1804 = vsel %vm1542, %v1718, 0.0
      %1805 = vadd.xlane.f32.xlu0 %v1804
      %v1806 = vpop.xlane.xlu0 %1805
      %v1807 = vsel %vm1542, %v1720, 0.0
      %1808 = vadd.xlane.f32.xlu0 %v1807
      %v1809 = vpop.xlane.xlu0 %1808
      %v1810 = vsel %vm1542, %v1722, 0.0
      %1811 = vadd.xlane.f32.xlu0 %v1810
      %v1812 = vpop.xlane.xlu0 %1811
      %v1813 = vsel %vm1542, %v1724, 0.0
      %1814 = vadd.xlane.f32.xlu0 %v1813
      %v1815 = vpop.xlane.xlu0 %1814
      %v1816 = vsel %vm1542, %v1726, 0.0
      %1817 = vadd.xlane.f32.xlu0 %v1816
      %v1818 = vpop.xlane.xlu0 %1817
      %v1819 = vsel %vm1542, %v1728, 0.0
      %1820 = vadd.xlane.f32.xlu0 %v1819
      %v1821 = vpop.xlane.xlu0 %1820
      %v1822 = vsel %vm1542, %v1730, 0.0
      %1823 = vadd.xlane.f32.xlu0 %v1822
      %v1824 = vpop.xlane.xlu0 %1823
      %v1825 = vsel %vm1542, %v1732, 0.0
      %1826 = vadd.xlane.f32.xlu0 %v1825
      %v1827 = vpop.xlane.xlu0 %1826
      %v1828 = vsel %vm1542, %v1734, 0.0
      %1829 = vadd.xlane.f32.xlu0 %v1828
      %v1830 = vpop.xlane.xlu0 %1829
      %v1831 = vrcp.pop %v1737
      %v1832 = vrcp.pop %v1740
      %v1833 = vrcp.pop %v1743
      %v1834 = vrcp.pop %v1746
      %v1835 = vrcp.pop %v1749
      %v1836 = vrcp.pop %v1752
      %v1837 = vrcp.pop %v1755
      %v1838 = vrcp.pop %v1758
      %v1839 = vrcp.pop %v1761
      %v1840 = vrcp.pop %v1764
      %v1841 = vrcp.pop %v1767
      %v1842 = vrcp.pop %v1770
      %v1843 = vrcp.pop %v1773
      %v1844 = vrcp.pop %v1776
      %v1845 = vrcp.pop %v1779
      %v1846 = vrcp.pop %v1782
      %v1847 = vrcp.pop %v1785
      %v1848 = vrcp.pop %v1788
      %v1849 = vrcp.pop %v1791
      %v1850 = vrcp.pop %v1794
      %v1851 = vrcp.pop %v1797
      %v1852 = vrcp.pop %v1800
      %v1853 = vrcp.pop %v1803
      %v1854 = vrcp.pop %v1806
      %v1855 = vrcp.pop %v1809
      %v1856 = vrcp.pop %v1812
      %v1857 = vrcp.pop %v1815
      %v1858 = vrcp.pop %v1818
      %v1859 = vrcp.pop %v1821
      %v1860 = vrcp.pop %v1824
      %v1861 = vrcp.pop %v1827
      %v1862 = vrcp.pop %v1830
      %v1863 = vmul.f32 %v1737, %v1831
      %v1864 = vmul.f32 %v1740, %v1832
      %v1865 = vmul.f32 %v1743, %v1833
      %v1866 = vmul.f32 %v1746, %v1834
      %v1867 = vmul.f32 %v1749, %v1835
      %v1868 = vmul.f32 %v1752, %v1836
      %v1869 = vmul.f32 %v1755, %v1837
      %v1870 = vmul.f32 %v1758, %v1838
      %v1871 = vmul.f32 %v1761, %v1839
      %v1872 = vmul.f32 %v1764, %v1840
      %v1873 = vmul.f32 %v1767, %v1841
      %v1874 = vmul.f32 %v1770, %v1842
      %v1875 = vmul.f32 %v1773, %v1843
      %v1876 = vmul.f32 %v1776, %v1844
      %v1877 = vmul.f32 %v1779, %v1845
      %v1878 = vmul.f32 %v1782, %v1846
      %v1879 = vmul.f32 %v1785, %v1847
      %v1880 = vmul.f32 %v1788, %v1848
      %v1881 = vmul.f32 %v1791, %v1849
      %v1882 = vmul.f32 %v1794, %v1850
      %v1883 = vmul.f32 %v1797, %v1851
      %v1884 = vmul.f32 %v1800, %v1852
      %v1885 = vmul.f32 %v1803, %v1853
      %v1886 = vmul.f32 %v1806, %v1854
      %v1887 = vmul.f32 %v1809, %v1855
      %v1888 = vmul.f32 %v1812, %v1856
      %v1889 = vmul.f32 %v1815, %v1857
      %v1890 = vmul.f32 %v1818, %v1858
      %v1891 = vmul.f32 %v1821, %v1859
      %v1892 = vmul.f32 %v1824, %v1860
      %v1893 = vmul.f32 %v1827, %v1861
      %v1894 = vmul.f32 %v1830, %v1862
      %v1895 = vsub.f32 2.0, %v1863
      %v1896 = vsub.f32 2.0, %v1864
      %v1897 = vsub.f32 2.0, %v1865
      %v1898 = vsub.f32 2.0, %v1866
      %v1899 = vsub.f32 2.0, %v1867
      %v1900 = vsub.f32 2.0, %v1868
      %v1901 = vsub.f32 2.0, %v1869
      %v1902 = vsub.f32 2.0, %v1870
      %v1903 = vsub.f32 2.0, %v1871
      %v1904 = vsub.f32 2.0, %v1872
      %v1905 = vsub.f32 2.0, %v1873
      %v1906 = vsub.f32 2.0, %v1874
      %v1907 = vsub.f32 2.0, %v1875
      %v1908 = vsub.f32 2.0, %v1876
      %v1909 = vsub.f32 2.0, %v1877
      %v1910 = vsub.f32 2.0, %v1878
      %v1911 = vsub.f32 2.0, %v1879
      %v1912 = vsub.f32 2.0, %v1880
      %v1913 = vsub.f32 2.0, %v1881
      %v1914 = vsub.f32 2.0, %v1882
      %v1915 = vsub.f32 2.0, %v1883
      %v1916 = vsub.f32 2.0, %v1884
      %v1917 = vsub.f32 2.0, %v1885
      %v1918 = vsub.f32 2.0, %v1886
      %v1919 = vsub.f32 2.0, %v1887
      %v1920 = vsub.f32 2.0, %v1888
      %v1921 = vsub.f32 2.0, %v1889
      %v1922 = vsub.f32 2.0, %v1890
      %v1923 = vsub.f32 2.0, %v1891
      %v1924 = vsub.f32 2.0, %v1892
      %v1925 = vsub.f32 2.0, %v1893
      %v1926 = vsub.f32 2.0, %v1894
      %v1927 = vmul.f32 %v1831, %v1895
      %v1928 = vmul.f32 %v1832, %v1896
      %v1929 = vmul.f32 %v1833, %v1897
      %v1930 = vmul.f32 %v1834, %v1898
      %v1931 = vmul.f32 %v1835, %v1899
      %v1932 = vmul.f32 %v1836, %v1900
      %v1933 = vmul.f32 %v1837, %v1901
      %v1934 = vmul.f32 %v1838, %v1902
      %v1935 = vmul.f32 %v1839, %v1903
      %v1936 = vmul.f32 %v1840, %v1904
      %v1937 = vmul.f32 %v1841, %v1905
      %v1938 = vmul.f32 %v1842, %v1906
      %v1939 = vmul.f32 %v1843, %v1907
      %v1940 = vmul.f32 %v1844, %v1908
      %v1941 = vmul.f32 %v1845, %v1909
      %v1942 = vmul.f32 %v1846, %v1910
      %v1943 = vmul.f32 %v1847, %v1911
      %v1944 = vmul.f32 %v1848, %v1912
      %v1945 = vmul.f32 %v1849, %v1913
      %v1946 = vmul.f32 %v1850, %v1914
      %v1947 = vmul.f32 %v1851, %v1915
      %v1948 = vmul.f32 %v1852, %v1916
      %v1949 = vmul.f32 %v1853, %v1917
      %v1950 = vmul.f32 %v1854, %v1918
      %v1951 = vmul.f32 %v1855, %v1919
      %v1952 = vmul.f32 %v1856, %v1920
      %v1953 = vmul.f32 %v1857, %v1921
      %v1954 = vmul.f32 %v1858, %v1922
      %v1955 = vmul.f32 %v1859, %v1923
      %v1956 = vmul.f32 %v1860, %v1924
      %v1957 = vmul.f32 %v1861, %v1925
      %v1958 = vmul.f32 %v1862, %v1926
      %v1959 = vmul.f32 %v1672, %v1927
      %v1960 = vmul.f32 %v1674, %v1928
      %v1961 = vmul.f32 %v1676, %v1929
      %v1962 = vmul.f32 %v1678, %v1930
      %v1963 = vmul.f32 %v1680, %v1931
      %v1964 = vmul.f32 %v1682, %v1932
      %v1965 = vmul.f32 %v1684, %v1933
      %v1966 = vmul.f32 %v1686, %v1934
      %v1967 = vmul.f32 %v1688, %v1935
      %v1968 = vmul.f32 %v1690, %v1936
      %v1969 = vmul.f32 %v1692, %v1937
      %v1970 = vmul.f32 %v1694, %v1938
      %v1971 = vmul.f32 %v1696, %v1939
      %v1972 = vmul.f32 %v1698, %v1940
      %v1973 = vmul.f32 %v1700, %v1941
      %v1974 = vmul.f32 %v1702, %v1942
      %v1975 = vmul.f32 %v1704, %v1943
      %v1976 = vmul.f32 %v1706, %v1944
      %v1977 = vmul.f32 %v1708, %v1945
      %v1978 = vmul.f32 %v1710, %v1946
      %v1979 = vmul.f32 %v1712, %v1947
      %v1980 = vmul.f32 %v1714, %v1948
      %v1981 = vmul.f32 %v1716, %v1949
      %v1982 = vmul.f32 %v1718, %v1950
      %v1983 = vmul.f32 %v1720, %v1951
      %v1984 = vmul.f32 %v1722, %v1952
      %v1985 = vmul.f32 %v1724, %v1953
      %v1986 = vmul.f32 %v1726, %v1954
      %v1987 = vmul.f32 %v1728, %v1955
      %v1988 = vmul.f32 %v1730, %v1956
      %v1989 = vmul.f32 %v1732, %v1957
      %v1990 = vmul.f32 %v1734, %v1958
      %v1991 = vpack.c.bf16 %v1960, %v1959
      %v1992 = vpack.c.bf16 %v1962, %v1961
      %v1993 = vpack.c.bf16 %v1964, %v1963
      %v1994 = vpack.c.bf16 %v1966, %v1965
      %v1995 = vpack.c.bf16 %v1968, %v1967
      %v1996 = vpack.c.bf16 %v1970, %v1969
      %v1997 = vpack.c.bf16 %v1972, %v1971
      %v1998 = vpack.c.bf16 %v1974, %v1973
      %v1999 = vpack.c.bf16 %v1976, %v1975
      %v2000 = vpack.c.bf16 %v1978, %v1977
      %v2001 = vpack.c.bf16 %v1980, %v1979
      %v2002 = vpack.c.bf16 %v1982, %v1981
      %v2003 = vpack.c.bf16 %v1984, %v1983
      %v2004 = vpack.c.bf16 %v1986, %v1985
      %v2005 = vpack.c.bf16 %v1988, %v1987
      %v2006 = vpack.c.bf16 %v1990, %v1989
      %v2008 = vsel %vm1542, %v1991, 0
      %v2011 = vsel %vm1542, %v1992, 0
      %2013 = vmatprep.subr.bf16.mxu0 0
      %2014 = vmatpush1.bf16.msra.mxu0 0
      %2015 = vmatprep.subr.bf16.mxu0 0
      %2016 = vmatpush1.bf16.msra.mxu0 0
      %2017 = vmatprep.subr.bf16.mxu0 0
      %2018 = vmatpush1.bf16.msra.mxu0 0
      %2019 = vmatprep.subr.bf16.mxu0 0
      %2020 = vmatpush1.bf16.msra.mxu0 0
      %2021 = vmatprep.subr.bf16.mxu0 0
      %2022 = vmatpush1.bf16.msra.mxu0 0
      %2023 = vmatprep.subr.bf16.mxu0 0
      %2024 = vmatpush1.bf16.msra.mxu0 0
      %2025 = vmatprep.subr.bf16.mxu0 0
      %2026 = vmatpush1.bf16.msra.mxu0 %v637
      %2027 = vmatprep.subr.bf16.mxu0 0
      %2028 = vmatpush1.bf16.msra.mxu0 %v636
      %2029 = vmatprep.subr.bf16.mxu0 0
      %2030 = vmatpush2.bf16.msra.mxu0 0
      %2031 = vmatprep.subr.bf16.mxu0 0
      %2032 = vmatpush2.bf16.msra.mxu0 0
      %2033 = vmatprep.subr.bf16.mxu0 0
      %2034 = vmatpush2.bf16.msra.mxu0 0
      %2035 = vmatprep.subr.bf16.mxu0 0
      %2036 = vmatpush2.bf16.msra.mxu0 0
      %2037 = vmatprep.subr.bf16.mxu0 0
      %2038 = vmatpush2.bf16.msra.mxu0 0
      %2039 = vmatprep.subr.bf16.mxu0 0
      %2040 = vmatpush2.bf16.msra.mxu0 0
      %2041 = vmatprep.subr.bf16.mxu0 0
      %2042 = vmatpush2.bf16.msra.mxu0 0
      %2043 = vmatprep.subr.bf16.mxu0 0
      %2044 = vmatpush2.bf16.msra.mxu0 0
      %2045 = vmatprep.mubr.bf16.mxu0 0
      %2046 = vmatmul.mubr.bf16.gmra.mxu0 %v2008
      %v2047 = vpop.f32.mrf.mxu0
      %v2048 = vadd.f32 0.0, %v2047
      %v2049 = vpop.f32.mrf.mxu0
      %v2050 = vpop.f32.mrf.mxu0
      %v2051 = vadd.f32 0.0, %v2050
      %v2052 = vpop.f32.mrf.mxu0
      %2053 = vmatprep.mubr.bf16.mxu0 0
      %2054 = vmatmul.mubr.bf16.gmra.mxu0 %v2011
      %v2055 = vpop.f32.mrf.mxu0
      %v2056 = vadd.f32 0.0, %v2055
      %v2057 = vpop.f32.mrf.mxu0
      %v2058 = vpop.f32.mrf.mxu0
      %v2059 = vadd.f32 0.0, %v2058
      %v2060 = vpop.f32.mrf.mxu0
      %2061 = vdwg.mxu0
      %v2063 = vsel %vm1542, %v1993, 0
      %v2066 = vsel %vm1542, %v1994, 0
      %2068 = vmatprep.subr.bf16.mxu0 0
      %2069 = vmatpush1.bf16.msra.mxu0 0
      %2070 = vmatprep.subr.bf16.mxu0 0
      %2071 = vmatpush1.bf16.msra.mxu0 0
      %2072 = vmatprep.subr.bf16.mxu0 0
      %2073 = vmatpush1.bf16.msra.mxu0 0
      %2074 = vmatprep.subr.bf16.mxu0 0
      %2075 = vmatpush1.bf16.msra.mxu0 0
      %2076 = vmatprep.subr.bf16.mxu0 0
      %2077 = vmatpush1.bf16.msra.mxu0 0
      %2078 = vmatprep.subr.bf16.mxu0 0
      %2079 = vmatpush1.bf16.msra.mxu0 0
      %2080 = vmatprep.subr.bf16.mxu0 0
      %2081 = vmatpush1.bf16.msra.mxu0 %v639
      %2082 = vmatprep.subr.bf16.mxu0 0
      %2083 = vmatpush1.bf16.msra.mxu0 %v638
      %2084 = vmatprep.subr.bf16.mxu0 0
      %2085 = vmatpush2.bf16.msra.mxu0 0
      %2086 = vmatprep.subr.bf16.mxu0 0
      %2087 = vmatpush2.bf16.msra.mxu0 0
      %2088 = vmatprep.subr.bf16.mxu0 0
      %2089 = vmatpush2.bf16.msra.mxu0 0
      %2090 = vmatprep.subr.bf16.mxu0 0
      %2091 = vmatpush2.bf16.msra.mxu0 0
      %2092 = vmatprep.subr.bf16.mxu0 0
      %2093 = vmatpush2.bf16.msra.mxu0 0
      %2094 = vmatprep.subr.bf16.mxu0 0
      %2095 = vmatpush2.bf16.msra.mxu0 0
      %2096 = vmatprep.subr.bf16.mxu0 0
      %2097 = vmatpush2.bf16.msra.mxu0 0
      %2098 = vmatprep.subr.bf16.mxu0 0
      %2099 = vmatpush2.bf16.msra.mxu0 0
      %2100 = vmatprep.mubr.bf16.mxu0 0
      %2101 = vmatmul.mubr.bf16.gmra.mxu0 %v2063
      %v2102 = vpop.f32.mrf.mxu0
      %v2103 = vadd.f32 0.0, %v2102
      %v2104 = vpop.f32.mrf.mxu0
      %v2105 = vpop.f32.mrf.mxu0
      %v2106 = vadd.f32 0.0, %v2105
      %v2107 = vpop.f32.mrf.mxu0
      %2108 = vmatprep.mubr.bf16.mxu0 0
      %2109 = vmatmul.mubr.bf16.gmra.mxu0 %v2066
      %v2110 = vpop.f32.mrf.mxu0
      %v2111 = vadd.f32 0.0, %v2110
      %v2112 = vpop.f32.mrf.mxu0
      %v2113 = vpop.f32.mrf.mxu0
      %v2114 = vadd.f32 0.0, %v2113
      %v2115 = vpop.f32.mrf.mxu0
      %2116 = vdwg.mxu0
      %v2118 = vsel %vm1542, %v1995, 0
      %v2121 = vsel %vm1542, %v1996, 0
      %2123 = vmatprep.subr.bf16.mxu0 0
      %2124 = vmatpush1.bf16.msra.mxu0 0
      %2125 = vmatprep.subr.bf16.mxu0 0
      %2126 = vmatpush1.bf16.msra.mxu0 0
      %2127 = vmatprep.subr.bf16.mxu0 0
      %2128 = vmatpush1.bf16.msra.mxu0 0
      %2129 = vmatprep.subr.bf16.mxu0 0
      %2130 = vmatpush1.bf16.msra.mxu0 0
      %2131 = vmatprep.subr.bf16.mxu0 0
      %2132 = vmatpush1.bf16.msra.mxu0 0
      %2133 = vmatprep.subr.bf16.mxu0 0
      %2134 = vmatpush1.bf16.msra.mxu0 0
      %2135 = vmatprep.subr.bf16.mxu0 0
      %2136 = vmatpush1.bf16.msra.mxu0 %v641
      %2137 = vmatprep.subr.bf16.mxu0 0
      %2138 = vmatpush1.bf16.msra.mxu0 %v640
      %2139 = vmatprep.subr.bf16.mxu0 0
      %2140 = vmatpush2.bf16.msra.mxu0 0
      %2141 = vmatprep.subr.bf16.mxu0 0
      %2142 = vmatpush2.bf16.msra.mxu0 0
      %2143 = vmatprep.subr.bf16.mxu0 0
      %2144 = vmatpush2.bf16.msra.mxu0 0
      %2145 = vmatprep.subr.bf16.mxu0 0
      %2146 = vmatpush2.bf16.msra.mxu0 0
      %2147 = vmatprep.subr.bf16.mxu0 0
      %2148 = vmatpush2.bf16.msra.mxu0 0
      %2149 = vmatprep.subr.bf16.mxu0 0
      %2150 = vmatpush2.bf16.msra.mxu0 0
      %2151 = vmatprep.subr.bf16.mxu0 0
      %2152 = vmatpush2.bf16.msra.mxu0 0
      %2153 = vmatprep.subr.bf16.mxu0 0
      %2154 = vmatpush2.bf16.msra.mxu0 0
      %2155 = vmatprep.mubr.bf16.mxu0 0
      %2156 = vmatmul.mubr.bf16.gmra.mxu0 %v2118
      %v2157 = vpop.f32.mrf.mxu0
      %v2158 = vadd.f32 0.0, %v2157
      %v2159 = vpop.f32.mrf.mxu0
      %v2160 = vpop.f32.mrf.mxu0
      %v2161 = vadd.f32 0.0, %v2160
      %v2162 = vpop.f32.mrf.mxu0
      %2163 = vmatprep.mubr.bf16.mxu0 0
      %2164 = vmatmul.mubr.bf16.gmra.mxu0 %v2121
      %v2165 = vpop.f32.mrf.mxu0
      %v2166 = vadd.f32 0.0, %v2165
      %v2167 = vpop.f32.mrf.mxu0
      %v2168 = vpop.f32.mrf.mxu0
      %v2169 = vadd.f32 0.0, %v2168
      %v2170 = vpop.f32.mrf.mxu0
      %2171 = vdwg.mxu0
      %v2173 = vsel %vm1542, %v1997, 0
      %v2176 = vsel %vm1542, %v1998, 0
      %2178 = vmatprep.subr.bf16.mxu0 0
      %2179 = vmatpush1.bf16.msra.mxu0 0
      %2180 = vmatprep.subr.bf16.mxu0 0
      %2181 = vmatpush1.bf16.msra.mxu0 0
      %2182 = vmatprep.subr.bf16.mxu0 0
      %2183 = vmatpush1.bf16.msra.mxu0 0
      %2184 = vmatprep.subr.bf16.mxu0 0
      %2185 = vmatpush1.bf16.msra.mxu0 0
      %2186 = vmatprep.subr.bf16.mxu0 0
      %2187 = vmatpush1.bf16.msra.mxu0 0
      %2188 = vmatprep.subr.bf16.mxu0 0
      %2189 = vmatpush1.bf16.msra.mxu0 0
      %2190 = vmatprep.subr.bf16.mxu0 0
      %2191 = vmatpush1.bf16.msra.mxu0 %v643
      %2192 = vmatprep.subr.bf16.mxu0 0
      %2193 = vmatpush1.bf16.msra.mxu0 %v642
      %2194 = vmatprep.subr.bf16.mxu0 0
      %2195 = vmatpush2.bf16.msra.mxu0 0
      %2196 = vmatprep.subr.bf16.mxu0 0
      %2197 = vmatpush2.bf16.msra.mxu0 0
      %2198 = vmatprep.subr.bf16.mxu0 0
      %2199 = vmatpush2.bf16.msra.mxu0 0
      %2200 = vmatprep.subr.bf16.mxu0 0
      %2201 = vmatpush2.bf16.msra.mxu0 0
      %2202 = vmatprep.subr.bf16.mxu0 0
      %2203 = vmatpush2.bf16.msra.mxu0 0
      %2204 = vmatprep.subr.bf16.mxu0 0
      %2205 = vmatpush2.bf16.msra.mxu0 0
      %2206 = vmatprep.subr.bf16.mxu0 0
      %2207 = vmatpush2.bf16.msra.mxu0 0
      %2208 = vmatprep.subr.bf16.mxu0 0
      %2209 = vmatpush2.bf16.msra.mxu0 0
      %2210 = vmatprep.mubr.bf16.mxu0 0
      %2211 = vmatmul.mubr.bf16.gmra.mxu0 %v2173
      %v2212 = vpop.f32.mrf.mxu0
      %v2213 = vadd.f32 0.0, %v2212
      %v2214 = vpop.f32.mrf.mxu0
      %v2215 = vpop.f32.mrf.mxu0
      %v2216 = vadd.f32 0.0, %v2215
      %v2217 = vpop.f32.mrf.mxu0
      %2218 = vmatprep.mubr.bf16.mxu0 0
      %2219 = vmatmul.mubr.bf16.gmra.mxu0 %v2176
      %v2220 = vpop.f32.mrf.mxu0
      %v2221 = vadd.f32 0.0, %v2220
      %v2222 = vpop.f32.mrf.mxu0
      %v2223 = vpop.f32.mrf.mxu0
      %v2224 = vadd.f32 0.0, %v2223
      %v2225 = vpop.f32.mrf.mxu0
      %2226 = vdwg.mxu0
      %v2228 = vsel %vm1542, %v1999, 0
      %v2231 = vsel %vm1542, %v2000, 0
      %2233 = vmatprep.subr.bf16.mxu0 0
      %2234 = vmatpush1.bf16.msra.mxu0 0
      %2235 = vmatprep.subr.bf16.mxu0 0
      %2236 = vmatpush1.bf16.msra.mxu0 0
      %2237 = vmatprep.subr.bf16.mxu0 0
      %2238 = vmatpush1.bf16.msra.mxu0 0
      %2239 = vmatprep.subr.bf16.mxu0 0
      %2240 = vmatpush1.bf16.msra.mxu0 0
      %2241 = vmatprep.subr.bf16.mxu0 0
      %2242 = vmatpush1.bf16.msra.mxu0 0
      %2243 = vmatprep.subr.bf16.mxu0 0
      %2244 = vmatpush1.bf16.msra.mxu0 0
      %2245 = vmatprep.subr.bf16.mxu0 0
      %2246 = vmatpush1.bf16.msra.mxu0 %v645
      %2247 = vmatprep.subr.bf16.mxu0 0
      %2248 = vmatpush1.bf16.msra.mxu0 %v644
      %2249 = vmatprep.subr.bf16.mxu0 0
      %2250 = vmatpush2.bf16.msra.mxu0 0
      %2251 = vmatprep.subr.bf16.mxu0 0
      %2252 = vmatpush2.bf16.msra.mxu0 0
      %2253 = vmatprep.subr.bf16.mxu0 0
      %2254 = vmatpush2.bf16.msra.mxu0 0
      %2255 = vmatprep.subr.bf16.mxu0 0
      %2256 = vmatpush2.bf16.msra.mxu0 0
      %2257 = vmatprep.subr.bf16.mxu0 0
      %2258 = vmatpush2.bf16.msra.mxu0 0
      %2259 = vmatprep.subr.bf16.mxu0 0
      %2260 = vmatpush2.bf16.msra.mxu0 0
      %2261 = vmatprep.subr.bf16.mxu0 0
      %2262 = vmatpush2.bf16.msra.mxu0 0
      %2263 = vmatprep.subr.bf16.mxu0 0
      %2264 = vmatpush2.bf16.msra.mxu0 0
      %2265 = vmatprep.mubr.bf16.mxu0 0
      %2266 = vmatmul.mubr.bf16.gmra.mxu0 %v2228
      %v2267 = vpop.f32.mrf.mxu0
      %v2268 = vadd.f32 0.0, %v2267
      %v2269 = vpop.f32.mrf.mxu0
      %v2270 = vpop.f32.mrf.mxu0
      %v2271 = vadd.f32 0.0, %v2270
      %v2272 = vpop.f32.mrf.mxu0
      %2273 = vmatprep.mubr.bf16.mxu0 0
      %2274 = vmatmul.mubr.bf16.gmra.mxu0 %v2231
      %v2275 = vpop.f32.mrf.mxu0
      %v2276 = vadd.f32 0.0, %v2275
      %v2277 = vpop.f32.mrf.mxu0
      %v2278 = vpop.f32.mrf.mxu0
      %v2279 = vadd.f32 0.0, %v2278
      %v2280 = vpop.f32.mrf.mxu0
      %2281 = vdwg.mxu0
      %v2283 = vsel %vm1542, %v2001, 0
      %v2286 = vsel %vm1542, %v2002, 0
      %2288 = vmatprep.subr.bf16.mxu0 0
      %2289 = vmatpush1.bf16.msra.mxu0 0
      %2290 = vmatprep.subr.bf16.mxu0 0
      %2291 = vmatpush1.bf16.msra.mxu0 0
      %2292 = vmatprep.subr.bf16.mxu0 0
      %2293 = vmatpush1.bf16.msra.mxu0 0
      %2294 = vmatprep.subr.bf16.mxu0 0
      %2295 = vmatpush1.bf16.msra.mxu0 0
      %2296 = vmatprep.subr.bf16.mxu0 0
      %2297 = vmatpush1.bf16.msra.mxu0 0
      %2298 = vmatprep.subr.bf16.mxu0 0
      %2299 = vmatpush1.bf16.msra.mxu0 0
      %2300 = vmatprep.subr.bf16.mxu0 0
      %2301 = vmatpush1.bf16.msra.mxu0 %v647
      %2302 = vmatprep.subr.bf16.mxu0 0
      %2303 = vmatpush1.bf16.msra.mxu0 %v646
      %2304 = vmatprep.subr.bf16.mxu0 0
      %2305 = vmatpush2.bf16.msra.mxu0 0
      %2306 = vmatprep.subr.bf16.mxu0 0
      %2307 = vmatpush2.bf16.msra.mxu0 0
      %2308 = vmatprep.subr.bf16.mxu0 0
      %2309 = vmatpush2.bf16.msra.mxu0 0
      %2310 = vmatprep.subr.bf16.mxu0 0
      %2311 = vmatpush2.bf16.msra.mxu0 0
      %2312 = vmatprep.subr.bf16.mxu0 0
      %2313 = vmatpush2.bf16.msra.mxu0 0
      %2314 = vmatprep.subr.bf16.mxu0 0
      %2315 = vmatpush2.bf16.msra.mxu0 0
      %2316 = vmatprep.subr.bf16.mxu0 0
      %2317 = vmatpush2.bf16.msra.mxu0 0
      %2318 = vmatprep.subr.bf16.mxu0 0
      %2319 = vmatpush2.bf16.msra.mxu0 0
      %2320 = vmatprep.mubr.bf16.mxu0 0
      %2321 = vmatmul.mubr.bf16.gmra.mxu0 %v2283
      %v2322 = vpop.f32.mrf.mxu0
      %v2323 = vadd.f32 0.0, %v2322
      %v2324 = vpop.f32.mrf.mxu0
      %v2325 = vpop.f32.mrf.mxu0
      %v2326 = vadd.f32 0.0, %v2325
      %v2327 = vpop.f32.mrf.mxu0
      %2328 = vmatprep.mubr.bf16.mxu0 0
      %2329 = vmatmul.mubr.bf16.gmra.mxu0 %v2286
      %v2330 = vpop.f32.mrf.mxu0
      %v2331 = vadd.f32 0.0, %v2330
      %v2332 = vpop.f32.mrf.mxu0
      %v2333 = vpop.f32.mrf.mxu0
      %v2334 = vadd.f32 0.0, %v2333
      %v2335 = vpop.f32.mrf.mxu0
      %2336 = vdwg.mxu0
      %v2338 = vsel %vm1542, %v2003, 0
      %v2341 = vsel %vm1542, %v2004, 0
      %2343 = vmatprep.subr.bf16.mxu0 0
      %2344 = vmatpush1.bf16.msra.mxu0 0
      %2345 = vmatprep.subr.bf16.mxu0 0
      %2346 = vmatpush1.bf16.msra.mxu0 0
      %2347 = vmatprep.subr.bf16.mxu0 0
      %2348 = vmatpush1.bf16.msra.mxu0 0
      %2349 = vmatprep.subr.bf16.mxu0 0
      %2350 = vmatpush1.bf16.msra.mxu0 0
      %2351 = vmatprep.subr.bf16.mxu0 0
      %2352 = vmatpush1.bf16.msra.mxu0 0
      %2353 = vmatprep.subr.bf16.mxu0 0
      %2354 = vmatpush1.bf16.msra.mxu0 0
      %2355 = vmatprep.subr.bf16.mxu0 0
      %2356 = vmatpush1.bf16.msra.mxu0 %v649
      %2357 = vmatprep.subr.bf16.mxu0 0
      %2358 = vmatpush1.bf16.msra.mxu0 %v648
      %2359 = vmatprep.subr.bf16.mxu0 0
      %2360 = vmatpush2.bf16.msra.mxu0 0
      %2361 = vmatprep.subr.bf16.mxu0 0
      %2362 = vmatpush2.bf16.msra.mxu0 0
      %2363 = vmatprep.subr.bf16.mxu0 0
      %2364 = vmatpush2.bf16.msra.mxu0 0
      %2365 = vmatprep.subr.bf16.mxu0 0
      %2366 = vmatpush2.bf16.msra.mxu0 0
      %2367 = vmatprep.subr.bf16.mxu0 0
      %2368 = vmatpush2.bf16.msra.mxu0 0
      %2369 = vmatprep.subr.bf16.mxu0 0
      %2370 = vmatpush2.bf16.msra.mxu0 0
      %2371 = vmatprep.subr.bf16.mxu0 0
      %2372 = vmatpush2.bf16.msra.mxu0 0
      %2373 = vmatprep.subr.bf16.mxu0 0
      %2374 = vmatpush2.bf16.msra.mxu0 0
      %2375 = vmatprep.mubr.bf16.mxu0 0
      %2376 = vmatmul.mubr.bf16.gmra.mxu0 %v2338
      %v2377 = vpop.f32.mrf.mxu0
      %v2378 = vadd.f32 0.0, %v2377
      %v2379 = vpop.f32.mrf.mxu0
      %v2380 = vpop.f32.mrf.mxu0
      %v2381 = vadd.f32 0.0, %v2380
      %v2382 = vpop.f32.mrf.mxu0
      %2383 = vmatprep.mubr.bf16.mxu0 0
      %2384 = vmatmul.mubr.bf16.gmra.mxu0 %v2341
      %v2385 = vpop.f32.mrf.mxu0
      %v2386 = vadd.f32 0.0, %v2385
      %v2387 = vpop.f32.mrf.mxu0
      %v2388 = vpop.f32.mrf.mxu0
      %v2389 = vadd.f32 0.0, %v2388
      %v2390 = vpop.f32.mrf.mxu0
      %2391 = vdwg.mxu0
      %v2393 = vsel %vm1542, %v2005, 0
      %v2396 = vsel %vm1542, %v2006, 0
      %2398 = vmatprep.subr.bf16.mxu0 0
      %2399 = vmatpush1.bf16.msra.mxu0 0
      %2400 = vmatprep.subr.bf16.mxu0 0
      %2401 = vmatpush1.bf16.msra.mxu0 0
      %2402 = vmatprep.subr.bf16.mxu0 0
      %2403 = vmatpush1.bf16.msra.mxu0 0
      %2404 = vmatprep.subr.bf16.mxu0 0
      %2405 = vmatpush1.bf16.msra.mxu0 0
      %2406 = vmatprep.subr.bf16.mxu0 0
      %2407 = vmatpush1.bf16.msra.mxu0 0
      %2408 = vmatprep.subr.bf16.mxu0 0
      %2409 = vmatpush1.bf16.msra.mxu0 0
      %2410 = vmatprep.subr.bf16.mxu0 0
      %2411 = vmatpush1.bf16.msra.mxu0 %v651
      %2412 = vmatprep.subr.bf16.mxu0 0
      %2413 = vmatpush1.bf16.msra.mxu0 %v650
      %2414 = vmatprep.subr.bf16.mxu0 0
      %2415 = vmatpush2.bf16.msra.mxu0 0
      %2416 = vmatprep.subr.bf16.mxu0 0
      %2417 = vmatpush2.bf16.msra.mxu0 0
      %2418 = vmatprep.subr.bf16.mxu0 0
      %2419 = vmatpush2.bf16.msra.mxu0 0
      %2420 = vmatprep.subr.bf16.mxu0 0
      %2421 = vmatpush2.bf16.msra.mxu0 0
      %2422 = vmatprep.subr.bf16.mxu0 0
      %2423 = vmatpush2.bf16.msra.mxu0 0
      %2424 = vmatprep.subr.bf16.mxu0 0
      %2425 = vmatpush2.bf16.msra.mxu0 0
      %2426 = vmatprep.subr.bf16.mxu0 0
      %2427 = vmatpush2.bf16.msra.mxu0 0
      %2428 = vmatprep.subr.bf16.mxu0 0
      %2429 = vmatpush2.bf16.msra.mxu0 0
      %2430 = vmatprep.mubr.bf16.mxu0 0
      %2431 = vmatmul.mubr.bf16.gmra.mxu0 %v2393
      %v2432 = vpop.f32.mrf.mxu0
      %v2433 = vadd.f32 0.0, %v2432
      %v2434 = vpop.f32.mrf.mxu0
      %v2435 = vpop.f32.mrf.mxu0
      %v2436 = vadd.f32 0.0, %v2435
      %v2437 = vpop.f32.mrf.mxu0
      %2438 = vmatprep.mubr.bf16.mxu0 0
      %2439 = vmatmul.mubr.bf16.gmra.mxu0 %v2396
      %v2440 = vpop.f32.mrf.mxu0
      %v2441 = vadd.f32 0.0, %v2440
      %v2442 = vpop.f32.mrf.mxu0
      %v2443 = vpop.f32.mrf.mxu0
      %v2444 = vadd.f32 0.0, %v2443
      %v2445 = vpop.f32.mrf.mxu0
      %2446 = vdwg.mxu0
      %2447 = vset.pattern.permute.xlu0 1
      %2448 = vperm.xlu0 %2447, %v741
      %v2449 = vpop.permute.xlu0 %2448
      %2451 = vset.pattern.permute.xlu0 1
      %2452 = vperm.xlu0 %2451, %v744
      %v2453 = vpop.permute.xlu0 %2452
      %2455 = vset.pattern.permute.xlu0 1
      %2456 = vperm.xlu0 %2455, %v749
      %v2457 = vpop.permute.xlu0 %2456
      %2459 = vset.pattern.permute.xlu0 1
      %2460 = vperm.xlu0 %2459, %v752
      %v2461 = vpop.permute.xlu0 %2460
      %2463 = vset.pattern.permute.xlu0 1
      %2464 = vperm.xlu0 %2463, %v757
      %v2465 = vpop.permute.xlu0 %2464
      %2467 = vset.pattern.permute.xlu0 1
      %2468 = vperm.xlu0 %2467, %v760
      %v2469 = vpop.permute.xlu0 %2468
      %2471 = vset.pattern.permute.xlu0 1
      %2472 = vperm.xlu0 %2471, %v765
      %v2473 = vpop.permute.xlu0 %2472
      %2475 = vset.pattern.permute.xlu0 1
      %2476 = vperm.xlu0 %2475, %v768
      %v2477 = vpop.permute.xlu0 %2476
      %2479 = vset.pattern.permute.xlu0 1
      %2480 = vperm.xlu0 %2479, %v773
      %v2481 = vpop.permute.xlu0 %2480
      %2483 = vset.pattern.permute.xlu0 1
      %2484 = vperm.xlu0 %2483, %v776
      %v2485 = vpop.permute.xlu0 %2484
      %2487 = vset.pattern.permute.xlu0 1
      %2488 = vperm.xlu0 %2487, %v781
      %v2489 = vpop.permute.xlu0 %2488
      %2491 = vset.pattern.permute.xlu0 1
      %2492 = vperm.xlu0 %2491, %v784
      %v2493 = vpop.permute.xlu0 %2492
      %2495 = vset.pattern.permute.xlu0 1
      %2496 = vperm.xlu0 %2495, %v789
      %v2497 = vpop.permute.xlu0 %2496
      %2499 = vset.pattern.permute.xlu0 1
      %2500 = vperm.xlu0 %2499, %v792
      %v2501 = vpop.permute.xlu0 %2500
      %2503 = vset.pattern.permute.xlu0 1
      %2504 = vperm.xlu0 %2503, %v797
      %v2505 = vpop.permute.xlu0 %2504
      %2507 = vset.pattern.permute.xlu0 1
      %2508 = vperm.xlu0 %2507, %v800
      %v2509 = vpop.permute.xlu0 %2508
      %2511 = vset.pattern.permute.xlu0 1
      %2512 = vperm.xlu0 %2511, %v805
      %v2513 = vpop.permute.xlu0 %2512
      %2515 = vset.pattern.permute.xlu0 1
      %2516 = vperm.xlu0 %2515, %v808
      %v2517 = vpop.permute.xlu0 %2516
      %2519 = vset.pattern.permute.xlu0 1
      %2520 = vperm.xlu0 %2519, %v813
      %v2521 = vpop.permute.xlu0 %2520
      %2523 = vset.pattern.permute.xlu0 1
      %2524 = vperm.xlu0 %2523, %v816
      %v2525 = vpop.permute.xlu0 %2524
      %2527 = vset.pattern.permute.xlu0 1
      %2528 = vperm.xlu0 %2527, %v821
      %v2529 = vpop.permute.xlu0 %2528
      %2531 = vset.pattern.permute.xlu0 1
      %2532 = vperm.xlu0 %2531, %v824
      %v2533 = vpop.permute.xlu0 %2532
      %2535 = vset.pattern.permute.xlu0 1
      %2536 = vperm.xlu0 %2535, %v829
      %v2537 = vpop.permute.xlu0 %2536
      %2539 = vset.pattern.permute.xlu0 1
      %2540 = vperm.xlu0 %2539, %v832
      %v2541 = vpop.permute.xlu0 %2540
      %2543 = vset.pattern.permute.xlu0 1
      %2544 = vperm.xlu0 %2543, %v837
      %v2545 = vpop.permute.xlu0 %2544
      %2547 = vset.pattern.permute.xlu0 1
      %2548 = vperm.xlu0 %2547, %v840
      %v2549 = vpop.permute.xlu0 %2548
      %2551 = vset.pattern.permute.xlu0 1
      %2552 = vperm.xlu0 %2551, %v845
      %v2553 = vpop.permute.xlu0 %2552
      %2555 = vset.pattern.permute.xlu0 1
      %2556 = vperm.xlu0 %2555, %v848
      %v2557 = vpop.permute.xlu0 %2556
      %2559 = vset.pattern.permute.xlu0 1
      %2560 = vperm.xlu0 %2559, %v853
      %v2561 = vpop.permute.xlu0 %2560
      %2563 = vset.pattern.permute.xlu0 1
      %2564 = vperm.xlu0 %2563, %v856
      %v2565 = vpop.permute.xlu0 %2564
      %2567 = vset.pattern.permute.xlu0 1
      %2568 = vperm.xlu0 %2567, %v861
      %v2569 = vpop.permute.xlu0 %2568
      %2571 = vset.pattern.permute.xlu0 1
      %2572 = vperm.xlu0 %2571, %v864
      %v2573 = vpop.permute.xlu0 %2572
      %v2575 = vlaneseq
      %v2576 = vshrl.u32 %v2575, 7
      %v2577 = vsub.s32 1, %v2576
      %v2578 = vrot.slane %v905, %v2577
      %v2579 = vlaneseq
      %v2580 = vshrl.u32 %v2579, 7
      %v2581 = vsub.s32 1, %v2580
      %v2582 = vrot.slane %v945, %v2581
      %v2583 = vlaneseq
      %v2584 = vshrl.u32 %v2583, 7
      %v2585 = vsub.s32 1, %v2584
      %v2586 = vrot.slane %v985, %v2585
      %v2587 = vlaneseq
      %v2588 = vshrl.u32 %v2587, 7
      %v2589 = vsub.s32 1, %v2588
      %v2590 = vrot.slane %v1025, %v2589
      %v2591 = vlaneseq
      %v2592 = vshrl.u32 %v2591, 7
      %v2593 = vsub.s32 1, %v2592
      %v2594 = vrot.slane %v1065, %v2593
      %v2595 = vlaneseq
      %v2596 = vshrl.u32 %v2595, 7
      %v2597 = vsub.s32 1, %v2596
      %v2598 = vrot.slane %v1105, %v2597
      %v2599 = vlaneseq
      %v2600 = vshrl.u32 %v2599, 7
      %v2601 = vsub.s32 1, %v2600
      %v2602 = vrot.slane %v1145, %v2601
      %v2603 = vlaneseq
      %v2604 = vshrl.u32 %v2603, 7
      %v2605 = vsub.s32 1, %v2604
      %v2606 = vrot.slane %v1185, %v2605
      %v2607 = vadd.f32 %v2449, %v2578
      %v2608 = vadd.f32 %v2453, %v2578
      %v2609 = vadd.f32 %v2457, %v2578
      %v2610 = vadd.f32 %v2461, %v2578
      %v2611 = vadd.f32 %v2465, %v2582
      %v2612 = vadd.f32 %v2469, %v2582
      %v2613 = vadd.f32 %v2473, %v2582
      %v2614 = vadd.f32 %v2477, %v2582
      %v2615 = vadd.f32 %v2481, %v2586
      %v2616 = vadd.f32 %v2485, %v2586
      %v2617 = vadd.f32 %v2489, %v2586
      %v2618 = vadd.f32 %v2493, %v2586
      %v2619 = vadd.f32 %v2497, %v2590
      %v2620 = vadd.f32 %v2501, %v2590
      %v2621 = vadd.f32 %v2505, %v2590
      %v2622 = vadd.f32 %v2509, %v2590
      %v2623 = vadd.f32 %v2513, %v2594
      %v2624 = vadd.f32 %v2517, %v2594
      %v2625 = vadd.f32 %v2521, %v2594
      %v2626 = vadd.f32 %v2525, %v2594
      %v2627 = vadd.f32 %v2529, %v2598
      %v2628 = vadd.f32 %v2533, %v2598
      %v2629 = vadd.f32 %v2537, %v2598
      %v2630 = vadd.f32 %v2541, %v2598
      %v2631 = vadd.f32 %v2545, %v2602
      %v2632 = vadd.f32 %v2549, %v2602
      %v2633 = vadd.f32 %v2553, %v2602
      %v2634 = vadd.f32 %v2557, %v2602
      %v2635 = vadd.f32 %v2561, %v2606
      %v2636 = vadd.f32 %v2565, %v2606
      %v2637 = vadd.f32 %v2569, %v2606
      %v2638 = vadd.f32 %v2573, %v2606
      %vm2639 = vcmp.gt.f32.partialorder %v2607, 0.0
      %vm2640 = vcmp.gt.f32.partialorder %v2608, 0.0
      %vm2641 = vcmp.gt.f32.partialorder %v2609, 0.0
      %vm2642 = vcmp.gt.f32.partialorder %v2610, 0.0
      %vm2643 = vcmp.gt.f32.partialorder %v2611, 0.0
      %vm2644 = vcmp.gt.f32.partialorder %v2612, 0.0
      %vm2645 = vcmp.gt.f32.partialorder %v2613, 0.0
      %vm2646 = vcmp.gt.f32.partialorder %v2614, 0.0
      %vm2647 = vcmp.gt.f32.partialorder %v2615, 0.0
      %vm2648 = vcmp.gt.f32.partialorder %v2616, 0.0
      %vm2649 = vcmp.gt.f32.partialorder %v2617, 0.0
      %vm2650 = vcmp.gt.f32.partialorder %v2618, 0.0
      %vm2651 = vcmp.gt.f32.partialorder %v2619, 0.0
      %vm2652 = vcmp.gt.f32.partialorder %v2620, 0.0
      %vm2653 = vcmp.gt.f32.partialorder %v2621, 0.0
      %vm2654 = vcmp.gt.f32.partialorder %v2622, 0.0
      %vm2655 = vcmp.gt.f32.partialorder %v2623, 0.0
      %vm2656 = vcmp.gt.f32.partialorder %v2624, 0.0
      %vm2657 = vcmp.gt.f32.partialorder %v2625, 0.0
      %vm2658 = vcmp.gt.f32.partialorder %v2626, 0.0
      %vm2659 = vcmp.gt.f32.partialorder %v2627, 0.0
      %vm2660 = vcmp.gt.f32.partialorder %v2628, 0.0
      %vm2661 = vcmp.gt.f32.partialorder %v2629, 0.0
      %vm2662 = vcmp.gt.f32.partialorder %v2630, 0.0
      %vm2663 = vcmp.gt.f32.partialorder %v2631, 0.0
      %vm2664 = vcmp.gt.f32.partialorder %v2632, 0.0
      %vm2665 = vcmp.gt.f32.partialorder %v2633, 0.0
      %vm2666 = vcmp.gt.f32.partialorder %v2634, 0.0
      %vm2667 = vcmp.gt.f32.partialorder %v2635, 0.0
      %vm2668 = vcmp.gt.f32.partialorder %v2636, 0.0
      %vm2669 = vcmp.gt.f32.partialorder %v2637, 0.0
      %vm2670 = vcmp.gt.f32.partialorder %v2638, 0.0
      %v2671 = vmul.f32 %v2607, 0.2
      %v2672 = vmul.f32 %v2608, 0.2
      %v2673 = vmul.f32 %v2609, 0.2
      %v2674 = vmul.f32 %v2610, 0.2
      %v2675 = vmul.f32 %v2611, 0.2
      %v2676 = vmul.f32 %v2612, 0.2
      %v2677 = vmul.f32 %v2613, 0.2
      %v2678 = vmul.f32 %v2614, 0.2
      %v2679 = vmul.f32 %v2615, 0.2
      %v2680 = vmul.f32 %v2616, 0.2
      %v2681 = vmul.f32 %v2617, 0.2
      %v2682 = vmul.f32 %v2618, 0.2
      %v2683 = vmul.f32 %v2619, 0.2
      %v2684 = vmul.f32 %v2620, 0.2
      %v2685 = vmul.f32 %v2621, 0.2
      %v2686 = vmul.f32 %v2622, 0.2
      %v2687 = vmul.f32 %v2623, 0.2
      %v2688 = vmul.f32 %v2624, 0.2
      %v2689 = vmul.f32 %v2625, 0.2
      %v2690 = vmul.f32 %v2626, 0.2
      %v2691 = vmul.f32 %v2627, 0.2
      %v2692 = vmul.f32 %v2628, 0.2
      %v2693 = vmul.f32 %v2629, 0.2
      %v2694 = vmul.f32 %v2630, 0.2
      %v2695 = vmul.f32 %v2631, 0.2
      %v2696 = vmul.f32 %v2632, 0.2
      %v2697 = vmul.f32 %v2633, 0.2
      %v2698 = vmul.f32 %v2634, 0.2
      %v2699 = vmul.f32 %v2635, 0.2
      %v2700 = vmul.f32 %v2636, 0.2
      %v2701 = vmul.f32 %v2637, 0.2
      %v2702 = vmul.f32 %v2638, 0.2
      %v2703 = vsel %vm2639, %v2607, %v2671
      %v2704 = vsel %vm2640, %v2608, %v2672
      %v2705 = vsel %vm2641, %v2609, %v2673
      %v2706 = vsel %vm2642, %v2610, %v2674
      %v2707 = vsel %vm2643, %v2611, %v2675
      %v2708 = vsel %vm2644, %v2612, %v2676
      %v2709 = vsel %vm2645, %v2613, %v2677
      %v2710 = vsel %vm2646, %v2614, %v2678
      %v2711 = vsel %vm2647, %v2615, %v2679
      %v2712 = vsel %vm2648, %v2616, %v2680
      %v2713 = vsel %vm2649, %v2617, %v2681
      %v2714 = vsel %vm2650, %v2618, %v2682
      %v2715 = vsel %vm2651, %v2619, %v2683
      %v2716 = vsel %vm2652, %v2620, %v2684
      %v2717 = vsel %vm2653, %v2621, %v2685
      %v2718 = vsel %vm2654, %v2622, %v2686
      %v2719 = vsel %vm2655, %v2623, %v2687
      %v2720 = vsel %vm2656, %v2624, %v2688
      %v2721 = vsel %vm2657, %v2625, %v2689
      %v2722 = vsel %vm2658, %v2626, %v2690
      %v2723 = vsel %vm2659, %v2627, %v2691
      %v2724 = vsel %vm2660, %v2628, %v2692
      %v2725 = vsel %vm2661, %v2629, %v2693
      %v2726 = vsel %vm2662, %v2630, %v2694
      %v2727 = vsel %vm2663, %v2631, %v2695
      %v2728 = vsel %vm2664, %v2632, %v2696
      %v2729 = vsel %vm2665, %v2633, %v2697
      %v2730 = vsel %vm2666, %v2634, %v2698
      %v2731 = vsel %vm2667, %v2635, %v2699
      %v2732 = vsel %vm2668, %v2636, %v2700
      %v2733 = vsel %vm2669, %v2637, %v2701
      %v2734 = vsel %vm2670, %v2638, %v2702
      %v2735 = vadd.f32 %v2703, %v333
      %v2736 = vadd.f32 %v2704, %v334
      %v2737 = vadd.f32 %v2705, %v335
      %v2738 = vadd.f32 %v2706, %v336
      %v2739 = vadd.f32 %v2707, %v337
      %v2740 = vadd.f32 %v2708, %v338
      %v2741 = vadd.f32 %v2709, %v339
      %v2742 = vadd.f32 %v2710, %v340
      %v2743 = vadd.f32 %v2711, %v341
      %v2744 = vadd.f32 %v2712, %v342
      %v2745 = vadd.f32 %v2713, %v343
      %v2746 = vadd.f32 %v2714, %v344
      %v2747 = vadd.f32 %v2715, %v345
      %v2748 = vadd.f32 %v2716, %v346
      %v2749 = vadd.f32 %v2717, %v347
      %v2750 = vadd.f32 %v2718, %v348
      %v2751 = vadd.f32 %v2719, %v349
      %v2752 = vadd.f32 %v2720, %v350
      %v2753 = vadd.f32 %v2721, %v351
      %v2754 = vadd.f32 %v2722, %v352
      %v2755 = vadd.f32 %v2723, %v353
      %v2756 = vadd.f32 %v2724, %v354
      %v2757 = vadd.f32 %v2725, %v355
      %v2758 = vadd.f32 %v2726, %v356
      %v2759 = vadd.f32 %v2727, %v357
      %v2760 = vadd.f32 %v2728, %v358
      %v2761 = vadd.f32 %v2729, %v359
      %v2762 = vadd.f32 %v2730, %v360
      %v2763 = vadd.f32 %v2731, %v361
      %v2764 = vadd.f32 %v2732, %v362
      %v2765 = vadd.f32 %v2733, %v363
      %v2766 = vadd.f32 %v2734, %v364
      %v2767 = vsel %vm1542, %v2735, -inf
      %2768 = vmax.xlane.f32.xlu0 %v2767
      %v2769 = vpop.xlane.xlu0 %2768
      %v2770 = vsel %vm1542, %v2736, -inf
      %2771 = vmax.xlane.f32.xlu0 %v2770
      %v2772 = vpop.xlane.xlu0 %2771
      %v2773 = vsel %vm1542, %v2737, -inf
      %2774 = vmax.xlane.f32.xlu0 %v2773
      %v2775 = vpop.xlane.xlu0 %2774
      %v2776 = vsel %vm1542, %v2738, -inf
      %2777 = vmax.xlane.f32.xlu0 %v2776
      %v2778 = vpop.xlane.xlu0 %2777
      %v2779 = vsel %vm1542, %v2739, -inf
      %2780 = vmax.xlane.f32.xlu0 %v2779
      %v2781 = vpop.xlane.xlu0 %2780
      %v2782 = vsel %vm1542, %v2740, -inf
      %2783 = vmax.xlane.f32.xlu0 %v2782
      %v2784 = vpop.xlane.xlu0 %2783
      %v2785 = vsel %vm1542, %v2741, -inf
      %2786 = vmax.xlane.f32.xlu0 %v2785
      %v2787 = vpop.xlane.xlu0 %2786
      %v2788 = vsel %vm1542, %v2742, -inf
      %2789 = vmax.xlane.f32.xlu0 %v2788
      %v2790 = vpop.xlane.xlu0 %2789
      %v2791 = vsel %vm1542, %v2743, -inf
      %2792 = vmax.xlane.f32.xlu0 %v2791
      %v2793 = vpop.xlane.xlu0 %2792
      %v2794 = vsel %vm1542, %v2744, -inf
      %2795 = vmax.xlane.f32.xlu0 %v2794
      %v2796 = vpop.xlane.xlu0 %2795
      %v2797 = vsel %vm1542, %v2745, -inf
      %2798 = vmax.xlane.f32.xlu0 %v2797
      %v2799 = vpop.xlane.xlu0 %2798
      %v2800 = vsel %vm1542, %v2746, -inf
      %2801 = vmax.xlane.f32.xlu0 %v2800
      %v2802 = vpop.xlane.xlu0 %2801
      %v2803 = vsel %vm1542, %v2747, -inf
      %2804 = vmax.xlane.f32.xlu0 %v2803
      %v2805 = vpop.xlane.xlu0 %2804
      %v2806 = vsel %vm1542, %v2748, -inf
      %2807 = vmax.xlane.f32.xlu0 %v2806
      %v2808 = vpop.xlane.xlu0 %2807
      %v2809 = vsel %vm1542, %v2749, -inf
      %2810 = vmax.xlane.f32.xlu0 %v2809
      %v2811 = vpop.xlane.xlu0 %2810
      %v2812 = vsel %vm1542, %v2750, -inf
      %2813 = vmax.xlane.f32.xlu0 %v2812
      %v2814 = vpop.xlane.xlu0 %2813
      %v2815 = vsel %vm1542, %v2751, -inf
      %2816 = vmax.xlane.f32.xlu0 %v2815
      %v2817 = vpop.xlane.xlu0 %2816
      %v2818 = vsel %vm1542, %v2752, -inf
      %2819 = vmax.xlane.f32.xlu0 %v2818
      %v2820 = vpop.xlane.xlu0 %2819
      %v2821 = vsel %vm1542, %v2753, -inf
      %2822 = vmax.xlane.f32.xlu0 %v2821
      %v2823 = vpop.xlane.xlu0 %2822
      %v2824 = vsel %vm1542, %v2754, -inf
      %2825 = vmax.xlane.f32.xlu0 %v2824
      %v2826 = vpop.xlane.xlu0 %2825
      %v2827 = vsel %vm1542, %v2755, -inf
      %2828 = vmax.xlane.f32.xlu0 %v2827
      %v2829 = vpop.xlane.xlu0 %2828
      %v2830 = vsel %vm1542, %v2756, -inf
      %2831 = vmax.xlane.f32.xlu0 %v2830
      %v2832 = vpop.xlane.xlu0 %2831
      %v2833 = vsel %vm1542, %v2757, -inf
      %2834 = vmax.xlane.f32.xlu0 %v2833
      %v2835 = vpop.xlane.xlu0 %2834
      %v2836 = vsel %vm1542, %v2758, -inf
      %2837 = vmax.xlane.f32.xlu0 %v2836
      %v2838 = vpop.xlane.xlu0 %2837
      %v2839 = vsel %vm1542, %v2759, -inf
      %2840 = vmax.xlane.f32.xlu0 %v2839
      %v2841 = vpop.xlane.xlu0 %2840
      %v2842 = vsel %vm1542, %v2760, -inf
      %2843 = vmax.xlane.f32.xlu0 %v2842
      %v2844 = vpop.xlane.xlu0 %2843
      %v2845 = vsel %vm1542, %v2761, -inf
      %2846 = vmax.xlane.f32.xlu0 %v2845
      %v2847 = vpop.xlane.xlu0 %2846
      %v2848 = vsel %vm1542, %v2762, -inf
      %2849 = vmax.xlane.f32.xlu0 %v2848
      %v2850 = vpop.xlane.xlu0 %2849
      %v2851 = vsel %vm1542, %v2763, -inf
      %2852 = vmax.xlane.f32.xlu0 %v2851
      %v2853 = vpop.xlane.xlu0 %2852
      %v2854 = vsel %vm1542, %v2764, -inf
      %2855 = vmax.xlane.f32.xlu0 %v2854
      %v2856 = vpop.xlane.xlu0 %2855
      %v2857 = vsel %vm1542, %v2765, -inf
      %2858 = vmax.xlane.f32.xlu0 %v2857
      %v2859 = vpop.xlane.xlu0 %2858
      %v2860 = vsel %vm1542, %v2766, -inf
      %2861 = vmax.xlane.f32.xlu0 %v2860
      %v2862 = vpop.xlane.xlu0 %2861
      %v2863 = vsub.f32 %v2735, %v2769
      %v2864 = vsub.f32 %v2736, %v2772
      %v2865 = vsub.f32 %v2737, %v2775
      %v2866 = vsub.f32 %v2738, %v2778
      %v2867 = vsub.f32 %v2739, %v2781
      %v2868 = vsub.f32 %v2740, %v2784
      %v2869 = vsub.f32 %v2741, %v2787
      %v2870 = vsub.f32 %v2742, %v2790
      %v2871 = vsub.f32 %v2743, %v2793
      %v2872 = vsub.f32 %v2744, %v2796
      %v2873 = vsub.f32 %v2745, %v2799
      %v2874 = vsub.f32 %v2746, %v2802
      %v2875 = vsub.f32 %v2747, %v2805
      %v2876 = vsub.f32 %v2748, %v2808
      %v2877 = vsub.f32 %v2749, %v2811
      %v2878 = vsub.f32 %v2750, %v2814
      %v2879 = vsub.f32 %v2751, %v2817
      %v2880 = vsub.f32 %v2752, %v2820
      %v2881 = vsub.f32 %v2753, %v2823
      %v2882 = vsub.f32 %v2754, %v2826
      %v2883 = vsub.f32 %v2755, %v2829
      %v2884 = vsub.f32 %v2756, %v2832
      %v2885 = vsub.f32 %v2757, %v2835
      %v2886 = vsub.f32 %v2758, %v2838
      %v2887 = vsub.f32 %v2759, %v2841
      %v2888 = vsub.f32 %v2760, %v2844
      %v2889 = vsub.f32 %v2761, %v2847
      %v2890 = vsub.f32 %v2762, %v2850
      %v2891 = vsub.f32 %v2763, %v2853
      %v2892 = vsub.f32 %v2764, %v2856
      %v2893 = vsub.f32 %v2765, %v2859
      %v2894 = vsub.f32 %v2766, %v2862
      %v2895 = vmul.f32 %v2863, 1.442695
      %v2896 = vpow.pop %v2895
      %v2897 = vmul.f32 %v2864, 1.442695
      %v2898 = vpow.pop %v2897
      %v2899 = vmul.f32 %v2865, 1.442695
      %v2900 = vpow.pop %v2899
      %v2901 = vmul.f32 %v2866, 1.442695
      %v2902 = vpow.pop %v2901
      %v2903 = vmul.f32 %v2867, 1.442695
      %v2904 = vpow.pop %v2903
      %v2905 = vmul.f32 %v2868, 1.442695
      %v2906 = vpow.pop %v2905
      %v2907 = vmul.f32 %v2869, 1.442695
      %v2908 = vpow.pop %v2907
      %v2909 = vmul.f32 %v2870, 1.442695
      %v2910 = vpow.pop %v2909
      %v2911 = vmul.f32 %v2871, 1.442695
      %v2912 = vpow.pop %v2911
      %v2913 = vmul.f32 %v2872, 1.442695
      %v2914 = vpow.pop %v2913
      %v2915 = vmul.f32 %v2873, 1.442695
      %v2916 = vpow.pop %v2915
      %v2917 = vmul.f32 %v2874, 1.442695
      %v2918 = vpow.pop %v2917
      %v2919 = vmul.f32 %v2875, 1.442695
      %v2920 = vpow.pop %v2919
      %v2921 = vmul.f32 %v2876, 1.442695
      %v2922 = vpow.pop %v2921
      %v2923 = vmul.f32 %v2877, 1.442695
      %v2924 = vpow.pop %v2923
      %v2925 = vmul.f32 %v2878, 1.442695
      %v2926 = vpow.pop %v2925
      %v2927 = vmul.f32 %v2879, 1.442695
      %v2928 = vpow.pop %v2927
      %v2929 = vmul.f32 %v2880, 1.442695
      %v2930 = vpow.pop %v2929
      %v2931 = vmul.f32 %v2881, 1.442695
      %v2932 = vpow.pop %v2931
      %v2933 = vmul.f32 %v2882, 1.442695
      %v2934 = vpow.pop %v2933
      %v2935 = vmul.f32 %v2883, 1.442695
      %v2936 = vpow.pop %v2935
      %v2937 = vmul.f32 %v2884, 1.442695
      %v2938 = vpow.pop %v2937
      %v2939 = vmul.f32 %v2885, 1.442695
      %v2940 = vpow.pop %v2939
      %v2941 = vmul.f32 %v2886, 1.442695
      %v2942 = vpow.pop %v2941
      %v2943 = vmul.f32 %v2887, 1.442695
      %v2944 = vpow.pop %v2943
      %v2945 = vmul.f32 %v2888, 1.442695
      %v2946 = vpow.pop %v2945
      %v2947 = vmul.f32 %v2889, 1.442695
      %v2948 = vpow.pop %v2947
      %v2949 = vmul.f32 %v2890, 1.442695
      %v2950 = vpow.pop %v2949
      %v2951 = vmul.f32 %v2891, 1.442695
      %v2952 = vpow.pop %v2951
      %v2953 = vmul.f32 %v2892, 1.442695
      %v2954 = vpow.pop %v2953
      %v2955 = vmul.f32 %v2893, 1.442695
      %v2956 = vpow.pop %v2955
      %v2957 = vmul.f32 %v2894, 1.442695
      %v2958 = vpow.pop %v2957
      %v2959 = vsel %vm1542, %v2896, 0.0
      %2960 = vadd.xlane.f32.xlu0 %v2959
      %v2961 = vpop.xlane.xlu0 %2960
      %v2962 = vsel %vm1542, %v2898, 0.0
      %2963 = vadd.xlane.f32.xlu0 %v2962
      %v2964 = vpop.xlane.xlu0 %2963
      %v2965 = vsel %vm1542, %v2900, 0.0
      %2966 = vadd.xlane.f32.xlu0 %v2965
      %v2967 = vpop.xlane.xlu0 %2966
      %v2968 = vsel %vm1542, %v2902, 0.0
      %2969 = vadd.xlane.f32.xlu0 %v2968
      %v2970 = vpop.xlane.xlu0 %2969
      %v2971 = vsel %vm1542, %v2904, 0.0
      %2972 = vadd.xlane.f32.xlu0 %v2971
      %v2973 = vpop.xlane.xlu0 %2972
      %v2974 = vsel %vm1542, %v2906, 0.0
      %2975 = vadd.xlane.f32.xlu0 %v2974
      %v2976 = vpop.xlane.xlu0 %2975
      %v2977 = vsel %vm1542, %v2908, 0.0
      %2978 = vadd.xlane.f32.xlu0 %v2977
      %v2979 = vpop.xlane.xlu0 %2978
      %v2980 = vsel %vm1542, %v2910, 0.0
      %2981 = vadd.xlane.f32.xlu0 %v2980
      %v2982 = vpop.xlane.xlu0 %2981
      %v2983 = vsel %vm1542, %v2912, 0.0
      %2984 = vadd.xlane.f32.xlu0 %v2983
      %v2985 = vpop.xlane.xlu0 %2984
      %v2986 = vsel %vm1542, %v2914, 0.0
      %2987 = vadd.xlane.f32.xlu0 %v2986
      %v2988 = vpop.xlane.xlu0 %2987
      %v2989 = vsel %vm1542, %v2916, 0.0
      %2990 = vadd.xlane.f32.xlu0 %v2989
      %v2991 = vpop.xlane.xlu0 %2990
      %v2992 = vsel %vm1542, %v2918, 0.0
      %2993 = vadd.xlane.f32.xlu0 %v2992
      %v2994 = vpop.xlane.xlu0 %2993
      %v2995 = vsel %vm1542, %v2920, 0.0
      %2996 = vadd.xlane.f32.xlu0 %v2995
      %v2997 = vpop.xlane.xlu0 %2996
      %v2998 = vsel %vm1542, %v2922, 0.0
      %2999 = vadd.xlane.f32.xlu0 %v2998
      %v3000 = vpop.xlane.xlu0 %2999
      %v3001 = vsel %vm1542, %v2924, 0.0
      %3002 = vadd.xlane.f32.xlu0 %v3001
      %v3003 = vpop.xlane.xlu0 %3002
      %v3004 = vsel %vm1542, %v2926, 0.0
      %3005 = vadd.xlane.f32.xlu0 %v3004
      %v3006 = vpop.xlane.xlu0 %3005
      %v3007 = vsel %vm1542, %v2928, 0.0
      %3008 = vadd.xlane.f32.xlu0 %v3007
      %v3009 = vpop.xlane.xlu0 %3008
      %v3010 = vsel %vm1542, %v2930, 0.0
      %3011 = vadd.xlane.f32.xlu0 %v3010
      %v3012 = vpop.xlane.xlu0 %3011
      %v3013 = vsel %vm1542, %v2932, 0.0
      %3014 = vadd.xlane.f32.xlu0 %v3013
      %v3015 = vpop.xlane.xlu0 %3014
      %v3016 = vsel %vm1542, %v2934, 0.0
      %3017 = vadd.xlane.f32.xlu0 %v3016
      %v3018 = vpop.xlane.xlu0 %3017
      %v3019 = vsel %vm1542, %v2936, 0.0
      %3020 = vadd.xlane.f32.xlu0 %v3019
      %v3021 = vpop.xlane.xlu0 %3020
      %v3022 = vsel %vm1542, %v2938, 0.0
      %3023 = vadd.xlane.f32.xlu0 %v3022
      %v3024 = vpop.xlane.xlu0 %3023
      %v3025 = vsel %vm1542, %v2940, 0.0
      %3026 = vadd.xlane.f32.xlu0 %v3025
      %v3027 = vpop.xlane.xlu0 %3026
      %v3028 = vsel %vm1542, %v2942, 0.0
      %3029 = vadd.xlane.f32.xlu0 %v3028
      %v3030 = vpop.xlane.xlu0 %3029
      %v3031 = vsel %vm1542, %v2944, 0.0
      %3032 = vadd.xlane.f32.xlu0 %v3031
      %v3033 = vpop.xlane.xlu0 %3032
      %v3034 = vsel %vm1542, %v2946, 0.0
      %3035 = vadd.xlane.f32.xlu0 %v3034
      %v3036 = vpop.xlane.xlu0 %3035
      %v3037 = vsel %vm1542, %v2948, 0.0
      %3038 = vadd.xlane.f32.xlu0 %v3037
      %v3039 = vpop.xlane.xlu0 %3038
      %v3040 = vsel %vm1542, %v2950, 0.0
      %3041 = vadd.xlane.f32.xlu0 %v3040
      %v3042 = vpop.xlane.xlu0 %3041
      %v3043 = vsel %vm1542, %v2952, 0.0
      %3044 = vadd.xlane.f32.xlu0 %v3043
      %v3045 = vpop.xlane.xlu0 %3044
      %v3046 = vsel %vm1542, %v2954, 0.0
      %3047 = vadd.xlane.f32.xlu0 %v3046
      %v3048 = vpop.xlane.xlu0 %3047
      %v3049 = vsel %vm1542, %v2956, 0.0
      %3050 = vadd.xlane.f32.xlu0 %v3049
      %v3051 = vpop.xlane.xlu0 %3050
      %v3052 = vsel %vm1542, %v2958, 0.0
      %3053 = vadd.xlane.f32.xlu0 %v3052
      %v3054 = vpop.xlane.xlu0 %3053
      %v3055 = vrcp.pop %v2961
      %v3056 = vrcp.pop %v2964
      %v3057 = vrcp.pop %v2967
      %v3058 = vrcp.pop %v2970
      %v3059 = vrcp.pop %v2973
      %v3060 = vrcp.pop %v2976
      %v3061 = vrcp.pop %v2979
      %v3062 = vrcp.pop %v2982
      %v3063 = vrcp.pop %v2985
      %v3064 = vrcp.pop %v2988
      %v3065 = vrcp.pop %v2991
      %v3066 = vrcp.pop %v2994
      %v3067 = vrcp.pop %v2997
      %v3068 = vrcp.pop %v3000
      %v3069 = vrcp.pop %v3003
      %v3070 = vrcp.pop %v3006
      %v3071 = vrcp.pop %v3009
      %v3072 = vrcp.pop %v3012
      %v3073 = vrcp.pop %v3015
      %v3074 = vrcp.pop %v3018
      %v3075 = vrcp.pop %v3021
      %v3076 = vrcp.pop %v3024
      %v3077 = vrcp.pop %v3027
      %v3078 = vrcp.pop %v3030
      %v3079 = vrcp.pop %v3033
      %v3080 = vrcp.pop %v3036
      %v3081 = vrcp.pop %v3039
      %v3082 = vrcp.pop %v3042
      %v3083 = vrcp.pop %v3045
      %v3084 = vrcp.pop %v3048
      %v3085 = vrcp.pop %v3051
      %v3086 = vrcp.pop %v3054
      %v3087 = vmul.f32 %v2961, %v3055
      %v3088 = vmul.f32 %v2964, %v3056
      %v3089 = vmul.f32 %v2967, %v3057
      %v3090 = vmul.f32 %v2970, %v3058
      %v3091 = vmul.f32 %v2973, %v3059
      %v3092 = vmul.f32 %v2976, %v3060
      %v3093 = vmul.f32 %v2979, %v3061
      %v3094 = vmul.f32 %v2982, %v3062
      %v3095 = vmul.f32 %v2985, %v3063
      %v3096 = vmul.f32 %v2988, %v3064
      %v3097 = vmul.f32 %v2991, %v3065
      %v3098 = vmul.f32 %v2994, %v3066
      %v3099 = vmul.f32 %v2997, %v3067
      %v3100 = vmul.f32 %v3000, %v3068
      %v3101 = vmul.f32 %v3003, %v3069
      %v3102 = vmul.f32 %v3006, %v3070
      %v3103 = vmul.f32 %v3009, %v3071
      %v3104 = vmul.f32 %v3012, %v3072
      %v3105 = vmul.f32 %v3015, %v3073
      %v3106 = vmul.f32 %v3018, %v3074
      %v3107 = vmul.f32 %v3021, %v3075
      %v3108 = vmul.f32 %v3024, %v3076
      %v3109 = vmul.f32 %v3027, %v3077
      %v3110 = vmul.f32 %v3030, %v3078
      %v3111 = vmul.f32 %v3033, %v3079
      %v3112 = vmul.f32 %v3036, %v3080
      %v3113 = vmul.f32 %v3039, %v3081
      %v3114 = vmul.f32 %v3042, %v3082
      %v3115 = vmul.f32 %v3045, %v3083
      %v3116 = vmul.f32 %v3048, %v3084
      %v3117 = vmul.f32 %v3051, %v3085
      %v3118 = vmul.f32 %v3054, %v3086
      %v3119 = vsub.f32 2.0, %v3087
      %v3120 = vsub.f32 2.0, %v3088
      %v3121 = vsub.f32 2.0, %v3089
      %v3122 = vsub.f32 2.0, %v3090
      %v3123 = vsub.f32 2.0, %v3091
      %v3124 = vsub.f32 2.0, %v3092
      %v3125 = vsub.f32 2.0, %v3093
      %v3126 = vsub.f32 2.0, %v3094
      %v3127 = vsub.f32 2.0, %v3095
      %v3128 = vsub.f32 2.0, %v3096
      %v3129 = vsub.f32 2.0, %v3097
      %v3130 = vsub.f32 2.0, %v3098
      %v3131 = vsub.f32 2.0, %v3099
      %v3132 = vsub.f32 2.0, %v3100
      %v3133 = vsub.f32 2.0, %v3101
      %v3134 = vsub.f32 2.0, %v3102
      %v3135 = vsub.f32 2.0, %v3103
      %v3136 = vsub.f32 2.0, %v3104
      %v3137 = vsub.f32 2.0, %v3105
      %v3138 = vsub.f32 2.0, %v3106
      %v3139 = vsub.f32 2.0, %v3107
      %v3140 = vsub.f32 2.0, %v3108
      %v3141 = vsub.f32 2.0, %v3109
      %v3142 = vsub.f32 2.0, %v3110
      %v3143 = vsub.f32 2.0, %v3111
      %v3144 = vsub.f32 2.0, %v3112
      %v3145 = vsub.f32 2.0, %v3113
      %v3146 = vsub.f32 2.0, %v3114
      %v3147 = vsub.f32 2.0, %v3115
      %v3148 = vsub.f32 2.0, %v3116
      %v3149 = vsub.f32 2.0, %v3117
      %v3150 = vsub.f32 2.0, %v3118
      %v3151 = vmul.f32 %v3055, %v3119
      %v3152 = vmul.f32 %v3056, %v3120
      %v3153 = vmul.f32 %v3057, %v3121
      %v3154 = vmul.f32 %v3058, %v3122
      %v3155 = vmul.f32 %v3059, %v3123
      %v3156 = vmul.f32 %v3060, %v3124
      %v3157 = vmul.f32 %v3061, %v3125
      %v3158 = vmul.f32 %v3062, %v3126
      %v3159 = vmul.f32 %v3063, %v3127
      %v3160 = vmul.f32 %v3064, %v3128
      %v3161 = vmul.f32 %v3065, %v3129
      %v3162 = vmul.f32 %v3066, %v3130
      %v3163 = vmul.f32 %v3067, %v3131
      %v3164 = vmul.f32 %v3068, %v3132
      %v3165 = vmul.f32 %v3069, %v3133
      %v3166 = vmul.f32 %v3070, %v3134
      %v3167 = vmul.f32 %v3071, %v3135
      %v3168 = vmul.f32 %v3072, %v3136
      %v3169 = vmul.f32 %v3073, %v3137
      %v3170 = vmul.f32 %v3074, %v3138
      %v3171 = vmul.f32 %v3075, %v3139
      %v3172 = vmul.f32 %v3076, %v3140
      %v3173 = vmul.f32 %v3077, %v3141
      %v3174 = vmul.f32 %v3078, %v3142
      %v3175 = vmul.f32 %v3079, %v3143
      %v3176 = vmul.f32 %v3080, %v3144
      %v3177 = vmul.f32 %v3081, %v3145
      %v3178 = vmul.f32 %v3082, %v3146
      %v3179 = vmul.f32 %v3083, %v3147
      %v3180 = vmul.f32 %v3084, %v3148
      %v3181 = vmul.f32 %v3085, %v3149
      %v3182 = vmul.f32 %v3086, %v3150
      %v3183 = vmul.f32 %v2896, %v3151
      %v3184 = vmul.f32 %v2898, %v3152
      %v3185 = vmul.f32 %v2900, %v3153
      %v3186 = vmul.f32 %v2902, %v3154
      %v3187 = vmul.f32 %v2904, %v3155
      %v3188 = vmul.f32 %v2906, %v3156
      %v3189 = vmul.f32 %v2908, %v3157
      %v3190 = vmul.f32 %v2910, %v3158
      %v3191 = vmul.f32 %v2912, %v3159
      %v3192 = vmul.f32 %v2914, %v3160
      %v3193 = vmul.f32 %v2916, %v3161
      %v3194 = vmul.f32 %v2918, %v3162
      %v3195 = vmul.f32 %v2920, %v3163
      %v3196 = vmul.f32 %v2922, %v3164
      %v3197 = vmul.f32 %v2924, %v3165
      %v3198 = vmul.f32 %v2926, %v3166
      %v3199 = vmul.f32 %v2928, %v3167
      %v3200 = vmul.f32 %v2930, %v3168
      %v3201 = vmul.f32 %v2932, %v3169
      %v3202 = vmul.f32 %v2934, %v3170
      %v3203 = vmul.f32 %v2936, %v3171
      %v3204 = vmul.f32 %v2938, %v3172
      %v3205 = vmul.f32 %v2940, %v3173
      %v3206 = vmul.f32 %v2942, %v3174
      %v3207 = vmul.f32 %v2944, %v3175
      %v3208 = vmul.f32 %v2946, %v3176
      %v3209 = vmul.f32 %v2948, %v3177
      %v3210 = vmul.f32 %v2950, %v3178
      %v3211 = vmul.f32 %v2952, %v3179
      %v3212 = vmul.f32 %v2954, %v3180
      %v3213 = vmul.f32 %v2956, %v3181
      %v3214 = vmul.f32 %v2958, %v3182
      %v3215 = vpack.c.bf16 %v3184, %v3183
      %v3216 = vpack.c.bf16 %v3186, %v3185
      %v3217 = vpack.c.bf16 %v3188, %v3187
      %v3218 = vpack.c.bf16 %v3190, %v3189
      %v3219 = vpack.c.bf16 %v3192, %v3191
      %v3220 = vpack.c.bf16 %v3194, %v3193
      %v3221 = vpack.c.bf16 %v3196, %v3195
      %v3222 = vpack.c.bf16 %v3198, %v3197
      %v3223 = vpack.c.bf16 %v3200, %v3199
      %v3224 = vpack.c.bf16 %v3202, %v3201
      %v3225 = vpack.c.bf16 %v3204, %v3203
      %v3226 = vpack.c.bf16 %v3206, %v3205
      %v3227 = vpack.c.bf16 %v3208, %v3207
      %v3228 = vpack.c.bf16 %v3210, %v3209
      %v3229 = vpack.c.bf16 %v3212, %v3211
      %v3230 = vpack.c.bf16 %v3214, %v3213
      %3233 = vrot.lane.b32.xlu0 %v636, 120
      %v3234 = vpop.permute.xlu0 %3233
      %3235 = vrot.lane.b32.xlu0 %v637, 120
      %v3236 = vpop.permute.xlu0 %3235
      %v3240 = vsel %vm1542, %v3215, 0
      %v3243 = vsel %vm1542, %v3216, 0
      %3245 = vmatprep.subr.bf16.mxu0 0
      %3246 = vmatpush1.bf16.msra.mxu0 0
      %3247 = vmatprep.subr.bf16.mxu0 0
      %3248 = vmatpush1.bf16.msra.mxu0 0
      %3249 = vmatprep.subr.bf16.mxu0 0
      %3250 = vmatpush1.bf16.msra.mxu0 0
      %3251 = vmatprep.subr.bf16.mxu0 0
      %3252 = vmatpush1.bf16.msra.mxu0 0
      %3253 = vmatprep.subr.bf16.mxu0 0
      %3254 = vmatpush1.bf16.msra.mxu0 0
      %3255 = vmatprep.subr.bf16.mxu0 0
      %3256 = vmatpush1.bf16.msra.mxu0 0
      %3257 = vmatprep.subr.bf16.mxu0 0
      %3258 = vmatpush1.bf16.msra.mxu0 %v3236
      %3259 = vmatprep.subr.bf16.mxu0 0
      %3260 = vmatpush1.bf16.msra.mxu0 %v3234
      %3261 = vmatprep.subr.bf16.mxu0 0
      %3262 = vmatpush2.bf16.msra.mxu0 0
      %3263 = vmatprep.subr.bf16.mxu0 0
      %3264 = vmatpush2.bf16.msra.mxu0 0
      %3265 = vmatprep.subr.bf16.mxu0 0
      %3266 = vmatpush2.bf16.msra.mxu0 0
      %3267 = vmatprep.subr.bf16.mxu0 0
      %3268 = vmatpush2.bf16.msra.mxu0 0
      %3269 = vmatprep.subr.bf16.mxu0 0
      %3270 = vmatpush2.bf16.msra.mxu0 0
      %3271 = vmatprep.subr.bf16.mxu0 0
      %3272 = vmatpush2.bf16.msra.mxu0 0
      %3273 = vmatprep.subr.bf16.mxu0 0
      %3274 = vmatpush2.bf16.msra.mxu0 0
      %3275 = vmatprep.subr.bf16.mxu0 0
      %3276 = vmatpush2.bf16.msra.mxu0 0
      %3277 = vmatprep.mubr.bf16.mxu0 0
      %3278 = vmatmul.mubr.bf16.gmra.mxu0 %v3240
      %v3279 = vpop.f32.mrf.mxu0
      %v3280 = vadd.f32 0.0, %v3279
      %v3281 = vpop.f32.mrf.mxu0
      %v3282 = vpop.f32.mrf.mxu0
      %v3283 = vadd.f32 0.0, %v3282
      %v3284 = vpop.f32.mrf.mxu0
      %3285 = vmatprep.mubr.bf16.mxu0 0
      %3286 = vmatmul.mubr.bf16.gmra.mxu0 %v3243
      %v3287 = vpop.f32.mrf.mxu0
      %v3288 = vadd.f32 0.0, %v3287
      %v3289 = vpop.f32.mrf.mxu0
      %v3290 = vpop.f32.mrf.mxu0
      %v3291 = vadd.f32 0.0, %v3290
      %v3292 = vpop.f32.mrf.mxu0
      %3293 = vdwg.mxu0
      %3296 = vrot.lane.b32.xlu0 %v638, 120
      %v3297 = vpop.permute.xlu0 %3296
      %3298 = vrot.lane.b32.xlu0 %v639, 120
      %v3299 = vpop.permute.xlu0 %3298
      %v3303 = vsel %vm1542, %v3217, 0
      %v3306 = vsel %vm1542, %v3218, 0
      %3308 = vmatprep.subr.bf16.mxu0 0
      %3309 = vmatpush1.bf16.msra.mxu0 0
      %3310 = vmatprep.subr.bf16.mxu0 0
      %3311 = vmatpush1.bf16.msra.mxu0 0
      %3312 = vmatprep.subr.bf16.mxu0 0
      %3313 = vmatpush1.bf16.msra.mxu0 0
      %3314 = vmatprep.subr.bf16.mxu0 0
      %3315 = vmatpush1.bf16.msra.mxu0 0
      %3316 = vmatprep.subr.bf16.mxu0 0
      %3317 = vmatpush1.bf16.msra.mxu0 0
      %3318 = vmatprep.subr.bf16.mxu0 0
      %3319 = vmatpush1.bf16.msra.mxu0 0
      %3320 = vmatprep.subr.bf16.mxu0 0
      %3321 = vmatpush1.bf16.msra.mxu0 %v3299
      %3322 = vmatprep.subr.bf16.mxu0 0
      %3323 = vmatpush1.bf16.msra.mxu0 %v3297
      %3324 = vmatprep.subr.bf16.mxu0 0
      %3325 = vmatpush2.bf16.msra.mxu0 0
      %3326 = vmatprep.subr.bf16.mxu0 0
      %3327 = vmatpush2.bf16.msra.mxu0 0
      %3328 = vmatprep.subr.bf16.mxu0 0
      %3329 = vmatpush2.bf16.msra.mxu0 0
      %3330 = vmatprep.subr.bf16.mxu0 0
      %3331 = vmatpush2.bf16.msra.mxu0 0
      %3332 = vmatprep.subr.bf16.mxu0 0
      %3333 = vmatpush2.bf16.msra.mxu0 0
      %3334 = vmatprep.subr.bf16.mxu0 0
      %3335 = vmatpush2.bf16.msra.mxu0 0
      %3336 = vmatprep.subr.bf16.mxu0 0
      %3337 = vmatpush2.bf16.msra.mxu0 0
      %3338 = vmatprep.subr.bf16.mxu0 0
      %3339 = vmatpush2.bf16.msra.mxu0 0
      %3340 = vmatprep.mubr.bf16.mxu0 0
      %3341 = vmatmul.mubr.bf16.gmra.mxu0 %v3303
      %v3342 = vpop.f32.mrf.mxu0
      %v3343 = vadd.f32 0.0, %v3342
      %v3344 = vpop.f32.mrf.mxu0
      %v3345 = vpop.f32.mrf.mxu0
      %v3346 = vadd.f32 0.0, %v3345
      %v3347 = vpop.f32.mrf.mxu0
      %3348 = vmatprep.mubr.bf16.mxu0 0
      %3349 = vmatmul.mubr.bf16.gmra.mxu0 %v3306
      %v3350 = vpop.f32.mrf.mxu0
      %v3351 = vadd.f32 0.0, %v3350
      %v3352 = vpop.f32.mrf.mxu0
      %v3353 = vpop.f32.mrf.mxu0
      %v3354 = vadd.f32 0.0, %v3353
      %v3355 = vpop.f32.mrf.mxu0
      %3356 = vdwg.mxu0
      %3359 = vrot.lane.b32.xlu0 %v640, 120
      %v3360 = vpop.permute.xlu0 %3359
      %3361 = vrot.lane.b32.xlu0 %v641, 120
      %v3362 = vpop.permute.xlu0 %3361
      %v3366 = vsel %vm1542, %v3219, 0
      %v3369 = vsel %vm1542, %v3220, 0
      %3371 = vmatprep.subr.bf16.mxu0 0
      %3372 = vmatpush1.bf16.msra.mxu0 0
      %3373 = vmatprep.subr.bf16.mxu0 0
      %3374 = vmatpush1.bf16.msra.mxu0 0
      %3375 = vmatprep.subr.bf16.mxu0 0
      %3376 = vmatpush1.bf16.msra.mxu0 0
      %3377 = vmatprep.subr.bf16.mxu0 0
      %3378 = vmatpush1.bf16.msra.mxu0 0
      %3379 = vmatprep.subr.bf16.mxu0 0
      %3380 = vmatpush1.bf16.msra.mxu0 0
      %3381 = vmatprep.subr.bf16.mxu0 0
      %3382 = vmatpush1.bf16.msra.mxu0 0
      %3383 = vmatprep.subr.bf16.mxu0 0
      %3384 = vmatpush1.bf16.msra.mxu0 %v3362
      %3385 = vmatprep.subr.bf16.mxu0 0
      %3386 = vmatpush1.bf16.msra.mxu0 %v3360
      %3387 = vmatprep.subr.bf16.mxu0 0
      %3388 = vmatpush2.bf16.msra.mxu0 0
      %3389 = vmatprep.subr.bf16.mxu0 0
      %3390 = vmatpush2.bf16.msra.mxu0 0
      %3391 = vmatprep.subr.bf16.mxu0 0
      %3392 = vmatpush2.bf16.msra.mxu0 0
      %3393 = vmatprep.subr.bf16.mxu0 0
      %3394 = vmatpush2.bf16.msra.mxu0 0
      %3395 = vmatprep.subr.bf16.mxu0 0
      %3396 = vmatpush2.bf16.msra.mxu0 0
      %3397 = vmatprep.subr.bf16.mxu0 0
      %3398 = vmatpush2.bf16.msra.mxu0 0
      %3399 = vmatprep.subr.bf16.mxu0 0
      %3400 = vmatpush2.bf16.msra.mxu0 0
      %3401 = vmatprep.subr.bf16.mxu0 0
      %3402 = vmatpush2.bf16.msra.mxu0 0
      %3403 = vmatprep.mubr.bf16.mxu0 0
      %3404 = vmatmul.mubr.bf16.gmra.mxu0 %v3366
      %v3405 = vpop.f32.mrf.mxu0
      %v3406 = vadd.f32 0.0, %v3405
      %v3407 = vpop.f32.mrf.mxu0
      %v3408 = vpop.f32.mrf.mxu0
      %v3409 = vadd.f32 0.0, %v3408
      %v3410 = vpop.f32.mrf.mxu0
      %3411 = vmatprep.mubr.bf16.mxu0 0
      %3412 = vmatmul.mubr.bf16.gmra.mxu0 %v3369
      %v3413 = vpop.f32.mrf.mxu0
      %v3414 = vadd.f32 0.0, %v3413
      %v3415 = vpop.f32.mrf.mxu0
      %v3416 = vpop.f32.mrf.mxu0
      %v3417 = vadd.f32 0.0, %v3416
      %v3418 = vpop.f32.mrf.mxu0
      %3419 = vdwg.mxu0
      %3422 = vrot.lane.b32.xlu0 %v642, 120
      %v3423 = vpop.permute.xlu0 %3422
      %3424 = vrot.lane.b32.xlu0 %v643, 120
      %v3425 = vpop.permute.xlu0 %3424
      %v3429 = vsel %vm1542, %v3221, 0
      %v3432 = vsel %vm1542, %v3222, 0
      %3434 = vmatprep.subr.bf16.mxu0 0
      %3435 = vmatpush1.bf16.msra.mxu0 0
      %3436 = vmatprep.subr.bf16.mxu0 0
      %3437 = vmatpush1.bf16.msra.mxu0 0
      %3438 = vmatprep.subr.bf16.mxu0 0
      %3439 = vmatpush1.bf16.msra.mxu0 0
      %3440 = vmatprep.subr.bf16.mxu0 0
      %3441 = vmatpush1.bf16.msra.mxu0 0
      %3442 = vmatprep.subr.bf16.mxu0 0
      %3443 = vmatpush1.bf16.msra.mxu0 0
      %3444 = vmatprep.subr.bf16.mxu0 0
      %3445 = vmatpush1.bf16.msra.mxu0 0
      %3446 = vmatprep.subr.bf16.mxu0 0
      %3447 = vmatpush1.bf16.msra.mxu0 %v3425
      %3448 = vmatprep.subr.bf16.mxu0 0
      %3449 = vmatpush1.bf16.msra.mxu0 %v3423
      %3450 = vmatprep.subr.bf16.mxu0 0
      %3451 = vmatpush2.bf16.msra.mxu0 0
      %3452 = vmatprep.subr.bf16.mxu0 0
      %3453 = vmatpush2.bf16.msra.mxu0 0
      %3454 = vmatprep.subr.bf16.mxu0 0
      %3455 = vmatpush2.bf16.msra.mxu0 0
      %3456 = vmatprep.subr.bf16.mxu0 0
      %3457 = vmatpush2.bf16.msra.mxu0 0
      %3458 = vmatprep.subr.bf16.mxu0 0
      %3459 = vmatpush2.bf16.msra.mxu0 0
      %3460 = vmatprep.subr.bf16.mxu0 0
      %3461 = vmatpush2.bf16.msra.mxu0 0
      %3462 = vmatprep.subr.bf16.mxu0 0
      %3463 = vmatpush2.bf16.msra.mxu0 0
      %3464 = vmatprep.subr.bf16.mxu0 0
      %3465 = vmatpush2.bf16.msra.mxu0 0
      %3466 = vmatprep.mubr.bf16.mxu0 0
      %3467 = vmatmul.mubr.bf16.gmra.mxu0 %v3429
      %v3468 = vpop.f32.mrf.mxu0
      %v3469 = vadd.f32 0.0, %v3468
      %v3470 = vpop.f32.mrf.mxu0
      %v3471 = vpop.f32.mrf.mxu0
      %v3472 = vadd.f32 0.0, %v3471
      %v3473 = vpop.f32.mrf.mxu0
      %3474 = vmatprep.mubr.bf16.mxu0 0
      %3475 = vmatmul.mubr.bf16.gmra.mxu0 %v3432
      %v3476 = vpop.f32.mrf.mxu0
      %v3477 = vadd.f32 0.0, %v3476
      %v3478 = vpop.f32.mrf.mxu0
      %v3479 = vpop.f32.mrf.mxu0
      %v3480 = vadd.f32 0.0, %v3479
      %v3481 = vpop.f32.mrf.mxu0
      %3482 = vdwg.mxu0
      %3485 = vrot.lane.b32.xlu0 %v644, 120
      %v3486 = vpop.permute.xlu0 %3485
      %3487 = vrot.lane.b32.xlu0 %v645, 120
      %v3488 = vpop.permute.xlu0 %3487
      %v3492 = vsel %vm1542, %v3223, 0
      %v3495 = vsel %vm1542, %v3224, 0
      %3497 = vmatprep.subr.bf16.mxu0 0
      %3498 = vmatpush1.bf16.msra.mxu0 0
      %3499 = vmatprep.subr.bf16.mxu0 0
      %3500 = vmatpush1.bf16.msra.mxu0 0
      %3501 = vmatprep.subr.bf16.mxu0 0
      %3502 = vmatpush1.bf16.msra.mxu0 0
      %3503 = vmatprep.subr.bf16.mxu0 0
      %3504 = vmatpush1.bf16.msra.mxu0 0
      %3505 = vmatprep.subr.bf16.mxu0 0
      %3506 = vmatpush1.bf16.msra.mxu0 0
      %3507 = vmatprep.subr.bf16.mxu0 0
      %3508 = vmatpush1.bf16.msra.mxu0 0
      %3509 = vmatprep.subr.bf16.mxu0 0
      %3510 = vmatpush1.bf16.msra.mxu0 %v3488
      %3511 = vmatprep.subr.bf16.mxu0 0
      %3512 = vmatpush1.bf16.msra.mxu0 %v3486
      %3513 = vmatprep.subr.bf16.mxu0 0
      %3514 = vmatpush2.bf16.msra.mxu0 0
      %3515 = vmatprep.subr.bf16.mxu0 0
      %3516 = vmatpush2.bf16.msra.mxu0 0
      %3517 = vmatprep.subr.bf16.mxu0 0
      %3518 = vmatpush2.bf16.msra.mxu0 0
      %3519 = vmatprep.subr.bf16.mxu0 0
      %3520 = vmatpush2.bf16.msra.mxu0 0
      %3521 = vmatprep.subr.bf16.mxu0 0
      %3522 = vmatpush2.bf16.msra.mxu0 0
      %3523 = vmatprep.subr.bf16.mxu0 0
      %3524 = vmatpush2.bf16.msra.mxu0 0
      %3525 = vmatprep.subr.bf16.mxu0 0
      %3526 = vmatpush2.bf16.msra.mxu0 0
      %3527 = vmatprep.subr.bf16.mxu0 0
      %3528 = vmatpush2.bf16.msra.mxu0 0
      %3529 = vmatprep.mubr.bf16.mxu0 0
      %3530 = vmatmul.mubr.bf16.gmra.mxu0 %v3492
      %v3531 = vpop.f32.mrf.mxu0
      %v3532 = vadd.f32 0.0, %v3531
      %v3533 = vpop.f32.mrf.mxu0
      %v3534 = vpop.f32.mrf.mxu0
      %v3535 = vadd.f32 0.0, %v3534
      %v3536 = vpop.f32.mrf.mxu0
      %3537 = vmatprep.mubr.bf16.mxu0 0
      %3538 = vmatmul.mubr.bf16.gmra.mxu0 %v3495
      %v3539 = vpop.f32.mrf.mxu0
      %v3540 = vadd.f32 0.0, %v3539
      %v3541 = vpop.f32.mrf.mxu0
      %v3542 = vpop.f32.mrf.mxu0
      %v3543 = vadd.f32 0.0, %v3542
      %v3544 = vpop.f32.mrf.mxu0
      %3545 = vdwg.mxu0
      %3548 = vrot.lane.b32.xlu0 %v646, 120
      %v3549 = vpop.permute.xlu0 %3548
      %3550 = vrot.lane.b32.xlu0 %v647, 120
      %v3551 = vpop.permute.xlu0 %3550
      %v3555 = vsel %vm1542, %v3225, 0
      %v3558 = vsel %vm1542, %v3226, 0
      %3560 = vmatprep.subr.bf16.mxu0 0
      %3561 = vmatpush1.bf16.msra.mxu0 0
      %3562 = vmatprep.subr.bf16.mxu0 0
      %3563 = vmatpush1.bf16.msra.mxu0 0
      %3564 = vmatprep.subr.bf16.mxu0 0
      %3565 = vmatpush1.bf16.msra.mxu0 0
      %3566 = vmatprep.subr.bf16.mxu0 0
      %3567 = vmatpush1.bf16.msra.mxu0 0
      %3568 = vmatprep.subr.bf16.mxu0 0
      %3569 = vmatpush1.bf16.msra.mxu0 0
      %3570 = vmatprep.subr.bf16.mxu0 0
      %3571 = vmatpush1.bf16.msra.mxu0 0
      %3572 = vmatprep.subr.bf16.mxu0 0
      %3573 = vmatpush1.bf16.msra.mxu0 %v3551
      %3574 = vmatprep.subr.bf16.mxu0 0
      %3575 = vmatpush1.bf16.msra.mxu0 %v3549
      %3576 = vmatprep.subr.bf16.mxu0 0
      %3577 = vmatpush2.bf16.msra.mxu0 0
      %3578 = vmatprep.subr.bf16.mxu0 0
      %3579 = vmatpush2.bf16.msra.mxu0 0
      %3580 = vmatprep.subr.bf16.mxu0 0
      %3581 = vmatpush2.bf16.msra.mxu0 0
      %3582 = vmatprep.subr.bf16.mxu0 0
      %3583 = vmatpush2.bf16.msra.mxu0 0
      %3584 = vmatprep.subr.bf16.mxu0 0
      %3585 = vmatpush2.bf16.msra.mxu0 0
      %3586 = vmatprep.subr.bf16.mxu0 0
      %3587 = vmatpush2.bf16.msra.mxu0 0
      %3588 = vmatprep.subr.bf16.mxu0 0
      %3589 = vmatpush2.bf16.msra.mxu0 0
      %3590 = vmatprep.subr.bf16.mxu0 0
      %3591 = vmatpush2.bf16.msra.mxu0 0
      %3592 = vmatprep.mubr.bf16.mxu0 0
      %3593 = vmatmul.mubr.bf16.gmra.mxu0 %v3555
      %v3594 = vpop.f32.mrf.mxu0
      %v3595 = vadd.f32 0.0, %v3594
      %v3596 = vpop.f32.mrf.mxu0
      %v3597 = vpop.f32.mrf.mxu0
      %v3598 = vadd.f32 0.0, %v3597
      %v3599 = vpop.f32.mrf.mxu0
      %3600 = vmatprep.mubr.bf16.mxu0 0
      %3601 = vmatmul.mubr.bf16.gmra.mxu0 %v3558
      %v3602 = vpop.f32.mrf.mxu0
      %v3603 = vadd.f32 0.0, %v3602
      %v3604 = vpop.f32.mrf.mxu0
      %v3605 = vpop.f32.mrf.mxu0
      %v3606 = vadd.f32 0.0, %v3605
      %v3607 = vpop.f32.mrf.mxu0
      %3608 = vdwg.mxu0
      %3611 = vrot.lane.b32.xlu0 %v648, 120
      %v3612 = vpop.permute.xlu0 %3611
      %3613 = vrot.lane.b32.xlu0 %v649, 120
      %v3614 = vpop.permute.xlu0 %3613
      %v3618 = vsel %vm1542, %v3227, 0
      %v3621 = vsel %vm1542, %v3228, 0
      %3623 = vmatprep.subr.bf16.mxu0 0
      %3624 = vmatpush1.bf16.msra.mxu0 0
      %3625 = vmatprep.subr.bf16.mxu0 0
      %3626 = vmatpush1.bf16.msra.mxu0 0
      %3627 = vmatprep.subr.bf16.mxu0 0
      %3628 = vmatpush1.bf16.msra.mxu0 0
      %3629 = vmatprep.subr.bf16.mxu0 0
      %3630 = vmatpush1.bf16.msra.mxu0 0
      %3631 = vmatprep.subr.bf16.mxu0 0
      %3632 = vmatpush1.bf16.msra.mxu0 0
      %3633 = vmatprep.subr.bf16.mxu0 0
      %3634 = vmatpush1.bf16.msra.mxu0 0
      %3635 = vmatprep.subr.bf16.mxu0 0
      %3636 = vmatpush1.bf16.msra.mxu0 %v3614
      %3637 = vmatprep.subr.bf16.mxu0 0
      %3638 = vmatpush1.bf16.msra.mxu0 %v3612
      %3639 = vmatprep.subr.bf16.mxu0 0
      %3640 = vmatpush2.bf16.msra.mxu0 0
      %3641 = vmatprep.subr.bf16.mxu0 0
      %3642 = vmatpush2.bf16.msra.mxu0 0
      %3643 = vmatprep.subr.bf16.mxu0 0
      %3644 = vmatpush2.bf16.msra.mxu0 0
      %3645 = vmatprep.subr.bf16.mxu0 0
      %3646 = vmatpush2.bf16.msra.mxu0 0
      %3647 = vmatprep.subr.bf16.mxu0 0
      %3648 = vmatpush2.bf16.msra.mxu0 0
      %3649 = vmatprep.subr.bf16.mxu0 0
      %3650 = vmatpush2.bf16.msra.mxu0 0
      %3651 = vmatprep.subr.bf16.mxu0 0
      %3652 = vmatpush2.bf16.msra.mxu0 0
      %3653 = vmatprep.subr.bf16.mxu0 0
      %3654 = vmatpush2.bf16.msra.mxu0 0
      %3655 = vmatprep.mubr.bf16.mxu0 0
      %3656 = vmatmul.mubr.bf16.gmra.mxu0 %v3618
      %v3657 = vpop.f32.mrf.mxu0
      %v3658 = vadd.f32 0.0, %v3657
      %v3659 = vpop.f32.mrf.mxu0
      %v3660 = vpop.f32.mrf.mxu0
      %v3661 = vadd.f32 0.0, %v3660
      %v3662 = vpop.f32.mrf.mxu0
      %3663 = vmatprep.mubr.bf16.mxu0 0
      %3664 = vmatmul.mubr.bf16.gmra.mxu0 %v3621
      %v3665 = vpop.f32.mrf.mxu0
      %v3666 = vadd.f32 0.0, %v3665
      %v3667 = vpop.f32.mrf.mxu0
      %v3668 = vpop.f32.mrf.mxu0
      %v3669 = vadd.f32 0.0, %v3668
      %v3670 = vpop.f32.mrf.mxu0
      %3671 = vdwg.mxu0
      %3674 = vrot.lane.b32.xlu0 %v650, 120
      %v3675 = vpop.permute.xlu0 %3674
      %3676 = vrot.lane.b32.xlu0 %v651, 120
      %v3677 = vpop.permute.xlu0 %3676
      %v3681 = vsel %vm1542, %v3229, 0
      %v3684 = vsel %vm1542, %v3230, 0
      %3686 = vmatprep.subr.bf16.mxu0 0
      %3687 = vmatpush1.bf16.msra.mxu0 0
      %3688 = vmatprep.subr.bf16.mxu0 0
      %3689 = vmatpush1.bf16.msra.mxu0 0
      %3690 = vmatprep.subr.bf16.mxu0 0
      %3691 = vmatpush1.bf16.msra.mxu0 0
      %3692 = vmatprep.subr.bf16.mxu0 0
      %3693 = vmatpush1.bf16.msra.mxu0 0
      %3694 = vmatprep.subr.bf16.mxu0 0
      %3695 = vmatpush1.bf16.msra.mxu0 0
      %3696 = vmatprep.subr.bf16.mxu0 0
      %3697 = vmatpush1.bf16.msra.mxu0 0
      %3698 = vmatprep.subr.bf16.mxu0 0
      %3699 = vmatpush1.bf16.msra.mxu0 %v3677
      %3700 = vmatprep.subr.bf16.mxu0 0
      %3701 = vmatpush1.bf16.msra.mxu0 %v3675
      %3702 = vmatprep.subr.bf16.mxu0 0
      %3703 = vmatpush2.bf16.msra.mxu0 0
      %3704 = vmatprep.subr.bf16.mxu0 0
      %3705 = vmatpush2.bf16.msra.mxu0 0
      %3706 = vmatprep.subr.bf16.mxu0 0
      %3707 = vmatpush2.bf16.msra.mxu0 0
      %3708 = vmatprep.subr.bf16.mxu0 0
      %3709 = vmatpush2.bf16.msra.mxu0 0
      %3710 = vmatprep.subr.bf16.mxu0 0
      %3711 = vmatpush2.bf16.msra.mxu0 0
      %3712 = vmatprep.subr.bf16.mxu0 0
      %3713 = vmatpush2.bf16.msra.mxu0 0
      %3714 = vmatprep.subr.bf16.mxu0 0
      %3715 = vmatpush2.bf16.msra.mxu0 0
      %3716 = vmatprep.subr.bf16.mxu0 0
      %3717 = vmatpush2.bf16.msra.mxu0 0
      %3718 = vmatprep.mubr.bf16.mxu0 0
      %3719 = vmatmul.mubr.bf16.gmra.mxu0 %v3681
      %v3720 = vpop.f32.mrf.mxu0
      %v3721 = vadd.f32 0.0, %v3720
      %v3722 = vpop.f32.mrf.mxu0
      %v3723 = vpop.f32.mrf.mxu0
      %v3724 = vadd.f32 0.0, %v3723
      %v3725 = vpop.f32.mrf.mxu0
      %3726 = vmatprep.mubr.bf16.mxu0 0
      %3727 = vmatmul.mubr.bf16.gmra.mxu0 %v3684
      %v3728 = vpop.f32.mrf.mxu0
      %v3729 = vadd.f32 0.0, %v3728
      %v3730 = vpop.f32.mrf.mxu0
      %v3731 = vpop.f32.mrf.mxu0
      %v3732 = vadd.f32 0.0, %v3731
      %v3733 = vpop.f32.mrf.mxu0
      %3734 = vdwg.mxu0
      %3767 = vrot.lane.b32.xlu0 %v3280, 8
      %v3768 = vpop.permute.xlu0 %3767
      %3769 = vrot.lane.b32.xlu0 %v3283, 8
      %v3770 = vpop.permute.xlu0 %3769
      %3771 = vrot.lane.b32.xlu0 %v3288, 8
      %v3772 = vpop.permute.xlu0 %3771
      %3773 = vrot.lane.b32.xlu0 %v3291, 8
      %v3774 = vpop.permute.xlu0 %3773
      %3775 = vrot.lane.b32.xlu0 %v3343, 8
      %v3776 = vpop.permute.xlu0 %3775
      %3777 = vrot.lane.b32.xlu0 %v3346, 8
      %v3778 = vpop.permute.xlu0 %3777
      %3779 = vrot.lane.b32.xlu0 %v3351, 8
      %v3780 = vpop.permute.xlu0 %3779
      %3781 = vrot.lane.b32.xlu0 %v3354, 8
      %v3782 = vpop.permute.xlu0 %3781
      %3783 = vrot.lane.b32.xlu0 %v3406, 8
      %v3784 = vpop.permute.xlu0 %3783
      %3785 = vrot.lane.b32.xlu0 %v3409, 8
      %v3786 = vpop.permute.xlu0 %3785
      %3787 = vrot.lane.b32.xlu0 %v3414, 8
      %v3788 = vpop.permute.xlu0 %3787
      %3789 = vrot.lane.b32.xlu0 %v3417, 8
      %v3790 = vpop.permute.xlu0 %3789
      %3791 = vrot.lane.b32.xlu0 %v3469, 8
      %v3792 = vpop.permute.xlu0 %3791
      %3793 = vrot.lane.b32.xlu0 %v3472, 8
      %v3794 = vpop.permute.xlu0 %3793
      %3795 = vrot.lane.b32.xlu0 %v3477, 8
      %v3796 = vpop.permute.xlu0 %3795
      %3797 = vrot.lane.b32.xlu0 %v3480, 8
      %v3798 = vpop.permute.xlu0 %3797
      %3799 = vrot.lane.b32.xlu0 %v3532, 8
      %v3800 = vpop.permute.xlu0 %3799
      %3801 = vrot.lane.b32.xlu0 %v3535, 8
      %v3802 = vpop.permute.xlu0 %3801
      %3803 = vrot.lane.b32.xlu0 %v3540, 8
      %v3804 = vpop.permute.xlu0 %3803
      %3805 = vrot.lane.b32.xlu0 %v3543, 8
      %v3806 = vpop.permute.xlu0 %3805
      %3807 = vrot.lane.b32.xlu0 %v3595, 8
      %v3808 = vpop.permute.xlu0 %3807
      %3809 = vrot.lane.b32.xlu0 %v3598, 8
      %v3810 = vpop.permute.xlu0 %3809
      %3811 = vrot.lane.b32.xlu0 %v3603, 8
      %v3812 = vpop.permute.xlu0 %3811
      %3813 = vrot.lane.b32.xlu0 %v3606, 8
      %v3814 = vpop.permute.xlu0 %3813
      %3815 = vrot.lane.b32.xlu0 %v3658, 8
      %v3816 = vpop.permute.xlu0 %3815
      %3817 = vrot.lane.b32.xlu0 %v3661, 8
      %v3818 = vpop.permute.xlu0 %3817
      %3819 = vrot.lane.b32.xlu0 %v3666, 8
      %v3820 = vpop.permute.xlu0 %3819
      %3821 = vrot.lane.b32.xlu0 %v3669, 8
      %v3822 = vpop.permute.xlu0 %3821
      %3823 = vrot.lane.b32.xlu0 %v3721, 8
      %v3824 = vpop.permute.xlu0 %3823
      %3825 = vrot.lane.b32.xlu0 %v3724, 8
      %v3826 = vpop.permute.xlu0 %3825
      %3827 = vrot.lane.b32.xlu0 %v3729, 8
      %v3828 = vpop.permute.xlu0 %3827
      %3829 = vrot.lane.b32.xlu0 %v3732, 8
      %v3830 = vpop.permute.xlu0 %3829
      %vm3863 = vcmask 64512
      %v3864 = vsel %vm3863, %v2048, %v3768
      %v3865 = vsel %vm3863, %v2051, %v3770
      %v3866 = vsel %vm3863, %v2056, %v3772
      %v3867 = vsel %vm3863, %v2059, %v3774
      %v3868 = vsel %vm3863, %v2103, %v3776
      %v3869 = vsel %vm3863, %v2106, %v3778
      %v3870 = vsel %vm3863, %v2111, %v3780
      %v3871 = vsel %vm3863, %v2114, %v3782
      %v3872 = vsel %vm3863, %v2158, %v3784
      %v3873 = vsel %vm3863, %v2161, %v3786
      %v3874 = vsel %vm3863, %v2166, %v3788
      %v3875 = vsel %vm3863, %v2169, %v3790
      %v3876 = vsel %vm3863, %v2213, %v3792
      %v3877 = vsel %vm3863, %v2216, %v3794
      %v3878 = vsel %vm3863, %v2221, %v3796
      %v3879 = vsel %vm3863, %v2224, %v3798
      %v3880 = vsel %vm3863, %v2268, %v3800
      %v3881 = vsel %vm3863, %v2271, %v3802
      %v3882 = vsel %vm3863, %v2276, %v3804
      %v3883 = vsel %vm3863, %v2279, %v3806
      %v3884 = vsel %vm3863, %v2323, %v3808
      %v3885 = vsel %vm3863, %v2326, %v3810
      %v3886 = vsel %vm3863, %v2331, %v3812
      %v3887 = vsel %vm3863, %v2334, %v3814
      %v3888 = vsel %vm3863, %v2378, %v3816
      %v3889 = vsel %vm3863, %v2381, %v3818
      %v3890 = vsel %vm3863, %v2386, %v3820
      %v3891 = vsel %vm3863, %v2389, %v3822
      %v3892 = vsel %vm3863, %v2433, %v3824
      %v3893 = vsel %vm3863, %v2436, %v3826
      %v3894 = vsel %vm3863, %v2441, %v3828
      %v3895 = vsel %vm3863, %v2444, %v3830
      %v3896 = vlaneseq
      %v3897 = vshrl.u32 %v3896, 7
      %v3898 = vsub.s32 0, %v3897
      %v3899 = vrot.slane %v402, %v3898
      %v3900 = vmul.f32 %v3864, %v3899
      %v3901 = vmul.f32 %v3865, %v3899
      %v3902 = vmul.f32 %v3866, %v3899
      %v3903 = vmul.f32 %v3867, %v3899
      %v3904 = vmul.f32 %v3868, %v3899
      %v3905 = vmul.f32 %v3869, %v3899
      %v3906 = vmul.f32 %v3870, %v3899
      %v3907 = vmul.f32 %v3871, %v3899
      %v3908 = vmul.f32 %v3872, %v3899
      %v3909 = vmul.f32 %v3873, %v3899
      %v3910 = vmul.f32 %v3874, %v3899
      %v3911 = vmul.f32 %v3875, %v3899
      %v3912 = vmul.f32 %v3876, %v3899
      %v3913 = vmul.f32 %v3877, %v3899
      %v3914 = vmul.f32 %v3878, %v3899
      %v3915 = vmul.f32 %v3879, %v3899
      %v3916 = vmul.f32 %v3880, %v3899
      %v3917 = vmul.f32 %v3881, %v3899
      %v3918 = vmul.f32 %v3882, %v3899
      %v3919 = vmul.f32 %v3883, %v3899
      %v3920 = vmul.f32 %v3884, %v3899
      %v3921 = vmul.f32 %v3885, %v3899
      %v3922 = vmul.f32 %v3886, %v3899
      %v3923 = vmul.f32 %v3887, %v3899
      %v3924 = vmul.f32 %v3888, %v3899
      %v3925 = vmul.f32 %v3889, %v3899
      %v3926 = vmul.f32 %v3890, %v3899
      %v3927 = vmul.f32 %v3891, %v3899
      %v3928 = vmul.f32 %v3892, %v3899
      %v3929 = vmul.f32 %v3893, %v3899
      %v3930 = vmul.f32 %v3894, %v3899
      %v3931 = vmul.f32 %v3895, %v3899
      %v3932 = vlaneseq
      %v3933 = vshrl.u32 %v3932, 7
      %v3934 = vsub.s32 0, %v3933
      %v3935 = vrot.slane %v403, %v3934
      %v3936 = vadd.f32 %v3900, %v3935
      %v3937 = vadd.f32 %v3901, %v3935
      %v3938 = vadd.f32 %v3902, %v3935
      %v3939 = vadd.f32 %v3903, %v3935
      %v3940 = vadd.f32 %v3904, %v3935
      %v3941 = vadd.f32 %v3905, %v3935
      %v3942 = vadd.f32 %v3906, %v3935
      %v3943 = vadd.f32 %v3907, %v3935
      %v3944 = vadd.f32 %v3908, %v3935
      %v3945 = vadd.f32 %v3909, %v3935
      %v3946 = vadd.f32 %v3910, %v3935
      %v3947 = vadd.f32 %v3911, %v3935
      %v3948 = vadd.f32 %v3912, %v3935
      %v3949 = vadd.f32 %v3913, %v3935
      %v3950 = vadd.f32 %v3914, %v3935
      %v3951 = vadd.f32 %v3915, %v3935
      %v3952 = vadd.f32 %v3916, %v3935
      %v3953 = vadd.f32 %v3917, %v3935
      %v3954 = vadd.f32 %v3918, %v3935
      %v3955 = vadd.f32 %v3919, %v3935
      %v3956 = vadd.f32 %v3920, %v3935
      %v3957 = vadd.f32 %v3921, %v3935
      %v3958 = vadd.f32 %v3922, %v3935
      %v3959 = vadd.f32 %v3923, %v3935
      %v3960 = vadd.f32 %v3924, %v3935
      %v3961 = vadd.f32 %v3925, %v3935
      %v3962 = vadd.f32 %v3926, %v3935
      %v3963 = vadd.f32 %v3927, %v3935
      %v3964 = vadd.f32 %v3928, %v3935
      %v3965 = vadd.f32 %v3929, %v3935
      %v3966 = vadd.f32 %v3930, %v3935
      %v3967 = vadd.f32 %v3931, %v3935
      %v3968 = vmax.f32 %v3936, 0.0
      %v3969 = vmax.f32 %v3937, 0.0
      %v3970 = vmax.f32 %v3938, 0.0
      %v3971 = vmax.f32 %v3939, 0.0
      %v3972 = vmax.f32 %v3940, 0.0
      %v3973 = vmax.f32 %v3941, 0.0
      %v3974 = vmax.f32 %v3942, 0.0
      %v3975 = vmax.f32 %v3943, 0.0
      %v3976 = vmax.f32 %v3944, 0.0
      %v3977 = vmax.f32 %v3945, 0.0
      %v3978 = vmax.f32 %v3946, 0.0
      %v3979 = vmax.f32 %v3947, 0.0
      %v3980 = vmax.f32 %v3948, 0.0
      %v3981 = vmax.f32 %v3949, 0.0
      %v3982 = vmax.f32 %v3950, 0.0
      %v3983 = vmax.f32 %v3951, 0.0
      %v3984 = vmax.f32 %v3952, 0.0
      %v3985 = vmax.f32 %v3953, 0.0
      %v3986 = vmax.f32 %v3954, 0.0
      %v3987 = vmax.f32 %v3955, 0.0
      %v3988 = vmax.f32 %v3956, 0.0
      %v3989 = vmax.f32 %v3957, 0.0
      %v3990 = vmax.f32 %v3958, 0.0
      %v3991 = vmax.f32 %v3959, 0.0
      %v3992 = vmax.f32 %v3960, 0.0
      %v3993 = vmax.f32 %v3961, 0.0
      %v3994 = vmax.f32 %v3962, 0.0
      %v3995 = vmax.f32 %v3963, 0.0
      %v3996 = vmax.f32 %v3964, 0.0
      %v3997 = vmax.f32 %v3965, 0.0
      %v3998 = vmax.f32 %v3966, 0.0
      %v3999 = vmax.f32 %v3967, 0.0
      %v4000 = vld [vmem:[%s2 + $0x18] sm:$0xf]
      %v4001 = vld [vmem:[%s2 + $0x1c] sm:$0xf]
      %v4002 = vld [vmem:[%s2 + $0x20] sm:$0x1]
      %v4003 = vld [vmem:[%s2 + $0x28] sm:$0xf]
      %v4004 = vld [vmem:[%s2 + $0x2c] sm:$0xf]
      %v4005 = vld [vmem:[%s3 + $0x8] sm:$0x1]
      %v4006 = vld [vmem:[%s3 + $0x9] sm:$0x1]
      %v4007 = vpack.c.bf16 %v3969, %v3968
      %v4008 = vpack.c.bf16 %v3971, %v3970
      %v4009 = vpack.c.bf16 %v3973, %v3972
      %v4010 = vpack.c.bf16 %v3975, %v3974
      %v4011 = vpack.c.bf16 %v3977, %v3976
      %v4012 = vpack.c.bf16 %v3979, %v3978
      %v4013 = vpack.c.bf16 %v3981, %v3980
      %v4014 = vpack.c.bf16 %v3983, %v3982
      %v4015 = vpack.c.bf16 %v3985, %v3984
      %v4016 = vpack.c.bf16 %v3987, %v3986
      %v4017 = vpack.c.bf16 %v3989, %v3988
      %v4018 = vpack.c.bf16 %v3991, %v3990
      %v4019 = vpack.c.bf16 %v3993, %v3992
      %v4020 = vpack.c.bf16 %v3995, %v3994
      %v4021 = vpack.c.bf16 %v3997, %v3996
      %v4022 = vpack.c.bf16 %v3999, %v3998
      %v4025 = vunpack.c.l.b16 %v4000
      %v4026 = vunpack.c.l.b16 %v4001
      %v4027 = vpack.c.b16 %v4026, %v4025
      %v4030 = vsel %vm426, %v4007, 0
      %v4033 = vsel %vm426, %v4008, 0
      %v4036 = vsel %vm426, %v4009, 0
      %v4039 = vsel %vm426, %v4010, 0
      %v4042 = vsel %vm426, %v4011, 0
      %v4045 = vsel %vm426, %v4012, 0
      %v4048 = vsel %vm426, %v4013, 0
      %v4051 = vsel %vm426, %v4014, 0
      %v4054 = vsel %vm426, %v4015, 0
      %v4057 = vsel %vm426, %v4016, 0
      %v4060 = vsel %vm426, %v4017, 0
      %v4063 = vsel %vm426, %v4018, 0
      %v4066 = vsel %vm426, %v4019, 0
      %v4069 = vsel %vm426, %v4020, 0
      %v4072 = vsel %vm426, %v4021, 0
      %v4075 = vsel %vm426, %v4022, 0
      %4077 = vmatprep.subr.bf16.mxu0 0
      %4078 = vmatpush1.bf16.msra.mxu0 0
      %4079 = vmatprep.subr.bf16.mxu0 0
      %4080 = vmatpush1.bf16.msra.mxu0 0
      %4081 = vmatprep.subr.bf16.mxu0 0
      %4082 = vmatpush1.bf16.msra.mxu0 0
      %4083 = vmatprep.subr.bf16.mxu0 0
      %4084 = vmatpush1.bf16.msra.mxu0 0
      %4085 = vmatprep.subr.bf16.mxu0 0
      %4086 = vmatpush1.bf16.msra.mxu0 0
      %4087 = vmatprep.subr.bf16.mxu0 0
      %4088 = vmatpush1.bf16.msra.mxu0 0
      %4089 = vmatprep.subr.bf16.mxu0 0
      %4090 = vmatpush1.bf16.msra.mxu0 0
      %4091 = vmatprep.subr.bf16.mxu0 0
      %4092 = vmatpush1.bf16.msra.mxu0 %v4027
      %4093 = vmatprep.subr.bf16.mxu0 0
      %4094 = vmatpush2.bf16.msra.mxu0 0
      %4095 = vmatprep.subr.bf16.mxu0 0
      %4096 = vmatpush2.bf16.msra.mxu0 0
      %4097 = vmatprep.subr.bf16.mxu0 0
      %4098 = vmatpush2.bf16.msra.mxu0 0
      %4099 = vmatprep.subr.bf16.mxu0 0
      %4100 = vmatpush2.bf16.msra.mxu0 0
      %4101 = vmatprep.subr.bf16.mxu0 0
      %4102 = vmatpush2.bf16.msra.mxu0 0
      %4103 = vmatprep.subr.bf16.mxu0 0
      %4104 = vmatpush2.bf16.msra.mxu0 0
      %4105 = vmatprep.subr.bf16.mxu0 0
      %4106 = vmatpush2.bf16.msra.mxu0 0
      %4107 = vmatprep.subr.bf16.mxu0 0
      %4108 = vmatpush2.bf16.msra.mxu0 0
      %4109 = vmatprep.mubr.bf16.mxu0 0
      %4110 = vmatmul.mubr.bf16.gmra.mxu0 %v4030
      %v4111 = vpop.f32.mrf.mxu0
      %v4112 = vadd.f32 0.0, %v4111
      %v4113 = vpop.f32.mrf.mxu0
      %v4114 = vpop.f32.mrf.mxu0
      %v4115 = vadd.f32 0.0, %v4114
      %v4116 = vpop.f32.mrf.mxu0
      %4117 = vmatprep.mubr.bf16.mxu0 0
      %4118 = vmatmul.mubr.bf16.gmra.mxu0 %v4033
      %v4119 = vpop.f32.mrf.mxu0
      %v4120 = vadd.f32 0.0, %v4119
      %v4121 = vpop.f32.mrf.mxu0
      %v4122 = vpop.f32.mrf.mxu0
      %v4123 = vadd.f32 0.0, %v4122
      %v4124 = vpop.f32.mrf.mxu0
      %4125 = vmatprep.mubr.bf16.mxu0 0
      %4126 = vmatmul.mubr.bf16.gmra.mxu0 %v4036
      %v4127 = vpop.f32.mrf.mxu0
      %v4128 = vadd.f32 0.0, %v4127
      %v4129 = vpop.f32.mrf.mxu0
      %v4130 = vpop.f32.mrf.mxu0
      %v4131 = vadd.f32 0.0, %v4130
      %v4132 = vpop.f32.mrf.mxu0
      %4133 = vmatprep.mubr.bf16.mxu0 0
      %4134 = vmatmul.mubr.bf16.gmra.mxu0 %v4039
      %v4135 = vpop.f32.mrf.mxu0
      %v4136 = vadd.f32 0.0, %v4135
      %v4137 = vpop.f32.mrf.mxu0
      %v4138 = vpop.f32.mrf.mxu0
      %v4139 = vadd.f32 0.0, %v4138
      %v4140 = vpop.f32.mrf.mxu0
      %4141 = vmatprep.mubr.bf16.mxu0 0
      %4142 = vmatmul.mubr.bf16.gmra.mxu0 %v4042
      %v4143 = vpop.f32.mrf.mxu0
      %v4144 = vadd.f32 0.0, %v4143
      %v4145 = vpop.f32.mrf.mxu0
      %v4146 = vpop.f32.mrf.mxu0
      %v4147 = vadd.f32 0.0, %v4146
      %v4148 = vpop.f32.mrf.mxu0
      %4149 = vmatprep.mubr.bf16.mxu0 0
      %4150 = vmatmul.mubr.bf16.gmra.mxu0 %v4045
      %v4151 = vpop.f32.mrf.mxu0
      %v4152 = vadd.f32 0.0, %v4151
      %v4153 = vpop.f32.mrf.mxu0
      %v4154 = vpop.f32.mrf.mxu0
      %v4155 = vadd.f32 0.0, %v4154
      %v4156 = vpop.f32.mrf.mxu0
      %4157 = vmatprep.mubr.bf16.mxu0 0
      %4158 = vmatmul.mubr.bf16.gmra.mxu0 %v4048
      %v4159 = vpop.f32.mrf.mxu0
      %v4160 = vadd.f32 0.0, %v4159
      %v4161 = vpop.f32.mrf.mxu0
      %v4162 = vpop.f32.mrf.mxu0
      %v4163 = vadd.f32 0.0, %v4162
      %v4164 = vpop.f32.mrf.mxu0
      %4165 = vmatprep.mubr.bf16.mxu0 0
      %4166 = vmatmul.mubr.bf16.gmra.mxu0 %v4051
      %v4167 = vpop.f32.mrf.mxu0
      %v4168 = vadd.f32 0.0, %v4167
      %v4169 = vpop.f32.mrf.mxu0
      %v4170 = vpop.f32.mrf.mxu0
      %v4171 = vadd.f32 0.0, %v4170
      %v4172 = vpop.f32.mrf.mxu0
      %4173 = vmatprep.mubr.bf16.mxu0 0
      %4174 = vmatmul.mubr.bf16.gmra.mxu0 %v4054
      %v4175 = vpop.f32.mrf.mxu0
      %v4176 = vadd.f32 0.0, %v4175
      %v4177 = vpop.f32.mrf.mxu0
      %v4178 = vpop.f32.mrf.mxu0
      %v4179 = vadd.f32 0.0, %v4178
      %v4180 = vpop.f32.mrf.mxu0
      %4181 = vmatprep.mubr.bf16.mxu0 0
      %4182 = vmatmul.mubr.bf16.gmra.mxu0 %v4057
      %v4183 = vpop.f32.mrf.mxu0
      %v4184 = vadd.f32 0.0, %v4183
      %v4185 = vpop.f32.mrf.mxu0
      %v4186 = vpop.f32.mrf.mxu0
      %v4187 = vadd.f32 0.0, %v4186
      %v4188 = vpop.f32.mrf.mxu0
      %4189 = vmatprep.mubr.bf16.mxu0 0
      %4190 = vmatmul.mubr.bf16.gmra.mxu0 %v4060
      %v4191 = vpop.f32.mrf.mxu0
      %v4192 = vadd.f32 0.0, %v4191
      %v4193 = vpop.f32.mrf.mxu0
      %v4194 = vpop.f32.mrf.mxu0
      %v4195 = vadd.f32 0.0, %v4194
      %v4196 = vpop.f32.mrf.mxu0
      %4197 = vmatprep.mubr.bf16.mxu0 0
      %4198 = vmatmul.mubr.bf16.gmra.mxu0 %v4063
      %v4199 = vpop.f32.mrf.mxu0
      %v4200 = vadd.f32 0.0, %v4199
      %v4201 = vpop.f32.mrf.mxu0
      %v4202 = vpop.f32.mrf.mxu0
      %v4203 = vadd.f32 0.0, %v4202
      %v4204 = vpop.f32.mrf.mxu0
      %4205 = vmatprep.mubr.bf16.mxu0 0
      %4206 = vmatmul.mubr.bf16.gmra.mxu0 %v4066
      %v4207 = vpop.f32.mrf.mxu0
      %v4208 = vadd.f32 0.0, %v4207
      %v4209 = vpop.f32.mrf.mxu0
      %v4210 = vpop.f32.mrf.mxu0
      %v4211 = vadd.f32 0.0, %v4210
      %v4212 = vpop.f32.mrf.mxu0
      %4213 = vmatprep.mubr.bf16.mxu0 0
      %4214 = vmatmul.mubr.bf16.gmra.mxu0 %v4069
      %v4215 = vpop.f32.mrf.mxu0
      %v4216 = vadd.f32 0.0, %v4215
      %v4217 = vpop.f32.mrf.mxu0
      %v4218 = vpop.f32.mrf.mxu0
      %v4219 = vadd.f32 0.0, %v4218
      %v4220 = vpop.f32.mrf.mxu0
      %4221 = vmatprep.mubr.bf16.mxu0 0
      %4222 = vmatmul.mubr.bf16.gmra.mxu0 %v4072
      %v4223 = vpop.f32.mrf.mxu0
      %v4224 = vadd.f32 0.0, %v4223
      %v4225 = vpop.f32.mrf.mxu0
      %v4226 = vpop.f32.mrf.mxu0
      %v4227 = vadd.f32 0.0, %v4226
      %v4228 = vpop.f32.mrf.mxu0
      %4229 = vmatprep.mubr.bf16.mxu0 0
      %4230 = vmatmul.mubr.bf16.gmra.mxu0 %v4075
      %v4231 = vpop.f32.mrf.mxu0
      %v4232 = vadd.f32 0.0, %v4231
      %v4233 = vpop.f32.mrf.mxu0
      %v4234 = vpop.f32.mrf.mxu0
      %v4235 = vadd.f32 0.0, %v4234
      %v4236 = vpop.f32.mrf.mxu0
      %4237 = vdwg.mxu0
      %v4238 = vpack.c.bf16 %v4115, %v4112
      %v4239 = vpack.c.bf16 %v4123, %v4120
      %v4240 = vpack.c.bf16 %v4131, %v4128
      %v4241 = vpack.c.bf16 %v4139, %v4136
      %v4242 = vpack.c.bf16 %v4147, %v4144
      %v4243 = vpack.c.bf16 %v4155, %v4152
      %v4244 = vpack.c.bf16 %v4163, %v4160
      %v4245 = vpack.c.bf16 %v4171, %v4168
      %v4246 = vpack.c.bf16 %v4179, %v4176
      %v4247 = vpack.c.bf16 %v4187, %v4184
      %v4248 = vpack.c.bf16 %v4195, %v4192
      %v4249 = vpack.c.bf16 %v4203, %v4200
      %v4250 = vpack.c.bf16 %v4211, %v4208
      %v4251 = vpack.c.bf16 %v4219, %v4216
      %v4252 = vpack.c.bf16 %v4227, %v4224
      %v4253 = vpack.c.bf16 %v4235, %v4232
      %v4256 = vunpack.c.l.b16 %v4003
      %v4257 = vunpack.c.l.b16 %v4004
      %v4258 = vpack.c.b16 %v4257, %v4256
      %v4261 = vsel %vm426, %v4238, 0
      %v4264 = vsel %vm426, %v4239, 0
      %v4267 = vsel %vm426, %v4240, 0
      %v4270 = vsel %vm426, %v4241, 0
      %v4273 = vsel %vm426, %v4242, 0
      %v4276 = vsel %vm426, %v4243, 0
      %v4279 = vsel %vm426, %v4244, 0
      %v4282 = vsel %vm426, %v4245, 0
      %v4285 = vsel %vm426, %v4246, 0
      %v4288 = vsel %vm426, %v4247, 0
      %v4291 = vsel %vm426, %v4248, 0
      %v4294 = vsel %vm426, %v4249, 0
      %v4297 = vsel %vm426, %v4250, 0
      %v4300 = vsel %vm426, %v4251, 0
      %v4303 = vsel %vm426, %v4252, 0
      %v4306 = vsel %vm426, %v4253, 0
      %4308 = vmatprep.subr.bf16.mxu0 0
      %4309 = vmatpush1.bf16.msra.mxu0 0
      %4310 = vmatprep.subr.bf16.mxu0 0
      %4311 = vmatpush1.bf16.msra.mxu0 0
      %4312 = vmatprep.subr.bf16.mxu0 0
      %4313 = vmatpush1.bf16.msra.mxu0 0
      %4314 = vmatprep.subr.bf16.mxu0 0
      %4315 = vmatpush1.bf16.msra.mxu0 0
      %4316 = vmatprep.subr.bf16.mxu0 0
      %4317 = vmatpush1.bf16.msra.mxu0 0
      %4318 = vmatprep.subr.bf16.mxu0 0
      %4319 = vmatpush1.bf16.msra.mxu0 0
      %4320 = vmatprep.subr.bf16.mxu0 0
      %4321 = vmatpush1.bf16.msra.mxu0 0
      %4322 = vmatprep.subr.bf16.mxu0 0
      %4323 = vmatpush1.bf16.msra.mxu0 %v4258
      %4324 = vmatprep.subr.bf16.mxu0 0
      %4325 = vmatpush2.bf16.msra.mxu0 0
      %4326 = vmatprep.subr.bf16.mxu0 0
      %4327 = vmatpush2.bf16.msra.mxu0 0
      %4328 = vmatprep.subr.bf16.mxu0 0
      %4329 = vmatpush2.bf16.msra.mxu0 0
      %4330 = vmatprep.subr.bf16.mxu0 0
      %4331 = vmatpush2.bf16.msra.mxu0 0
      %4332 = vmatprep.subr.bf16.mxu0 0
      %4333 = vmatpush2.bf16.msra.mxu0 0
      %4334 = vmatprep.subr.bf16.mxu0 0
      %4335 = vmatpush2.bf16.msra.mxu0 0
      %4336 = vmatprep.subr.bf16.mxu0 0
      %4337 = vmatpush2.bf16.msra.mxu0 0
      %4338 = vmatprep.subr.bf16.mxu0 0
      %4339 = vmatpush2.bf16.msra.mxu0 0
      %4340 = vmatprep.mubr.bf16.mxu0 0
      %4341 = vmatmul.mubr.bf16.gmra.mxu0 %v4261
      %v4342 = vpop.f32.mrf.mxu0
      %v4343 = vadd.f32 0.0, %v4342
      %v4344 = vpop.f32.mrf.mxu0
      %v4345 = vpop.f32.mrf.mxu0
      %v4346 = vadd.f32 0.0, %v4345
      %v4347 = vpop.f32.mrf.mxu0
      %4348 = vmatprep.mubr.bf16.mxu0 0
      %4349 = vmatmul.mubr.bf16.gmra.mxu0 %v4264
      %v4350 = vpop.f32.mrf.mxu0
      %v4351 = vadd.f32 0.0, %v4350
      %v4352 = vpop.f32.mrf.mxu0
      %v4353 = vpop.f32.mrf.mxu0
      %v4354 = vadd.f32 0.0, %v4353
      %v4355 = vpop.f32.mrf.mxu0
      %4356 = vmatprep.mubr.bf16.mxu0 0
      %4357 = vmatmul.mubr.bf16.gmra.mxu0 %v4267
      %v4358 = vpop.f32.mrf.mxu0
      %v4359 = vadd.f32 0.0, %v4358
      %v4360 = vpop.f32.mrf.mxu0
      %v4361 = vpop.f32.mrf.mxu0
      %v4362 = vadd.f32 0.0, %v4361
      %v4363 = vpop.f32.mrf.mxu0
      %4364 = vmatprep.mubr.bf16.mxu0 0
      %4365 = vmatmul.mubr.bf16.gmra.mxu0 %v4270
      %v4366 = vpop.f32.mrf.mxu0
      %v4367 = vadd.f32 0.0, %v4366
      %v4368 = vpop.f32.mrf.mxu0
      %v4369 = vpop.f32.mrf.mxu0
      %v4370 = vadd.f32 0.0, %v4369
      %v4371 = vpop.f32.mrf.mxu0
      %4372 = vmatprep.mubr.bf16.mxu0 0
      %4373 = vmatmul.mubr.bf16.gmra.mxu0 %v4273
      %v4374 = vpop.f32.mrf.mxu0
      %v4375 = vadd.f32 0.0, %v4374
      %v4376 = vpop.f32.mrf.mxu0
      %v4377 = vpop.f32.mrf.mxu0
      %v4378 = vadd.f32 0.0, %v4377
      %v4379 = vpop.f32.mrf.mxu0
      %4380 = vmatprep.mubr.bf16.mxu0 0
      %4381 = vmatmul.mubr.bf16.gmra.mxu0 %v4276
      %v4382 = vpop.f32.mrf.mxu0
      %v4383 = vadd.f32 0.0, %v4382
      %v4384 = vpop.f32.mrf.mxu0
      %v4385 = vpop.f32.mrf.mxu0
      %v4386 = vadd.f32 0.0, %v4385
      %v4387 = vpop.f32.mrf.mxu0
      %4388 = vmatprep.mubr.bf16.mxu0 0
      %4389 = vmatmul.mubr.bf16.gmra.mxu0 %v4279
      %v4390 = vpop.f32.mrf.mxu0
      %v4391 = vadd.f32 0.0, %v4390
      %v4392 = vpop.f32.mrf.mxu0
      %v4393 = vpop.f32.mrf.mxu0
      %v4394 = vadd.f32 0.0, %v4393
      %v4395 = vpop.f32.mrf.mxu0
      %4396 = vmatprep.mubr.bf16.mxu0 0
      %4397 = vmatmul.mubr.bf16.gmra.mxu0 %v4282
      %v4398 = vpop.f32.mrf.mxu0
      %v4399 = vadd.f32 0.0, %v4398
      %v4400 = vpop.f32.mrf.mxu0
      %v4401 = vpop.f32.mrf.mxu0
      %v4402 = vadd.f32 0.0, %v4401
      %v4403 = vpop.f32.mrf.mxu0
      %4404 = vmatprep.mubr.bf16.mxu0 0
      %4405 = vmatmul.mubr.bf16.gmra.mxu0 %v4285
      %v4406 = vpop.f32.mrf.mxu0
      %v4407 = vadd.f32 0.0, %v4406
      %v4408 = vpop.f32.mrf.mxu0
      %v4409 = vpop.f32.mrf.mxu0
      %v4410 = vadd.f32 0.0, %v4409
      %v4411 = vpop.f32.mrf.mxu0
      %4412 = vmatprep.mubr.bf16.mxu0 0
      %4413 = vmatmul.mubr.bf16.gmra.mxu0 %v4288
      %v4414 = vpop.f32.mrf.mxu0
      %v4415 = vadd.f32 0.0, %v4414
      %v4416 = vpop.f32.mrf.mxu0
      %v4417 = vpop.f32.mrf.mxu0
      %v4418 = vadd.f32 0.0, %v4417
      %v4419 = vpop.f32.mrf.mxu0
      %4420 = vmatprep.mubr.bf16.mxu0 0
      %4421 = vmatmul.mubr.bf16.gmra.mxu0 %v4291
      %v4422 = vpop.f32.mrf.mxu0
      %v4423 = vadd.f32 0.0, %v4422
      %v4424 = vpop.f32.mrf.mxu0
      %v4425 = vpop.f32.mrf.mxu0
      %v4426 = vadd.f32 0.0, %v4425
      %v4427 = vpop.f32.mrf.mxu0
      %4428 = vmatprep.mubr.bf16.mxu0 0
      %4429 = vmatmul.mubr.bf16.gmra.mxu0 %v4294
      %v4430 = vpop.f32.mrf.mxu0
      %v4431 = vadd.f32 0.0, %v4430
      %v4432 = vpop.f32.mrf.mxu0
      %v4433 = vpop.f32.mrf.mxu0
      %v4434 = vadd.f32 0.0, %v4433
      %v4435 = vpop.f32.mrf.mxu0
      %4436 = vmatprep.mubr.bf16.mxu0 0
      %4437 = vmatmul.mubr.bf16.gmra.mxu0 %v4297
      %v4438 = vpop.f32.mrf.mxu0
      %v4439 = vadd.f32 0.0, %v4438
      %v4440 = vpop.f32.mrf.mxu0
      %v4441 = vpop.f32.mrf.mxu0
      %v4442 = vadd.f32 0.0, %v4441
      %v4443 = vpop.f32.mrf.mxu0
      %4444 = vmatprep.mubr.bf16.mxu0 0
      %4445 = vmatmul.mubr.bf16.gmra.mxu0 %v4300
      %v4446 = vpop.f32.mrf.mxu0
      %v4447 = vadd.f32 0.0, %v4446
      %v4448 = vpop.f32.mrf.mxu0
      %v4449 = vpop.f32.mrf.mxu0
      %v4450 = vadd.f32 0.0, %v4449
      %v4451 = vpop.f32.mrf.mxu0
      %4452 = vmatprep.mubr.bf16.mxu0 0
      %4453 = vmatmul.mubr.bf16.gmra.mxu0 %v4303
      %v4454 = vpop.f32.mrf.mxu0
      %v4455 = vadd.f32 0.0, %v4454
      %v4456 = vpop.f32.mrf.mxu0
      %v4457 = vpop.f32.mrf.mxu0
      %v4458 = vadd.f32 0.0, %v4457
      %v4459 = vpop.f32.mrf.mxu0
      %4460 = vmatprep.mubr.bf16.mxu0 0
      %4461 = vmatmul.mubr.bf16.gmra.mxu0 %v4306
      %v4462 = vpop.f32.mrf.mxu0
      %v4463 = vadd.f32 0.0, %v4462
      %v4464 = vpop.f32.mrf.mxu0
      %v4465 = vpop.f32.mrf.mxu0
      %v4466 = vadd.f32 0.0, %v4465
      %v4467 = vpop.f32.mrf.mxu0
      %4468 = vdwg.mxu0
      %v4470 = vsel %vm426, %v4002, 0
      %4472 = vmatprep.subr.bf16.mxu0 0
      %4473 = vmatpush1.bf16.xpose.msra.mxu0 0
      %4474 = vmatprep.subr.bf16.mxu0 0
      %4475 = vmatpush1.bf16.xpose.msra.mxu0 0
      %4476 = vmatprep.subr.bf16.mxu0 0
      %4477 = vmatpush1.bf16.xpose.msra.mxu0 0
      %4478 = vmatprep.subr.bf16.mxu0 0
      %4479 = vmatpush1.bf16.xpose.msra.mxu0 0
      %4480 = vmatprep.subr.bf16.mxu0 0
      %4481 = vmatpush1.bf16.xpose.msra.mxu0 0
      %4482 = vmatprep.subr.bf16.mxu0 0
      %4483 = vmatpush1.bf16.xpose.msra.mxu0 0
      %4484 = vmatprep.subr.bf16.mxu0 0
      %4485 = vmatpush1.bf16.xpose.msra.mxu0 %v4264
      %4486 = vmatprep.subr.bf16.mxu0 0
      %4487 = vmatpush1.bf16.xpose.msra.mxu0 %v4261
      %4488 = vmatprep.subr.bf16.mxu0 0
      %4489 = vmatpush2.bf16.xpose.msra.mxu0 0
      %4490 = vmatprep.subr.bf16.mxu0 0
      %4491 = vmatpush2.bf16.xpose.msra.mxu0 0
      %4492 = vmatprep.subr.bf16.mxu0 0
      %4493 = vmatpush2.bf16.xpose.msra.mxu0 0
      %4494 = vmatprep.subr.bf16.mxu0 0
      %4495 = vmatpush2.bf16.xpose.msra.mxu0 0
      %4496 = vmatprep.subr.bf16.mxu0 0
      %4497 = vmatpush2.bf16.xpose.msra.mxu0 0
      %4498 = vmatprep.subr.bf16.mxu0 0
      %4499 = vmatpush2.bf16.xpose.msra.mxu0 0
      %4500 = vmatprep.subr.bf16.mxu0 0
      %4501 = vmatpush2.bf16.xpose.msra.mxu0 0
      %4502 = vmatprep.subr.bf16.mxu0 0
      %4503 = vmatpush2.bf16.xpose.msra.mxu0 0
      %4504 = vmatprep.mubr.bf16.mxu0 0
      %4505 = vmatmul.mubr.bf16.gmra.mxu0 %v4470
      %v4506 = vpop.f32.mrf.mxu0
      %v4507 = vadd.f32 0.0, %v4506
      %v4508 = vpop.f32.mrf.mxu0
      %v4509 = vpop.f32.mrf.mxu0
      %v4510 = vpop.f32.mrf.mxu0
      %4511 = vdwg.mxu0
      %4512 = vmatprep.subr.bf16.mxu0 0
      %4513 = vmatpush1.bf16.xpose.msra.mxu0 0
      %4514 = vmatprep.subr.bf16.mxu0 0
      %4515 = vmatpush1.bf16.xpose.msra.mxu0 0
      %4516 = vmatprep.subr.bf16.mxu0 0
      %4517 = vmatpush1.bf16.xpose.msra.mxu0 0
      %4518 = vmatprep.subr.bf16.mxu0 0
      %4519 = vmatpush1.bf16.xpose.msra.mxu0 0
      %4520 = vmatprep.subr.bf16.mxu0 0
      %4521 = vmatpush1.bf16.xpose.msra.mxu0 0
      %4522 = vmatprep.subr.bf16.mxu0 0
      %4523 = vmatpush1.bf16.xpose.msra.mxu0 0
      %4524 = vmatprep.subr.bf16.mxu0 0
      %4525 = vmatpush1.bf16.xpose.msra.mxu0 %v4270
      %4526 = vmatprep.subr.bf16.mxu0 0
      %4527 = vmatpush1.bf16.xpose.msra.mxu0 %v4267
      %4528 = vmatprep.subr.bf16.mxu0 0
      %4529 = vmatpush2.bf16.xpose.msra.mxu0 0
      %4530 = vmatprep.subr.bf16.mxu0 0
      %4531 = vmatpush2.bf16.xpose.msra.mxu0 0
      %4532 = vmatprep.subr.bf16.mxu0 0
      %4533 = vmatpush2.bf16.xpose.msra.mxu0 0
      %4534 = vmatprep.subr.bf16.mxu0 0
      %4535 = vmatpush2.bf16.xpose.msra.mxu0 0
      %4536 = vmatprep.subr.bf16.mxu0 0
      %4537 = vmatpush2.bf16.xpose.msra.mxu0 0
      %4538 = vmatprep.subr.bf16.mxu0 0
      %4539 = vmatpush2.bf16.xpose.msra.mxu0 0
      %4540 = vmatprep.subr.bf16.mxu0 0
      %4541 = vmatpush2.bf16.xpose.msra.mxu0 0
      %4542 = vmatprep.subr.bf16.mxu0 0
      %4543 = vmatpush2.bf16.xpose.msra.mxu0 0
      %4544 = vmatprep.mubr.bf16.mxu0 0
      %4545 = vmatmul.mubr.bf16.gmra.mxu0 %v4470
      %v4546 = vpop.f32.mrf.mxu0
      %v4547 = vadd.f32 0.0, %v4546
      %v4548 = vpop.f32.mrf.mxu0
      %v4549 = vpop.f32.mrf.mxu0
      %v4550 = vpop.f32.mrf.mxu0
      %4551 = vdwg.mxu0
      %4552 = vmatprep.subr.bf16.mxu0 0
      %4553 = vmatpush1.bf16.xpose.msra.mxu0 0
      %4554 = vmatprep.subr.bf16.mxu0 0
      %4555 = vmatpush1.bf16.xpose.msra.mxu0 0
      %4556 = vmatprep.subr.bf16.mxu0 0
      %4557 = vmatpush1.bf16.xpose.msra.mxu0 0
      %4558 = vmatprep.subr.bf16.mxu0 0
      %4559 = vmatpush1.bf16.xpose.msra.mxu0 0
      %4560 = vmatprep.subr.bf16.mxu0 0
      %4561 = vmatpush1.bf16.xpose.msra.mxu0 0
      %4562 = vmatprep.subr.bf16.mxu0 0
      %4563 = vmatpush1.bf16.xpose.msra.mxu0 0
      %4564 = vmatprep.subr.bf16.mxu0 0
      %4565 = vmatpush1.bf16.xpose.msra.mxu0 %v4276
      %4566 = vmatprep.subr.bf16.mxu0 0
      %4567 = vmatpush1.bf16.xpose.msra.mxu0 %v4273
      %4568 = vmatprep.subr.bf16.mxu0 0
      %4569 = vmatpush2.bf16.xpose.msra.mxu0 0
      %4570 = vmatprep.subr.bf16.mxu0 0
      %4571 = vmatpush2.bf16.xpose.msra.mxu0 0
      %4572 = vmatprep.subr.bf16.mxu0 0
      %4573 = vmatpush2.bf16.xpose.msra.mxu0 0
      %4574 = vmatprep.subr.bf16.mxu0 0
      %4575 = vmatpush2.bf16.xpose.msra.mxu0 0
      %4576 = vmatprep.subr.bf16.mxu0 0
      %4577 = vmatpush2.bf16.xpose.msra.mxu0 0
      %4578 = vmatprep.subr.bf16.mxu0 0
      %4579 = vmatpush2.bf16.xpose.msra.mxu0 0
      %4580 = vmatprep.subr.bf16.mxu0 0
      %4581 = vmatpush2.bf16.xpose.msra.mxu0 0
      %4582 = vmatprep.subr.bf16.mxu0 0
      %4583 = vmatpush2.bf16.xpose.msra.mxu0 0
      %4584 = vmatprep.mubr.bf16.mxu0 0
      %4585 = vmatmul.mubr.bf16.gmra.mxu0 %v4470
      %v4586 = vpop.f32.mrf.mxu0
      %v4587 = vadd.f32 0.0, %v4586
      %v4588 = vpop.f32.mrf.mxu0
      %v4589 = vpop.f32.mrf.mxu0
      %v4590 = vpop.f32.mrf.mxu0
      %4591 = vdwg.mxu0
      %4592 = vmatprep.subr.bf16.mxu0 0
      %4593 = vmatpush1.bf16.xpose.msra.mxu0 0
      %4594 = vmatprep.subr.bf16.mxu0 0
      %4595 = vmatpush1.bf16.xpose.msra.mxu0 0
      %4596 = vmatprep.subr.bf16.mxu0 0
      %4597 = vmatpush1.bf16.xpose.msra.mxu0 0
      %4598 = vmatprep.subr.bf16.mxu0 0
      %4599 = vmatpush1.bf16.xpose.msra.mxu0 0
      %4600 = vmatprep.subr.bf16.mxu0 0
      %4601 = vmatpush1.bf16.xpose.msra.mxu0 0
      %4602 = vmatprep.subr.bf16.mxu0 0
      %4603 = vmatpush1.bf16.xpose.msra.mxu0 0
      %4604 = vmatprep.subr.bf16.mxu0 0
      %4605 = vmatpush1.bf16.xpose.msra.mxu0 %v4282
      %4606 = vmatprep.subr.bf16.mxu0 0
      %4607 = vmatpush1.bf16.xpose.msra.mxu0 %v4279
      %4608 = vmatprep.subr.bf16.mxu0 0
      %4609 = vmatpush2.bf16.xpose.msra.mxu0 0
      %4610 = vmatprep.subr.bf16.mxu0 0
      %4611 = vmatpush2.bf16.xpose.msra.mxu0 0
      %4612 = vmatprep.subr.bf16.mxu0 0
      %4613 = vmatpush2.bf16.xpose.msra.mxu0 0
      %4614 = vmatprep.subr.bf16.mxu0 0
      %4615 = vmatpush2.bf16.xpose.msra.mxu0 0
      %4616 = vmatprep.subr.bf16.mxu0 0
      %4617 = vmatpush2.bf16.xpose.msra.mxu0 0
      %4618 = vmatprep.subr.bf16.mxu0 0
      %4619 = vmatpush2.bf16.xpose.msra.mxu0 0
      %4620 = vmatprep.subr.bf16.mxu0 0
      %4621 = vmatpush2.bf16.xpose.msra.mxu0 0
      %4622 = vmatprep.subr.bf16.mxu0 0
      %4623 = vmatpush2.bf16.xpose.msra.mxu0 0
      %4624 = vmatprep.mubr.bf16.mxu0 0
      %4625 = vmatmul.mubr.bf16.gmra.mxu0 %v4470
      %v4626 = vpop.f32.mrf.mxu0
      %v4627 = vadd.f32 0.0, %v4626
      %v4628 = vpop.f32.mrf.mxu0
      %v4629 = vpop.f32.mrf.mxu0
      %v4630 = vpop.f32.mrf.mxu0
      %4631 = vdwg.mxu0
      %4632 = vmatprep.subr.bf16.mxu0 0
      %4633 = vmatpush1.bf16.xpose.msra.mxu0 0
      %4634 = vmatprep.subr.bf16.mxu0 0
      %4635 = vmatpush1.bf16.xpose.msra.mxu0 0
      %4636 = vmatprep.subr.bf16.mxu0 0
      %4637 = vmatpush1.bf16.xpose.msra.mxu0 0
      %4638 = vmatprep.subr.bf16.mxu0 0
      %4639 = vmatpush1.bf16.xpose.msra.mxu0 0
      %4640 = vmatprep.subr.bf16.mxu0 0
      %4641 = vmatpush1.bf16.xpose.msra.mxu0 0
      %4642 = vmatprep.subr.bf16.mxu0 0
      %4643 = vmatpush1.bf16.xpose.msra.mxu0 0
      %4644 = vmatprep.subr.bf16.mxu0 0
      %4645 = vmatpush1.bf16.xpose.msra.mxu0 %v4288
      %4646 = vmatprep.subr.bf16.mxu0 0
      %4647 = vmatpush1.bf16.xpose.msra.mxu0 %v4285
      %4648 = vmatprep.subr.bf16.mxu0 0
      %4649 = vmatpush2.bf16.xpose.msra.mxu0 0
      %4650 = vmatprep.subr.bf16.mxu0 0
      %4651 = vmatpush2.bf16.xpose.msra.mxu0 0
      %4652 = vmatprep.subr.bf16.mxu0 0
      %4653 = vmatpush2.bf16.xpose.msra.mxu0 0
      %4654 = vmatprep.subr.bf16.mxu0 0
      %4655 = vmatpush2.bf16.xpose.msra.mxu0 0
      %4656 = vmatprep.subr.bf16.mxu0 0
      %4657 = vmatpush2.bf16.xpose.msra.mxu0 0
      %4658 = vmatprep.subr.bf16.mxu0 0
      %4659 = vmatpush2.bf16.xpose.msra.mxu0 0
      %4660 = vmatprep.subr.bf16.mxu0 0
      %4661 = vmatpush2.bf16.xpose.msra.mxu0 0
      %4662 = vmatprep.subr.bf16.mxu0 0
      %4663 = vmatpush2.bf16.xpose.msra.mxu0 0
      %4664 = vmatprep.mubr.bf16.mxu0 0
      %4665 = vmatmul.mubr.bf16.gmra.mxu0 %v4470
      %v4666 = vpop.f32.mrf.mxu0
      %v4667 = vadd.f32 0.0, %v4666
      %v4668 = vpop.f32.mrf.mxu0
      %v4669 = vpop.f32.mrf.mxu0
      %v4670 = vpop.f32.mrf.mxu0
      %4671 = vdwg.mxu0
      %4672 = vmatprep.subr.bf16.mxu0 0
      %4673 = vmatpush1.bf16.xpose.msra.mxu0 0
      %4674 = vmatprep.subr.bf16.mxu0 0
      %4675 = vmatpush1.bf16.xpose.msra.mxu0 0
      %4676 = vmatprep.subr.bf16.mxu0 0
      %4677 = vmatpush1.bf16.xpose.msra.mxu0 0
      %4678 = vmatprep.subr.bf16.mxu0 0
      %4679 = vmatpush1.bf16.xpose.msra.mxu0 0
      %4680 = vmatprep.subr.bf16.mxu0 0
      %4681 = vmatpush1.bf16.xpose.msra.mxu0 0
      %4682 = vmatprep.subr.bf16.mxu0 0
      %4683 = vmatpush1.bf16.xpose.msra.mxu0 0
      %4684 = vmatprep.subr.bf16.mxu0 0
      %4685 = vmatpush1.bf16.xpose.msra.mxu0 %v4294
      %4686 = vmatprep.subr.bf16.mxu0 0
      %4687 = vmatpush1.bf16.xpose.msra.mxu0 %v4291
      %4688 = vmatprep.subr.bf16.mxu0 0
      %4689 = vmatpush2.bf16.xpose.msra.mxu0 0
      %4690 = vmatprep.subr.bf16.mxu0 0
      %4691 = vmatpush2.bf16.xpose.msra.mxu0 0
      %4692 = vmatprep.subr.bf16.mxu0 0
      %4693 = vmatpush2.bf16.xpose.msra.mxu0 0
      %4694 = vmatprep.subr.bf16.mxu0 0
      %4695 = vmatpush2.bf16.xpose.msra.mxu0 0
      %4696 = vmatprep.subr.bf16.mxu0 0
      %4697 = vmatpush2.bf16.xpose.msra.mxu0 0
      %4698 = vmatprep.subr.bf16.mxu0 0
      %4699 = vmatpush2.bf16.xpose.msra.mxu0 0
      %4700 = vmatprep.subr.bf16.mxu0 0
      %4701 = vmatpush2.bf16.xpose.msra.mxu0 0
      %4702 = vmatprep.subr.bf16.mxu0 0
      %4703 = vmatpush2.bf16.xpose.msra.mxu0 0
      %4704 = vmatprep.mubr.bf16.mxu0 0
      %4705 = vmatmul.mubr.bf16.gmra.mxu0 %v4470
      %v4706 = vpop.f32.mrf.mxu0
      %v4707 = vadd.f32 0.0, %v4706
      %v4708 = vpop.f32.mrf.mxu0
      %v4709 = vpop.f32.mrf.mxu0
      %v4710 = vpop.f32.mrf.mxu0
      %4711 = vdwg.mxu0
      %4712 = vmatprep.subr.bf16.mxu0 0
      %4713 = vmatpush1.bf16.xpose.msra.mxu0 0
      %4714 = vmatprep.subr.bf16.mxu0 0
      %4715 = vmatpush1.bf16.xpose.msra.mxu0 0
      %4716 = vmatprep.subr.bf16.mxu0 0
      %4717 = vmatpush1.bf16.xpose.msra.mxu0 0
      %4718 = vmatprep.subr.bf16.mxu0 0
      %4719 = vmatpush1.bf16.xpose.msra.mxu0 0
      %4720 = vmatprep.subr.bf16.mxu0 0
      %4721 = vmatpush1.bf16.xpose.msra.mxu0 0
      %4722 = vmatprep.subr.bf16.mxu0 0
      %4723 = vmatpush1.bf16.xpose.msra.mxu0 0
      %4724 = vmatprep.subr.bf16.mxu0 0
      %4725 = vmatpush1.bf16.xpose.msra.mxu0 %v4300
      %4726 = vmatprep.subr.bf16.mxu0 0
      %4727 = vmatpush1.bf16.xpose.msra.mxu0 %v4297
      %4728 = vmatprep.subr.bf16.mxu0 0
      %4729 = vmatpush2.bf16.xpose.msra.mxu0 0
      %4730 = vmatprep.subr.bf16.mxu0 0
      %4731 = vmatpush2.bf16.xpose.msra.mxu0 0
      %4732 = vmatprep.subr.bf16.mxu0 0
      %4733 = vmatpush2.bf16.xpose.msra.mxu0 0
      %4734 = vmatprep.subr.bf16.mxu0 0
      %4735 = vmatpush2.bf16.xpose.msra.mxu0 0
      %4736 = vmatprep.subr.bf16.mxu0 0
      %4737 = vmatpush2.bf16.xpose.msra.mxu0 0
      %4738 = vmatprep.subr.bf16.mxu0 0
      %4739 = vmatpush2.bf16.xpose.msra.mxu0 0
      %4740 = vmatprep.subr.bf16.mxu0 0
      %4741 = vmatpush2.bf16.xpose.msra.mxu0 0
      %4742 = vmatprep.subr.bf16.mxu0 0
      %4743 = vmatpush2.bf16.xpose.msra.mxu0 0
      %4744 = vmatprep.mubr.bf16.mxu0 0
      %4745 = vmatmul.mubr.bf16.gmra.mxu0 %v4470
      %v4746 = vpop.f32.mrf.mxu0
      %v4747 = vadd.f32 0.0, %v4746
      %v4748 = vpop.f32.mrf.mxu0
      %v4749 = vpop.f32.mrf.mxu0
      %v4750 = vpop.f32.mrf.mxu0
      %4751 = vdwg.mxu0
      %4752 = vmatprep.subr.bf16.mxu0 0
      %4753 = vmatpush1.bf16.xpose.msra.mxu0 0
      %4754 = vmatprep.subr.bf16.mxu0 0
      %4755 = vmatpush1.bf16.xpose.msra.mxu0 0
      %4756 = vmatprep.subr.bf16.mxu0 0
      %4757 = vmatpush1.bf16.xpose.msra.mxu0 0
      %4758 = vmatprep.subr.bf16.mxu0 0
      %4759 = vmatpush1.bf16.xpose.msra.mxu0 0
      %4760 = vmatprep.subr.bf16.mxu0 0
      %4761 = vmatpush1.bf16.xpose.msra.mxu0 0
      %4762 = vmatprep.subr.bf16.mxu0 0
      %4763 = vmatpush1.bf16.xpose.msra.mxu0 0
      %4764 = vmatprep.subr.bf16.mxu0 0
      %4765 = vmatpush1.bf16.xpose.msra.mxu0 %v4306
      %4766 = vmatprep.subr.bf16.mxu0 0
      %4767 = vmatpush1.bf16.xpose.msra.mxu0 %v4303
      %4768 = vmatprep.subr.bf16.mxu0 0
      %4769 = vmatpush2.bf16.xpose.msra.mxu0 0
      %4770 = vmatprep.subr.bf16.mxu0 0
      %4771 = vmatpush2.bf16.xpose.msra.mxu0 0
      %4772 = vmatprep.subr.bf16.mxu0 0
      %4773 = vmatpush2.bf16.xpose.msra.mxu0 0
      %4774 = vmatprep.subr.bf16.mxu0 0
      %4775 = vmatpush2.bf16.xpose.msra.mxu0 0
      %4776 = vmatprep.subr.bf16.mxu0 0
      %4777 = vmatpush2.bf16.xpose.msra.mxu0 0
      %4778 = vmatprep.subr.bf16.mxu0 0
      %4779 = vmatpush2.bf16.xpose.msra.mxu0 0
      %4780 = vmatprep.subr.bf16.mxu0 0
      %4781 = vmatpush2.bf16.xpose.msra.mxu0 0
      %4782 = vmatprep.subr.bf16.mxu0 0
      %4783 = vmatpush2.bf16.xpose.msra.mxu0 0
      %4784 = vmatprep.mubr.bf16.mxu0 0
      %4785 = vmatmul.mubr.bf16.gmra.mxu0 %v4470
      %v4786 = vpop.f32.mrf.mxu0
      %v4787 = vadd.f32 0.0, %v4786
      %v4788 = vpop.f32.mrf.mxu0
      %v4789 = vpop.f32.mrf.mxu0
      %v4790 = vpop.f32.mrf.mxu0
      %4791 = vdwg.mxu0
      %4793 = vset.pattern.permute.xlu0 0
      %4794 = vperm.xlu0 %4793, %v4343
      %v4795 = vpop.permute.xlu0 %4794
      %4798 = vset.pattern.permute.xlu0 0
      %4799 = vperm.xlu0 %4798, %v4346
      %v4800 = vpop.permute.xlu0 %4799
      %4803 = vset.pattern.permute.xlu0 0
      %4804 = vperm.xlu0 %4803, %v4351
      %v4805 = vpop.permute.xlu0 %4804
      %4808 = vset.pattern.permute.xlu0 0
      %4809 = vperm.xlu0 %4808, %v4354
      %v4810 = vpop.permute.xlu0 %4809
      %4813 = vset.pattern.permute.xlu0 0
      %4814 = vperm.xlu0 %4813, %v4359
      %v4815 = vpop.permute.xlu0 %4814
      %4818 = vset.pattern.permute.xlu0 0
      %4819 = vperm.xlu0 %4818, %v4362
      %v4820 = vpop.permute.xlu0 %4819
      %4823 = vset.pattern.permute.xlu0 0
      %4824 = vperm.xlu0 %4823, %v4367
      %v4825 = vpop.permute.xlu0 %4824
      %4828 = vset.pattern.permute.xlu0 0
      %4829 = vperm.xlu0 %4828, %v4370
      %v4830 = vpop.permute.xlu0 %4829
      %4833 = vset.pattern.permute.xlu0 0
      %4834 = vperm.xlu0 %4833, %v4375
      %v4835 = vpop.permute.xlu0 %4834
      %4838 = vset.pattern.permute.xlu0 0
      %4839 = vperm.xlu0 %4838, %v4378
      %v4840 = vpop.permute.xlu0 %4839
      %4843 = vset.pattern.permute.xlu0 0
      %4844 = vperm.xlu0 %4843, %v4383
      %v4845 = vpop.permute.xlu0 %4844
      %4848 = vset.pattern.permute.xlu0 0
      %4849 = vperm.xlu0 %4848, %v4386
      %v4850 = vpop.permute.xlu0 %4849
      %4853 = vset.pattern.permute.xlu0 0
      %4854 = vperm.xlu0 %4853, %v4391
      %v4855 = vpop.permute.xlu0 %4854
      %4858 = vset.pattern.permute.xlu0 0
      %4859 = vperm.xlu0 %4858, %v4394
      %v4860 = vpop.permute.xlu0 %4859
      %4863 = vset.pattern.permute.xlu0 0
      %4864 = vperm.xlu0 %4863, %v4399
      %v4865 = vpop.permute.xlu0 %4864
      %4868 = vset.pattern.permute.xlu0 0
      %4869 = vperm.xlu0 %4868, %v4402
      %v4870 = vpop.permute.xlu0 %4869
      %4873 = vset.pattern.permute.xlu0 0
      %4874 = vperm.xlu0 %4873, %v4407
      %v4875 = vpop.permute.xlu0 %4874
      %4878 = vset.pattern.permute.xlu0 0
      %4879 = vperm.xlu0 %4878, %v4410
      %v4880 = vpop.permute.xlu0 %4879
      %4883 = vset.pattern.permute.xlu0 0
      %4884 = vperm.xlu0 %4883, %v4415
      %v4885 = vpop.permute.xlu0 %4884
      %4888 = vset.pattern.permute.xlu0 0
      %4889 = vperm.xlu0 %4888, %v4418
      %v4890 = vpop.permute.xlu0 %4889
      %4893 = vset.pattern.permute.xlu0 0
      %4894 = vperm.xlu0 %4893, %v4423
      %v4895 = vpop.permute.xlu0 %4894
      %4898 = vset.pattern.permute.xlu0 0
      %4899 = vperm.xlu0 %4898, %v4426
      %v4900 = vpop.permute.xlu0 %4899
      %4903 = vset.pattern.permute.xlu0 0
      %4904 = vperm.xlu0 %4903, %v4431
      %v4905 = vpop.permute.xlu0 %4904
      %4908 = vset.pattern.permute.xlu0 0
      %4909 = vperm.xlu0 %4908, %v4434
      %v4910 = vpop.permute.xlu0 %4909
      %4913 = vset.pattern.permute.xlu0 0
      %4914 = vperm.xlu0 %4913, %v4439
      %v4915 = vpop.permute.xlu0 %4914
      %4918 = vset.pattern.permute.xlu0 0
      %4919 = vperm.xlu0 %4918, %v4442
      %v4920 = vpop.permute.xlu0 %4919
      %4923 = vset.pattern.permute.xlu0 0
      %4924 = vperm.xlu0 %4923, %v4447
      %v4925 = vpop.permute.xlu0 %4924
      %4928 = vset.pattern.permute.xlu0 0
      %4929 = vperm.xlu0 %4928, %v4450
      %v4930 = vpop.permute.xlu0 %4929
      %4933 = vset.pattern.permute.xlu0 0
      %4934 = vperm.xlu0 %4933, %v4455
      %v4935 = vpop.permute.xlu0 %4934
      %4938 = vset.pattern.permute.xlu0 0
      %4939 = vperm.xlu0 %4938, %v4458
      %v4940 = vpop.permute.xlu0 %4939
      %4943 = vset.pattern.permute.xlu0 0
      %4944 = vperm.xlu0 %4943, %v4463
      %v4945 = vpop.permute.xlu0 %4944
      %4948 = vset.pattern.permute.xlu0 0
      %4949 = vperm.xlu0 %4948, %v4466
      %v4950 = vpop.permute.xlu0 %4949
      %v4952 = vlaneseq
      %v4953 = vshrl.u32 %v4952, 7
      %v4954 = vsub.s32 0, %v4953
      %v4955 = vrot.slane %v4507, %v4954
      %v4956 = vlaneseq
      %v4957 = vshrl.u32 %v4956, 7
      %v4958 = vsub.s32 0, %v4957
      %v4959 = vrot.slane %v4547, %v4958
      %v4960 = vlaneseq
      %v4961 = vshrl.u32 %v4960, 7
      %v4962 = vsub.s32 0, %v4961
      %v4963 = vrot.slane %v4587, %v4962
      %v4964 = vlaneseq
      %v4965 = vshrl.u32 %v4964, 7
      %v4966 = vsub.s32 0, %v4965
      %v4967 = vrot.slane %v4627, %v4966
      %v4968 = vlaneseq
      %v4969 = vshrl.u32 %v4968, 7
      %v4970 = vsub.s32 0, %v4969
      %v4971 = vrot.slane %v4667, %v4970
      %v4972 = vlaneseq
      %v4973 = vshrl.u32 %v4972, 7
      %v4974 = vsub.s32 0, %v4973
      %v4975 = vrot.slane %v4707, %v4974
      %v4976 = vlaneseq
      %v4977 = vshrl.u32 %v4976, 7
      %v4978 = vsub.s32 0, %v4977
      %v4979 = vrot.slane %v4747, %v4978
      %v4980 = vlaneseq
      %v4981 = vshrl.u32 %v4980, 7
      %v4982 = vsub.s32 0, %v4981
      %v4983 = vrot.slane %v4787, %v4982
      %v4984 = vadd.f32 %v4795, %v4955
      %v4985 = vadd.f32 %v4800, %v4955
      %v4986 = vadd.f32 %v4805, %v4955
      %v4987 = vadd.f32 %v4810, %v4955
      %v4988 = vadd.f32 %v4815, %v4959
      %v4989 = vadd.f32 %v4820, %v4959
      %v4990 = vadd.f32 %v4825, %v4959
      %v4991 = vadd.f32 %v4830, %v4959
      %v4992 = vadd.f32 %v4835, %v4963
      %v4993 = vadd.f32 %v4840, %v4963
      %v4994 = vadd.f32 %v4845, %v4963
      %v4995 = vadd.f32 %v4850, %v4963
      %v4996 = vadd.f32 %v4855, %v4967
      %v4997 = vadd.f32 %v4860, %v4967
      %v4998 = vadd.f32 %v4865, %v4967
      %v4999 = vadd.f32 %v4870, %v4967
      %v5000 = vadd.f32 %v4875, %v4971
      %v5001 = vadd.f32 %v4880, %v4971
      %v5002 = vadd.f32 %v4885, %v4971
      %v5003 = vadd.f32 %v4890, %v4971
      %v5004 = vadd.f32 %v4895, %v4975
      %v5005 = vadd.f32 %v4900, %v4975
      %v5006 = vadd.f32 %v4905, %v4975
      %v5007 = vadd.f32 %v4910, %v4975
      %v5008 = vadd.f32 %v4915, %v4979
      %v5009 = vadd.f32 %v4920, %v4979
      %v5010 = vadd.f32 %v4925, %v4979
      %v5011 = vadd.f32 %v4930, %v4979
      %v5012 = vadd.f32 %v4935, %v4983
      %v5013 = vadd.f32 %v4940, %v4983
      %v5014 = vadd.f32 %v4945, %v4983
      %v5015 = vadd.f32 %v4950, %v4983
      %vm5016 = vcmp.gt.f32.partialorder %v4984, 0.0
      %vm5017 = vcmp.gt.f32.partialorder %v4985, 0.0
      %vm5018 = vcmp.gt.f32.partialorder %v4986, 0.0
      %vm5019 = vcmp.gt.f32.partialorder %v4987, 0.0
      %vm5020 = vcmp.gt.f32.partialorder %v4988, 0.0
      %vm5021 = vcmp.gt.f32.partialorder %v4989, 0.0
      %vm5022 = vcmp.gt.f32.partialorder %v4990, 0.0
      %vm5023 = vcmp.gt.f32.partialorder %v4991, 0.0
      %vm5024 = vcmp.gt.f32.partialorder %v4992, 0.0
      %vm5025 = vcmp.gt.f32.partialorder %v4993, 0.0
      %vm5026 = vcmp.gt.f32.partialorder %v4994, 0.0
      %vm5027 = vcmp.gt.f32.partialorder %v4995, 0.0
      %vm5028 = vcmp.gt.f32.partialorder %v4996, 0.0
      %vm5029 = vcmp.gt.f32.partialorder %v4997, 0.0
      %vm5030 = vcmp.gt.f32.partialorder %v4998, 0.0
      %vm5031 = vcmp.gt.f32.partialorder %v4999, 0.0
      %vm5032 = vcmp.gt.f32.partialorder %v5000, 0.0
      %vm5033 = vcmp.gt.f32.partialorder %v5001, 0.0
      %vm5034 = vcmp.gt.f32.partialorder %v5002, 0.0
      %vm5035 = vcmp.gt.f32.partialorder %v5003, 0.0
      %vm5036 = vcmp.gt.f32.partialorder %v5004, 0.0
      %vm5037 = vcmp.gt.f32.partialorder %v5005, 0.0
      %vm5038 = vcmp.gt.f32.partialorder %v5006, 0.0
      %vm5039 = vcmp.gt.f32.partialorder %v5007, 0.0
      %vm5040 = vcmp.gt.f32.partialorder %v5008, 0.0
      %vm5041 = vcmp.gt.f32.partialorder %v5009, 0.0
      %vm5042 = vcmp.gt.f32.partialorder %v5010, 0.0
      %vm5043 = vcmp.gt.f32.partialorder %v5011, 0.0
      %vm5044 = vcmp.gt.f32.partialorder %v5012, 0.0
      %vm5045 = vcmp.gt.f32.partialorder %v5013, 0.0
      %vm5046 = vcmp.gt.f32.partialorder %v5014, 0.0
      %vm5047 = vcmp.gt.f32.partialorder %v5015, 0.0
      %v5048 = vmul.f32 %v4984, 0.2
      %v5049 = vmul.f32 %v4985, 0.2
      %v5050 = vmul.f32 %v4986, 0.2
      %v5051 = vmul.f32 %v4987, 0.2
      %v5052 = vmul.f32 %v4988, 0.2
      %v5053 = vmul.f32 %v4989, 0.2
      %v5054 = vmul.f32 %v4990, 0.2
      %v5055 = vmul.f32 %v4991, 0.2
      %v5056 = vmul.f32 %v4992, 0.2
      %v5057 = vmul.f32 %v4993, 0.2
      %v5058 = vmul.f32 %v4994, 0.2
      %v5059 = vmul.f32 %v4995, 0.2
      %v5060 = vmul.f32 %v4996, 0.2
      %v5061 = vmul.f32 %v4997, 0.2
      %v5062 = vmul.f32 %v4998, 0.2
      %v5063 = vmul.f32 %v4999, 0.2
      %v5064 = vmul.f32 %v5000, 0.2
      %v5065 = vmul.f32 %v5001, 0.2
      %v5066 = vmul.f32 %v5002, 0.2
      %v5067 = vmul.f32 %v5003, 0.2
      %v5068 = vmul.f32 %v5004, 0.2
      %v5069 = vmul.f32 %v5005, 0.2
      %v5070 = vmul.f32 %v5006, 0.2
      %v5071 = vmul.f32 %v5007, 0.2
      %v5072 = vmul.f32 %v5008, 0.2
      %v5073 = vmul.f32 %v5009, 0.2
      %v5074 = vmul.f32 %v5010, 0.2
      %v5075 = vmul.f32 %v5011, 0.2
      %v5076 = vmul.f32 %v5012, 0.2
      %v5077 = vmul.f32 %v5013, 0.2
      %v5078 = vmul.f32 %v5014, 0.2
      %v5079 = vmul.f32 %v5015, 0.2
      %v5080 = vsel %vm5016, %v4984, %v5048
      %v5081 = vsel %vm5017, %v4985, %v5049
      %v5082 = vsel %vm5018, %v4986, %v5050
      %v5083 = vsel %vm5019, %v4987, %v5051
      %v5084 = vsel %vm5020, %v4988, %v5052
      %v5085 = vsel %vm5021, %v4989, %v5053
      %v5086 = vsel %vm5022, %v4990, %v5054
      %v5087 = vsel %vm5023, %v4991, %v5055
      %v5088 = vsel %vm5024, %v4992, %v5056
      %v5089 = vsel %vm5025, %v4993, %v5057
      %v5090 = vsel %vm5026, %v4994, %v5058
      %v5091 = vsel %vm5027, %v4995, %v5059
      %v5092 = vsel %vm5028, %v4996, %v5060
      %v5093 = vsel %vm5029, %v4997, %v5061
      %v5094 = vsel %vm5030, %v4998, %v5062
      %v5095 = vsel %vm5031, %v4999, %v5063
      %v5096 = vsel %vm5032, %v5000, %v5064
      %v5097 = vsel %vm5033, %v5001, %v5065
      %v5098 = vsel %vm5034, %v5002, %v5066
      %v5099 = vsel %vm5035, %v5003, %v5067
      %v5100 = vsel %vm5036, %v5004, %v5068
      %v5101 = vsel %vm5037, %v5005, %v5069
      %v5102 = vsel %vm5038, %v5006, %v5070
      %v5103 = vsel %vm5039, %v5007, %v5071
      %v5104 = vsel %vm5040, %v5008, %v5072
      %v5105 = vsel %vm5041, %v5009, %v5073
      %v5106 = vsel %vm5042, %v5010, %v5074
      %v5107 = vsel %vm5043, %v5011, %v5075
      %v5108 = vsel %vm5044, %v5012, %v5076
      %v5109 = vsel %vm5045, %v5013, %v5077
      %v5110 = vsel %vm5046, %v5014, %v5078
      %v5111 = vsel %vm5047, %v5015, %v5079
      %v5112 = vadd.f32 %v5080, %v333
      %v5113 = vadd.f32 %v5081, %v334
      %v5114 = vadd.f32 %v5082, %v335
      %v5115 = vadd.f32 %v5083, %v336
      %v5116 = vadd.f32 %v5084, %v337
      %v5117 = vadd.f32 %v5085, %v338
      %v5118 = vadd.f32 %v5086, %v339
      %v5119 = vadd.f32 %v5087, %v340
      %v5120 = vadd.f32 %v5088, %v341
      %v5121 = vadd.f32 %v5089, %v342
      %v5122 = vadd.f32 %v5090, %v343
      %v5123 = vadd.f32 %v5091, %v344
      %v5124 = vadd.f32 %v5092, %v345
      %v5125 = vadd.f32 %v5093, %v346
      %v5126 = vadd.f32 %v5094, %v347
      %v5127 = vadd.f32 %v5095, %v348
      %v5128 = vadd.f32 %v5096, %v349
      %v5129 = vadd.f32 %v5097, %v350
      %v5130 = vadd.f32 %v5098, %v351
      %v5131 = vadd.f32 %v5099, %v352
      %v5132 = vadd.f32 %v5100, %v353
      %v5133 = vadd.f32 %v5101, %v354
      %v5134 = vadd.f32 %v5102, %v355
      %v5135 = vadd.f32 %v5103, %v356
      %v5136 = vadd.f32 %v5104, %v357
      %v5137 = vadd.f32 %v5105, %v358
      %v5138 = vadd.f32 %v5106, %v359
      %v5139 = vadd.f32 %v5107, %v360
      %v5140 = vadd.f32 %v5108, %v361
      %v5141 = vadd.f32 %v5109, %v362
      %v5142 = vadd.f32 %v5110, %v363
      %v5143 = vadd.f32 %v5111, %v364
      %v5144 = vsel %vm1542, %v5112, -inf
      %5145 = vmax.xlane.f32.xlu0 %v5144
      %v5146 = vpop.xlane.xlu0 %5145
      %v5147 = vsel %vm1542, %v5113, -inf
      %5148 = vmax.xlane.f32.xlu0 %v5147
      %v5149 = vpop.xlane.xlu0 %5148
      %v5150 = vsel %vm1542, %v5114, -inf
      %5151 = vmax.xlane.f32.xlu0 %v5150
      %v5152 = vpop.xlane.xlu0 %5151
      %v5153 = vsel %vm1542, %v5115, -inf
      %5154 = vmax.xlane.f32.xlu0 %v5153
      %v5155 = vpop.xlane.xlu0 %5154
      %v5156 = vsel %vm1542, %v5116, -inf
      %5157 = vmax.xlane.f32.xlu0 %v5156
      %v5158 = vpop.xlane.xlu0 %5157
      %v5159 = vsel %vm1542, %v5117, -inf
      %5160 = vmax.xlane.f32.xlu0 %v5159
      %v5161 = vpop.xlane.xlu0 %5160
      %v5162 = vsel %vm1542, %v5118, -inf
      %5163 = vmax.xlane.f32.xlu0 %v5162
      %v5164 = vpop.xlane.xlu0 %5163
      %v5165 = vsel %vm1542, %v5119, -inf
      %5166 = vmax.xlane.f32.xlu0 %v5165
      %v5167 = vpop.xlane.xlu0 %5166
      %v5168 = vsel %vm1542, %v5120, -inf
      %5169 = vmax.xlane.f32.xlu0 %v5168
      %v5170 = vpop.xlane.xlu0 %5169
      %v5171 = vsel %vm1542, %v5121, -inf
      %5172 = vmax.xlane.f32.xlu0 %v5171
      %v5173 = vpop.xlane.xlu0 %5172
      %v5174 = vsel %vm1542, %v5122, -inf
      %5175 = vmax.xlane.f32.xlu0 %v5174
      %v5176 = vpop.xlane.xlu0 %5175
      %v5177 = vsel %vm1542, %v5123, -inf
      %5178 = vmax.xlane.f32.xlu0 %v5177
      %v5179 = vpop.xlane.xlu0 %5178
      %v5180 = vsel %vm1542, %v5124, -inf
      %5181 = vmax.xlane.f32.xlu0 %v5180
      %v5182 = vpop.xlane.xlu0 %5181
      %v5183 = vsel %vm1542, %v5125, -inf
      %5184 = vmax.xlane.f32.xlu0 %v5183
      %v5185 = vpop.xlane.xlu0 %5184
      %v5186 = vsel %vm1542, %v5126, -inf
      %5187 = vmax.xlane.f32.xlu0 %v5186
      %v5188 = vpop.xlane.xlu0 %5187
      %v5189 = vsel %vm1542, %v5127, -inf
      %5190 = vmax.xlane.f32.xlu0 %v5189
      %v5191 = vpop.xlane.xlu0 %5190
      %v5192 = vsel %vm1542, %v5128, -inf
      %5193 = vmax.xlane.f32.xlu0 %v5192
      %v5194 = vpop.xlane.xlu0 %5193
      %v5195 = vsel %vm1542, %v5129, -inf
      %5196 = vmax.xlane.f32.xlu0 %v5195
      %v5197 = vpop.xlane.xlu0 %5196
      %v5198 = vsel %vm1542, %v5130, -inf
      %5199 = vmax.xlane.f32.xlu0 %v5198
      %v5200 = vpop.xlane.xlu0 %5199
      %v5201 = vsel %vm1542, %v5131, -inf
      %5202 = vmax.xlane.f32.xlu0 %v5201
      %v5203 = vpop.xlane.xlu0 %5202
      %v5204 = vsel %vm1542, %v5132, -inf
      %5205 = vmax.xlane.f32.xlu0 %v5204
      %v5206 = vpop.xlane.xlu0 %5205
      %v5207 = vsel %vm1542, %v5133, -inf
      %5208 = vmax.xlane.f32.xlu0 %v5207
      %v5209 = vpop.xlane.xlu0 %5208
      %v5210 = vsel %vm1542, %v5134, -inf
      %5211 = vmax.xlane.f32.xlu0 %v5210
      %v5212 = vpop.xlane.xlu0 %5211
      %v5213 = vsel %vm1542, %v5135, -inf
      %5214 = vmax.xlane.f32.xlu0 %v5213
      %v5215 = vpop.xlane.xlu0 %5214
      %v5216 = vsel %vm1542, %v5136, -inf
      %5217 = vmax.xlane.f32.xlu0 %v5216
      %v5218 = vpop.xlane.xlu0 %5217
      %v5219 = vsel %vm1542, %v5137, -inf
      %5220 = vmax.xlane.f32.xlu0 %v5219
      %v5221 = vpop.xlane.xlu0 %5220
      %v5222 = vsel %vm1542, %v5138, -inf
      %5223 = vmax.xlane.f32.xlu0 %v5222
      %v5224 = vpop.xlane.xlu0 %5223
      %v5225 = vsel %vm1542, %v5139, -inf
      %5226 = vmax.xlane.f32.xlu0 %v5225
      %v5227 = vpop.xlane.xlu0 %5226
      %v5228 = vsel %vm1542, %v5140, -inf
      %5229 = vmax.xlane.f32.xlu0 %v5228
      %v5230 = vpop.xlane.xlu0 %5229
      %v5231 = vsel %vm1542, %v5141, -inf
      %5232 = vmax.xlane.f32.xlu0 %v5231
      %v5233 = vpop.xlane.xlu0 %5232
      %v5234 = vsel %vm1542, %v5142, -inf
      %5235 = vmax.xlane.f32.xlu0 %v5234
      %v5236 = vpop.xlane.xlu0 %5235
      %v5237 = vsel %vm1542, %v5143, -inf
      %5238 = vmax.xlane.f32.xlu0 %v5237
      %v5239 = vpop.xlane.xlu0 %5238
      %v5240 = vsub.f32 %v5112, %v5146
      %v5241 = vsub.f32 %v5113, %v5149
      %v5242 = vsub.f32 %v5114, %v5152
      %v5243 = vsub.f32 %v5115, %v5155
      %v5244 = vsub.f32 %v5116, %v5158
      %v5245 = vsub.f32 %v5117, %v5161
      %v5246 = vsub.f32 %v5118, %v5164
      %v5247 = vsub.f32 %v5119, %v5167
      %v5248 = vsub.f32 %v5120, %v5170
      %v5249 = vsub.f32 %v5121, %v5173
      %v5250 = vsub.f32 %v5122, %v5176
      %v5251 = vsub.f32 %v5123, %v5179
      %v5252 = vsub.f32 %v5124, %v5182
      %v5253 = vsub.f32 %v5125, %v5185
      %v5254 = vsub.f32 %v5126, %v5188
      %v5255 = vsub.f32 %v5127, %v5191
      %v5256 = vsub.f32 %v5128, %v5194
      %v5257 = vsub.f32 %v5129, %v5197
      %v5258 = vsub.f32 %v5130, %v5200
      %v5259 = vsub.f32 %v5131, %v5203
      %v5260 = vsub.f32 %v5132, %v5206
      %v5261 = vsub.f32 %v5133, %v5209
      %v5262 = vsub.f32 %v5134, %v5212
      %v5263 = vsub.f32 %v5135, %v5215
      %v5264 = vsub.f32 %v5136, %v5218
      %v5265 = vsub.f32 %v5137, %v5221
      %v5266 = vsub.f32 %v5138, %v5224
      %v5267 = vsub.f32 %v5139, %v5227
      %v5268 = vsub.f32 %v5140, %v5230
      %v5269 = vsub.f32 %v5141, %v5233
      %v5270 = vsub.f32 %v5142, %v5236
      %v5271 = vsub.f32 %v5143, %v5239
      %v5272 = vmul.f32 %v5240, 1.442695
      %v5273 = vpow.pop %v5272
      %v5274 = vmul.f32 %v5241, 1.442695
      %v5275 = vpow.pop %v5274
      %v5276 = vmul.f32 %v5242, 1.442695
      %v5277 = vpow.pop %v5276
      %v5278 = vmul.f32 %v5243, 1.442695
      %v5279 = vpow.pop %v5278
      %v5280 = vmul.f32 %v5244, 1.442695
      %v5281 = vpow.pop %v5280
      %v5282 = vmul.f32 %v5245, 1.442695
      %v5283 = vpow.pop %v5282
      %v5284 = vmul.f32 %v5246, 1.442695
      %v5285 = vpow.pop %v5284
      %v5286 = vmul.f32 %v5247, 1.442695
      %v5287 = vpow.pop %v5286
      %v5288 = vmul.f32 %v5248, 1.442695
      %v5289 = vpow.pop %v5288
      %v5290 = vmul.f32 %v5249, 1.442695
      %v5291 = vpow.pop %v5290
      %v5292 = vmul.f32 %v5250, 1.442695
      %v5293 = vpow.pop %v5292
      %v5294 = vmul.f32 %v5251, 1.442695
      %v5295 = vpow.pop %v5294
      %v5296 = vmul.f32 %v5252, 1.442695
      %v5297 = vpow.pop %v5296
      %v5298 = vmul.f32 %v5253, 1.442695
      %v5299 = vpow.pop %v5298
      %v5300 = vmul.f32 %v5254, 1.442695
      %v5301 = vpow.pop %v5300
      %v5302 = vmul.f32 %v5255, 1.442695
      %v5303 = vpow.pop %v5302
      %v5304 = vmul.f32 %v5256, 1.442695
      %v5305 = vpow.pop %v5304
      %v5306 = vmul.f32 %v5257, 1.442695
      %v5307 = vpow.pop %v5306
      %v5308 = vmul.f32 %v5258, 1.442695
      %v5309 = vpow.pop %v5308
      %v5310 = vmul.f32 %v5259, 1.442695
      %v5311 = vpow.pop %v5310
      %v5312 = vmul.f32 %v5260, 1.442695
      %v5313 = vpow.pop %v5312
      %v5314 = vmul.f32 %v5261, 1.442695
      %v5315 = vpow.pop %v5314
      %v5316 = vmul.f32 %v5262, 1.442695
      %v5317 = vpow.pop %v5316
      %v5318 = vmul.f32 %v5263, 1.442695
      %v5319 = vpow.pop %v5318
      %v5320 = vmul.f32 %v5264, 1.442695
      %v5321 = vpow.pop %v5320
      %v5322 = vmul.f32 %v5265, 1.442695
      %v5323 = vpow.pop %v5322
      %v5324 = vmul.f32 %v5266, 1.442695
      %v5325 = vpow.pop %v5324
      %v5326 = vmul.f32 %v5267, 1.442695
      %v5327 = vpow.pop %v5326
      %v5328 = vmul.f32 %v5268, 1.442695
      %v5329 = vpow.pop %v5328
      %v5330 = vmul.f32 %v5269, 1.442695
      %v5331 = vpow.pop %v5330
      %v5332 = vmul.f32 %v5270, 1.442695
      %v5333 = vpow.pop %v5332
      %v5334 = vmul.f32 %v5271, 1.442695
      %v5335 = vpow.pop %v5334
      %v5336 = vsel %vm1542, %v5273, 0.0
      %5337 = vadd.xlane.f32.xlu0 %v5336
      %v5338 = vpop.xlane.xlu0 %5337
      %v5339 = vsel %vm1542, %v5275, 0.0
      %5340 = vadd.xlane.f32.xlu0 %v5339
      %v5341 = vpop.xlane.xlu0 %5340
      %v5342 = vsel %vm1542, %v5277, 0.0
      %5343 = vadd.xlane.f32.xlu0 %v5342
      %v5344 = vpop.xlane.xlu0 %5343
      %v5345 = vsel %vm1542, %v5279, 0.0
      %5346 = vadd.xlane.f32.xlu0 %v5345
      %v5347 = vpop.xlane.xlu0 %5346
      %v5348 = vsel %vm1542, %v5281, 0.0
      %5349 = vadd.xlane.f32.xlu0 %v5348
      %v5350 = vpop.xlane.xlu0 %5349
      %v5351 = vsel %vm1542, %v5283, 0.0
      %5352 = vadd.xlane.f32.xlu0 %v5351
      %v5353 = vpop.xlane.xlu0 %5352
      %v5354 = vsel %vm1542, %v5285, 0.0
      %5355 = vadd.xlane.f32.xlu0 %v5354
      %v5356 = vpop.xlane.xlu0 %5355
      %v5357 = vsel %vm1542, %v5287, 0.0
      %5358 = vadd.xlane.f32.xlu0 %v5357
      %v5359 = vpop.xlane.xlu0 %5358
      %v5360 = vsel %vm1542, %v5289, 0.0
      %5361 = vadd.xlane.f32.xlu0 %v5360
      %v5362 = vpop.xlane.xlu0 %5361
      %v5363 = vsel %vm1542, %v5291, 0.0
      %5364 = vadd.xlane.f32.xlu0 %v5363
      %v5365 = vpop.xlane.xlu0 %5364
      %v5366 = vsel %vm1542, %v5293, 0.0
      %5367 = vadd.xlane.f32.xlu0 %v5366
      %v5368 = vpop.xlane.xlu0 %5367
      %v5369 = vsel %vm1542, %v5295, 0.0
      %5370 = vadd.xlane.f32.xlu0 %v5369
      %v5371 = vpop.xlane.xlu0 %5370
      %v5372 = vsel %vm1542, %v5297, 0.0
      %5373 = vadd.xlane.f32.xlu0 %v5372
      %v5374 = vpop.xlane.xlu0 %5373
      %v5375 = vsel %vm1542, %v5299, 0.0
      %5376 = vadd.xlane.f32.xlu0 %v5375
      %v5377 = vpop.xlane.xlu0 %5376
      %v5378 = vsel %vm1542, %v5301, 0.0
      %5379 = vadd.xlane.f32.xlu0 %v5378
      %v5380 = vpop.xlane.xlu0 %5379
      %v5381 = vsel %vm1542, %v5303, 0.0
      %5382 = vadd.xlane.f32.xlu0 %v5381
      %v5383 = vpop.xlane.xlu0 %5382
      %v5384 = vsel %vm1542, %v5305, 0.0
      %5385 = vadd.xlane.f32.xlu0 %v5384
      %v5386 = vpop.xlane.xlu0 %5385
      %v5387 = vsel %vm1542, %v5307, 0.0
      %5388 = vadd.xlane.f32.xlu0 %v5387
      %v5389 = vpop.xlane.xlu0 %5388
      %v5390 = vsel %vm1542, %v5309, 0.0
      %5391 = vadd.xlane.f32.xlu0 %v5390
      %v5392 = vpop.xlane.xlu0 %5391
      %v5393 = vsel %vm1542, %v5311, 0.0
      %5394 = vadd.xlane.f32.xlu0 %v5393
      %v5395 = vpop.xlane.xlu0 %5394
      %v5396 = vsel %vm1542, %v5313, 0.0
      %5397 = vadd.xlane.f32.xlu0 %v5396
      %v5398 = vpop.xlane.xlu0 %5397
      %v5399 = vsel %vm1542, %v5315, 0.0
      %5400 = vadd.xlane.f32.xlu0 %v5399
      %v5401 = vpop.xlane.xlu0 %5400
      %v5402 = vsel %vm1542, %v5317, 0.0
      %5403 = vadd.xlane.f32.xlu0 %v5402
      %v5404 = vpop.xlane.xlu0 %5403
      %v5405 = vsel %vm1542, %v5319, 0.0
      %5406 = vadd.xlane.f32.xlu0 %v5405
      %v5407 = vpop.xlane.xlu0 %5406
      %v5408 = vsel %vm1542, %v5321, 0.0
      %5409 = vadd.xlane.f32.xlu0 %v5408
      %v5410 = vpop.xlane.xlu0 %5409
      %v5411 = vsel %vm1542, %v5323, 0.0
      %5412 = vadd.xlane.f32.xlu0 %v5411
      %v5413 = vpop.xlane.xlu0 %5412
      %v5414 = vsel %vm1542, %v5325, 0.0
      %5415 = vadd.xlane.f32.xlu0 %v5414
      %v5416 = vpop.xlane.xlu0 %5415
      %v5417 = vsel %vm1542, %v5327, 0.0
      %5418 = vadd.xlane.f32.xlu0 %v5417
      %v5419 = vpop.xlane.xlu0 %5418
      %v5420 = vsel %vm1542, %v5329, 0.0
      %5421 = vadd.xlane.f32.xlu0 %v5420
      %v5422 = vpop.xlane.xlu0 %5421
      %v5423 = vsel %vm1542, %v5331, 0.0
      %5424 = vadd.xlane.f32.xlu0 %v5423
      %v5425 = vpop.xlane.xlu0 %5424
      %v5426 = vsel %vm1542, %v5333, 0.0
      %5427 = vadd.xlane.f32.xlu0 %v5426
      %v5428 = vpop.xlane.xlu0 %5427
      %v5429 = vsel %vm1542, %v5335, 0.0
      %5430 = vadd.xlane.f32.xlu0 %v5429
      %v5431 = vpop.xlane.xlu0 %5430
      %v5432 = vrcp.pop %v5338
      %v5433 = vrcp.pop %v5341
      %v5434 = vrcp.pop %v5344
      %v5435 = vrcp.pop %v5347
      %v5436 = vrcp.pop %v5350
      %v5437 = vrcp.pop %v5353
      %v5438 = vrcp.pop %v5356
      %v5439 = vrcp.pop %v5359
      %v5440 = vrcp.pop %v5362
      %v5441 = vrcp.pop %v5365
      %v5442 = vrcp.pop %v5368
      %v5443 = vrcp.pop %v5371
      %v5444 = vrcp.pop %v5374
      %v5445 = vrcp.pop %v5377
      %v5446 = vrcp.pop %v5380
      %v5447 = vrcp.pop %v5383
      %v5448 = vrcp.pop %v5386
      %v5449 = vrcp.pop %v5389
      %v5450 = vrcp.pop %v5392
      %v5451 = vrcp.pop %v5395
      %v5452 = vrcp.pop %v5398
      %v5453 = vrcp.pop %v5401
      %v5454 = vrcp.pop %v5404
      %v5455 = vrcp.pop %v5407
      %v5456 = vrcp.pop %v5410
      %v5457 = vrcp.pop %v5413
      %v5458 = vrcp.pop %v5416
      %v5459 = vrcp.pop %v5419
      %v5460 = vrcp.pop %v5422
      %v5461 = vrcp.pop %v5425
      %v5462 = vrcp.pop %v5428
      %v5463 = vrcp.pop %v5431
      %v5464 = vmul.f32 %v5338, %v5432
      %v5465 = vmul.f32 %v5341, %v5433
      %v5466 = vmul.f32 %v5344, %v5434
      %v5467 = vmul.f32 %v5347, %v5435
      %v5468 = vmul.f32 %v5350, %v5436
      %v5469 = vmul.f32 %v5353, %v5437
      %v5470 = vmul.f32 %v5356, %v5438
      %v5471 = vmul.f32 %v5359, %v5439
      %v5472 = vmul.f32 %v5362, %v5440
      %v5473 = vmul.f32 %v5365, %v5441
      %v5474 = vmul.f32 %v5368, %v5442
      %v5475 = vmul.f32 %v5371, %v5443
      %v5476 = vmul.f32 %v5374, %v5444
      %v5477 = vmul.f32 %v5377, %v5445
      %v5478 = vmul.f32 %v5380, %v5446
      %v5479 = vmul.f32 %v5383, %v5447
      %v5480 = vmul.f32 %v5386, %v5448
      %v5481 = vmul.f32 %v5389, %v5449
      %v5482 = vmul.f32 %v5392, %v5450
      %v5483 = vmul.f32 %v5395, %v5451
      %v5484 = vmul.f32 %v5398, %v5452
      %v5485 = vmul.f32 %v5401, %v5453
      %v5486 = vmul.f32 %v5404, %v5454
      %v5487 = vmul.f32 %v5407, %v5455
      %v5488 = vmul.f32 %v5410, %v5456
      %v5489 = vmul.f32 %v5413, %v5457
      %v5490 = vmul.f32 %v5416, %v5458
      %v5491 = vmul.f32 %v5419, %v5459
      %v5492 = vmul.f32 %v5422, %v5460
      %v5493 = vmul.f32 %v5425, %v5461
      %v5494 = vmul.f32 %v5428, %v5462
      %v5495 = vmul.f32 %v5431, %v5463
      %v5496 = vsub.f32 2.0, %v5464
      %v5497 = vsub.f32 2.0, %v5465
      %v5498 = vsub.f32 2.0, %v5466
      %v5499 = vsub.f32 2.0, %v5467
      %v5500 = vsub.f32 2.0, %v5468
      %v5501 = vsub.f32 2.0, %v5469
      %v5502 = vsub.f32 2.0, %v5470
      %v5503 = vsub.f32 2.0, %v5471
      %v5504 = vsub.f32 2.0, %v5472
      %v5505 = vsub.f32 2.0, %v5473
      %v5506 = vsub.f32 2.0, %v5474
      %v5507 = vsub.f32 2.0, %v5475
      %v5508 = vsub.f32 2.0, %v5476
      %v5509 = vsub.f32 2.0, %v5477
      %v5510 = vsub.f32 2.0, %v5478
      %v5511 = vsub.f32 2.0, %v5479
      %v5512 = vsub.f32 2.0, %v5480
      %v5513 = vsub.f32 2.0, %v5481
      %v5514 = vsub.f32 2.0, %v5482
      %v5515 = vsub.f32 2.0, %v5483
      %v5516 = vsub.f32 2.0, %v5484
      %v5517 = vsub.f32 2.0, %v5485
      %v5518 = vsub.f32 2.0, %v5486
      %v5519 = vsub.f32 2.0, %v5487
      %v5520 = vsub.f32 2.0, %v5488
      %v5521 = vsub.f32 2.0, %v5489
      %v5522 = vsub.f32 2.0, %v5490
      %v5523 = vsub.f32 2.0, %v5491
      %v5524 = vsub.f32 2.0, %v5492
      %v5525 = vsub.f32 2.0, %v5493
      %v5526 = vsub.f32 2.0, %v5494
      %v5527 = vsub.f32 2.0, %v5495
      %v5528 = vmul.f32 %v5432, %v5496
      %v5529 = vmul.f32 %v5433, %v5497
      %v5530 = vmul.f32 %v5434, %v5498
      %v5531 = vmul.f32 %v5435, %v5499
      %v5532 = vmul.f32 %v5436, %v5500
      %v5533 = vmul.f32 %v5437, %v5501
      %v5534 = vmul.f32 %v5438, %v5502
      %v5535 = vmul.f32 %v5439, %v5503
      %v5536 = vmul.f32 %v5440, %v5504
      %v5537 = vmul.f32 %v5441, %v5505
      %v5538 = vmul.f32 %v5442, %v5506
      %v5539 = vmul.f32 %v5443, %v5507
      %v5540 = vmul.f32 %v5444, %v5508
      %v5541 = vmul.f32 %v5445, %v5509
      %v5542 = vmul.f32 %v5446, %v5510
      %v5543 = vmul.f32 %v5447, %v5511
      %v5544 = vmul.f32 %v5448, %v5512
      %v5545 = vmul.f32 %v5449, %v5513
      %v5546 = vmul.f32 %v5450, %v5514
      %v5547 = vmul.f32 %v5451, %v5515
      %v5548 = vmul.f32 %v5452, %v5516
      %v5549 = vmul.f32 %v5453, %v5517
      %v5550 = vmul.f32 %v5454, %v5518
      %v5551 = vmul.f32 %v5455, %v5519
      %v5552 = vmul.f32 %v5456, %v5520
      %v5553 = vmul.f32 %v5457, %v5521
      %v5554 = vmul.f32 %v5458, %v5522
      %v5555 = vmul.f32 %v5459, %v5523
      %v5556 = vmul.f32 %v5460, %v5524
      %v5557 = vmul.f32 %v5461, %v5525
      %v5558 = vmul.f32 %v5462, %v5526
      %v5559 = vmul.f32 %v5463, %v5527
      %v5560 = vmul.f32 %v5273, %v5528
      %v5561 = vmul.f32 %v5275, %v5529
      %v5562 = vmul.f32 %v5277, %v5530
      %v5563 = vmul.f32 %v5279, %v5531
      %v5564 = vmul.f32 %v5281, %v5532
      %v5565 = vmul.f32 %v5283, %v5533
      %v5566 = vmul.f32 %v5285, %v5534
      %v5567 = vmul.f32 %v5287, %v5535
      %v5568 = vmul.f32 %v5289, %v5536
      %v5569 = vmul.f32 %v5291, %v5537
      %v5570 = vmul.f32 %v5293, %v5538
      %v5571 = vmul.f32 %v5295, %v5539
      %v5572 = vmul.f32 %v5297, %v5540
      %v5573 = vmul.f32 %v5299, %v5541
      %v5574 = vmul.f32 %v5301, %v5542
      %v5575 = vmul.f32 %v5303, %v5543
      %v5576 = vmul.f32 %v5305, %v5544
      %v5577 = vmul.f32 %v5307, %v5545
      %v5578 = vmul.f32 %v5309, %v5546
      %v5579 = vmul.f32 %v5311, %v5547
      %v5580 = vmul.f32 %v5313, %v5548
      %v5581 = vmul.f32 %v5315, %v5549
      %v5582 = vmul.f32 %v5317, %v5550
      %v5583 = vmul.f32 %v5319, %v5551
      %v5584 = vmul.f32 %v5321, %v5552
      %v5585 = vmul.f32 %v5323, %v5553
      %v5586 = vmul.f32 %v5325, %v5554
      %v5587 = vmul.f32 %v5327, %v5555
      %v5588 = vmul.f32 %v5329, %v5556
      %v5589 = vmul.f32 %v5331, %v5557
      %v5590 = vmul.f32 %v5333, %v5558
      %v5591 = vmul.f32 %v5335, %v5559
      %v5592 = vpack.c.bf16 %v5561, %v5560
      %v5593 = vpack.c.bf16 %v5563, %v5562
      %v5594 = vpack.c.bf16 %v5565, %v5564
      %v5595 = vpack.c.bf16 %v5567, %v5566
      %v5596 = vpack.c.bf16 %v5569, %v5568
      %v5597 = vpack.c.bf16 %v5571, %v5570
      %v5598 = vpack.c.bf16 %v5573, %v5572
      %v5599 = vpack.c.bf16 %v5575, %v5574
      %v5600 = vpack.c.bf16 %v5577, %v5576
      %v5601 = vpack.c.bf16 %v5579, %v5578
      %v5602 = vpack.c.bf16 %v5581, %v5580
      %v5603 = vpack.c.bf16 %v5583, %v5582
      %v5604 = vpack.c.bf16 %v5585, %v5584
      %v5605 = vpack.c.bf16 %v5587, %v5586
      %v5606 = vpack.c.bf16 %v5589, %v5588
      %v5607 = vpack.c.bf16 %v5591, %v5590
      %v5609 = vsel %vm1542, %v5592, 0
      %v5612 = vsel %vm1542, %v5593, 0
      %5614 = vmatprep.subr.bf16.mxu0 0
      %5615 = vmatpush1.bf16.msra.mxu0 0
      %5616 = vmatprep.subr.bf16.mxu0 0
      %5617 = vmatpush1.bf16.msra.mxu0 0
      %5618 = vmatprep.subr.bf16.mxu0 0
      %5619 = vmatpush1.bf16.msra.mxu0 0
      %5620 = vmatprep.subr.bf16.mxu0 0
      %5621 = vmatpush1.bf16.msra.mxu0 0
      %5622 = vmatprep.subr.bf16.mxu0 0
      %5623 = vmatpush1.bf16.msra.mxu0 0
      %5624 = vmatprep.subr.bf16.mxu0 0
      %5625 = vmatpush1.bf16.msra.mxu0 0
      %5626 = vmatprep.subr.bf16.mxu0 0
      %5627 = vmatpush1.bf16.msra.mxu0 %v4239
      %5628 = vmatprep.subr.bf16.mxu0 0
      %5629 = vmatpush1.bf16.msra.mxu0 %v4238
      %5630 = vmatprep.subr.bf16.mxu0 0
      %5631 = vmatpush2.bf16.msra.mxu0 0
      %5632 = vmatprep.subr.bf16.mxu0 0
      %5633 = vmatpush2.bf16.msra.mxu0 0
      %5634 = vmatprep.subr.bf16.mxu0 0
      %5635 = vmatpush2.bf16.msra.mxu0 0
      %5636 = vmatprep.subr.bf16.mxu0 0
      %5637 = vmatpush2.bf16.msra.mxu0 0
      %5638 = vmatprep.subr.bf16.mxu0 0
      %5639 = vmatpush2.bf16.msra.mxu0 0
      %5640 = vmatprep.subr.bf16.mxu0 0
      %5641 = vmatpush2.bf16.msra.mxu0 0
      %5642 = vmatprep.subr.bf16.mxu0 0
      %5643 = vmatpush2.bf16.msra.mxu0 0
      %5644 = vmatprep.subr.bf16.mxu0 0
      %5645 = vmatpush2.bf16.msra.mxu0 0
      %5646 = vmatprep.mubr.bf16.mxu0 0
      %5647 = vmatmul.mubr.bf16.gmra.mxu0 %v5609
      %v5648 = vpop.f32.mrf.mxu0
      %v5649 = vadd.f32 0.0, %v5648
      %v5650 = vpop.f32.mrf.mxu0
      %v5651 = vpop.f32.mrf.mxu0
      %v5652 = vadd.f32 0.0, %v5651
      %v5653 = vpop.f32.mrf.mxu0
      %5654 = vmatprep.mubr.bf16.mxu0 0
      %5655 = vmatmul.mubr.bf16.gmra.mxu0 %v5612
      %v5656 = vpop.f32.mrf.mxu0
      %v5657 = vadd.f32 0.0, %v5656
      %v5658 = vpop.f32.mrf.mxu0
      %v5659 = vpop.f32.mrf.mxu0
      %v5660 = vadd.f32 0.0, %v5659
      %v5661 = vpop.f32.mrf.mxu0
      %5662 = vdwg.mxu0
      %v5664 = vsel %vm1542, %v5594, 0
      %v5667 = vsel %vm1542, %v5595, 0
      %5669 = vmatprep.subr.bf16.mxu0 0
      %5670 = vmatpush1.bf16.msra.mxu0 0
      %5671 = vmatprep.subr.bf16.mxu0 0
      %5672 = vmatpush1.bf16.msra.mxu0 0
      %5673 = vmatprep.subr.bf16.mxu0 0
      %5674 = vmatpush1.bf16.msra.mxu0 0
      %5675 = vmatprep.subr.bf16.mxu0 0
      %5676 = vmatpush1.bf16.msra.mxu0 0
      %5677 = vmatprep.subr.bf16.mxu0 0
      %5678 = vmatpush1.bf16.msra.mxu0 0
      %5679 = vmatprep.subr.bf16.mxu0 0
      %5680 = vmatpush1.bf16.msra.mxu0 0
      %5681 = vmatprep.subr.bf16.mxu0 0
      %5682 = vmatpush1.bf16.msra.mxu0 %v4241
      %5683 = vmatprep.subr.bf16.mxu0 0
      %5684 = vmatpush1.bf16.msra.mxu0 %v4240
      %5685 = vmatprep.subr.bf16.mxu0 0
      %5686 = vmatpush2.bf16.msra.mxu0 0
      %5687 = vmatprep.subr.bf16.mxu0 0
      %5688 = vmatpush2.bf16.msra.mxu0 0
      %5689 = vmatprep.subr.bf16.mxu0 0
      %5690 = vmatpush2.bf16.msra.mxu0 0
      %5691 = vmatprep.subr.bf16.mxu0 0
      %5692 = vmatpush2.bf16.msra.mxu0 0
      %5693 = vmatprep.subr.bf16.mxu0 0
      %5694 = vmatpush2.bf16.msra.mxu0 0
      %5695 = vmatprep.subr.bf16.mxu0 0
      %5696 = vmatpush2.bf16.msra.mxu0 0
      %5697 = vmatprep.subr.bf16.mxu0 0
      %5698 = vmatpush2.bf16.msra.mxu0 0
      %5699 = vmatprep.subr.bf16.mxu0 0
      %5700 = vmatpush2.bf16.msra.mxu0 0
      %5701 = vmatprep.mubr.bf16.mxu0 0
      %5702 = vmatmul.mubr.bf16.gmra.mxu0 %v5664
      %v5703 = vpop.f32.mrf.mxu0
      %v5704 = vadd.f32 0.0, %v5703
      %v5705 = vpop.f32.mrf.mxu0
      %v5706 = vpop.f32.mrf.mxu0
      %v5707 = vadd.f32 0.0, %v5706
      %v5708 = vpop.f32.mrf.mxu0
      %5709 = vmatprep.mubr.bf16.mxu0 0
      %5710 = vmatmul.mubr.bf16.gmra.mxu0 %v5667
      %v5711 = vpop.f32.mrf.mxu0
      %v5712 = vadd.f32 0.0, %v5711
      %v5713 = vpop.f32.mrf.mxu0
      %v5714 = vpop.f32.mrf.mxu0
      %v5715 = vadd.f32 0.0, %v5714
      %v5716 = vpop.f32.mrf.mxu0
      %5717 = vdwg.mxu0
      %v5719 = vsel %vm1542, %v5596, 0
      %v5722 = vsel %vm1542, %v5597, 0
      %5724 = vmatprep.subr.bf16.mxu0 0
      %5725 = vmatpush1.bf16.msra.mxu0 0
      %5726 = vmatprep.subr.bf16.mxu0 0
      %5727 = vmatpush1.bf16.msra.mxu0 0
      %5728 = vmatprep.subr.bf16.mxu0 0
      %5729 = vmatpush1.bf16.msra.mxu0 0
      %5730 = vmatprep.subr.bf16.mxu0 0
      %5731 = vmatpush1.bf16.msra.mxu0 0
      %5732 = vmatprep.subr.bf16.mxu0 0
      %5733 = vmatpush1.bf16.msra.mxu0 0
      %5734 = vmatprep.subr.bf16.mxu0 0
      %5735 = vmatpush1.bf16.msra.mxu0 0
      %5736 = vmatprep.subr.bf16.mxu0 0
      %5737 = vmatpush1.bf16.msra.mxu0 %v4243
      %5738 = vmatprep.subr.bf16.mxu0 0
      %5739 = vmatpush1.bf16.msra.mxu0 %v4242
      %5740 = vmatprep.subr.bf16.mxu0 0
      %5741 = vmatpush2.bf16.msra.mxu0 0
      %5742 = vmatprep.subr.bf16.mxu0 0
      %5743 = vmatpush2.bf16.msra.mxu0 0
      %5744 = vmatprep.subr.bf16.mxu0 0
      %5745 = vmatpush2.bf16.msra.mxu0 0
      %5746 = vmatprep.subr.bf16.mxu0 0
      %5747 = vmatpush2.bf16.msra.mxu0 0
      %5748 = vmatprep.subr.bf16.mxu0 0
      %5749 = vmatpush2.bf16.msra.mxu0 0
      %5750 = vmatprep.subr.bf16.mxu0 0
      %5751 = vmatpush2.bf16.msra.mxu0 0
      %5752 = vmatprep.subr.bf16.mxu0 0
      %5753 = vmatpush2.bf16.msra.mxu0 0
      %5754 = vmatprep.subr.bf16.mxu0 0
      %5755 = vmatpush2.bf16.msra.mxu0 0
      %5756 = vmatprep.mubr.bf16.mxu0 0
      %5757 = vmatmul.mubr.bf16.gmra.mxu0 %v5719
      %v5758 = vpop.f32.mrf.mxu0
      %v5759 = vadd.f32 0.0, %v5758
      %v5760 = vpop.f32.mrf.mxu0
      %v5761 = vpop.f32.mrf.mxu0
      %v5762 = vadd.f32 0.0, %v5761
      %v5763 = vpop.f32.mrf.mxu0
      %5764 = vmatprep.mubr.bf16.mxu0 0
      %5765 = vmatmul.mubr.bf16.gmra.mxu0 %v5722
      %v5766 = vpop.f32.mrf.mxu0
      %v5767 = vadd.f32 0.0, %v5766
      %v5768 = vpop.f32.mrf.mxu0
      %v5769 = vpop.f32.mrf.mxu0
      %v5770 = vadd.f32 0.0, %v5769
      %v5771 = vpop.f32.mrf.mxu0
      %5772 = vdwg.mxu0
      %v5774 = vsel %vm1542, %v5598, 0
      %v5777 = vsel %vm1542, %v5599, 0
      %5779 = vmatprep.subr.bf16.mxu0 0
      %5780 = vmatpush1.bf16.msra.mxu0 0
      %5781 = vmatprep.subr.bf16.mxu0 0
      %5782 = vmatpush1.bf16.msra.mxu0 0
      %5783 = vmatprep.subr.bf16.mxu0 0
      %5784 = vmatpush1.bf16.msra.mxu0 0
      %5785 = vmatprep.subr.bf16.mxu0 0
      %5786 = vmatpush1.bf16.msra.mxu0 0
      %5787 = vmatprep.subr.bf16.mxu0 0
      %5788 = vmatpush1.bf16.msra.mxu0 0
      %5789 = vmatprep.subr.bf16.mxu0 0
      %5790 = vmatpush1.bf16.msra.mxu0 0
      %5791 = vmatprep.subr.bf16.mxu0 0
      %5792 = vmatpush1.bf16.msra.mxu0 %v4245
      %5793 = vmatprep.subr.bf16.mxu0 0
      %5794 = vmatpush1.bf16.msra.mxu0 %v4244
      %5795 = vmatprep.subr.bf16.mxu0 0
      %5796 = vmatpush2.bf16.msra.mxu0 0
      %5797 = vmatprep.subr.bf16.mxu0 0
      %5798 = vmatpush2.bf16.msra.mxu0 0
      %5799 = vmatprep.subr.bf16.mxu0 0
      %5800 = vmatpush2.bf16.msra.mxu0 0
      %5801 = vmatprep.subr.bf16.mxu0 0
      %5802 = vmatpush2.bf16.msra.mxu0 0
      %5803 = vmatprep.subr.bf16.mxu0 0
      %5804 = vmatpush2.bf16.msra.mxu0 0
      %5805 = vmatprep.subr.bf16.mxu0 0
      %5806 = vmatpush2.bf16.msra.mxu0 0
      %5807 = vmatprep.subr.bf16.mxu0 0
      %5808 = vmatpush2.bf16.msra.mxu0 0
      %5809 = vmatprep.subr.bf16.mxu0 0
      %5810 = vmatpush2.bf16.msra.mxu0 0
      %5811 = vmatprep.mubr.bf16.mxu0 0
      %5812 = vmatmul.mubr.bf16.gmra.mxu0 %v5774
      %v5813 = vpop.f32.mrf.mxu0
      %v5814 = vadd.f32 0.0, %v5813
      %v5815 = vpop.f32.mrf.mxu0
      %v5816 = vpop.f32.mrf.mxu0
      %v5817 = vadd.f32 0.0, %v5816
      %v5818 = vpop.f32.mrf.mxu0
      %5819 = vmatprep.mubr.bf16.mxu0 0
      %5820 = vmatmul.mubr.bf16.gmra.mxu0 %v5777
      %v5821 = vpop.f32.mrf.mxu0
      %v5822 = vadd.f32 0.0, %v5821
      %v5823 = vpop.f32.mrf.mxu0
      %v5824 = vpop.f32.mrf.mxu0
      %v5825 = vadd.f32 0.0, %v5824
      %v5826 = vpop.f32.mrf.mxu0
      %5827 = vdwg.mxu0
      %v5829 = vsel %vm1542, %v5600, 0
      %v5832 = vsel %vm1542, %v5601, 0
      %5834 = vmatprep.subr.bf16.mxu0 0
      %5835 = vmatpush1.bf16.msra.mxu0 0
      %5836 = vmatprep.subr.bf16.mxu0 0
      %5837 = vmatpush1.bf16.msra.mxu0 0
      %5838 = vmatprep.subr.bf16.mxu0 0
      %5839 = vmatpush1.bf16.msra.mxu0 0
      %5840 = vmatprep.subr.bf16.mxu0 0
      %5841 = vmatpush1.bf16.msra.mxu0 0
      %5842 = vmatprep.subr.bf16.mxu0 0
      %5843 = vmatpush1.bf16.msra.mxu0 0
      %5844 = vmatprep.subr.bf16.mxu0 0
      %5845 = vmatpush1.bf16.msra.mxu0 0
      %5846 = vmatprep.subr.bf16.mxu0 0
      %5847 = vmatpush1.bf16.msra.mxu0 %v4247
      %5848 = vmatprep.subr.bf16.mxu0 0
      %5849 = vmatpush1.bf16.msra.mxu0 %v4246
      %5850 = vmatprep.subr.bf16.mxu0 0
      %5851 = vmatpush2.bf16.msra.mxu0 0
      %5852 = vmatprep.subr.bf16.mxu0 0
      %5853 = vmatpush2.bf16.msra.mxu0 0
      %5854 = vmatprep.subr.bf16.mxu0 0
      %5855 = vmatpush2.bf16.msra.mxu0 0
      %5856 = vmatprep.subr.bf16.mxu0 0
      %5857 = vmatpush2.bf16.msra.mxu0 0
      %5858 = vmatprep.subr.bf16.mxu0 0
      %5859 = vmatpush2.bf16.msra.mxu0 0
      %5860 = vmatprep.subr.bf16.mxu0 0
      %5861 = vmatpush2.bf16.msra.mxu0 0
      %5862 = vmatprep.subr.bf16.mxu0 0
      %5863 = vmatpush2.bf16.msra.mxu0 0
      %5864 = vmatprep.subr.bf16.mxu0 0
      %5865 = vmatpush2.bf16.msra.mxu0 0
      %5866 = vmatprep.mubr.bf16.mxu0 0
      %5867 = vmatmul.mubr.bf16.gmra.mxu0 %v5829
      %v5868 = vpop.f32.mrf.mxu0
      %v5869 = vadd.f32 0.0, %v5868
      %v5870 = vpop.f32.mrf.mxu0
      %v5871 = vpop.f32.mrf.mxu0
      %v5872 = vadd.f32 0.0, %v5871
      %v5873 = vpop.f32.mrf.mxu0
      %5874 = vmatprep.mubr.bf16.mxu0 0
      %5875 = vmatmul.mubr.bf16.gmra.mxu0 %v5832
      %v5876 = vpop.f32.mrf.mxu0
      %v5877 = vadd.f32 0.0, %v5876
      %v5878 = vpop.f32.mrf.mxu0
      %v5879 = vpop.f32.mrf.mxu0
      %v5880 = vadd.f32 0.0, %v5879
      %v5881 = vpop.f32.mrf.mxu0
      %5882 = vdwg.mxu0
      %v5884 = vsel %vm1542, %v5602, 0
      %v5887 = vsel %vm1542, %v5603, 0
      %5889 = vmatprep.subr.bf16.mxu0 0
      %5890 = vmatpush1.bf16.msra.mxu0 0
      %5891 = vmatprep.subr.bf16.mxu0 0
      %5892 = vmatpush1.bf16.msra.mxu0 0
      %5893 = vmatprep.subr.bf16.mxu0 0
      %5894 = vmatpush1.bf16.msra.mxu0 0
      %5895 = vmatprep.subr.bf16.mxu0 0
      %5896 = vmatpush1.bf16.msra.mxu0 0
      %5897 = vmatprep.subr.bf16.mxu0 0
      %5898 = vmatpush1.bf16.msra.mxu0 0
      %5899 = vmatprep.subr.bf16.mxu0 0
      %5900 = vmatpush1.bf16.msra.mxu0 0
      %5901 = vmatprep.subr.bf16.mxu0 0
      %5902 = vmatpush1.bf16.msra.mxu0 %v4249
      %5903 = vmatprep.subr.bf16.mxu0 0
      %5904 = vmatpush1.bf16.msra.mxu0 %v4248
      %5905 = vmatprep.subr.bf16.mxu0 0
      %5906 = vmatpush2.bf16.msra.mxu0 0
      %5907 = vmatprep.subr.bf16.mxu0 0
      %5908 = vmatpush2.bf16.msra.mxu0 0
      %5909 = vmatprep.subr.bf16.mxu0 0
      %5910 = vmatpush2.bf16.msra.mxu0 0
      %5911 = vmatprep.subr.bf16.mxu0 0
      %5912 = vmatpush2.bf16.msra.mxu0 0
      %5913 = vmatprep.subr.bf16.mxu0 0
      %5914 = vmatpush2.bf16.msra.mxu0 0
      %5915 = vmatprep.subr.bf16.mxu0 0
      %5916 = vmatpush2.bf16.msra.mxu0 0
      %5917 = vmatprep.subr.bf16.mxu0 0
      %5918 = vmatpush2.bf16.msra.mxu0 0
      %5919 = vmatprep.subr.bf16.mxu0 0
      %5920 = vmatpush2.bf16.msra.mxu0 0
      %5921 = vmatprep.mubr.bf16.mxu0 0
      %5922 = vmatmul.mubr.bf16.gmra.mxu0 %v5884
      %v5923 = vpop.f32.mrf.mxu0
      %v5924 = vadd.f32 0.0, %v5923
      %v5925 = vpop.f32.mrf.mxu0
      %v5926 = vpop.f32.mrf.mxu0
      %v5927 = vadd.f32 0.0, %v5926
      %v5928 = vpop.f32.mrf.mxu0
      %5929 = vmatprep.mubr.bf16.mxu0 0
      %5930 = vmatmul.mubr.bf16.gmra.mxu0 %v5887
      %v5931 = vpop.f32.mrf.mxu0
      %v5932 = vadd.f32 0.0, %v5931
      %v5933 = vpop.f32.mrf.mxu0
      %v5934 = vpop.f32.mrf.mxu0
      %v5935 = vadd.f32 0.0, %v5934
      %v5936 = vpop.f32.mrf.mxu0
      %5937 = vdwg.mxu0
      %v5939 = vsel %vm1542, %v5604, 0
      %v5942 = vsel %vm1542, %v5605, 0
      %5944 = vmatprep.subr.bf16.mxu0 0
      %5945 = vmatpush1.bf16.msra.mxu0 0
      %5946 = vmatprep.subr.bf16.mxu0 0
      %5947 = vmatpush1.bf16.msra.mxu0 0
      %5948 = vmatprep.subr.bf16.mxu0 0
      %5949 = vmatpush1.bf16.msra.mxu0 0
      %5950 = vmatprep.subr.bf16.mxu0 0
      %5951 = vmatpush1.bf16.msra.mxu0 0
      %5952 = vmatprep.subr.bf16.mxu0 0
      %5953 = vmatpush1.bf16.msra.mxu0 0
      %5954 = vmatprep.subr.bf16.mxu0 0
      %5955 = vmatpush1.bf16.msra.mxu0 0
      %5956 = vmatprep.subr.bf16.mxu0 0
      %5957 = vmatpush1.bf16.msra.mxu0 %v4251
      %5958 = vmatprep.subr.bf16.mxu0 0
      %5959 = vmatpush1.bf16.msra.mxu0 %v4250
      %5960 = vmatprep.subr.bf16.mxu0 0
      %5961 = vmatpush2.bf16.msra.mxu0 0
      %5962 = vmatprep.subr.bf16.mxu0 0
      %5963 = vmatpush2.bf16.msra.mxu0 0
      %5964 = vmatprep.subr.bf16.mxu0 0
      %5965 = vmatpush2.bf16.msra.mxu0 0
      %5966 = vmatprep.subr.bf16.mxu0 0
      %5967 = vmatpush2.bf16.msra.mxu0 0
      %5968 = vmatprep.subr.bf16.mxu0 0
      %5969 = vmatpush2.bf16.msra.mxu0 0
      %5970 = vmatprep.subr.bf16.mxu0 0
      %5971 = vmatpush2.bf16.msra.mxu0 0
      %5972 = vmatprep.subr.bf16.mxu0 0
      %5973 = vmatpush2.bf16.msra.mxu0 0
      %5974 = vmatprep.subr.bf16.mxu0 0
      %5975 = vmatpush2.bf16.msra.mxu0 0
      %5976 = vmatprep.mubr.bf16.mxu0 0
      %5977 = vmatmul.mubr.bf16.gmra.mxu0 %v5939
      %v5978 = vpop.f32.mrf.mxu0
      %v5979 = vadd.f32 0.0, %v5978
      %v5980 = vpop.f32.mrf.mxu0
      %v5981 = vpop.f32.mrf.mxu0
      %v5982 = vadd.f32 0.0, %v5981
      %v5983 = vpop.f32.mrf.mxu0
      %5984 = vmatprep.mubr.bf16.mxu0 0
      %5985 = vmatmul.mubr.bf16.gmra.mxu0 %v5942
      %v5986 = vpop.f32.mrf.mxu0
      %v5987 = vadd.f32 0.0, %v5986
      %v5988 = vpop.f32.mrf.mxu0
      %v5989 = vpop.f32.mrf.mxu0
      %v5990 = vadd.f32 0.0, %v5989
      %v5991 = vpop.f32.mrf.mxu0
      %5992 = vdwg.mxu0
      %v5994 = vsel %vm1542, %v5606, 0
      %v5997 = vsel %vm1542, %v5607, 0
      %5999 = vmatprep.subr.bf16.mxu0 0
      %6000 = vmatpush1.bf16.msra.mxu0 0
      %6001 = vmatprep.subr.bf16.mxu0 0
      %6002 = vmatpush1.bf16.msra.mxu0 0
      %6003 = vmatprep.subr.bf16.mxu0 0
      %6004 = vmatpush1.bf16.msra.mxu0 0
      %6005 = vmatprep.subr.bf16.mxu0 0
      %6006 = vmatpush1.bf16.msra.mxu0 0
      %6007 = vmatprep.subr.bf16.mxu0 0
      %6008 = vmatpush1.bf16.msra.mxu0 0
      %6009 = vmatprep.subr.bf16.mxu0 0
      %6010 = vmatpush1.bf16.msra.mxu0 0
      %6011 = vmatprep.subr.bf16.mxu0 0
      %6012 = vmatpush1.bf16.msra.mxu0 %v4253
      %6013 = vmatprep.subr.bf16.mxu0 0
      %6014 = vmatpush1.bf16.msra.mxu0 %v4252
      %6015 = vmatprep.subr.bf16.mxu0 0
      %6016 = vmatpush2.bf16.msra.mxu0 0
      %6017 = vmatprep.subr.bf16.mxu0 0
      %6018 = vmatpush2.bf16.msra.mxu0 0
      %6019 = vmatprep.subr.bf16.mxu0 0
      %6020 = vmatpush2.bf16.msra.mxu0 0
      %6021 = vmatprep.subr.bf16.mxu0 0
      %6022 = vmatpush2.bf16.msra.mxu0 0
      %6023 = vmatprep.subr.bf16.mxu0 0
      %6024 = vmatpush2.bf16.msra.mxu0 0
      %6025 = vmatprep.subr.bf16.mxu0 0
      %6026 = vmatpush2.bf16.msra.mxu0 0
      %6027 = vmatprep.subr.bf16.mxu0 0
      %6028 = vmatpush2.bf16.msra.mxu0 0
      %6029 = vmatprep.subr.bf16.mxu0 0
      %6030 = vmatpush2.bf16.msra.mxu0 0
      %6031 = vmatprep.mubr.bf16.mxu0 0
      %6032 = vmatmul.mubr.bf16.gmra.mxu0 %v5994
      %v6033 = vpop.f32.mrf.mxu0
      %v6034 = vadd.f32 0.0, %v6033
      %v6035 = vpop.f32.mrf.mxu0
      %v6036 = vpop.f32.mrf.mxu0
      %v6037 = vadd.f32 0.0, %v6036
      %v6038 = vpop.f32.mrf.mxu0
      %6039 = vmatprep.mubr.bf16.mxu0 0
      %6040 = vmatmul.mubr.bf16.gmra.mxu0 %v5997
      %v6041 = vpop.f32.mrf.mxu0
      %v6042 = vadd.f32 0.0, %v6041
      %v6043 = vpop.f32.mrf.mxu0
      %v6044 = vpop.f32.mrf.mxu0
      %v6045 = vadd.f32 0.0, %v6044
      %v6046 = vpop.f32.mrf.mxu0
      %6047 = vdwg.mxu0
      %6048 = vset.pattern.permute.xlu0 1
      %6049 = vperm.xlu0 %6048, %v4343
      %v6050 = vpop.permute.xlu0 %6049
      %6052 = vset.pattern.permute.xlu0 1
      %6053 = vperm.xlu0 %6052, %v4346
      %v6054 = vpop.permute.xlu0 %6053
      %6056 = vset.pattern.permute.xlu0 1
      %6057 = vperm.xlu0 %6056, %v4351
      %v6058 = vpop.permute.xlu0 %6057
      %6060 = vset.pattern.permute.xlu0 1
      %6061 = vperm.xlu0 %6060, %v4354
      %v6062 = vpop.permute.xlu0 %6061
      %6064 = vset.pattern.permute.xlu0 1
      %6065 = vperm.xlu0 %6064, %v4359
      %v6066 = vpop.permute.xlu0 %6065
      %6068 = vset.pattern.permute.xlu0 1
      %6069 = vperm.xlu0 %6068, %v4362
      %v6070 = vpop.permute.xlu0 %6069
      %6072 = vset.pattern.permute.xlu0 1
      %6073 = vperm.xlu0 %6072, %v4367
      %v6074 = vpop.permute.xlu0 %6073
      %6076 = vset.pattern.permute.xlu0 1
      %6077 = vperm.xlu0 %6076, %v4370
      %v6078 = vpop.permute.xlu0 %6077
      %6080 = vset.pattern.permute.xlu0 1
      %6081 = vperm.xlu0 %6080, %v4375
      %v6082 = vpop.permute.xlu0 %6081
      %6084 = vset.pattern.permute.xlu0 1
      %6085 = vperm.xlu0 %6084, %v4378
      %v6086 = vpop.permute.xlu0 %6085
      %6088 = vset.pattern.permute.xlu0 1
      %6089 = vperm.xlu0 %6088, %v4383
      %v6090 = vpop.permute.xlu0 %6089
      %6092 = vset.pattern.permute.xlu0 1
      %6093 = vperm.xlu0 %6092, %v4386
      %v6094 = vpop.permute.xlu0 %6093
      %6096 = vset.pattern.permute.xlu0 1
      %6097 = vperm.xlu0 %6096, %v4391
      %v6098 = vpop.permute.xlu0 %6097
      %6100 = vset.pattern.permute.xlu0 1
      %6101 = vperm.xlu0 %6100, %v4394
      %v6102 = vpop.permute.xlu0 %6101
      %6104 = vset.pattern.permute.xlu0 1
      %6105 = vperm.xlu0 %6104, %v4399
      %v6106 = vpop.permute.xlu0 %6105
      %6108 = vset.pattern.permute.xlu0 1
      %6109 = vperm.xlu0 %6108, %v4402
      %v6110 = vpop.permute.xlu0 %6109
      %6112 = vset.pattern.permute.xlu0 1
      %6113 = vperm.xlu0 %6112, %v4407
      %v6114 = vpop.permute.xlu0 %6113
      %6116 = vset.pattern.permute.xlu0 1
      %6117 = vperm.xlu0 %6116, %v4410
      %v6118 = vpop.permute.xlu0 %6117
      %6120 = vset.pattern.permute.xlu0 1
      %6121 = vperm.xlu0 %6120, %v4415
      %v6122 = vpop.permute.xlu0 %6121
      %6124 = vset.pattern.permute.xlu0 1
      %6125 = vperm.xlu0 %6124, %v4418
      %v6126 = vpop.permute.xlu0 %6125
      %6128 = vset.pattern.permute.xlu0 1
      %6129 = vperm.xlu0 %6128, %v4423
      %v6130 = vpop.permute.xlu0 %6129
      %6132 = vset.pattern.permute.xlu0 1
      %6133 = vperm.xlu0 %6132, %v4426
      %v6134 = vpop.permute.xlu0 %6133
      %6136 = vset.pattern.permute.xlu0 1
      %6137 = vperm.xlu0 %6136, %v4431
      %v6138 = vpop.permute.xlu0 %6137
      %6140 = vset.pattern.permute.xlu0 1
      %6141 = vperm.xlu0 %6140, %v4434
      %v6142 = vpop.permute.xlu0 %6141
      %6144 = vset.pattern.permute.xlu0 1
      %6145 = vperm.xlu0 %6144, %v4439
      %v6146 = vpop.permute.xlu0 %6145
      %6148 = vset.pattern.permute.xlu0 1
      %6149 = vperm.xlu0 %6148, %v4442
      %v6150 = vpop.permute.xlu0 %6149
      %6152 = vset.pattern.permute.xlu0 1
      %6153 = vperm.xlu0 %6152, %v4447
      %v6154 = vpop.permute.xlu0 %6153
      %6156 = vset.pattern.permute.xlu0 1
      %6157 = vperm.xlu0 %6156, %v4450
      %v6158 = vpop.permute.xlu0 %6157
      %6160 = vset.pattern.permute.xlu0 1
      %6161 = vperm.xlu0 %6160, %v4455
      %v6162 = vpop.permute.xlu0 %6161
      %6164 = vset.pattern.permute.xlu0 1
      %6165 = vperm.xlu0 %6164, %v4458
      %v6166 = vpop.permute.xlu0 %6165
      %6168 = vset.pattern.permute.xlu0 1
      %6169 = vperm.xlu0 %6168, %v4463
      %v6170 = vpop.permute.xlu0 %6169
      %6172 = vset.pattern.permute.xlu0 1
      %6173 = vperm.xlu0 %6172, %v4466
      %v6174 = vpop.permute.xlu0 %6173
      %v6176 = vlaneseq
      %v6177 = vshrl.u32 %v6176, 7
      %v6178 = vsub.s32 1, %v6177
      %v6179 = vrot.slane %v4507, %v6178
      %v6180 = vlaneseq
      %v6181 = vshrl.u32 %v6180, 7
      %v6182 = vsub.s32 1, %v6181
      %v6183 = vrot.slane %v4547, %v6182
      %v6184 = vlaneseq
      %v6185 = vshrl.u32 %v6184, 7
      %v6186 = vsub.s32 1, %v6185
      %v6187 = vrot.slane %v4587, %v6186
      %v6188 = vlaneseq
      %v6189 = vshrl.u32 %v6188, 7
      %v6190 = vsub.s32 1, %v6189
      %v6191 = vrot.slane %v4627, %v6190
      %v6192 = vlaneseq
      %v6193 = vshrl.u32 %v6192, 7
      %v6194 = vsub.s32 1, %v6193
      %v6195 = vrot.slane %v4667, %v6194
      %v6196 = vlaneseq
      %v6197 = vshrl.u32 %v6196, 7
      %v6198 = vsub.s32 1, %v6197
      %v6199 = vrot.slane %v4707, %v6198
      %v6200 = vlaneseq
      %v6201 = vshrl.u32 %v6200, 7
      %v6202 = vsub.s32 1, %v6201
      %v6203 = vrot.slane %v4747, %v6202
      %v6204 = vlaneseq
      %v6205 = vshrl.u32 %v6204, 7
      %v6206 = vsub.s32 1, %v6205
      %v6207 = vrot.slane %v4787, %v6206
      %v6208 = vadd.f32 %v6050, %v6179
      %v6209 = vadd.f32 %v6054, %v6179
      %v6210 = vadd.f32 %v6058, %v6179
      %v6211 = vadd.f32 %v6062, %v6179
      %v6212 = vadd.f32 %v6066, %v6183
      %v6213 = vadd.f32 %v6070, %v6183
      %v6214 = vadd.f32 %v6074, %v6183
      %v6215 = vadd.f32 %v6078, %v6183
      %v6216 = vadd.f32 %v6082, %v6187
      %v6217 = vadd.f32 %v6086, %v6187
      %v6218 = vadd.f32 %v6090, %v6187
      %v6219 = vadd.f32 %v6094, %v6187
      %v6220 = vadd.f32 %v6098, %v6191
      %v6221 = vadd.f32 %v6102, %v6191
      %v6222 = vadd.f32 %v6106, %v6191
      %v6223 = vadd.f32 %v6110, %v6191
      %v6224 = vadd.f32 %v6114, %v6195
      %v6225 = vadd.f32 %v6118, %v6195
      %v6226 = vadd.f32 %v6122, %v6195
      %v6227 = vadd.f32 %v6126, %v6195
      %v6228 = vadd.f32 %v6130, %v6199
      %v6229 = vadd.f32 %v6134, %v6199
      %v6230 = vadd.f32 %v6138, %v6199
      %v6231 = vadd.f32 %v6142, %v6199
      %v6232 = vadd.f32 %v6146, %v6203
      %v6233 = vadd.f32 %v6150, %v6203
      %v6234 = vadd.f32 %v6154, %v6203
      %v6235 = vadd.f32 %v6158, %v6203
      %v6236 = vadd.f32 %v6162, %v6207
      %v6237 = vadd.f32 %v6166, %v6207
      %v6238 = vadd.f32 %v6170, %v6207
      %v6239 = vadd.f32 %v6174, %v6207
      %vm6240 = vcmp.gt.f32.partialorder %v6208, 0.0
      %vm6241 = vcmp.gt.f32.partialorder %v6209, 0.0
      %vm6242 = vcmp.gt.f32.partialorder %v6210, 0.0
      %vm6243 = vcmp.gt.f32.partialorder %v6211, 0.0
      %vm6244 = vcmp.gt.f32.partialorder %v6212, 0.0
      %vm6245 = vcmp.gt.f32.partialorder %v6213, 0.0
      %vm6246 = vcmp.gt.f32.partialorder %v6214, 0.0
      %vm6247 = vcmp.gt.f32.partialorder %v6215, 0.0
      %vm6248 = vcmp.gt.f32.partialorder %v6216, 0.0
      %vm6249 = vcmp.gt.f32.partialorder %v6217, 0.0
      %vm6250 = vcmp.gt.f32.partialorder %v6218, 0.0
      %vm6251 = vcmp.gt.f32.partialorder %v6219, 0.0
      %vm6252 = vcmp.gt.f32.partialorder %v6220, 0.0
      %vm6253 = vcmp.gt.f32.partialorder %v6221, 0.0
      %vm6254 = vcmp.gt.f32.partialorder %v6222, 0.0
      %vm6255 = vcmp.gt.f32.partialorder %v6223, 0.0
      %vm6256 = vcmp.gt.f32.partialorder %v6224, 0.0
      %vm6257 = vcmp.gt.f32.partialorder %v6225, 0.0
      %vm6258 = vcmp.gt.f32.partialorder %v6226, 0.0
      %vm6259 = vcmp.gt.f32.partialorder %v6227, 0.0
      %vm6260 = vcmp.gt.f32.partialorder %v6228, 0.0
      %vm6261 = vcmp.gt.f32.partialorder %v6229, 0.0
      %vm6262 = vcmp.gt.f32.partialorder %v6230, 0.0
      %vm6263 = vcmp.gt.f32.partialorder %v6231, 0.0
      %vm6264 = vcmp.gt.f32.partialorder %v6232, 0.0
      %vm6265 = vcmp.gt.f32.partialorder %v6233, 0.0
      %vm6266 = vcmp.gt.f32.partialorder %v6234, 0.0
      %vm6267 = vcmp.gt.f32.partialorder %v6235, 0.0
      %vm6268 = vcmp.gt.f32.partialorder %v6236, 0.0
      %vm6269 = vcmp.gt.f32.partialorder %v6237, 0.0
      %vm6270 = vcmp.gt.f32.partialorder %v6238, 0.0
      %vm6271 = vcmp.gt.f32.partialorder %v6239, 0.0
      %v6272 = vmul.f32 %v6208, 0.2
      %v6273 = vmul.f32 %v6209, 0.2
      %v6274 = vmul.f32 %v6210, 0.2
      %v6275 = vmul.f32 %v6211, 0.2
      %v6276 = vmul.f32 %v6212, 0.2
      %v6277 = vmul.f32 %v6213, 0.2
      %v6278 = vmul.f32 %v6214, 0.2
      %v6279 = vmul.f32 %v6215, 0.2
      %v6280 = vmul.f32 %v6216, 0.2
      %v6281 = vmul.f32 %v6217, 0.2
      %v6282 = vmul.f32 %v6218, 0.2
      %v6283 = vmul.f32 %v6219, 0.2
      %v6284 = vmul.f32 %v6220, 0.2
      %v6285 = vmul.f32 %v6221, 0.2
      %v6286 = vmul.f32 %v6222, 0.2
      %v6287 = vmul.f32 %v6223, 0.2
      %v6288 = vmul.f32 %v6224, 0.2
      %v6289 = vmul.f32 %v6225, 0.2
      %v6290 = vmul.f32 %v6226, 0.2
      %v6291 = vmul.f32 %v6227, 0.2
      %v6292 = vmul.f32 %v6228, 0.2
      %v6293 = vmul.f32 %v6229, 0.2
      %v6294 = vmul.f32 %v6230, 0.2
      %v6295 = vmul.f32 %v6231, 0.2
      %v6296 = vmul.f32 %v6232, 0.2
      %v6297 = vmul.f32 %v6233, 0.2
      %v6298 = vmul.f32 %v6234, 0.2
      %v6299 = vmul.f32 %v6235, 0.2
      %v6300 = vmul.f32 %v6236, 0.2
      %v6301 = vmul.f32 %v6237, 0.2
      %v6302 = vmul.f32 %v6238, 0.2
      %v6303 = vmul.f32 %v6239, 0.2
      %v6304 = vsel %vm6240, %v6208, %v6272
      %v6305 = vsel %vm6241, %v6209, %v6273
      %v6306 = vsel %vm6242, %v6210, %v6274
      %v6307 = vsel %vm6243, %v6211, %v6275
      %v6308 = vsel %vm6244, %v6212, %v6276
      %v6309 = vsel %vm6245, %v6213, %v6277
      %v6310 = vsel %vm6246, %v6214, %v6278
      %v6311 = vsel %vm6247, %v6215, %v6279
      %v6312 = vsel %vm6248, %v6216, %v6280
      %v6313 = vsel %vm6249, %v6217, %v6281
      %v6314 = vsel %vm6250, %v6218, %v6282
      %v6315 = vsel %vm6251, %v6219, %v6283
      %v6316 = vsel %vm6252, %v6220, %v6284
      %v6317 = vsel %vm6253, %v6221, %v6285
      %v6318 = vsel %vm6254, %v6222, %v6286
      %v6319 = vsel %vm6255, %v6223, %v6287
      %v6320 = vsel %vm6256, %v6224, %v6288
      %v6321 = vsel %vm6257, %v6225, %v6289
      %v6322 = vsel %vm6258, %v6226, %v6290
      %v6323 = vsel %vm6259, %v6227, %v6291
      %v6324 = vsel %vm6260, %v6228, %v6292
      %v6325 = vsel %vm6261, %v6229, %v6293
      %v6326 = vsel %vm6262, %v6230, %v6294
      %v6327 = vsel %vm6263, %v6231, %v6295
      %v6328 = vsel %vm6264, %v6232, %v6296
      %v6329 = vsel %vm6265, %v6233, %v6297
      %v6330 = vsel %vm6266, %v6234, %v6298
      %v6331 = vsel %vm6267, %v6235, %v6299
      %v6332 = vsel %vm6268, %v6236, %v6300
      %v6333 = vsel %vm6269, %v6237, %v6301
      %v6334 = vsel %vm6270, %v6238, %v6302
      %v6335 = vsel %vm6271, %v6239, %v6303
      %v6336 = vadd.f32 %v6304, %v333
      %v6337 = vadd.f32 %v6305, %v334
      %v6338 = vadd.f32 %v6306, %v335
      %v6339 = vadd.f32 %v6307, %v336
      %v6340 = vadd.f32 %v6308, %v337
      %v6341 = vadd.f32 %v6309, %v338
      %v6342 = vadd.f32 %v6310, %v339
      %v6343 = vadd.f32 %v6311, %v340
      %v6344 = vadd.f32 %v6312, %v341
      %v6345 = vadd.f32 %v6313, %v342
      %v6346 = vadd.f32 %v6314, %v343
      %v6347 = vadd.f32 %v6315, %v344
      %v6348 = vadd.f32 %v6316, %v345
      %v6349 = vadd.f32 %v6317, %v346
      %v6350 = vadd.f32 %v6318, %v347
      %v6351 = vadd.f32 %v6319, %v348
      %v6352 = vadd.f32 %v6320, %v349
      %v6353 = vadd.f32 %v6321, %v350
      %v6354 = vadd.f32 %v6322, %v351
      %v6355 = vadd.f32 %v6323, %v352
      %v6356 = vadd.f32 %v6324, %v353
      %v6357 = vadd.f32 %v6325, %v354
      %v6358 = vadd.f32 %v6326, %v355
      %v6359 = vadd.f32 %v6327, %v356
      %v6360 = vadd.f32 %v6328, %v357
      %v6361 = vadd.f32 %v6329, %v358
      %v6362 = vadd.f32 %v6330, %v359
      %v6363 = vadd.f32 %v6331, %v360
      %v6364 = vadd.f32 %v6332, %v361
      %v6365 = vadd.f32 %v6333, %v362
      %v6366 = vadd.f32 %v6334, %v363
      %v6367 = vadd.f32 %v6335, %v364
      %v6368 = vsel %vm1542, %v6336, -inf
      %6369 = vmax.xlane.f32.xlu0 %v6368
      %v6370 = vpop.xlane.xlu0 %6369
      %v6371 = vsel %vm1542, %v6337, -inf
      %6372 = vmax.xlane.f32.xlu0 %v6371
      %v6373 = vpop.xlane.xlu0 %6372
      %v6374 = vsel %vm1542, %v6338, -inf
      %6375 = vmax.xlane.f32.xlu0 %v6374
      %v6376 = vpop.xlane.xlu0 %6375
      %v6377 = vsel %vm1542, %v6339, -inf
      %6378 = vmax.xlane.f32.xlu0 %v6377
      %v6379 = vpop.xlane.xlu0 %6378
      %v6380 = vsel %vm1542, %v6340, -inf
      %6381 = vmax.xlane.f32.xlu0 %v6380
      %v6382 = vpop.xlane.xlu0 %6381
      %v6383 = vsel %vm1542, %v6341, -inf
      %6384 = vmax.xlane.f32.xlu0 %v6383
      %v6385 = vpop.xlane.xlu0 %6384
      %v6386 = vsel %vm1542, %v6342, -inf
      %6387 = vmax.xlane.f32.xlu0 %v6386
      %v6388 = vpop.xlane.xlu0 %6387
      %v6389 = vsel %vm1542, %v6343, -inf
      %6390 = vmax.xlane.f32.xlu0 %v6389
      %v6391 = vpop.xlane.xlu0 %6390
      %v6392 = vsel %vm1542, %v6344, -inf
      %6393 = vmax.xlane.f32.xlu0 %v6392
      %v6394 = vpop.xlane.xlu0 %6393
      %v6395 = vsel %vm1542, %v6345, -inf
      %6396 = vmax.xlane.f32.xlu0 %v6395
      %v6397 = vpop.xlane.xlu0 %6396
      %v6398 = vsel %vm1542, %v6346, -inf
      %6399 = vmax.xlane.f32.xlu0 %v6398
      %v6400 = vpop.xlane.xlu0 %6399
      %v6401 = vsel %vm1542, %v6347, -inf
      %6402 = vmax.xlane.f32.xlu0 %v6401
      %v6403 = vpop.xlane.xlu0 %6402
      %v6404 = vsel %vm1542, %v6348, -inf
      %6405 = vmax.xlane.f32.xlu0 %v6404
      %v6406 = vpop.xlane.xlu0 %6405
      %v6407 = vsel %vm1542, %v6349, -inf
      %6408 = vmax.xlane.f32.xlu0 %v6407
      %v6409 = vpop.xlane.xlu0 %6408
      %v6410 = vsel %vm1542, %v6350, -inf
      %6411 = vmax.xlane.f32.xlu0 %v6410
      %v6412 = vpop.xlane.xlu0 %6411
      %v6413 = vsel %vm1542, %v6351, -inf
      %6414 = vmax.xlane.f32.xlu0 %v6413
      %v6415 = vpop.xlane.xlu0 %6414
      %v6416 = vsel %vm1542, %v6352, -inf
      %6417 = vmax.xlane.f32.xlu0 %v6416
      %v6418 = vpop.xlane.xlu0 %6417
      %v6419 = vsel %vm1542, %v6353, -inf
      %6420 = vmax.xlane.f32.xlu0 %v6419
      %v6421 = vpop.xlane.xlu0 %6420
      %v6422 = vsel %vm1542, %v6354, -inf
      %6423 = vmax.xlane.f32.xlu0 %v6422
      %v6424 = vpop.xlane.xlu0 %6423
      %v6425 = vsel %vm1542, %v6355, -inf
      %6426 = vmax.xlane.f32.xlu0 %v6425
      %v6427 = vpop.xlane.xlu0 %6426
      %v6428 = vsel %vm1542, %v6356, -inf
      %6429 = vmax.xlane.f32.xlu0 %v6428
      %v6430 = vpop.xlane.xlu0 %6429
      %v6431 = vsel %vm1542, %v6357, -inf
      %6432 = vmax.xlane.f32.xlu0 %v6431
      %v6433 = vpop.xlane.xlu0 %6432
      %v6434 = vsel %vm1542, %v6358, -inf
      %6435 = vmax.xlane.f32.xlu0 %v6434
      %v6436 = vpop.xlane.xlu0 %6435
      %v6437 = vsel %vm1542, %v6359, -inf
      %6438 = vmax.xlane.f32.xlu0 %v6437
      %v6439 = vpop.xlane.xlu0 %6438
      %v6440 = vsel %vm1542, %v6360, -inf
      %6441 = vmax.xlane.f32.xlu0 %v6440
      %v6442 = vpop.xlane.xlu0 %6441
      %v6443 = vsel %vm1542, %v6361, -inf
      %6444 = vmax.xlane.f32.xlu0 %v6443
      %v6445 = vpop.xlane.xlu0 %6444
      %v6446 = vsel %vm1542, %v6362, -inf
      %6447 = vmax.xlane.f32.xlu0 %v6446
      %v6448 = vpop.xlane.xlu0 %6447
      %v6449 = vsel %vm1542, %v6363, -inf
      %6450 = vmax.xlane.f32.xlu0 %v6449
      %v6451 = vpop.xlane.xlu0 %6450
      %v6452 = vsel %vm1542, %v6364, -inf
      %6453 = vmax.xlane.f32.xlu0 %v6452
      %v6454 = vpop.xlane.xlu0 %6453
      %v6455 = vsel %vm1542, %v6365, -inf
      %6456 = vmax.xlane.f32.xlu0 %v6455
      %v6457 = vpop.xlane.xlu0 %6456
      %v6458 = vsel %vm1542, %v6366, -inf
      %6459 = vmax.xlane.f32.xlu0 %v6458
      %v6460 = vpop.xlane.xlu0 %6459
      %v6461 = vsel %vm1542, %v6367, -inf
      %6462 = vmax.xlane.f32.xlu0 %v6461
      %v6463 = vpop.xlane.xlu0 %6462
      %v6464 = vsub.f32 %v6336, %v6370
      %v6465 = vsub.f32 %v6337, %v6373
      %v6466 = vsub.f32 %v6338, %v6376
      %v6467 = vsub.f32 %v6339, %v6379
      %v6468 = vsub.f32 %v6340, %v6382
      %v6469 = vsub.f32 %v6341, %v6385
      %v6470 = vsub.f32 %v6342, %v6388
      %v6471 = vsub.f32 %v6343, %v6391
      %v6472 = vsub.f32 %v6344, %v6394
      %v6473 = vsub.f32 %v6345, %v6397
      %v6474 = vsub.f32 %v6346, %v6400
      %v6475 = vsub.f32 %v6347, %v6403
      %v6476 = vsub.f32 %v6348, %v6406
      %v6477 = vsub.f32 %v6349, %v6409
      %v6478 = vsub.f32 %v6350, %v6412
      %v6479 = vsub.f32 %v6351, %v6415
      %v6480 = vsub.f32 %v6352, %v6418
      %v6481 = vsub.f32 %v6353, %v6421
      %v6482 = vsub.f32 %v6354, %v6424
      %v6483 = vsub.f32 %v6355, %v6427
      %v6484 = vsub.f32 %v6356, %v6430
      %v6485 = vsub.f32 %v6357, %v6433
      %v6486 = vsub.f32 %v6358, %v6436
      %v6487 = vsub.f32 %v6359, %v6439
      %v6488 = vsub.f32 %v6360, %v6442
      %v6489 = vsub.f32 %v6361, %v6445
      %v6490 = vsub.f32 %v6362, %v6448
      %v6491 = vsub.f32 %v6363, %v6451
      %v6492 = vsub.f32 %v6364, %v6454
      %v6493 = vsub.f32 %v6365, %v6457
      %v6494 = vsub.f32 %v6366, %v6460
      %v6495 = vsub.f32 %v6367, %v6463
      %v6496 = vmul.f32 %v6464, 1.442695
      %v6497 = vpow.pop %v6496
      %v6498 = vmul.f32 %v6465, 1.442695
      %v6499 = vpow.pop %v6498
      %v6500 = vmul.f32 %v6466, 1.442695
      %v6501 = vpow.pop %v6500
      %v6502 = vmul.f32 %v6467, 1.442695
      %v6503 = vpow.pop %v6502
      %v6504 = vmul.f32 %v6468, 1.442695
      %v6505 = vpow.pop %v6504
      %v6506 = vmul.f32 %v6469, 1.442695
      %v6507 = vpow.pop %v6506
      %v6508 = vmul.f32 %v6470, 1.442695
      %v6509 = vpow.pop %v6508
      %v6510 = vmul.f32 %v6471, 1.442695
      %v6511 = vpow.pop %v6510
      %v6512 = vmul.f32 %v6472, 1.442695
      %v6513 = vpow.pop %v6512
      %v6514 = vmul.f32 %v6473, 1.442695
      %v6515 = vpow.pop %v6514
      %v6516 = vmul.f32 %v6474, 1.442695
      %v6517 = vpow.pop %v6516
      %v6518 = vmul.f32 %v6475, 1.442695
      %v6519 = vpow.pop %v6518
      %v6520 = vmul.f32 %v6476, 1.442695
      %v6521 = vpow.pop %v6520
      %v6522 = vmul.f32 %v6477, 1.442695
      %v6523 = vpow.pop %v6522
      %v6524 = vmul.f32 %v6478, 1.442695
      %v6525 = vpow.pop %v6524
      %v6526 = vmul.f32 %v6479, 1.442695
      %v6527 = vpow.pop %v6526
      %v6528 = vmul.f32 %v6480, 1.442695
      %v6529 = vpow.pop %v6528
      %v6530 = vmul.f32 %v6481, 1.442695
      %v6531 = vpow.pop %v6530
      %v6532 = vmul.f32 %v6482, 1.442695
      %v6533 = vpow.pop %v6532
      %v6534 = vmul.f32 %v6483, 1.442695
      %v6535 = vpow.pop %v6534
      %v6536 = vmul.f32 %v6484, 1.442695
      %v6537 = vpow.pop %v6536
      %v6538 = vmul.f32 %v6485, 1.442695
      %v6539 = vpow.pop %v6538
      %v6540 = vmul.f32 %v6486, 1.442695
      %v6541 = vpow.pop %v6540
      %v6542 = vmul.f32 %v6487, 1.442695
      %v6543 = vpow.pop %v6542
      %v6544 = vmul.f32 %v6488, 1.442695
      %v6545 = vpow.pop %v6544
      %v6546 = vmul.f32 %v6489, 1.442695
      %v6547 = vpow.pop %v6546
      %v6548 = vmul.f32 %v6490, 1.442695
      %v6549 = vpow.pop %v6548
      %v6550 = vmul.f32 %v6491, 1.442695
      %v6551 = vpow.pop %v6550
      %v6552 = vmul.f32 %v6492, 1.442695
      %v6553 = vpow.pop %v6552
      %v6554 = vmul.f32 %v6493, 1.442695
      %v6555 = vpow.pop %v6554
      %v6556 = vmul.f32 %v6494, 1.442695
      %v6557 = vpow.pop %v6556
      %v6558 = vmul.f32 %v6495, 1.442695
      %v6559 = vpow.pop %v6558
      %v6560 = vsel %vm1542, %v6497, 0.0
      %6561 = vadd.xlane.f32.xlu0 %v6560
      %v6562 = vpop.xlane.xlu0 %6561
      %v6563 = vsel %vm1542, %v6499, 0.0
      %6564 = vadd.xlane.f32.xlu0 %v6563
      %v6565 = vpop.xlane.xlu0 %6564
      %v6566 = vsel %vm1542, %v6501, 0.0
      %6567 = vadd.xlane.f32.xlu0 %v6566
      %v6568 = vpop.xlane.xlu0 %6567
      %v6569 = vsel %vm1542, %v6503, 0.0
      %6570 = vadd.xlane.f32.xlu0 %v6569
      %v6571 = vpop.xlane.xlu0 %6570
      %v6572 = vsel %vm1542, %v6505, 0.0
      %6573 = vadd.xlane.f32.xlu0 %v6572
      %v6574 = vpop.xlane.xlu0 %6573
      %v6575 = vsel %vm1542, %v6507, 0.0
      %6576 = vadd.xlane.f32.xlu0 %v6575
      %v6577 = vpop.xlane.xlu0 %6576
      %v6578 = vsel %vm1542, %v6509, 0.0
      %6579 = vadd.xlane.f32.xlu0 %v6578
      %v6580 = vpop.xlane.xlu0 %6579
      %v6581 = vsel %vm1542, %v6511, 0.0
      %6582 = vadd.xlane.f32.xlu0 %v6581
      %v6583 = vpop.xlane.xlu0 %6582
      %v6584 = vsel %vm1542, %v6513, 0.0
      %6585 = vadd.xlane.f32.xlu0 %v6584
      %v6586 = vpop.xlane.xlu0 %6585
      %v6587 = vsel %vm1542, %v6515, 0.0
      %6588 = vadd.xlane.f32.xlu0 %v6587
      %v6589 = vpop.xlane.xlu0 %6588
      %v6590 = vsel %vm1542, %v6517, 0.0
      %6591 = vadd.xlane.f32.xlu0 %v6590
      %v6592 = vpop.xlane.xlu0 %6591
      %v6593 = vsel %vm1542, %v6519, 0.0
      %6594 = vadd.xlane.f32.xlu0 %v6593
      %v6595 = vpop.xlane.xlu0 %6594
      %v6596 = vsel %vm1542, %v6521, 0.0
      %6597 = vadd.xlane.f32.xlu0 %v6596
      %v6598 = vpop.xlane.xlu0 %6597
      %v6599 = vsel %vm1542, %v6523, 0.0
      %6600 = vadd.xlane.f32.xlu0 %v6599
      %v6601 = vpop.xlane.xlu0 %6600
      %v6602 = vsel %vm1542, %v6525, 0.0
      %6603 = vadd.xlane.f32.xlu0 %v6602
      %v6604 = vpop.xlane.xlu0 %6603
      %v6605 = vsel %vm1542, %v6527, 0.0
      %6606 = vadd.xlane.f32.xlu0 %v6605
      %v6607 = vpop.xlane.xlu0 %6606
      %v6608 = vsel %vm1542, %v6529, 0.0
      %6609 = vadd.xlane.f32.xlu0 %v6608
      %v6610 = vpop.xlane.xlu0 %6609
      %v6611 = vsel %vm1542, %v6531, 0.0
      %6612 = vadd.xlane.f32.xlu0 %v6611
      %v6613 = vpop.xlane.xlu0 %6612
      %v6614 = vsel %vm1542, %v6533, 0.0
      %6615 = vadd.xlane.f32.xlu0 %v6614
      %v6616 = vpop.xlane.xlu0 %6615
      %v6617 = vsel %vm1542, %v6535, 0.0
      %6618 = vadd.xlane.f32.xlu0 %v6617
      %v6619 = vpop.xlane.xlu0 %6618
      %v6620 = vsel %vm1542, %v6537, 0.0
      %6621 = vadd.xlane.f32.xlu0 %v6620
      %v6622 = vpop.xlane.xlu0 %6621
      %v6623 = vsel %vm1542, %v6539, 0.0
      %6624 = vadd.xlane.f32.xlu0 %v6623
      %v6625 = vpop.xlane.xlu0 %6624
      %v6626 = vsel %vm1542, %v6541, 0.0
      %6627 = vadd.xlane.f32.xlu0 %v6626
      %v6628 = vpop.xlane.xlu0 %6627
      %v6629 = vsel %vm1542, %v6543, 0.0
      %6630 = vadd.xlane.f32.xlu0 %v6629
      %v6631 = vpop.xlane.xlu0 %6630
      %v6632 = vsel %vm1542, %v6545, 0.0
      %6633 = vadd.xlane.f32.xlu0 %v6632
      %v6634 = vpop.xlane.xlu0 %6633
      %v6635 = vsel %vm1542, %v6547, 0.0
      %6636 = vadd.xlane.f32.xlu0 %v6635
      %v6637 = vpop.xlane.xlu0 %6636
      %v6638 = vsel %vm1542, %v6549, 0.0
      %6639 = vadd.xlane.f32.xlu0 %v6638
      %v6640 = vpop.xlane.xlu0 %6639
      %v6641 = vsel %vm1542, %v6551, 0.0
      %6642 = vadd.xlane.f32.xlu0 %v6641
      %v6643 = vpop.xlane.xlu0 %6642
      %v6644 = vsel %vm1542, %v6553, 0.0
      %6645 = vadd.xlane.f32.xlu0 %v6644
      %v6646 = vpop.xlane.xlu0 %6645
      %v6647 = vsel %vm1542, %v6555, 0.0
      %6648 = vadd.xlane.f32.xlu0 %v6647
      %v6649 = vpop.xlane.xlu0 %6648
      %v6650 = vsel %vm1542, %v6557, 0.0
      %6651 = vadd.xlane.f32.xlu0 %v6650
      %v6652 = vpop.xlane.xlu0 %6651
      %v6653 = vsel %vm1542, %v6559, 0.0
      %6654 = vadd.xlane.f32.xlu0 %v6653
      %v6655 = vpop.xlane.xlu0 %6654
      %v6656 = vrcp.pop %v6562
      %v6657 = vrcp.pop %v6565
      %v6658 = vrcp.pop %v6568
      %v6659 = vrcp.pop %v6571
      %v6660 = vrcp.pop %v6574
      %v6661 = vrcp.pop %v6577
      %v6662 = vrcp.pop %v6580
      %v6663 = vrcp.pop %v6583
      %v6664 = vrcp.pop %v6586
      %v6665 = vrcp.pop %v6589
      %v6666 = vrcp.pop %v6592
      %v6667 = vrcp.pop %v6595
      %v6668 = vrcp.pop %v6598
      %v6669 = vrcp.pop %v6601
      %v6670 = vrcp.pop %v6604
      %v6671 = vrcp.pop %v6607
      %v6672 = vrcp.pop %v6610
      %v6673 = vrcp.pop %v6613
      %v6674 = vrcp.pop %v6616
      %v6675 = vrcp.pop %v6619
      %v6676 = vrcp.pop %v6622
      %v6677 = vrcp.pop %v6625
      %v6678 = vrcp.pop %v6628
      %v6679 = vrcp.pop %v6631
      %v6680 = vrcp.pop %v6634
      %v6681 = vrcp.pop %v6637
      %v6682 = vrcp.pop %v6640
      %v6683 = vrcp.pop %v6643
      %v6684 = vrcp.pop %v6646
      %v6685 = vrcp.pop %v6649
      %v6686 = vrcp.pop %v6652
      %v6687 = vrcp.pop %v6655
      %v6688 = vmul.f32 %v6562, %v6656
      %v6689 = vmul.f32 %v6565, %v6657
      %v6690 = vmul.f32 %v6568, %v6658
      %v6691 = vmul.f32 %v6571, %v6659
      %v6692 = vmul.f32 %v6574, %v6660
      %v6693 = vmul.f32 %v6577, %v6661
      %v6694 = vmul.f32 %v6580, %v6662
      %v6695 = vmul.f32 %v6583, %v6663
      %v6696 = vmul.f32 %v6586, %v6664
      %v6697 = vmul.f32 %v6589, %v6665
      %v6698 = vmul.f32 %v6592, %v6666
      %v6699 = vmul.f32 %v6595, %v6667
      %v6700 = vmul.f32 %v6598, %v6668
      %v6701 = vmul.f32 %v6601, %v6669
      %v6702 = vmul.f32 %v6604, %v6670
      %v6703 = vmul.f32 %v6607, %v6671
      %v6704 = vmul.f32 %v6610, %v6672
      %v6705 = vmul.f32 %v6613, %v6673
      %v6706 = vmul.f32 %v6616, %v6674
      %v6707 = vmul.f32 %v6619, %v6675
      %v6708 = vmul.f32 %v6622, %v6676
      %v6709 = vmul.f32 %v6625, %v6677
      %v6710 = vmul.f32 %v6628, %v6678
      %v6711 = vmul.f32 %v6631, %v6679
      %v6712 = vmul.f32 %v6634, %v6680
      %v6713 = vmul.f32 %v6637, %v6681
      %v6714 = vmul.f32 %v6640, %v6682
      %v6715 = vmul.f32 %v6643, %v6683
      %v6716 = vmul.f32 %v6646, %v6684
      %v6717 = vmul.f32 %v6649, %v6685
      %v6718 = vmul.f32 %v6652, %v6686
      %v6719 = vmul.f32 %v6655, %v6687
      %v6720 = vsub.f32 2.0, %v6688
      %v6721 = vsub.f32 2.0, %v6689
      %v6722 = vsub.f32 2.0, %v6690
      %v6723 = vsub.f32 2.0, %v6691
      %v6724 = vsub.f32 2.0, %v6692
      %v6725 = vsub.f32 2.0, %v6693
      %v6726 = vsub.f32 2.0, %v6694
      %v6727 = vsub.f32 2.0, %v6695
      %v6728 = vsub.f32 2.0, %v6696
      %v6729 = vsub.f32 2.0, %v6697
      %v6730 = vsub.f32 2.0, %v6698
      %v6731 = vsub.f32 2.0, %v6699
      %v6732 = vsub.f32 2.0, %v6700
      %v6733 = vsub.f32 2.0, %v6701
      %v6734 = vsub.f32 2.0, %v6702
      %v6735 = vsub.f32 2.0, %v6703
      %v6736 = vsub.f32 2.0, %v6704
      %v6737 = vsub.f32 2.0, %v6705
      %v6738 = vsub.f32 2.0, %v6706
      %v6739 = vsub.f32 2.0, %v6707
      %v6740 = vsub.f32 2.0, %v6708
      %v6741 = vsub.f32 2.0, %v6709
      %v6742 = vsub.f32 2.0, %v6710
      %v6743 = vsub.f32 2.0, %v6711
      %v6744 = vsub.f32 2.0, %v6712
      %v6745 = vsub.f32 2.0, %v6713
      %v6746 = vsub.f32 2.0, %v6714
      %v6747 = vsub.f32 2.0, %v6715
      %v6748 = vsub.f32 2.0, %v6716
      %v6749 = vsub.f32 2.0, %v6717
      %v6750 = vsub.f32 2.0, %v6718
      %v6751 = vsub.f32 2.0, %v6719
      %v6752 = vmul.f32 %v6656, %v6720
      %v6753 = vmul.f32 %v6657, %v6721
      %v6754 = vmul.f32 %v6658, %v6722
      %v6755 = vmul.f32 %v6659, %v6723
      %v6756 = vmul.f32 %v6660, %v6724
      %v6757 = vmul.f32 %v6661, %v6725
      %v6758 = vmul.f32 %v6662, %v6726
      %v6759 = vmul.f32 %v6663, %v6727
      %v6760 = vmul.f32 %v6664, %v6728
      %v6761 = vmul.f32 %v6665, %v6729
      %v6762 = vmul.f32 %v6666, %v6730
      %v6763 = vmul.f32 %v6667, %v6731
      %v6764 = vmul.f32 %v6668, %v6732
      %v6765 = vmul.f32 %v6669, %v6733
      %v6766 = vmul.f32 %v6670, %v6734
      %v6767 = vmul.f32 %v6671, %v6735
      %v6768 = vmul.f32 %v6672, %v6736
      %v6769 = vmul.f32 %v6673, %v6737
      %v6770 = vmul.f32 %v6674, %v6738
      %v6771 = vmul.f32 %v6675, %v6739
      %v6772 = vmul.f32 %v6676, %v6740
      %v6773 = vmul.f32 %v6677, %v6741
      %v6774 = vmul.f32 %v6678, %v6742
      %v6775 = vmul.f32 %v6679, %v6743
      %v6776 = vmul.f32 %v6680, %v6744
      %v6777 = vmul.f32 %v6681, %v6745
      %v6778 = vmul.f32 %v6682, %v6746
      %v6779 = vmul.f32 %v6683, %v6747
      %v6780 = vmul.f32 %v6684, %v6748
      %v6781 = vmul.f32 %v6685, %v6749
      %v6782 = vmul.f32 %v6686, %v6750
      %v6783 = vmul.f32 %v6687, %v6751
      %v6784 = vmul.f32 %v6497, %v6752
      %v6785 = vmul.f32 %v6499, %v6753
      %v6786 = vmul.f32 %v6501, %v6754
      %v6787 = vmul.f32 %v6503, %v6755
      %v6788 = vmul.f32 %v6505, %v6756
      %v6789 = vmul.f32 %v6507, %v6757
      %v6790 = vmul.f32 %v6509, %v6758
      %v6791 = vmul.f32 %v6511, %v6759
      %v6792 = vmul.f32 %v6513, %v6760
      %v6793 = vmul.f32 %v6515, %v6761
      %v6794 = vmul.f32 %v6517, %v6762
      %v6795 = vmul.f32 %v6519, %v6763
      %v6796 = vmul.f32 %v6521, %v6764
      %v6797 = vmul.f32 %v6523, %v6765
      %v6798 = vmul.f32 %v6525, %v6766
      %v6799 = vmul.f32 %v6527, %v6767
      %v6800 = vmul.f32 %v6529, %v6768
      %v6801 = vmul.f32 %v6531, %v6769
      %v6802 = vmul.f32 %v6533, %v6770
      %v6803 = vmul.f32 %v6535, %v6771
      %v6804 = vmul.f32 %v6537, %v6772
      %v6805 = vmul.f32 %v6539, %v6773
      %v6806 = vmul.f32 %v6541, %v6774
      %v6807 = vmul.f32 %v6543, %v6775
      %v6808 = vmul.f32 %v6545, %v6776
      %v6809 = vmul.f32 %v6547, %v6777
      %v6810 = vmul.f32 %v6549, %v6778
      %v6811 = vmul.f32 %v6551, %v6779
      %v6812 = vmul.f32 %v6553, %v6780
      %v6813 = vmul.f32 %v6555, %v6781
      %v6814 = vmul.f32 %v6557, %v6782
      %v6815 = vmul.f32 %v6559, %v6783
      %v6816 = vpack.c.bf16 %v6785, %v6784
      %v6817 = vpack.c.bf16 %v6787, %v6786
      %v6818 = vpack.c.bf16 %v6789, %v6788
      %v6819 = vpack.c.bf16 %v6791, %v6790
      %v6820 = vpack.c.bf16 %v6793, %v6792
      %v6821 = vpack.c.bf16 %v6795, %v6794
      %v6822 = vpack.c.bf16 %v6797, %v6796
      %v6823 = vpack.c.bf16 %v6799, %v6798
      %v6824 = vpack.c.bf16 %v6801, %v6800
      %v6825 = vpack.c.bf16 %v6803, %v6802
      %v6826 = vpack.c.bf16 %v6805, %v6804
      %v6827 = vpack.c.bf16 %v6807, %v6806
      %v6828 = vpack.c.bf16 %v6809, %v6808
      %v6829 = vpack.c.bf16 %v6811, %v6810
      %v6830 = vpack.c.bf16 %v6813, %v6812
      %v6831 = vpack.c.bf16 %v6815, %v6814
      %6834 = vrot.lane.b32.xlu0 %v4238, 120
      %v6835 = vpop.permute.xlu0 %6834
      %6836 = vrot.lane.b32.xlu0 %v4239, 120
      %v6837 = vpop.permute.xlu0 %6836
      %v6841 = vsel %vm1542, %v6816, 0
      %v6844 = vsel %vm1542, %v6817, 0
      %6846 = vmatprep.subr.bf16.mxu0 0
      %6847 = vmatpush1.bf16.msra.mxu0 0
      %6848 = vmatprep.subr.bf16.mxu0 0
      %6849 = vmatpush1.bf16.msra.mxu0 0
      %6850 = vmatprep.subr.bf16.mxu0 0
      %6851 = vmatpush1.bf16.msra.mxu0 0
      %6852 = vmatprep.subr.bf16.mxu0 0
      %6853 = vmatpush1.bf16.msra.mxu0 0
      %6854 = vmatprep.subr.bf16.mxu0 0
      %6855 = vmatpush1.bf16.msra.mxu0 0
      %6856 = vmatprep.subr.bf16.mxu0 0
      %6857 = vmatpush1.bf16.msra.mxu0 0
      %6858 = vmatprep.subr.bf16.mxu0 0
      %6859 = vmatpush1.bf16.msra.mxu0 %v6837
      %6860 = vmatprep.subr.bf16.mxu0 0
      %6861 = vmatpush1.bf16.msra.mxu0 %v6835
      %6862 = vmatprep.subr.bf16.mxu0 0
      %6863 = vmatpush2.bf16.msra.mxu0 0
      %6864 = vmatprep.subr.bf16.mxu0 0
      %6865 = vmatpush2.bf16.msra.mxu0 0
      %6866 = vmatprep.subr.bf16.mxu0 0
      %6867 = vmatpush2.bf16.msra.mxu0 0
      %6868 = vmatprep.subr.bf16.mxu0 0
      %6869 = vmatpush2.bf16.msra.mxu0 0
      %6870 = vmatprep.subr.bf16.mxu0 0
      %6871 = vmatpush2.bf16.msra.mxu0 0
      %6872 = vmatprep.subr.bf16.mxu0 0
      %6873 = vmatpush2.bf16.msra.mxu0 0
      %6874 = vmatprep.subr.bf16.mxu0 0
      %6875 = vmatpush2.bf16.msra.mxu0 0
      %6876 = vmatprep.subr.bf16.mxu0 0
      %6877 = vmatpush2.bf16.msra.mxu0 0
      %6878 = vmatprep.mubr.bf16.mxu0 0
      %6879 = vmatmul.mubr.bf16.gmra.mxu0 %v6841
      %v6880 = vpop.f32.mrf.mxu0
      %v6881 = vadd.f32 0.0, %v6880
      %v6882 = vpop.f32.mrf.mxu0
      %v6883 = vpop.f32.mrf.mxu0
      %v6884 = vadd.f32 0.0, %v6883
      %v6885 = vpop.f32.mrf.mxu0
      %6886 = vmatprep.mubr.bf16.mxu0 0
      %6887 = vmatmul.mubr.bf16.gmra.mxu0 %v6844
      %v6888 = vpop.f32.mrf.mxu0
      %v6889 = vadd.f32 0.0, %v6888
      %v6890 = vpop.f32.mrf.mxu0
      %v6891 = vpop.f32.mrf.mxu0
      %v6892 = vadd.f32 0.0, %v6891
      %v6893 = vpop.f32.mrf.mxu0
      %6894 = vdwg.mxu0
      %6897 = vrot.lane.b32.xlu0 %v4240, 120
      %v6898 = vpop.permute.xlu0 %6897
      %6899 = vrot.lane.b32.xlu0 %v4241, 120
      %v6900 = vpop.permute.xlu0 %6899
      %v6904 = vsel %vm1542, %v6818, 0
      %v6907 = vsel %vm1542, %v6819, 0
      %6909 = vmatprep.subr.bf16.mxu0 0
      %6910 = vmatpush1.bf16.msra.mxu0 0
      %6911 = vmatprep.subr.bf16.mxu0 0
      %6912 = vmatpush1.bf16.msra.mxu0 0
      %6913 = vmatprep.subr.bf16.mxu0 0
      %6914 = vmatpush1.bf16.msra.mxu0 0
      %6915 = vmatprep.subr.bf16.mxu0 0
      %6916 = vmatpush1.bf16.msra.mxu0 0
      %6917 = vmatprep.subr.bf16.mxu0 0
      %6918 = vmatpush1.bf16.msra.mxu0 0
      %6919 = vmatprep.subr.bf16.mxu0 0
      %6920 = vmatpush1.bf16.msra.mxu0 0
      %6921 = vmatprep.subr.bf16.mxu0 0
      %6922 = vmatpush1.bf16.msra.mxu0 %v6900
      %6923 = vmatprep.subr.bf16.mxu0 0
      %6924 = vmatpush1.bf16.msra.mxu0 %v6898
      %6925 = vmatprep.subr.bf16.mxu0 0
      %6926 = vmatpush2.bf16.msra.mxu0 0
      %6927 = vmatprep.subr.bf16.mxu0 0
      %6928 = vmatpush2.bf16.msra.mxu0 0
      %6929 = vmatprep.subr.bf16.mxu0 0
      %6930 = vmatpush2.bf16.msra.mxu0 0
      %6931 = vmatprep.subr.bf16.mxu0 0
      %6932 = vmatpush2.bf16.msra.mxu0 0
      %6933 = vmatprep.subr.bf16.mxu0 0
      %6934 = vmatpush2.bf16.msra.mxu0 0
      %6935 = vmatprep.subr.bf16.mxu0 0
      %6936 = vmatpush2.bf16.msra.mxu0 0
      %6937 = vmatprep.subr.bf16.mxu0 0
      %6938 = vmatpush2.bf16.msra.mxu0 0
      %6939 = vmatprep.subr.bf16.mxu0 0
      %6940 = vmatpush2.bf16.msra.mxu0 0
      %6941 = vmatprep.mubr.bf16.mxu0 0
      %6942 = vmatmul.mubr.bf16.gmra.mxu0 %v6904
      %v6943 = vpop.f32.mrf.mxu0
      %v6944 = vadd.f32 0.0, %v6943
      %v6945 = vpop.f32.mrf.mxu0
      %v6946 = vpop.f32.mrf.mxu0
      %v6947 = vadd.f32 0.0, %v6946
      %v6948 = vpop.f32.mrf.mxu0
      %6949 = vmatprep.mubr.bf16.mxu0 0
      %6950 = vmatmul.mubr.bf16.gmra.mxu0 %v6907
      %v6951 = vpop.f32.mrf.mxu0
      %v6952 = vadd.f32 0.0, %v6951
      %v6953 = vpop.f32.mrf.mxu0
      %v6954 = vpop.f32.mrf.mxu0
      %v6955 = vadd.f32 0.0, %v6954
      %v6956 = vpop.f32.mrf.mxu0
      %6957 = vdwg.mxu0
      %6960 = vrot.lane.b32.xlu0 %v4242, 120
      %v6961 = vpop.permute.xlu0 %6960
      %6962 = vrot.lane.b32.xlu0 %v4243, 120
      %v6963 = vpop.permute.xlu0 %6962
      %v6967 = vsel %vm1542, %v6820, 0
      %v6970 = vsel %vm1542, %v6821, 0
      %6972 = vmatprep.subr.bf16.mxu0 0
      %6973 = vmatpush1.bf16.msra.mxu0 0
      %6974 = vmatprep.subr.bf16.mxu0 0
      %6975 = vmatpush1.bf16.msra.mxu0 0
      %6976 = vmatprep.subr.bf16.mxu0 0
      %6977 = vmatpush1.bf16.msra.mxu0 0
      %6978 = vmatprep.subr.bf16.mxu0 0
      %6979 = vmatpush1.bf16.msra.mxu0 0
      %6980 = vmatprep.subr.bf16.mxu0 0
      %6981 = vmatpush1.bf16.msra.mxu0 0
      %6982 = vmatprep.subr.bf16.mxu0 0
      %6983 = vmatpush1.bf16.msra.mxu0 0
      %6984 = vmatprep.subr.bf16.mxu0 0
      %6985 = vmatpush1.bf16.msra.mxu0 %v6963
      %6986 = vmatprep.subr.bf16.mxu0 0
      %6987 = vmatpush1.bf16.msra.mxu0 %v6961
      %6988 = vmatprep.subr.bf16.mxu0 0
      %6989 = vmatpush2.bf16.msra.mxu0 0
      %6990 = vmatprep.subr.bf16.mxu0 0
      %6991 = vmatpush2.bf16.msra.mxu0 0
      %6992 = vmatprep.subr.bf16.mxu0 0
      %6993 = vmatpush2.bf16.msra.mxu0 0
      %6994 = vmatprep.subr.bf16.mxu0 0
      %6995 = vmatpush2.bf16.msra.mxu0 0
      %6996 = vmatprep.subr.bf16.mxu0 0
      %6997 = vmatpush2.bf16.msra.mxu0 0
      %6998 = vmatprep.subr.bf16.mxu0 0
      %6999 = vmatpush2.bf16.msra.mxu0 0
      %7000 = vmatprep.subr.bf16.mxu0 0
      %7001 = vmatpush2.bf16.msra.mxu0 0
      %7002 = vmatprep.subr.bf16.mxu0 0
      %7003 = vmatpush2.bf16.msra.mxu0 0
      %7004 = vmatprep.mubr.bf16.mxu0 0
      %7005 = vmatmul.mubr.bf16.gmra.mxu0 %v6967
      %v7006 = vpop.f32.mrf.mxu0
      %v7007 = vadd.f32 0.0, %v7006
      %v7008 = vpop.f32.mrf.mxu0
      %v7009 = vpop.f32.mrf.mxu0
      %v7010 = vadd.f32 0.0, %v7009
      %v7011 = vpop.f32.mrf.mxu0
      %7012 = vmatprep.mubr.bf16.mxu0 0
      %7013 = vmatmul.mubr.bf16.gmra.mxu0 %v6970
      %v7014 = vpop.f32.mrf.mxu0
      %v7015 = vadd.f32 0.0, %v7014
      %v7016 = vpop.f32.mrf.mxu0
      %v7017 = vpop.f32.mrf.mxu0
      %v7018 = vadd.f32 0.0, %v7017
      %v7019 = vpop.f32.mrf.mxu0
      %7020 = vdwg.mxu0
      %7023 = vrot.lane.b32.xlu0 %v4244, 120
      %v7024 = vpop.permute.xlu0 %7023
      %7025 = vrot.lane.b32.xlu0 %v4245, 120
      %v7026 = vpop.permute.xlu0 %7025
      %v7030 = vsel %vm1542, %v6822, 0
      %v7033 = vsel %vm1542, %v6823, 0
      %7035 = vmatprep.subr.bf16.mxu0 0
      %7036 = vmatpush1.bf16.msra.mxu0 0
      %7037 = vmatprep.subr.bf16.mxu0 0
      %7038 = vmatpush1.bf16.msra.mxu0 0
      %7039 = vmatprep.subr.bf16.mxu0 0
      %7040 = vmatpush1.bf16.msra.mxu0 0
      %7041 = vmatprep.subr.bf16.mxu0 0
      %7042 = vmatpush1.bf16.msra.mxu0 0
      %7043 = vmatprep.subr.bf16.mxu0 0
      %7044 = vmatpush1.bf16.msra.mxu0 0
      %7045 = vmatprep.subr.bf16.mxu0 0
      %7046 = vmatpush1.bf16.msra.mxu0 0
      %7047 = vmatprep.subr.bf16.mxu0 0
      %7048 = vmatpush1.bf16.msra.mxu0 %v7026
      %7049 = vmatprep.subr.bf16.mxu0 0
      %7050 = vmatpush1.bf16.msra.mxu0 %v7024
      %7051 = vmatprep.subr.bf16.mxu0 0
      %7052 = vmatpush2.bf16.msra.mxu0 0
      %7053 = vmatprep.subr.bf16.mxu0 0
      %7054 = vmatpush2.bf16.msra.mxu0 0
      %7055 = vmatprep.subr.bf16.mxu0 0
      %7056 = vmatpush2.bf16.msra.mxu0 0
      %7057 = vmatprep.subr.bf16.mxu0 0
      %7058 = vmatpush2.bf16.msra.mxu0 0
      %7059 = vmatprep.subr.bf16.mxu0 0
      %7060 = vmatpush2.bf16.msra.mxu0 0
      %7061 = vmatprep.subr.bf16.mxu0 0
      %7062 = vmatpush2.bf16.msra.mxu0 0
      %7063 = vmatprep.subr.bf16.mxu0 0
      %7064 = vmatpush2.bf16.msra.mxu0 0
      %7065 = vmatprep.subr.bf16.mxu0 0
      %7066 = vmatpush2.bf16.msra.mxu0 0
      %7067 = vmatprep.mubr.bf16.mxu0 0
      %7068 = vmatmul.mubr.bf16.gmra.mxu0 %v7030
      %v7069 = vpop.f32.mrf.mxu0
      %v7070 = vadd.f32 0.0, %v7069
      %v7071 = vpop.f32.mrf.mxu0
      %v7072 = vpop.f32.mrf.mxu0
      %v7073 = vadd.f32 0.0, %v7072
      %v7074 = vpop.f32.mrf.mxu0
      %7075 = vmatprep.mubr.bf16.mxu0 0
      %7076 = vmatmul.mubr.bf16.gmra.mxu0 %v7033
      %v7077 = vpop.f32.mrf.mxu0
      %v7078 = vadd.f32 0.0, %v7077
      %v7079 = vpop.f32.mrf.mxu0
      %v7080 = vpop.f32.mrf.mxu0
      %v7081 = vadd.f32 0.0, %v7080
      %v7082 = vpop.f32.mrf.mxu0
      %7083 = vdwg.mxu0
      %7086 = vrot.lane.b32.xlu0 %v4246, 120
      %v7087 = vpop.permute.xlu0 %7086
      %7088 = vrot.lane.b32.xlu0 %v4247, 120
      %v7089 = vpop.permute.xlu0 %7088
      %v7093 = vsel %vm1542, %v6824, 0
      %v7096 = vsel %vm1542, %v6825, 0
      %7098 = vmatprep.subr.bf16.mxu0 0
      %7099 = vmatpush1.bf16.msra.mxu0 0
      %7100 = vmatprep.subr.bf16.mxu0 0
      %7101 = vmatpush1.bf16.msra.mxu0 0
      %7102 = vmatprep.subr.bf16.mxu0 0
      %7103 = vmatpush1.bf16.msra.mxu0 0
      %7104 = vmatprep.subr.bf16.mxu0 0
      %7105 = vmatpush1.bf16.msra.mxu0 0
      %7106 = vmatprep.subr.bf16.mxu0 0
      %7107 = vmatpush1.bf16.msra.mxu0 0
      %7108 = vmatprep.subr.bf16.mxu0 0
      %7109 = vmatpush1.bf16.msra.mxu0 0
      %7110 = vmatprep.subr.bf16.mxu0 0
      %7111 = vmatpush1.bf16.msra.mxu0 %v7089
      %7112 = vmatprep.subr.bf16.mxu0 0
      %7113 = vmatpush1.bf16.msra.mxu0 %v7087
      %7114 = vmatprep.subr.bf16.mxu0 0
      %7115 = vmatpush2.bf16.msra.mxu0 0
      %7116 = vmatprep.subr.bf16.mxu0 0
      %7117 = vmatpush2.bf16.msra.mxu0 0
      %7118 = vmatprep.subr.bf16.mxu0 0
      %7119 = vmatpush2.bf16.msra.mxu0 0
      %7120 = vmatprep.subr.bf16.mxu0 0
      %7121 = vmatpush2.bf16.msra.mxu0 0
      %7122 = vmatprep.subr.bf16.mxu0 0
      %7123 = vmatpush2.bf16.msra.mxu0 0
      %7124 = vmatprep.subr.bf16.mxu0 0
      %7125 = vmatpush2.bf16.msra.mxu0 0
      %7126 = vmatprep.subr.bf16.mxu0 0
      %7127 = vmatpush2.bf16.msra.mxu0 0
      %7128 = vmatprep.subr.bf16.mxu0 0
      %7129 = vmatpush2.bf16.msra.mxu0 0
      %7130 = vmatprep.mubr.bf16.mxu0 0
      %7131 = vmatmul.mubr.bf16.gmra.mxu0 %v7093
      %v7132 = vpop.f32.mrf.mxu0
      %v7133 = vadd.f32 0.0, %v7132
      %v7134 = vpop.f32.mrf.mxu0
      %v7135 = vpop.f32.mrf.mxu0
      %v7136 = vadd.f32 0.0, %v7135
      %v7137 = vpop.f32.mrf.mxu0
      %7138 = vmatprep.mubr.bf16.mxu0 0
      %7139 = vmatmul.mubr.bf16.gmra.mxu0 %v7096
      %v7140 = vpop.f32.mrf.mxu0
      %v7141 = vadd.f32 0.0, %v7140
      %v7142 = vpop.f32.mrf.mxu0
      %v7143 = vpop.f32.mrf.mxu0
      %v7144 = vadd.f32 0.0, %v7143
      %v7145 = vpop.f32.mrf.mxu0
      %7146 = vdwg.mxu0
      %7149 = vrot.lane.b32.xlu0 %v4248, 120
      %v7150 = vpop.permute.xlu0 %7149
      %7151 = vrot.lane.b32.xlu0 %v4249, 120
      %v7152 = vpop.permute.xlu0 %7151
      %v7156 = vsel %vm1542, %v6826, 0
      %v7159 = vsel %vm1542, %v6827, 0
      %7161 = vmatprep.subr.bf16.mxu0 0
      %7162 = vmatpush1.bf16.msra.mxu0 0
      %7163 = vmatprep.subr.bf16.mxu0 0
      %7164 = vmatpush1.bf16.msra.mxu0 0
      %7165 = vmatprep.subr.bf16.mxu0 0
      %7166 = vmatpush1.bf16.msra.mxu0 0
      %7167 = vmatprep.subr.bf16.mxu0 0
      %7168 = vmatpush1.bf16.msra.mxu0 0
      %7169 = vmatprep.subr.bf16.mxu0 0
      %7170 = vmatpush1.bf16.msra.mxu0 0
      %7171 = vmatprep.subr.bf16.mxu0 0
      %7172 = vmatpush1.bf16.msra.mxu0 0
      %7173 = vmatprep.subr.bf16.mxu0 0
      %7174 = vmatpush1.bf16.msra.mxu0 %v7152
      %7175 = vmatprep.subr.bf16.mxu0 0
      %7176 = vmatpush1.bf16.msra.mxu0 %v7150
      %7177 = vmatprep.subr.bf16.mxu0 0
      %7178 = vmatpush2.bf16.msra.mxu0 0
      %7179 = vmatprep.subr.bf16.mxu0 0
      %7180 = vmatpush2.bf16.msra.mxu0 0
      %7181 = vmatprep.subr.bf16.mxu0 0
      %7182 = vmatpush2.bf16.msra.mxu0 0
      %7183 = vmatprep.subr.bf16.mxu0 0
      %7184 = vmatpush2.bf16.msra.mxu0 0
      %7185 = vmatprep.subr.bf16.mxu0 0
      %7186 = vmatpush2.bf16.msra.mxu0 0
      %7187 = vmatprep.subr.bf16.mxu0 0
      %7188 = vmatpush2.bf16.msra.mxu0 0
      %7189 = vmatprep.subr.bf16.mxu0 0
      %7190 = vmatpush2.bf16.msra.mxu0 0
      %7191 = vmatprep.subr.bf16.mxu0 0
      %7192 = vmatpush2.bf16.msra.mxu0 0
      %7193 = vmatprep.mubr.bf16.mxu0 0
      %7194 = vmatmul.mubr.bf16.gmra.mxu0 %v7156
      %v7195 = vpop.f32.mrf.mxu0
      %v7196 = vadd.f32 0.0, %v7195
      %v7197 = vpop.f32.mrf.mxu0
      %v7198 = vpop.f32.mrf.mxu0
      %v7199 = vadd.f32 0.0, %v7198
      %v7200 = vpop.f32.mrf.mxu0
      %7201 = vmatprep.mubr.bf16.mxu0 0
      %7202 = vmatmul.mubr.bf16.gmra.mxu0 %v7159
      %v7203 = vpop.f32.mrf.mxu0
      %v7204 = vadd.f32 0.0, %v7203
      %v7205 = vpop.f32.mrf.mxu0
      %v7206 = vpop.f32.mrf.mxu0
      %v7207 = vadd.f32 0.0, %v7206
      %v7208 = vpop.f32.mrf.mxu0
      %7209 = vdwg.mxu0
      %7212 = vrot.lane.b32.xlu0 %v4250, 120
      %v7213 = vpop.permute.xlu0 %7212
      %7214 = vrot.lane.b32.xlu0 %v4251, 120
      %v7215 = vpop.permute.xlu0 %7214
      %v7219 = vsel %vm1542, %v6828, 0
      %v7222 = vsel %vm1542, %v6829, 0
      %7224 = vmatprep.subr.bf16.mxu0 0
      %7225 = vmatpush1.bf16.msra.mxu0 0
      %7226 = vmatprep.subr.bf16.mxu0 0
      %7227 = vmatpush1.bf16.msra.mxu0 0
      %7228 = vmatprep.subr.bf16.mxu0 0
      %7229 = vmatpush1.bf16.msra.mxu0 0
      %7230 = vmatprep.subr.bf16.mxu0 0
      %7231 = vmatpush1.bf16.msra.mxu0 0
      %7232 = vmatprep.subr.bf16.mxu0 0
      %7233 = vmatpush1.bf16.msra.mxu0 0
      %7234 = vmatprep.subr.bf16.mxu0 0
      %7235 = vmatpush1.bf16.msra.mxu0 0
      %7236 = vmatprep.subr.bf16.mxu0 0
      %7237 = vmatpush1.bf16.msra.mxu0 %v7215
      %7238 = vmatprep.subr.bf16.mxu0 0
      %7239 = vmatpush1.bf16.msra.mxu0 %v7213
      %7240 = vmatprep.subr.bf16.mxu0 0
      %7241 = vmatpush2.bf16.msra.mxu0 0
      %7242 = vmatprep.subr.bf16.mxu0 0
      %7243 = vmatpush2.bf16.msra.mxu0 0
      %7244 = vmatprep.subr.bf16.mxu0 0
      %7245 = vmatpush2.bf16.msra.mxu0 0
      %7246 = vmatprep.subr.bf16.mxu0 0
      %7247 = vmatpush2.bf16.msra.mxu0 0
      %7248 = vmatprep.subr.bf16.mxu0 0
      %7249 = vmatpush2.bf16.msra.mxu0 0
      %7250 = vmatprep.subr.bf16.mxu0 0
      %7251 = vmatpush2.bf16.msra.mxu0 0
      %7252 = vmatprep.subr.bf16.mxu0 0
      %7253 = vmatpush2.bf16.msra.mxu0 0
      %7254 = vmatprep.subr.bf16.mxu0 0
      %7255 = vmatpush2.bf16.msra.mxu0 0
      %7256 = vmatprep.mubr.bf16.mxu0 0
      %7257 = vmatmul.mubr.bf16.gmra.mxu0 %v7219
      %v7258 = vpop.f32.mrf.mxu0
      %v7259 = vadd.f32 0.0, %v7258
      %v7260 = vpop.f32.mrf.mxu0
      %v7261 = vpop.f32.mrf.mxu0
      %v7262 = vadd.f32 0.0, %v7261
      %v7263 = vpop.f32.mrf.mxu0
      %7264 = vmatprep.mubr.bf16.mxu0 0
      %7265 = vmatmul.mubr.bf16.gmra.mxu0 %v7222
      %v7266 = vpop.f32.mrf.mxu0
      %v7267 = vadd.f32 0.0, %v7266
      %v7268 = vpop.f32.mrf.mxu0
      %v7269 = vpop.f32.mrf.mxu0
      %v7270 = vadd.f32 0.0, %v7269
      %v7271 = vpop.f32.mrf.mxu0
      %7272 = vdwg.mxu0
      %7275 = vrot.lane.b32.xlu0 %v4252, 120
      %v7276 = vpop.permute.xlu0 %7275
      %7277 = vrot.lane.b32.xlu0 %v4253, 120
      %v7278 = vpop.permute.xlu0 %7277
      %v7282 = vsel %vm1542, %v6830, 0
      %v7285 = vsel %vm1542, %v6831, 0
      %7287 = vmatprep.subr.bf16.mxu0 0
      %7288 = vmatpush1.bf16.msra.mxu0 0
      %7289 = vmatprep.subr.bf16.mxu0 0
      %7290 = vmatpush1.bf16.msra.mxu0 0
      %7291 = vmatprep.subr.bf16.mxu0 0
      %7292 = vmatpush1.bf16.msra.mxu0 0
      %7293 = vmatprep.subr.bf16.mxu0 0
      %7294 = vmatpush1.bf16.msra.mxu0 0
      %7295 = vmatprep.subr.bf16.mxu0 0
      %7296 = vmatpush1.bf16.msra.mxu0 0
      %7297 = vmatprep.subr.bf16.mxu0 0
      %7298 = vmatpush1.bf16.msra.mxu0 0
      %7299 = vmatprep.subr.bf16.mxu0 0
      %7300 = vmatpush1.bf16.msra.mxu0 %v7278
      %7301 = vmatprep.subr.bf16.mxu0 0
      %7302 = vmatpush1.bf16.msra.mxu0 %v7276
      %7303 = vmatprep.subr.bf16.mxu0 0
      %7304 = vmatpush2.bf16.msra.mxu0 0
      %7305 = vmatprep.subr.bf16.mxu0 0
      %7306 = vmatpush2.bf16.msra.mxu0 0
      %7307 = vmatprep.subr.bf16.mxu0 0
      %7308 = vmatpush2.bf16.msra.mxu0 0
      %7309 = vmatprep.subr.bf16.mxu0 0
      %7310 = vmatpush2.bf16.msra.mxu0 0
      %7311 = vmatprep.subr.bf16.mxu0 0
      %7312 = vmatpush2.bf16.msra.mxu0 0
      %7313 = vmatprep.subr.bf16.mxu0 0
      %7314 = vmatpush2.bf16.msra.mxu0 0
      %7315 = vmatprep.subr.bf16.mxu0 0
      %7316 = vmatpush2.bf16.msra.mxu0 0
      %7317 = vmatprep.subr.bf16.mxu0 0
      %7318 = vmatpush2.bf16.msra.mxu0 0
      %7319 = vmatprep.mubr.bf16.mxu0 0
      %7320 = vmatmul.mubr.bf16.gmra.mxu0 %v7282
      %v7321 = vpop.f32.mrf.mxu0
      %v7322 = vadd.f32 0.0, %v7321
      %v7323 = vpop.f32.mrf.mxu0
      %v7324 = vpop.f32.mrf.mxu0
      %v7325 = vadd.f32 0.0, %v7324
      %v7326 = vpop.f32.mrf.mxu0
      %7327 = vmatprep.mubr.bf16.mxu0 0
      %7328 = vmatmul.mubr.bf16.gmra.mxu0 %v7285
      %v7329 = vpop.f32.mrf.mxu0
      %v7330 = vadd.f32 0.0, %v7329
      %v7331 = vpop.f32.mrf.mxu0
      %v7332 = vpop.f32.mrf.mxu0
      %v7333 = vadd.f32 0.0, %v7332
      %v7334 = vpop.f32.mrf.mxu0
      %7335 = vdwg.mxu0
      %7368 = vrot.lane.b32.xlu0 %v6881, 8
      %v7369 = vpop.permute.xlu0 %7368
      %7370 = vrot.lane.b32.xlu0 %v6884, 8
      %v7371 = vpop.permute.xlu0 %7370
      %7372 = vrot.lane.b32.xlu0 %v6889, 8
      %v7373 = vpop.permute.xlu0 %7372
      %7374 = vrot.lane.b32.xlu0 %v6892, 8
      %v7375 = vpop.permute.xlu0 %7374
      %7376 = vrot.lane.b32.xlu0 %v6944, 8
      %v7377 = vpop.permute.xlu0 %7376
      %7378 = vrot.lane.b32.xlu0 %v6947, 8
      %v7379 = vpop.permute.xlu0 %7378
      %7380 = vrot.lane.b32.xlu0 %v6952, 8
      %v7381 = vpop.permute.xlu0 %7380
      %7382 = vrot.lane.b32.xlu0 %v6955, 8
      %v7383 = vpop.permute.xlu0 %7382
      %7384 = vrot.lane.b32.xlu0 %v7007, 8
      %v7385 = vpop.permute.xlu0 %7384
      %7386 = vrot.lane.b32.xlu0 %v7010, 8
      %v7387 = vpop.permute.xlu0 %7386
      %7388 = vrot.lane.b32.xlu0 %v7015, 8
      %v7389 = vpop.permute.xlu0 %7388
      %7390 = vrot.lane.b32.xlu0 %v7018, 8
      %v7391 = vpop.permute.xlu0 %7390
      %7392 = vrot.lane.b32.xlu0 %v7070, 8
      %v7393 = vpop.permute.xlu0 %7392
      %7394 = vrot.lane.b32.xlu0 %v7073, 8
      %v7395 = vpop.permute.xlu0 %7394
      %7396 = vrot.lane.b32.xlu0 %v7078, 8
      %v7397 = vpop.permute.xlu0 %7396
      %7398 = vrot.lane.b32.xlu0 %v7081, 8
      %v7399 = vpop.permute.xlu0 %7398
      %7400 = vrot.lane.b32.xlu0 %v7133, 8
      %v7401 = vpop.permute.xlu0 %7400
      %7402 = vrot.lane.b32.xlu0 %v7136, 8
      %v7403 = vpop.permute.xlu0 %7402
      %7404 = vrot.lane.b32.xlu0 %v7141, 8
      %v7405 = vpop.permute.xlu0 %7404
      %7406 = vrot.lane.b32.xlu0 %v7144, 8
      %v7407 = vpop.permute.xlu0 %7406
      %7408 = vrot.lane.b32.xlu0 %v7196, 8
      %v7409 = vpop.permute.xlu0 %7408
      %7410 = vrot.lane.b32.xlu0 %v7199, 8
      %v7411 = vpop.permute.xlu0 %7410
      %7412 = vrot.lane.b32.xlu0 %v7204, 8
      %v7413 = vpop.permute.xlu0 %7412
      %7414 = vrot.lane.b32.xlu0 %v7207, 8
      %v7415 = vpop.permute.xlu0 %7414
      %7416 = vrot.lane.b32.xlu0 %v7259, 8
      %v7417 = vpop.permute.xlu0 %7416
      %7418 = vrot.lane.b32.xlu0 %v7262, 8
      %v7419 = vpop.permute.xlu0 %7418
      %7420 = vrot.lane.b32.xlu0 %v7267, 8
      %v7421 = vpop.permute.xlu0 %7420
      %7422 = vrot.lane.b32.xlu0 %v7270, 8
      %v7423 = vpop.permute.xlu0 %7422
      %7424 = vrot.lane.b32.xlu0 %v7322, 8
      %v7425 = vpop.permute.xlu0 %7424
      %7426 = vrot.lane.b32.xlu0 %v7325, 8
      %v7427 = vpop.permute.xlu0 %7426
      %7428 = vrot.lane.b32.xlu0 %v7330, 8
      %v7429 = vpop.permute.xlu0 %7428
      %7430 = vrot.lane.b32.xlu0 %v7333, 8
      %v7431 = vpop.permute.xlu0 %7430
      %v7464 = vsel %vm3863, %v5649, %v7369
      %v7465 = vsel %vm3863, %v5652, %v7371
      %v7466 = vsel %vm3863, %v5657, %v7373
      %v7467 = vsel %vm3863, %v5660, %v7375
      %v7468 = vsel %vm3863, %v5704, %v7377
      %v7469 = vsel %vm3863, %v5707, %v7379
      %v7470 = vsel %vm3863, %v5712, %v7381
      %v7471 = vsel %vm3863, %v5715, %v7383
      %v7472 = vsel %vm3863, %v5759, %v7385
      %v7473 = vsel %vm3863, %v5762, %v7387
      %v7474 = vsel %vm3863, %v5767, %v7389
      %v7475 = vsel %vm3863, %v5770, %v7391
      %v7476 = vsel %vm3863, %v5814, %v7393
      %v7477 = vsel %vm3863, %v5817, %v7395
      %v7478 = vsel %vm3863, %v5822, %v7397
      %v7479 = vsel %vm3863, %v5825, %v7399
      %v7480 = vsel %vm3863, %v5869, %v7401
      %v7481 = vsel %vm3863, %v5872, %v7403
      %v7482 = vsel %vm3863, %v5877, %v7405
      %v7483 = vsel %vm3863, %v5880, %v7407
      %v7484 = vsel %vm3863, %v5924, %v7409
      %v7485 = vsel %vm3863, %v5927, %v7411
      %v7486 = vsel %vm3863, %v5932, %v7413
      %v7487 = vsel %vm3863, %v5935, %v7415
      %v7488 = vsel %vm3863, %v5979, %v7417
      %v7489 = vsel %vm3863, %v5982, %v7419
      %v7490 = vsel %vm3863, %v5987, %v7421
      %v7491 = vsel %vm3863, %v5990, %v7423
      %v7492 = vsel %vm3863, %v6034, %v7425
      %v7493 = vsel %vm3863, %v6037, %v7427
      %v7494 = vsel %vm3863, %v6042, %v7429
      %v7495 = vsel %vm3863, %v6045, %v7431
      %v7496 = vlaneseq
      %v7497 = vshrl.u32 %v7496, 7
      %v7498 = vsub.s32 0, %v7497
      %v7499 = vrot.slane %v4005, %v7498
      %v7500 = vmul.f32 %v7464, %v7499
      %v7501 = vmul.f32 %v7465, %v7499
      %v7502 = vmul.f32 %v7466, %v7499
      %v7503 = vmul.f32 %v7467, %v7499
      %v7504 = vmul.f32 %v7468, %v7499
      %v7505 = vmul.f32 %v7469, %v7499
      %v7506 = vmul.f32 %v7470, %v7499
      %v7507 = vmul.f32 %v7471, %v7499
      %v7508 = vmul.f32 %v7472, %v7499
      %v7509 = vmul.f32 %v7473, %v7499
      %v7510 = vmul.f32 %v7474, %v7499
      %v7511 = vmul.f32 %v7475, %v7499
      %v7512 = vmul.f32 %v7476, %v7499
      %v7513 = vmul.f32 %v7477, %v7499
      %v7514 = vmul.f32 %v7478, %v7499
      %v7515 = vmul.f32 %v7479, %v7499
      %v7516 = vmul.f32 %v7480, %v7499
      %v7517 = vmul.f32 %v7481, %v7499
      %v7518 = vmul.f32 %v7482, %v7499
      %v7519 = vmul.f32 %v7483, %v7499
      %v7520 = vmul.f32 %v7484, %v7499
      %v7521 = vmul.f32 %v7485, %v7499
      %v7522 = vmul.f32 %v7486, %v7499
      %v7523 = vmul.f32 %v7487, %v7499
      %v7524 = vmul.f32 %v7488, %v7499
      %v7525 = vmul.f32 %v7489, %v7499
      %v7526 = vmul.f32 %v7490, %v7499
      %v7527 = vmul.f32 %v7491, %v7499
      %v7528 = vmul.f32 %v7492, %v7499
      %v7529 = vmul.f32 %v7493, %v7499
      %v7530 = vmul.f32 %v7494, %v7499
      %v7531 = vmul.f32 %v7495, %v7499
      %v7532 = vlaneseq
      %v7533 = vshrl.u32 %v7532, 7
      %v7534 = vsub.s32 0, %v7533
      %v7535 = vrot.slane %v4006, %v7534
      %v7536 = vadd.f32 %v7500, %v7535
      %v7537 = vadd.f32 %v7501, %v7535
      %v7538 = vadd.f32 %v7502, %v7535
      %v7539 = vadd.f32 %v7503, %v7535
      %v7540 = vadd.f32 %v7504, %v7535
      %v7541 = vadd.f32 %v7505, %v7535
      %v7542 = vadd.f32 %v7506, %v7535
      %v7543 = vadd.f32 %v7507, %v7535
      %v7544 = vadd.f32 %v7508, %v7535
      %v7545 = vadd.f32 %v7509, %v7535
      %v7546 = vadd.f32 %v7510, %v7535
      %v7547 = vadd.f32 %v7511, %v7535
      %v7548 = vadd.f32 %v7512, %v7535
      %v7549 = vadd.f32 %v7513, %v7535
      %v7550 = vadd.f32 %v7514, %v7535
      %v7551 = vadd.f32 %v7515, %v7535
      %v7552 = vadd.f32 %v7516, %v7535
      %v7553 = vadd.f32 %v7517, %v7535
      %v7554 = vadd.f32 %v7518, %v7535
      %v7555 = vadd.f32 %v7519, %v7535
      %v7556 = vadd.f32 %v7520, %v7535
      %v7557 = vadd.f32 %v7521, %v7535
      %v7558 = vadd.f32 %v7522, %v7535
      %v7559 = vadd.f32 %v7523, %v7535
      %v7560 = vadd.f32 %v7524, %v7535
      %v7561 = vadd.f32 %v7525, %v7535
      %v7562 = vadd.f32 %v7526, %v7535
      %v7563 = vadd.f32 %v7527, %v7535
      %v7564 = vadd.f32 %v7528, %v7535
      %v7565 = vadd.f32 %v7529, %v7535
      %v7566 = vadd.f32 %v7530, %v7535
      %v7567 = vadd.f32 %v7531, %v7535
      %v7568 = vmax.f32 %v7536, 0.0
      %v7569 = vmax.f32 %v7537, 0.0
      %v7570 = vmax.f32 %v7538, 0.0
      %v7571 = vmax.f32 %v7539, 0.0
      %v7572 = vmax.f32 %v7540, 0.0
      %v7573 = vmax.f32 %v7541, 0.0
      %v7574 = vmax.f32 %v7542, 0.0
      %v7575 = vmax.f32 %v7543, 0.0
      %v7576 = vmax.f32 %v7544, 0.0
      %v7577 = vmax.f32 %v7545, 0.0
      %v7578 = vmax.f32 %v7546, 0.0
      %v7579 = vmax.f32 %v7547, 0.0
      %v7580 = vmax.f32 %v7548, 0.0
      %v7581 = vmax.f32 %v7549, 0.0
      %v7582 = vmax.f32 %v7550, 0.0
      %v7583 = vmax.f32 %v7551, 0.0
      %v7584 = vmax.f32 %v7552, 0.0
      %v7585 = vmax.f32 %v7553, 0.0
      %v7586 = vmax.f32 %v7554, 0.0
      %v7587 = vmax.f32 %v7555, 0.0
      %v7588 = vmax.f32 %v7556, 0.0
      %v7589 = vmax.f32 %v7557, 0.0
      %v7590 = vmax.f32 %v7558, 0.0
      %v7591 = vmax.f32 %v7559, 0.0
      %v7592 = vmax.f32 %v7560, 0.0
      %v7593 = vmax.f32 %v7561, 0.0
      %v7594 = vmax.f32 %v7562, 0.0
      %v7595 = vmax.f32 %v7563, 0.0
      %v7596 = vmax.f32 %v7564, 0.0
      %v7597 = vmax.f32 %v7565, 0.0
      %v7598 = vmax.f32 %v7566, 0.0
      %v7599 = vmax.f32 %v7567, 0.0
      %v7600 = vld [vmem:[%s2 + $0x30] sm:$0xf]
      %v7601 = vld [vmem:[%s2 + $0x34] sm:$0xf]
      %v7602 = vld [vmem:[%s2 + $0x38] sm:$0x1]
      %v7603 = vld [vmem:[%s2 + $0x40] sm:$0x3]
      %v7604 = vld [vmem:[%s3 + $0x10] sm:$0x1]
      %v7605 = vld [vmem:[%s3 + $0x11] sm:$0x1]
      %v7606 = vpack.c.bf16 %v7569, %v7568
      %v7607 = vpack.c.bf16 %v7571, %v7570
      %v7608 = vpack.c.bf16 %v7573, %v7572
      %v7609 = vpack.c.bf16 %v7575, %v7574
      %v7610 = vpack.c.bf16 %v7577, %v7576
      %v7611 = vpack.c.bf16 %v7579, %v7578
      %v7612 = vpack.c.bf16 %v7581, %v7580
      %v7613 = vpack.c.bf16 %v7583, %v7582
      %v7614 = vpack.c.bf16 %v7585, %v7584
      %v7615 = vpack.c.bf16 %v7587, %v7586
      %v7616 = vpack.c.bf16 %v7589, %v7588
      %v7617 = vpack.c.bf16 %v7591, %v7590
      %v7618 = vpack.c.bf16 %v7593, %v7592
      %v7619 = vpack.c.bf16 %v7595, %v7594
      %v7620 = vpack.c.bf16 %v7597, %v7596
      %v7621 = vpack.c.bf16 %v7599, %v7598
      %v7624 = vunpack.c.l.b16 %v7600
      %v7625 = vunpack.c.l.b16 %v7601
      %v7626 = vpack.c.b16 %v7625, %v7624
      %v7629 = vsel %vm426, %v7606, 0
      %v7632 = vsel %vm426, %v7607, 0
      %v7635 = vsel %vm426, %v7608, 0
      %v7638 = vsel %vm426, %v7609, 0
      %v7641 = vsel %vm426, %v7610, 0
      %v7644 = vsel %vm426, %v7611, 0
      %v7647 = vsel %vm426, %v7612, 0
      %v7650 = vsel %vm426, %v7613, 0
      %v7653 = vsel %vm426, %v7614, 0
      %v7656 = vsel %vm426, %v7615, 0
      %v7659 = vsel %vm426, %v7616, 0
      %v7662 = vsel %vm426, %v7617, 0
      %v7665 = vsel %vm426, %v7618, 0
      %v7668 = vsel %vm426, %v7619, 0
      %v7671 = vsel %vm426, %v7620, 0
      %v7674 = vsel %vm426, %v7621, 0
      %7676 = vmatprep.subr.bf16.mxu0 0
      %7677 = vmatpush1.bf16.msra.mxu0 0
      %7678 = vmatprep.subr.bf16.mxu0 0
      %7679 = vmatpush1.bf16.msra.mxu0 0
      %7680 = vmatprep.subr.bf16.mxu0 0
      %7681 = vmatpush1.bf16.msra.mxu0 0
      %7682 = vmatprep.subr.bf16.mxu0 0
      %7683 = vmatpush1.bf16.msra.mxu0 0
      %7684 = vmatprep.subr.bf16.mxu0 0
      %7685 = vmatpush1.bf16.msra.mxu0 0
      %7686 = vmatprep.subr.bf16.mxu0 0
      %7687 = vmatpush1.bf16.msra.mxu0 0
      %7688 = vmatprep.subr.bf16.mxu0 0
      %7689 = vmatpush1.bf16.msra.mxu0 0
      %7690 = vmatprep.subr.bf16.mxu0 0
      %7691 = vmatpush1.bf16.msra.mxu0 %v7626
      %7692 = vmatprep.subr.bf16.mxu0 0
      %7693 = vmatpush2.bf16.msra.mxu0 0
      %7694 = vmatprep.subr.bf16.mxu0 0
      %7695 = vmatpush2.bf16.msra.mxu0 0
      %7696 = vmatprep.subr.bf16.mxu0 0
      %7697 = vmatpush2.bf16.msra.mxu0 0
      %7698 = vmatprep.subr.bf16.mxu0 0
      %7699 = vmatpush2.bf16.msra.mxu0 0
      %7700 = vmatprep.subr.bf16.mxu0 0
      %7701 = vmatpush2.bf16.msra.mxu0 0
      %7702 = vmatprep.subr.bf16.mxu0 0
      %7703 = vmatpush2.bf16.msra.mxu0 0
      %7704 = vmatprep.subr.bf16.mxu0 0
      %7705 = vmatpush2.bf16.msra.mxu0 0
      %7706 = vmatprep.subr.bf16.mxu0 0
      %7707 = vmatpush2.bf16.msra.mxu0 0
      %7708 = vmatprep.mubr.bf16.mxu0 0
      %7709 = vmatmul.mubr.bf16.gmra.mxu0 %v7629
      %v7710 = vpop.f32.mrf.mxu0
      %v7711 = vadd.f32 0.0, %v7710
      %v7712 = vpop.f32.mrf.mxu0
      %v7713 = vpop.f32.mrf.mxu0
      %v7714 = vadd.f32 0.0, %v7713
      %v7715 = vpop.f32.mrf.mxu0
      %7716 = vmatprep.mubr.bf16.mxu0 0
      %7717 = vmatmul.mubr.bf16.gmra.mxu0 %v7632
      %v7718 = vpop.f32.mrf.mxu0
      %v7719 = vadd.f32 0.0, %v7718
      %v7720 = vpop.f32.mrf.mxu0
      %v7721 = vpop.f32.mrf.mxu0
      %v7722 = vadd.f32 0.0, %v7721
      %v7723 = vpop.f32.mrf.mxu0
      %7724 = vmatprep.mubr.bf16.mxu0 0
      %7725 = vmatmul.mubr.bf16.gmra.mxu0 %v7635
      %v7726 = vpop.f32.mrf.mxu0
      %v7727 = vadd.f32 0.0, %v7726
      %v7728 = vpop.f32.mrf.mxu0
      %v7729 = vpop.f32.mrf.mxu0
      %v7730 = vadd.f32 0.0, %v7729
      %v7731 = vpop.f32.mrf.mxu0
      %7732 = vmatprep.mubr.bf16.mxu0 0
      %7733 = vmatmul.mubr.bf16.gmra.mxu0 %v7638
      %v7734 = vpop.f32.mrf.mxu0
      %v7735 = vadd.f32 0.0, %v7734
      %v7736 = vpop.f32.mrf.mxu0
      %v7737 = vpop.f32.mrf.mxu0
      %v7738 = vadd.f32 0.0, %v7737
      %v7739 = vpop.f32.mrf.mxu0
      %7740 = vmatprep.mubr.bf16.mxu0 0
      %7741 = vmatmul.mubr.bf16.gmra.mxu0 %v7641
      %v7742 = vpop.f32.mrf.mxu0
      %v7743 = vadd.f32 0.0, %v7742
      %v7744 = vpop.f32.mrf.mxu0
      %v7745 = vpop.f32.mrf.mxu0
      %v7746 = vadd.f32 0.0, %v7745
      %v7747 = vpop.f32.mrf.mxu0
      %7748 = vmatprep.mubr.bf16.mxu0 0
      %7749 = vmatmul.mubr.bf16.gmra.mxu0 %v7644
      %v7750 = vpop.f32.mrf.mxu0
      %v7751 = vadd.f32 0.0, %v7750
      %v7752 = vpop.f32.mrf.mxu0
      %v7753 = vpop.f32.mrf.mxu0
      %v7754 = vadd.f32 0.0, %v7753
      %v7755 = vpop.f32.mrf.mxu0
      %7756 = vmatprep.mubr.bf16.mxu0 0
      %7757 = vmatmul.mubr.bf16.gmra.mxu0 %v7647
      %v7758 = vpop.f32.mrf.mxu0
      %v7759 = vadd.f32 0.0, %v7758
      %v7760 = vpop.f32.mrf.mxu0
      %v7761 = vpop.f32.mrf.mxu0
      %v7762 = vadd.f32 0.0, %v7761
      %v7763 = vpop.f32.mrf.mxu0
      %7764 = vmatprep.mubr.bf16.mxu0 0
      %7765 = vmatmul.mubr.bf16.gmra.mxu0 %v7650
      %v7766 = vpop.f32.mrf.mxu0
      %v7767 = vadd.f32 0.0, %v7766
      %v7768 = vpop.f32.mrf.mxu0
      %v7769 = vpop.f32.mrf.mxu0
      %v7770 = vadd.f32 0.0, %v7769
      %v7771 = vpop.f32.mrf.mxu0
      %7772 = vmatprep.mubr.bf16.mxu0 0
      %7773 = vmatmul.mubr.bf16.gmra.mxu0 %v7653
      %v7774 = vpop.f32.mrf.mxu0
      %v7775 = vadd.f32 0.0, %v7774
      %v7776 = vpop.f32.mrf.mxu0
      %v7777 = vpop.f32.mrf.mxu0
      %v7778 = vadd.f32 0.0, %v7777
      %v7779 = vpop.f32.mrf.mxu0
      %7780 = vmatprep.mubr.bf16.mxu0 0
      %7781 = vmatmul.mubr.bf16.gmra.mxu0 %v7656
      %v7782 = vpop.f32.mrf.mxu0
      %v7783 = vadd.f32 0.0, %v7782
      %v7784 = vpop.f32.mrf.mxu0
      %v7785 = vpop.f32.mrf.mxu0
      %v7786 = vadd.f32 0.0, %v7785
      %v7787 = vpop.f32.mrf.mxu0
      %7788 = vmatprep.mubr.bf16.mxu0 0
      %7789 = vmatmul.mubr.bf16.gmra.mxu0 %v7659
      %v7790 = vpop.f32.mrf.mxu0
      %v7791 = vadd.f32 0.0, %v7790
      %v7792 = vpop.f32.mrf.mxu0
      %v7793 = vpop.f32.mrf.mxu0
      %v7794 = vadd.f32 0.0, %v7793
      %v7795 = vpop.f32.mrf.mxu0
      %7796 = vmatprep.mubr.bf16.mxu0 0
      %7797 = vmatmul.mubr.bf16.gmra.mxu0 %v7662
      %v7798 = vpop.f32.mrf.mxu0
      %v7799 = vadd.f32 0.0, %v7798
      %v7800 = vpop.f32.mrf.mxu0
      %v7801 = vpop.f32.mrf.mxu0
      %v7802 = vadd.f32 0.0, %v7801
      %v7803 = vpop.f32.mrf.mxu0
      %7804 = vmatprep.mubr.bf16.mxu0 0
      %7805 = vmatmul.mubr.bf16.gmra.mxu0 %v7665
      %v7806 = vpop.f32.mrf.mxu0
      %v7807 = vadd.f32 0.0, %v7806
      %v7808 = vpop.f32.mrf.mxu0
      %v7809 = vpop.f32.mrf.mxu0
      %v7810 = vadd.f32 0.0, %v7809
      %v7811 = vpop.f32.mrf.mxu0
      %7812 = vmatprep.mubr.bf16.mxu0 0
      %7813 = vmatmul.mubr.bf16.gmra.mxu0 %v7668
      %v7814 = vpop.f32.mrf.mxu0
      %v7815 = vadd.f32 0.0, %v7814
      %v7816 = vpop.f32.mrf.mxu0
      %v7817 = vpop.f32.mrf.mxu0
      %v7818 = vadd.f32 0.0, %v7817
      %v7819 = vpop.f32.mrf.mxu0
      %7820 = vmatprep.mubr.bf16.mxu0 0
      %7821 = vmatmul.mubr.bf16.gmra.mxu0 %v7671
      %v7822 = vpop.f32.mrf.mxu0
      %v7823 = vadd.f32 0.0, %v7822
      %v7824 = vpop.f32.mrf.mxu0
      %v7825 = vpop.f32.mrf.mxu0
      %v7826 = vadd.f32 0.0, %v7825
      %v7827 = vpop.f32.mrf.mxu0
      %7828 = vmatprep.mubr.bf16.mxu0 0
      %7829 = vmatmul.mubr.bf16.gmra.mxu0 %v7674
      %v7830 = vpop.f32.mrf.mxu0
      %v7831 = vadd.f32 0.0, %v7830
      %v7832 = vpop.f32.mrf.mxu0
      %v7833 = vpop.f32.mrf.mxu0
      %v7834 = vadd.f32 0.0, %v7833
      %v7835 = vpop.f32.mrf.mxu0
      %7836 = vdwg.mxu0
      %v7837 = vpack.c.bf16 %v7714, %v7711
      %v7838 = vpack.c.bf16 %v7722, %v7719
      %v7839 = vpack.c.bf16 %v7730, %v7727
      %v7840 = vpack.c.bf16 %v7738, %v7735
      %v7841 = vpack.c.bf16 %v7746, %v7743
      %v7842 = vpack.c.bf16 %v7754, %v7751
      %v7843 = vpack.c.bf16 %v7762, %v7759
      %v7844 = vpack.c.bf16 %v7770, %v7767
      %v7845 = vpack.c.bf16 %v7778, %v7775
      %v7846 = vpack.c.bf16 %v7786, %v7783
      %v7847 = vpack.c.bf16 %v7794, %v7791
      %v7848 = vpack.c.bf16 %v7802, %v7799
      %v7849 = vpack.c.bf16 %v7810, %v7807
      %v7850 = vpack.c.bf16 %v7818, %v7815
      %v7851 = vpack.c.bf16 %v7826, %v7823
      %v7852 = vpack.c.bf16 %v7834, %v7831
      %vm7853 = vcmask 31744
      %v7855 = vsel %vm7853, %v7837, 0
      %v7858 = vsel %vm7853, %v7838, 0
      %v7861 = vsel %vm7853, %v7839, 0
      %v7864 = vsel %vm7853, %v7840, 0
      %v7867 = vsel %vm7853, %v7841, 0
      %v7870 = vsel %vm7853, %v7842, 0
      %v7873 = vsel %vm7853, %v7843, 0
      %v7876 = vsel %vm7853, %v7844, 0
      %v7879 = vsel %vm7853, %v7845, 0
      %v7882 = vsel %vm7853, %v7846, 0
      %v7885 = vsel %vm7853, %v7847, 0
      %v7888 = vsel %vm7853, %v7848, 0
      %v7891 = vsel %vm7853, %v7849, 0
      %v7894 = vsel %vm7853, %v7850, 0
      %v7897 = vsel %vm7853, %v7851, 0
      %v7900 = vsel %vm7853, %v7852, 0
      %vm7902 = vcmask 1041408
      %v7904 = vsel %vm7902, %v7603, 0
      %7906 = vmatprep.subr.bf16.mxu0 0
      %7907 = vmatpush1.bf16.msra.mxu0 0
      %7908 = vmatprep.subr.bf16.mxu0 0
      %7909 = vmatpush1.bf16.msra.mxu0 0
      %7910 = vmatprep.subr.bf16.mxu0 0
      %7911 = vmatpush1.bf16.msra.mxu0 0
      %7912 = vmatprep.subr.bf16.mxu0 0
      %7913 = vmatpush1.bf16.msra.mxu0 0
      %7914 = vmatprep.subr.bf16.mxu0 0
      %7915 = vmatpush1.bf16.msra.mxu0 0
      %7916 = vmatprep.subr.bf16.mxu0 0
      %7917 = vmatpush1.bf16.msra.mxu0 0
      %7918 = vmatprep.subr.bf16.mxu0 0
      %7919 = vmatpush1.bf16.msra.mxu0 0
      %7920 = vmatprep.subr.bf16.mxu0 0
      %7921 = vmatpush1.bf16.msra.mxu0 %v7904
      %7922 = vmatprep.subr.bf16.mxu0 0
      %7923 = vmatpush2.bf16.msra.mxu0 0
      %7924 = vmatprep.subr.bf16.mxu0 0
      %7925 = vmatpush2.bf16.msra.mxu0 0
      %7926 = vmatprep.subr.bf16.mxu0 0
      %7927 = vmatpush2.bf16.msra.mxu0 0
      %7928 = vmatprep.subr.bf16.mxu0 0
      %7929 = vmatpush2.bf16.msra.mxu0 0
      %7930 = vmatprep.subr.bf16.mxu0 0
      %7931 = vmatpush2.bf16.msra.mxu0 0
      %7932 = vmatprep.subr.bf16.mxu0 0
      %7933 = vmatpush2.bf16.msra.mxu0 0
      %7934 = vmatprep.subr.bf16.mxu0 0
      %7935 = vmatpush2.bf16.msra.mxu0 0
      %7936 = vmatprep.subr.bf16.mxu0 0
      %7937 = vmatpush2.bf16.msra.mxu0 0
      %7938 = vmatprep.mubr.bf16.mxu0 0
      %7939 = vmatmul.mubr.bf16.gmra.mxu0 %v7855
      %v7940 = vpop.f32.mrf.mxu0
      %v7941 = vadd.f32 0.0, %v7940
      %v7942 = vpop.f32.mrf.mxu0
      %v7943 = vpop.f32.mrf.mxu0
      %v7944 = vadd.f32 0.0, %v7943
      %v7945 = vpop.f32.mrf.mxu0
      %7946 = vmatprep.mubr.bf16.mxu0 0
      %7947 = vmatmul.mubr.bf16.gmra.mxu0 %v7858
      %v7948 = vpop.f32.mrf.mxu0
      %v7949 = vadd.f32 0.0, %v7948
      %v7950 = vpop.f32.mrf.mxu0
      %v7951 = vpop.f32.mrf.mxu0
      %v7952 = vadd.f32 0.0, %v7951
      %v7953 = vpop.f32.mrf.mxu0
      %7954 = vmatprep.mubr.bf16.mxu0 0
      %7955 = vmatmul.mubr.bf16.gmra.mxu0 %v7861
      %v7956 = vpop.f32.mrf.mxu0
      %v7957 = vadd.f32 0.0, %v7956
      %v7958 = vpop.f32.mrf.mxu0
      %v7959 = vpop.f32.mrf.mxu0
      %v7960 = vadd.f32 0.0, %v7959
      %v7961 = vpop.f32.mrf.mxu0
      %7962 = vmatprep.mubr.bf16.mxu0 0
      %7963 = vmatmul.mubr.bf16.gmra.mxu0 %v7864
      %v7964 = vpop.f32.mrf.mxu0
      %v7965 = vadd.f32 0.0, %v7964
      %v7966 = vpop.f32.mrf.mxu0
      %v7967 = vpop.f32.mrf.mxu0
      %v7968 = vadd.f32 0.0, %v7967
      %v7969 = vpop.f32.mrf.mxu0
      %7970 = vmatprep.mubr.bf16.mxu0 0
      %7971 = vmatmul.mubr.bf16.gmra.mxu0 %v7867
      %v7972 = vpop.f32.mrf.mxu0
      %v7973 = vadd.f32 0.0, %v7972
      %v7974 = vpop.f32.mrf.mxu0
      %v7975 = vpop.f32.mrf.mxu0
      %v7976 = vadd.f32 0.0, %v7975
      %v7977 = vpop.f32.mrf.mxu0
      %7978 = vmatprep.mubr.bf16.mxu0 0
      %7979 = vmatmul.mubr.bf16.gmra.mxu0 %v7870
      %v7980 = vpop.f32.mrf.mxu0
      %v7981 = vadd.f32 0.0, %v7980
      %v7982 = vpop.f32.mrf.mxu0
      %v7983 = vpop.f32.mrf.mxu0
      %v7984 = vadd.f32 0.0, %v7983
      %v7985 = vpop.f32.mrf.mxu0
      %7986 = vmatprep.mubr.bf16.mxu0 0
      %7987 = vmatmul.mubr.bf16.gmra.mxu0 %v7873
      %v7988 = vpop.f32.mrf.mxu0
      %v7989 = vadd.f32 0.0, %v7988
      %v7990 = vpop.f32.mrf.mxu0
      %v7991 = vpop.f32.mrf.mxu0
      %v7992 = vadd.f32 0.0, %v7991
      %v7993 = vpop.f32.mrf.mxu0
      %7994 = vmatprep.mubr.bf16.mxu0 0
      %7995 = vmatmul.mubr.bf16.gmra.mxu0 %v7876
      %v7996 = vpop.f32.mrf.mxu0
      %v7997 = vadd.f32 0.0, %v7996
      %v7998 = vpop.f32.mrf.mxu0
      %v7999 = vpop.f32.mrf.mxu0
      %v8000 = vadd.f32 0.0, %v7999
      %v8001 = vpop.f32.mrf.mxu0
      %8002 = vmatprep.mubr.bf16.mxu0 0
      %8003 = vmatmul.mubr.bf16.gmra.mxu0 %v7879
      %v8004 = vpop.f32.mrf.mxu0
      %v8005 = vadd.f32 0.0, %v8004
      %v8006 = vpop.f32.mrf.mxu0
      %v8007 = vpop.f32.mrf.mxu0
      %v8008 = vadd.f32 0.0, %v8007
      %v8009 = vpop.f32.mrf.mxu0
      %8010 = vmatprep.mubr.bf16.mxu0 0
      %8011 = vmatmul.mubr.bf16.gmra.mxu0 %v7882
      %v8012 = vpop.f32.mrf.mxu0
      %v8013 = vadd.f32 0.0, %v8012
      %v8014 = vpop.f32.mrf.mxu0
      %v8015 = vpop.f32.mrf.mxu0
      %v8016 = vadd.f32 0.0, %v8015
      %v8017 = vpop.f32.mrf.mxu0
      %8018 = vmatprep.mubr.bf16.mxu0 0
      %8019 = vmatmul.mubr.bf16.gmra.mxu0 %v7885
      %v8020 = vpop.f32.mrf.mxu0
      %v8021 = vadd.f32 0.0, %v8020
      %v8022 = vpop.f32.mrf.mxu0
      %v8023 = vpop.f32.mrf.mxu0
      %v8024 = vadd.f32 0.0, %v8023
      %v8025 = vpop.f32.mrf.mxu0
      %8026 = vmatprep.mubr.bf16.mxu0 0
      %8027 = vmatmul.mubr.bf16.gmra.mxu0 %v7888
      %v8028 = vpop.f32.mrf.mxu0
      %v8029 = vadd.f32 0.0, %v8028
      %v8030 = vpop.f32.mrf.mxu0
      %v8031 = vpop.f32.mrf.mxu0
      %v8032 = vadd.f32 0.0, %v8031
      %v8033 = vpop.f32.mrf.mxu0
      %8034 = vmatprep.mubr.bf16.mxu0 0
      %8035 = vmatmul.mubr.bf16.gmra.mxu0 %v7891
      %v8036 = vpop.f32.mrf.mxu0
      %v8037 = vadd.f32 0.0, %v8036
      %v8038 = vpop.f32.mrf.mxu0
      %v8039 = vpop.f32.mrf.mxu0
      %v8040 = vadd.f32 0.0, %v8039
      %v8041 = vpop.f32.mrf.mxu0
      %8042 = vmatprep.mubr.bf16.mxu0 0
      %8043 = vmatmul.mubr.bf16.gmra.mxu0 %v7894
      %v8044 = vpop.f32.mrf.mxu0
      %v8045 = vadd.f32 0.0, %v8044
      %v8046 = vpop.f32.mrf.mxu0
      %v8047 = vpop.f32.mrf.mxu0
      %v8048 = vadd.f32 0.0, %v8047
      %v8049 = vpop.f32.mrf.mxu0
      %8050 = vmatprep.mubr.bf16.mxu0 0
      %8051 = vmatmul.mubr.bf16.gmra.mxu0 %v7897
      %v8052 = vpop.f32.mrf.mxu0
      %v8053 = vadd.f32 0.0, %v8052
      %v8054 = vpop.f32.mrf.mxu0
      %v8055 = vpop.f32.mrf.mxu0
      %v8056 = vadd.f32 0.0, %v8055
      %v8057 = vpop.f32.mrf.mxu0
      %8058 = vmatprep.mubr.bf16.mxu0 0
      %8059 = vmatmul.mubr.bf16.gmra.mxu0 %v7900
      %v8060 = vpop.f32.mrf.mxu0
      %v8061 = vadd.f32 0.0, %v8060
      %v8062 = vpop.f32.mrf.mxu0
      %v8063 = vpop.f32.mrf.mxu0
      %v8064 = vadd.f32 0.0, %v8063
      %v8065 = vpop.f32.mrf.mxu0
      %8066 = vdwg.mxu0
      %v8068 = vsel %vm7853, %v7602, 0
      %8070 = vmatprep.subr.bf16.mxu0 0
      %8071 = vmatpush1.bf16.xpose.msra.mxu0 0
      %8072 = vmatprep.subr.bf16.mxu0 0
      %8073 = vmatpush1.bf16.xpose.msra.mxu0 0
      %8074 = vmatprep.subr.bf16.mxu0 0
      %8075 = vmatpush1.bf16.xpose.msra.mxu0 0
      %8076 = vmatprep.subr.bf16.mxu0 0
      %8077 = vmatpush1.bf16.xpose.msra.mxu0 0
      %8078 = vmatprep.subr.bf16.mxu0 0
      %8079 = vmatpush1.bf16.xpose.msra.mxu0 0
      %8080 = vmatprep.subr.bf16.mxu0 0
      %8081 = vmatpush1.bf16.xpose.msra.mxu0 0
      %8082 = vmatprep.subr.bf16.mxu0 0
      %8083 = vmatpush1.bf16.xpose.msra.mxu0 %v7858
      %8084 = vmatprep.subr.bf16.mxu0 0
      %8085 = vmatpush1.bf16.xpose.msra.mxu0 %v7855
      %8086 = vmatprep.subr.bf16.mxu0 0
      %8087 = vmatpush2.bf16.xpose.msra.mxu0 0
      %8088 = vmatprep.subr.bf16.mxu0 0
      %8089 = vmatpush2.bf16.xpose.msra.mxu0 0
      %8090 = vmatprep.subr.bf16.mxu0 0
      %8091 = vmatpush2.bf16.xpose.msra.mxu0 0
      %8092 = vmatprep.subr.bf16.mxu0 0
      %8093 = vmatpush2.bf16.xpose.msra.mxu0 0
      %8094 = vmatprep.subr.bf16.mxu0 0
      %8095 = vmatpush2.bf16.xpose.msra.mxu0 0
      %8096 = vmatprep.subr.bf16.mxu0 0
      %8097 = vmatpush2.bf16.xpose.msra.mxu0 0
      %8098 = vmatprep.subr.bf16.mxu0 0
      %8099 = vmatpush2.bf16.xpose.msra.mxu0 0
      %8100 = vmatprep.subr.bf16.mxu0 0
      %8101 = vmatpush2.bf16.xpose.msra.mxu0 0
      %8102 = vmatprep.mubr.bf16.mxu0 0
      %8103 = vmatmul.mubr.bf16.gmra.mxu0 %v8068
      %v8104 = vpop.f32.mrf.mxu0
      %v8105 = vadd.f32 0.0, %v8104
      %v8106 = vpop.f32.mrf.mxu0
      %v8107 = vpop.f32.mrf.mxu0
      %v8108 = vpop.f32.mrf.mxu0
      %8109 = vdwg.mxu0
      %8110 = vmatprep.subr.bf16.mxu0 0
      %8111 = vmatpush1.bf16.xpose.msra.mxu0 0
      %8112 = vmatprep.subr.bf16.mxu0 0
      %8113 = vmatpush1.bf16.xpose.msra.mxu0 0
      %8114 = vmatprep.subr.bf16.mxu0 0
      %8115 = vmatpush1.bf16.xpose.msra.mxu0 0
      %8116 = vmatprep.subr.bf16.mxu0 0
      %8117 = vmatpush1.bf16.xpose.msra.mxu0 0
      %8118 = vmatprep.subr.bf16.mxu0 0
      %8119 = vmatpush1.bf16.xpose.msra.mxu0 0
      %8120 = vmatprep.subr.bf16.mxu0 0
      %8121 = vmatpush1.bf16.xpose.msra.mxu0 0
      %8122 = vmatprep.subr.bf16.mxu0 0
      %8123 = vmatpush1.bf16.xpose.msra.mxu0 %v7864
      %8124 = vmatprep.subr.bf16.mxu0 0
      %8125 = vmatpush1.bf16.xpose.msra.mxu0 %v7861
      %8126 = vmatprep.subr.bf16.mxu0 0
      %8127 = vmatpush2.bf16.xpose.msra.mxu0 0
      %8128 = vmatprep.subr.bf16.mxu0 0
      %8129 = vmatpush2.bf16.xpose.msra.mxu0 0
      %8130 = vmatprep.subr.bf16.mxu0 0
      %8131 = vmatpush2.bf16.xpose.msra.mxu0 0
      %8132 = vmatprep.subr.bf16.mxu0 0
      %8133 = vmatpush2.bf16.xpose.msra.mxu0 0
      %8134 = vmatprep.subr.bf16.mxu0 0
      %8135 = vmatpush2.bf16.xpose.msra.mxu0 0
      %8136 = vmatprep.subr.bf16.mxu0 0
      %8137 = vmatpush2.bf16.xpose.msra.mxu0 0
      %8138 = vmatprep.subr.bf16.mxu0 0
      %8139 = vmatpush2.bf16.xpose.msra.mxu0 0
      %8140 = vmatprep.subr.bf16.mxu0 0
      %8141 = vmatpush2.bf16.xpose.msra.mxu0 0
      %8142 = vmatprep.mubr.bf16.mxu0 0
      %8143 = vmatmul.mubr.bf16.gmra.mxu0 %v8068
      %v8144 = vpop.f32.mrf.mxu0
      %v8145 = vadd.f32 0.0, %v8144
      %v8146 = vpop.f32.mrf.mxu0
      %v8147 = vpop.f32.mrf.mxu0
      %v8148 = vpop.f32.mrf.mxu0
      %8149 = vdwg.mxu0
      %8150 = vmatprep.subr.bf16.mxu0 0
      %8151 = vmatpush1.bf16.xpose.msra.mxu0 0
      %8152 = vmatprep.subr.bf16.mxu0 0
      %8153 = vmatpush1.bf16.xpose.msra.mxu0 0
      %8154 = vmatprep.subr.bf16.mxu0 0
      %8155 = vmatpush1.bf16.xpose.msra.mxu0 0
      %8156 = vmatprep.subr.bf16.mxu0 0
      %8157 = vmatpush1.bf16.xpose.msra.mxu0 0
      %8158 = vmatprep.subr.bf16.mxu0 0
      %8159 = vmatpush1.bf16.xpose.msra.mxu0 0
      %8160 = vmatprep.subr.bf16.mxu0 0
      %8161 = vmatpush1.bf16.xpose.msra.mxu0 0
      %8162 = vmatprep.subr.bf16.mxu0 0
      %8163 = vmatpush1.bf16.xpose.msra.mxu0 %v7870
      %8164 = vmatprep.subr.bf16.mxu0 0
      %8165 = vmatpush1.bf16.xpose.msra.mxu0 %v7867
      %8166 = vmatprep.subr.bf16.mxu0 0
      %8167 = vmatpush2.bf16.xpose.msra.mxu0 0
      %8168 = vmatprep.subr.bf16.mxu0 0
      %8169 = vmatpush2.bf16.xpose.msra.mxu0 0
      %8170 = vmatprep.subr.bf16.mxu0 0
      %8171 = vmatpush2.bf16.xpose.msra.mxu0 0
      %8172 = vmatprep.subr.bf16.mxu0 0
      %8173 = vmatpush2.bf16.xpose.msra.mxu0 0
      %8174 = vmatprep.subr.bf16.mxu0 0
      %8175 = vmatpush2.bf16.xpose.msra.mxu0 0
      %8176 = vmatprep.subr.bf16.mxu0 0
      %8177 = vmatpush2.bf16.xpose.msra.mxu0 0
      %8178 = vmatprep.subr.bf16.mxu0 0
      %8179 = vmatpush2.bf16.xpose.msra.mxu0 0
      %8180 = vmatprep.subr.bf16.mxu0 0
      %8181 = vmatpush2.bf16.xpose.msra.mxu0 0
      %8182 = vmatprep.mubr.bf16.mxu0 0
      %8183 = vmatmul.mubr.bf16.gmra.mxu0 %v8068
      %v8184 = vpop.f32.mrf.mxu0
      %v8185 = vadd.f32 0.0, %v8184
      %v8186 = vpop.f32.mrf.mxu0
      %v8187 = vpop.f32.mrf.mxu0
      %v8188 = vpop.f32.mrf.mxu0
      %8189 = vdwg.mxu0
      %8190 = vmatprep.subr.bf16.mxu0 0
      %8191 = vmatpush1.bf16.xpose.msra.mxu0 0
      %8192 = vmatprep.subr.bf16.mxu0 0
      %8193 = vmatpush1.bf16.xpose.msra.mxu0 0
      %8194 = vmatprep.subr.bf16.mxu0 0
      %8195 = vmatpush1.bf16.xpose.msra.mxu0 0
      %8196 = vmatprep.subr.bf16.mxu0 0
      %8197 = vmatpush1.bf16.xpose.msra.mxu0 0
      %8198 = vmatprep.subr.bf16.mxu0 0
      %8199 = vmatpush1.bf16.xpose.msra.mxu0 0
      %8200 = vmatprep.subr.bf16.mxu0 0
      %8201 = vmatpush1.bf16.xpose.msra.mxu0 0
      %8202 = vmatprep.subr.bf16.mxu0 0
      %8203 = vmatpush1.bf16.xpose.msra.mxu0 %v7876
      %8204 = vmatprep.subr.bf16.mxu0 0
      %8205 = vmatpush1.bf16.xpose.msra.mxu0 %v7873
      %8206 = vmatprep.subr.bf16.mxu0 0
      %8207 = vmatpush2.bf16.xpose.msra.mxu0 0
      %8208 = vmatprep.subr.bf16.mxu0 0
      %8209 = vmatpush2.bf16.xpose.msra.mxu0 0
      %8210 = vmatprep.subr.bf16.mxu0 0
      %8211 = vmatpush2.bf16.xpose.msra.mxu0 0
      %8212 = vmatprep.subr.bf16.mxu0 0
      %8213 = vmatpush2.bf16.xpose.msra.mxu0 0
      %8214 = vmatprep.subr.bf16.mxu0 0
      %8215 = vmatpush2.bf16.xpose.msra.mxu0 0
      %8216 = vmatprep.subr.bf16.mxu0 0
      %8217 = vmatpush2.bf16.xpose.msra.mxu0 0
      %8218 = vmatprep.subr.bf16.mxu0 0
      %8219 = vmatpush2.bf16.xpose.msra.mxu0 0
      %8220 = vmatprep.subr.bf16.mxu0 0
      %8221 = vmatpush2.bf16.xpose.msra.mxu0 0
      %8222 = vmatprep.mubr.bf16.mxu0 0
      %8223 = vmatmul.mubr.bf16.gmra.mxu0 %v8068
      %v8224 = vpop.f32.mrf.mxu0
      %v8225 = vadd.f32 0.0, %v8224
      %v8226 = vpop.f32.mrf.mxu0
      %v8227 = vpop.f32.mrf.mxu0
      %v8228 = vpop.f32.mrf.mxu0
      %8229 = vdwg.mxu0
      %8230 = vmatprep.subr.bf16.mxu0 0
      %8231 = vmatpush1.bf16.xpose.msra.mxu0 0
      %8232 = vmatprep.subr.bf16.mxu0 0
      %8233 = vmatpush1.bf16.xpose.msra.mxu0 0
      %8234 = vmatprep.subr.bf16.mxu0 0
      %8235 = vmatpush1.bf16.xpose.msra.mxu0 0
      %8236 = vmatprep.subr.bf16.mxu0 0
      %8237 = vmatpush1.bf16.xpose.msra.mxu0 0
      %8238 = vmatprep.subr.bf16.mxu0 0
      %8239 = vmatpush1.bf16.xpose.msra.mxu0 0
      %8240 = vmatprep.subr.bf16.mxu0 0
      %8241 = vmatpush1.bf16.xpose.msra.mxu0 0
      %8242 = vmatprep.subr.bf16.mxu0 0
      %8243 = vmatpush1.bf16.xpose.msra.mxu0 %v7882
      %8244 = vmatprep.subr.bf16.mxu0 0
      %8245 = vmatpush1.bf16.xpose.msra.mxu0 %v7879
      %8246 = vmatprep.subr.bf16.mxu0 0
      %8247 = vmatpush2.bf16.xpose.msra.mxu0 0
      %8248 = vmatprep.subr.bf16.mxu0 0
      %8249 = vmatpush2.bf16.xpose.msra.mxu0 0
      %8250 = vmatprep.subr.bf16.mxu0 0
      %8251 = vmatpush2.bf16.xpose.msra.mxu0 0
      %8252 = vmatprep.subr.bf16.mxu0 0
      %8253 = vmatpush2.bf16.xpose.msra.mxu0 0
      %8254 = vmatprep.subr.bf16.mxu0 0
      %8255 = vmatpush2.bf16.xpose.msra.mxu0 0
      %8256 = vmatprep.subr.bf16.mxu0 0
      %8257 = vmatpush2.bf16.xpose.msra.mxu0 0
      %8258 = vmatprep.subr.bf16.mxu0 0
      %8259 = vmatpush2.bf16.xpose.msra.mxu0 0
      %8260 = vmatprep.subr.bf16.mxu0 0
      %8261 = vmatpush2.bf16.xpose.msra.mxu0 0
      %8262 = vmatprep.mubr.bf16.mxu0 0
      %8263 = vmatmul.mubr.bf16.gmra.mxu0 %v8068
      %v8264 = vpop.f32.mrf.mxu0
      %v8265 = vadd.f32 0.0, %v8264
      %v8266 = vpop.f32.mrf.mxu0
      %v8267 = vpop.f32.mrf.mxu0
      %v8268 = vpop.f32.mrf.mxu0
      %8269 = vdwg.mxu0
      %8270 = vmatprep.subr.bf16.mxu0 0
      %8271 = vmatpush1.bf16.xpose.msra.mxu0 0
      %8272 = vmatprep.subr.bf16.mxu0 0
      %8273 = vmatpush1.bf16.xpose.msra.mxu0 0
      %8274 = vmatprep.subr.bf16.mxu0 0
      %8275 = vmatpush1.bf16.xpose.msra.mxu0 0
      %8276 = vmatprep.subr.bf16.mxu0 0
      %8277 = vmatpush1.bf16.xpose.msra.mxu0 0
      %8278 = vmatprep.subr.bf16.mxu0 0
      %8279 = vmatpush1.bf16.xpose.msra.mxu0 0
      %8280 = vmatprep.subr.bf16.mxu0 0
      %8281 = vmatpush1.bf16.xpose.msra.mxu0 0
      %8282 = vmatprep.subr.bf16.mxu0 0
      %8283 = vmatpush1.bf16.xpose.msra.mxu0 %v7888
      %8284 = vmatprep.subr.bf16.mxu0 0
      %8285 = vmatpush1.bf16.xpose.msra.mxu0 %v7885
      %8286 = vmatprep.subr.bf16.mxu0 0
      %8287 = vmatpush2.bf16.xpose.msra.mxu0 0
      %8288 = vmatprep.subr.bf16.mxu0 0
      %8289 = vmatpush2.bf16.xpose.msra.mxu0 0
      %8290 = vmatprep.subr.bf16.mxu0 0
      %8291 = vmatpush2.bf16.xpose.msra.mxu0 0
      %8292 = vmatprep.subr.bf16.mxu0 0
      %8293 = vmatpush2.bf16.xpose.msra.mxu0 0
      %8294 = vmatprep.subr.bf16.mxu0 0
      %8295 = vmatpush2.bf16.xpose.msra.mxu0 0
      %8296 = vmatprep.subr.bf16.mxu0 0
      %8297 = vmatpush2.bf16.xpose.msra.mxu0 0
      %8298 = vmatprep.subr.bf16.mxu0 0
      %8299 = vmatpush2.bf16.xpose.msra.mxu0 0
      %8300 = vmatprep.subr.bf16.mxu0 0
      %8301 = vmatpush2.bf16.xpose.msra.mxu0 0
      %8302 = vmatprep.mubr.bf16.mxu0 0
      %8303 = vmatmul.mubr.bf16.gmra.mxu0 %v8068
      %v8304 = vpop.f32.mrf.mxu0
      %v8305 = vadd.f32 0.0, %v8304
      %v8306 = vpop.f32.mrf.mxu0
      %v8307 = vpop.f32.mrf.mxu0
      %v8308 = vpop.f32.mrf.mxu0
      %8309 = vdwg.mxu0
      %8310 = vmatprep.subr.bf16.mxu0 0
      %8311 = vmatpush1.bf16.xpose.msra.mxu0 0
      %8312 = vmatprep.subr.bf16.mxu0 0
      %8313 = vmatpush1.bf16.xpose.msra.mxu0 0
      %8314 = vmatprep.subr.bf16.mxu0 0
      %8315 = vmatpush1.bf16.xpose.msra.mxu0 0
      %8316 = vmatprep.subr.bf16.mxu0 0
      %8317 = vmatpush1.bf16.xpose.msra.mxu0 0
      %8318 = vmatprep.subr.bf16.mxu0 0
      %8319 = vmatpush1.bf16.xpose.msra.mxu0 0
      %8320 = vmatprep.subr.bf16.mxu0 0
      %8321 = vmatpush1.bf16.xpose.msra.mxu0 0
      %8322 = vmatprep.subr.bf16.mxu0 0
      %8323 = vmatpush1.bf16.xpose.msra.mxu0 %v7894
      %8324 = vmatprep.subr.bf16.mxu0 0
      %8325 = vmatpush1.bf16.xpose.msra.mxu0 %v7891
      %8326 = vmatprep.subr.bf16.mxu0 0
      %8327 = vmatpush2.bf16.xpose.msra.mxu0 0
      %8328 = vmatprep.subr.bf16.mxu0 0
      %8329 = vmatpush2.bf16.xpose.msra.mxu0 0
      %8330 = vmatprep.subr.bf16.mxu0 0
      %8331 = vmatpush2.bf16.xpose.msra.mxu0 0
      %8332 = vmatprep.subr.bf16.mxu0 0
      %8333 = vmatpush2.bf16.xpose.msra.mxu0 0
      %8334 = vmatprep.subr.bf16.mxu0 0
      %8335 = vmatpush2.bf16.xpose.msra.mxu0 0
      %8336 = vmatprep.subr.bf16.mxu0 0
      %8337 = vmatpush2.bf16.xpose.msra.mxu0 0
      %8338 = vmatprep.subr.bf16.mxu0 0
      %8339 = vmatpush2.bf16.xpose.msra.mxu0 0
      %8340 = vmatprep.subr.bf16.mxu0 0
      %8341 = vmatpush2.bf16.xpose.msra.mxu0 0
      %8342 = vmatprep.mubr.bf16.mxu0 0
      %8343 = vmatmul.mubr.bf16.gmra.mxu0 %v8068
      %v8344 = vpop.f32.mrf.mxu0
      %v8345 = vadd.f32 0.0, %v8344
      %v8346 = vpop.f32.mrf.mxu0
      %v8347 = vpop.f32.mrf.mxu0
      %v8348 = vpop.f32.mrf.mxu0
      %8349 = vdwg.mxu0
      %8350 = vmatprep.subr.bf16.mxu0 0
      %8351 = vmatpush1.bf16.xpose.msra.mxu0 0
      %8352 = vmatprep.subr.bf16.mxu0 0
      %8353 = vmatpush1.bf16.xpose.msra.mxu0 0
      %8354 = vmatprep.subr.bf16.mxu0 0
      %8355 = vmatpush1.bf16.xpose.msra.mxu0 0
      %8356 = vmatprep.subr.bf16.mxu0 0
      %8357 = vmatpush1.bf16.xpose.msra.mxu0 0
      %8358 = vmatprep.subr.bf16.mxu0 0
      %8359 = vmatpush1.bf16.xpose.msra.mxu0 0
      %8360 = vmatprep.subr.bf16.mxu0 0
      %8361 = vmatpush1.bf16.xpose.msra.mxu0 0
      %8362 = vmatprep.subr.bf16.mxu0 0
      %8363 = vmatpush1.bf16.xpose.msra.mxu0 %v7900
      %8364 = vmatprep.subr.bf16.mxu0 0
      %8365 = vmatpush1.bf16.xpose.msra.mxu0 %v7897
      %8366 = vmatprep.subr.bf16.mxu0 0
      %8367 = vmatpush2.bf16.xpose.msra.mxu0 0
      %8368 = vmatprep.subr.bf16.mxu0 0
      %8369 = vmatpush2.bf16.xpose.msra.mxu0 0
      %8370 = vmatprep.subr.bf16.mxu0 0
      %8371 = vmatpush2.bf16.xpose.msra.mxu0 0
      %8372 = vmatprep.subr.bf16.mxu0 0
      %8373 = vmatpush2.bf16.xpose.msra.mxu0 0
      %8374 = vmatprep.subr.bf16.mxu0 0
      %8375 = vmatpush2.bf16.xpose.msra.mxu0 0
      %8376 = vmatprep.subr.bf16.mxu0 0
      %8377 = vmatpush2.bf16.xpose.msra.mxu0 0
      %8378 = vmatprep.subr.bf16.mxu0 0
      %8379 = vmatpush2.bf16.xpose.msra.mxu0 0
      %8380 = vmatprep.subr.bf16.mxu0 0
      %8381 = vmatpush2.bf16.xpose.msra.mxu0 0
      %8382 = vmatprep.mubr.bf16.mxu0 0
      %8383 = vmatmul.mubr.bf16.gmra.mxu0 %v8068
      %v8384 = vpop.f32.mrf.mxu0
      %v8385 = vadd.f32 0.0, %v8384
      %v8386 = vpop.f32.mrf.mxu0
      %v8387 = vpop.f32.mrf.mxu0
      %v8388 = vpop.f32.mrf.mxu0
      %8389 = vdwg.mxu0
      %8391 = vset.pattern.permute.xlu0 0
      %8392 = vperm.xlu0 %8391, %v7941
      %v8393 = vpop.permute.xlu0 %8392
      %8396 = vset.pattern.permute.xlu0 0
      %8397 = vperm.xlu0 %8396, %v7944
      %v8398 = vpop.permute.xlu0 %8397
      %8401 = vset.pattern.permute.xlu0 0
      %8402 = vperm.xlu0 %8401, %v7949
      %v8403 = vpop.permute.xlu0 %8402
      %8406 = vset.pattern.permute.xlu0 0
      %8407 = vperm.xlu0 %8406, %v7952
      %v8408 = vpop.permute.xlu0 %8407
      %8411 = vset.pattern.permute.xlu0 0
      %8412 = vperm.xlu0 %8411, %v7957
      %v8413 = vpop.permute.xlu0 %8412
      %8416 = vset.pattern.permute.xlu0 0
      %8417 = vperm.xlu0 %8416, %v7960
      %v8418 = vpop.permute.xlu0 %8417
      %8421 = vset.pattern.permute.xlu0 0
      %8422 = vperm.xlu0 %8421, %v7965
      %v8423 = vpop.permute.xlu0 %8422
      %8426 = vset.pattern.permute.xlu0 0
      %8427 = vperm.xlu0 %8426, %v7968
      %v8428 = vpop.permute.xlu0 %8427
      %8431 = vset.pattern.permute.xlu0 0
      %8432 = vperm.xlu0 %8431, %v7973
      %v8433 = vpop.permute.xlu0 %8432
      %8436 = vset.pattern.permute.xlu0 0
      %8437 = vperm.xlu0 %8436, %v7976
      %v8438 = vpop.permute.xlu0 %8437
      %8441 = vset.pattern.permute.xlu0 0
      %8442 = vperm.xlu0 %8441, %v7981
      %v8443 = vpop.permute.xlu0 %8442
      %8446 = vset.pattern.permute.xlu0 0
      %8447 = vperm.xlu0 %8446, %v7984
      %v8448 = vpop.permute.xlu0 %8447
      %8451 = vset.pattern.permute.xlu0 0
      %8452 = vperm.xlu0 %8451, %v7989
      %v8453 = vpop.permute.xlu0 %8452
      %8456 = vset.pattern.permute.xlu0 0
      %8457 = vperm.xlu0 %8456, %v7992
      %v8458 = vpop.permute.xlu0 %8457
      %8461 = vset.pattern.permute.xlu0 0
      %8462 = vperm.xlu0 %8461, %v7997
      %v8463 = vpop.permute.xlu0 %8462
      %8466 = vset.pattern.permute.xlu0 0
      %8467 = vperm.xlu0 %8466, %v8000
      %v8468 = vpop.permute.xlu0 %8467
      %8471 = vset.pattern.permute.xlu0 0
      %8472 = vperm.xlu0 %8471, %v8005
      %v8473 = vpop.permute.xlu0 %8472
      %8476 = vset.pattern.permute.xlu0 0
      %8477 = vperm.xlu0 %8476, %v8008
      %v8478 = vpop.permute.xlu0 %8477
      %8481 = vset.pattern.permute.xlu0 0
      %8482 = vperm.xlu0 %8481, %v8013
      %v8483 = vpop.permute.xlu0 %8482
      %8486 = vset.pattern.permute.xlu0 0
      %8487 = vperm.xlu0 %8486, %v8016
      %v8488 = vpop.permute.xlu0 %8487
      %8491 = vset.pattern.permute.xlu0 0
      %8492 = vperm.xlu0 %8491, %v8021
      %v8493 = vpop.permute.xlu0 %8492
      %8496 = vset.pattern.permute.xlu0 0
      %8497 = vperm.xlu0 %8496, %v8024
      %v8498 = vpop.permute.xlu0 %8497
      %8501 = vset.pattern.permute.xlu0 0
      %8502 = vperm.xlu0 %8501, %v8029
      %v8503 = vpop.permute.xlu0 %8502
      %8506 = vset.pattern.permute.xlu0 0
      %8507 = vperm.xlu0 %8506, %v8032
      %v8508 = vpop.permute.xlu0 %8507
      %8511 = vset.pattern.permute.xlu0 0
      %8512 = vperm.xlu0 %8511, %v8037
      %v8513 = vpop.permute.xlu0 %8512
      %8516 = vset.pattern.permute.xlu0 0
      %8517 = vperm.xlu0 %8516, %v8040
      %v8518 = vpop.permute.xlu0 %8517
      %8521 = vset.pattern.permute.xlu0 0
      %8522 = vperm.xlu0 %8521, %v8045
      %v8523 = vpop.permute.xlu0 %8522
      %8526 = vset.pattern.permute.xlu0 0
      %8527 = vperm.xlu0 %8526, %v8048
      %v8528 = vpop.permute.xlu0 %8527
      %8531 = vset.pattern.permute.xlu0 0
      %8532 = vperm.xlu0 %8531, %v8053
      %v8533 = vpop.permute.xlu0 %8532
      %8536 = vset.pattern.permute.xlu0 0
      %8537 = vperm.xlu0 %8536, %v8056
      %v8538 = vpop.permute.xlu0 %8537
      %8541 = vset.pattern.permute.xlu0 0
      %8542 = vperm.xlu0 %8541, %v8061
      %v8543 = vpop.permute.xlu0 %8542
      %8546 = vset.pattern.permute.xlu0 0
      %8547 = vperm.xlu0 %8546, %v8064
      %v8548 = vpop.permute.xlu0 %8547
      %v8550 = vlaneseq
      %v8551 = vshrl.u32 %v8550, 7
      %v8552 = vsub.s32 0, %v8551
      %v8553 = vrot.slane %v8105, %v8552
      %v8554 = vlaneseq
      %v8555 = vshrl.u32 %v8554, 7
      %v8556 = vsub.s32 0, %v8555
      %v8557 = vrot.slane %v8145, %v8556
      %v8558 = vlaneseq
      %v8559 = vshrl.u32 %v8558, 7
      %v8560 = vsub.s32 0, %v8559
      %v8561 = vrot.slane %v8185, %v8560
      %v8562 = vlaneseq
      %v8563 = vshrl.u32 %v8562, 7
      %v8564 = vsub.s32 0, %v8563
      %v8565 = vrot.slane %v8225, %v8564
      %v8566 = vlaneseq
      %v8567 = vshrl.u32 %v8566, 7
      %v8568 = vsub.s32 0, %v8567
      %v8569 = vrot.slane %v8265, %v8568
      %v8570 = vlaneseq
      %v8571 = vshrl.u32 %v8570, 7
      %v8572 = vsub.s32 0, %v8571
      %v8573 = vrot.slane %v8305, %v8572
      %v8574 = vlaneseq
      %v8575 = vshrl.u32 %v8574, 7
      %v8576 = vsub.s32 0, %v8575
      %v8577 = vrot.slane %v8345, %v8576
      %v8578 = vlaneseq
      %v8579 = vshrl.u32 %v8578, 7
      %v8580 = vsub.s32 0, %v8579
      %v8581 = vrot.slane %v8385, %v8580
      %v8582 = vadd.f32 %v8393, %v8553
      %v8583 = vadd.f32 %v8398, %v8553
      %v8584 = vadd.f32 %v8403, %v8553
      %v8585 = vadd.f32 %v8408, %v8553
      %v8586 = vadd.f32 %v8413, %v8557
      %v8587 = vadd.f32 %v8418, %v8557
      %v8588 = vadd.f32 %v8423, %v8557
      %v8589 = vadd.f32 %v8428, %v8557
      %v8590 = vadd.f32 %v8433, %v8561
      %v8591 = vadd.f32 %v8438, %v8561
      %v8592 = vadd.f32 %v8443, %v8561
      %v8593 = vadd.f32 %v8448, %v8561
      %v8594 = vadd.f32 %v8453, %v8565
      %v8595 = vadd.f32 %v8458, %v8565
      %v8596 = vadd.f32 %v8463, %v8565
      %v8597 = vadd.f32 %v8468, %v8565
      %v8598 = vadd.f32 %v8473, %v8569
      %v8599 = vadd.f32 %v8478, %v8569
      %v8600 = vadd.f32 %v8483, %v8569
      %v8601 = vadd.f32 %v8488, %v8569
      %v8602 = vadd.f32 %v8493, %v8573
      %v8603 = vadd.f32 %v8498, %v8573
      %v8604 = vadd.f32 %v8503, %v8573
      %v8605 = vadd.f32 %v8508, %v8573
      %v8606 = vadd.f32 %v8513, %v8577
      %v8607 = vadd.f32 %v8518, %v8577
      %v8608 = vadd.f32 %v8523, %v8577
      %v8609 = vadd.f32 %v8528, %v8577
      %v8610 = vadd.f32 %v8533, %v8581
      %v8611 = vadd.f32 %v8538, %v8581
      %v8612 = vadd.f32 %v8543, %v8581
      %v8613 = vadd.f32 %v8548, %v8581
      %vm8614 = vcmp.gt.f32.partialorder %v8582, 0.0
      %vm8615 = vcmp.gt.f32.partialorder %v8583, 0.0
      %vm8616 = vcmp.gt.f32.partialorder %v8584, 0.0
      %vm8617 = vcmp.gt.f32.partialorder %v8585, 0.0
      %vm8618 = vcmp.gt.f32.partialorder %v8586, 0.0
      %vm8619 = vcmp.gt.f32.partialorder %v8587, 0.0
      %vm8620 = vcmp.gt.f32.partialorder %v8588, 0.0
      %vm8621 = vcmp.gt.f32.partialorder %v8589, 0.0
      %vm8622 = vcmp.gt.f32.partialorder %v8590, 0.0
      %vm8623 = vcmp.gt.f32.partialorder %v8591, 0.0
      %vm8624 = vcmp.gt.f32.partialorder %v8592, 0.0
      %vm8625 = vcmp.gt.f32.partialorder %v8593, 0.0
      %vm8626 = vcmp.gt.f32.partialorder %v8594, 0.0
      %vm8627 = vcmp.gt.f32.partialorder %v8595, 0.0
      %vm8628 = vcmp.gt.f32.partialorder %v8596, 0.0
      %vm8629 = vcmp.gt.f32.partialorder %v8597, 0.0
      %vm8630 = vcmp.gt.f32.partialorder %v8598, 0.0
      %vm8631 = vcmp.gt.f32.partialorder %v8599, 0.0
      %vm8632 = vcmp.gt.f32.partialorder %v8600, 0.0
      %vm8633 = vcmp.gt.f32.partialorder %v8601, 0.0
      %vm8634 = vcmp.gt.f32.partialorder %v8602, 0.0
      %vm8635 = vcmp.gt.f32.partialorder %v8603, 0.0
      %vm8636 = vcmp.gt.f32.partialorder %v8604, 0.0
      %vm8637 = vcmp.gt.f32.partialorder %v8605, 0.0
      %vm8638 = vcmp.gt.f32.partialorder %v8606, 0.0
      %vm8639 = vcmp.gt.f32.partialorder %v8607, 0.0
      %vm8640 = vcmp.gt.f32.partialorder %v8608, 0.0
      %vm8641 = vcmp.gt.f32.partialorder %v8609, 0.0
      %vm8642 = vcmp.gt.f32.partialorder %v8610, 0.0
      %vm8643 = vcmp.gt.f32.partialorder %v8611, 0.0
      %vm8644 = vcmp.gt.f32.partialorder %v8612, 0.0
      %vm8645 = vcmp.gt.f32.partialorder %v8613, 0.0
      %v8646 = vmul.f32 %v8582, 0.2
      %v8647 = vmul.f32 %v8583, 0.2
      %v8648 = vmul.f32 %v8584, 0.2
      %v8649 = vmul.f32 %v8585, 0.2
      %v8650 = vmul.f32 %v8586, 0.2
      %v8651 = vmul.f32 %v8587, 0.2
      %v8652 = vmul.f32 %v8588, 0.2
      %v8653 = vmul.f32 %v8589, 0.2
      %v8654 = vmul.f32 %v8590, 0.2
      %v8655 = vmul.f32 %v8591, 0.2
      %v8656 = vmul.f32 %v8592, 0.2
      %v8657 = vmul.f32 %v8593, 0.2
      %v8658 = vmul.f32 %v8594, 0.2
      %v8659 = vmul.f32 %v8595, 0.2
      %v8660 = vmul.f32 %v8596, 0.2
      %v8661 = vmul.f32 %v8597, 0.2
      %v8662 = vmul.f32 %v8598, 0.2
      %v8663 = vmul.f32 %v8599, 0.2
      %v8664 = vmul.f32 %v8600, 0.2
      %v8665 = vmul.f32 %v8601, 0.2
      %v8666 = vmul.f32 %v8602, 0.2
      %v8667 = vmul.f32 %v8603, 0.2
      %v8668 = vmul.f32 %v8604, 0.2
      %v8669 = vmul.f32 %v8605, 0.2
      %v8670 = vmul.f32 %v8606, 0.2
      %v8671 = vmul.f32 %v8607, 0.2
      %v8672 = vmul.f32 %v8608, 0.2
      %v8673 = vmul.f32 %v8609, 0.2
      %v8674 = vmul.f32 %v8610, 0.2
      %v8675 = vmul.f32 %v8611, 0.2
      %v8676 = vmul.f32 %v8612, 0.2
      %v8677 = vmul.f32 %v8613, 0.2
      %v8678 = vsel %vm8614, %v8582, %v8646
      %v8679 = vsel %vm8615, %v8583, %v8647
      %v8680 = vsel %vm8616, %v8584, %v8648
      %v8681 = vsel %vm8617, %v8585, %v8649
      %v8682 = vsel %vm8618, %v8586, %v8650
      %v8683 = vsel %vm8619, %v8587, %v8651
      %v8684 = vsel %vm8620, %v8588, %v8652
      %v8685 = vsel %vm8621, %v8589, %v8653
      %v8686 = vsel %vm8622, %v8590, %v8654
      %v8687 = vsel %vm8623, %v8591, %v8655
      %v8688 = vsel %vm8624, %v8592, %v8656
      %v8689 = vsel %vm8625, %v8593, %v8657
      %v8690 = vsel %vm8626, %v8594, %v8658
      %v8691 = vsel %vm8627, %v8595, %v8659
      %v8692 = vsel %vm8628, %v8596, %v8660
      %v8693 = vsel %vm8629, %v8597, %v8661
      %v8694 = vsel %vm8630, %v8598, %v8662
      %v8695 = vsel %vm8631, %v8599, %v8663
      %v8696 = vsel %vm8632, %v8600, %v8664
      %v8697 = vsel %vm8633, %v8601, %v8665
      %v8698 = vsel %vm8634, %v8602, %v8666
      %v8699 = vsel %vm8635, %v8603, %v8667
      %v8700 = vsel %vm8636, %v8604, %v8668
      %v8701 = vsel %vm8637, %v8605, %v8669
      %v8702 = vsel %vm8638, %v8606, %v8670
      %v8703 = vsel %vm8639, %v8607, %v8671
      %v8704 = vsel %vm8640, %v8608, %v8672
      %v8705 = vsel %vm8641, %v8609, %v8673
      %v8706 = vsel %vm8642, %v8610, %v8674
      %v8707 = vsel %vm8643, %v8611, %v8675
      %v8708 = vsel %vm8644, %v8612, %v8676
      %v8709 = vsel %vm8645, %v8613, %v8677
      %v8710 = vadd.f32 %v8678, %v333
      %v8711 = vadd.f32 %v8679, %v334
      %v8712 = vadd.f32 %v8680, %v335
      %v8713 = vadd.f32 %v8681, %v336
      %v8714 = vadd.f32 %v8682, %v337
      %v8715 = vadd.f32 %v8683, %v338
      %v8716 = vadd.f32 %v8684, %v339
      %v8717 = vadd.f32 %v8685, %v340
      %v8718 = vadd.f32 %v8686, %v341
      %v8719 = vadd.f32 %v8687, %v342
      %v8720 = vadd.f32 %v8688, %v343
      %v8721 = vadd.f32 %v8689, %v344
      %v8722 = vadd.f32 %v8690, %v345
      %v8723 = vadd.f32 %v8691, %v346
      %v8724 = vadd.f32 %v8692, %v347
      %v8725 = vadd.f32 %v8693, %v348
      %v8726 = vadd.f32 %v8694, %v349
      %v8727 = vadd.f32 %v8695, %v350
      %v8728 = vadd.f32 %v8696, %v351
      %v8729 = vadd.f32 %v8697, %v352
      %v8730 = vadd.f32 %v8698, %v353
      %v8731 = vadd.f32 %v8699, %v354
      %v8732 = vadd.f32 %v8700, %v355
      %v8733 = vadd.f32 %v8701, %v356
      %v8734 = vadd.f32 %v8702, %v357
      %v8735 = vadd.f32 %v8703, %v358
      %v8736 = vadd.f32 %v8704, %v359
      %v8737 = vadd.f32 %v8705, %v360
      %v8738 = vadd.f32 %v8706, %v361
      %v8739 = vadd.f32 %v8707, %v362
      %v8740 = vadd.f32 %v8708, %v363
      %v8741 = vadd.f32 %v8709, %v364
      %v8742 = vsel %vm1542, %v8710, -inf
      %8743 = vmax.xlane.f32.xlu0 %v8742
      %v8744 = vpop.xlane.xlu0 %8743
      %v8745 = vsel %vm1542, %v8711, -inf
      %8746 = vmax.xlane.f32.xlu0 %v8745
      %v8747 = vpop.xlane.xlu0 %8746
      %v8748 = vsel %vm1542, %v8712, -inf
      %8749 = vmax.xlane.f32.xlu0 %v8748
      %v8750 = vpop.xlane.xlu0 %8749
      %v8751 = vsel %vm1542, %v8713, -inf
      %8752 = vmax.xlane.f32.xlu0 %v8751
      %v8753 = vpop.xlane.xlu0 %8752
      %v8754 = vsel %vm1542, %v8714, -inf
      %8755 = vmax.xlane.f32.xlu0 %v8754
      %v8756 = vpop.xlane.xlu0 %8755
      %v8757 = vsel %vm1542, %v8715, -inf
      %8758 = vmax.xlane.f32.xlu0 %v8757
      %v8759 = vpop.xlane.xlu0 %8758
      %v8760 = vsel %vm1542, %v8716, -inf
      %8761 = vmax.xlane.f32.xlu0 %v8760
      %v8762 = vpop.xlane.xlu0 %8761
      %v8763 = vsel %vm1542, %v8717, -inf
      %8764 = vmax.xlane.f32.xlu0 %v8763
      %v8765 = vpop.xlane.xlu0 %8764
      %v8766 = vsel %vm1542, %v8718, -inf
      %8767 = vmax.xlane.f32.xlu0 %v8766
      %v8768 = vpop.xlane.xlu0 %8767
      %v8769 = vsel %vm1542, %v8719, -inf
      %8770 = vmax.xlane.f32.xlu0 %v8769
      %v8771 = vpop.xlane.xlu0 %8770
      %v8772 = vsel %vm1542, %v8720, -inf
      %8773 = vmax.xlane.f32.xlu0 %v8772
      %v8774 = vpop.xlane.xlu0 %8773
      %v8775 = vsel %vm1542, %v8721, -inf
      %8776 = vmax.xlane.f32.xlu0 %v8775
      %v8777 = vpop.xlane.xlu0 %8776
      %v8778 = vsel %vm1542, %v8722, -inf
      %8779 = vmax.xlane.f32.xlu0 %v8778
      %v8780 = vpop.xlane.xlu0 %8779
      %v8781 = vsel %vm1542, %v8723, -inf
      %8782 = vmax.xlane.f32.xlu0 %v8781
      %v8783 = vpop.xlane.xlu0 %8782
      %v8784 = vsel %vm1542, %v8724, -inf
      %8785 = vmax.xlane.f32.xlu0 %v8784
      %v8786 = vpop.xlane.xlu0 %8785
      %v8787 = vsel %vm1542, %v8725, -inf
      %8788 = vmax.xlane.f32.xlu0 %v8787
      %v8789 = vpop.xlane.xlu0 %8788
      %v8790 = vsel %vm1542, %v8726, -inf
      %8791 = vmax.xlane.f32.xlu0 %v8790
      %v8792 = vpop.xlane.xlu0 %8791
      %v8793 = vsel %vm1542, %v8727, -inf
      %8794 = vmax.xlane.f32.xlu0 %v8793
      %v8795 = vpop.xlane.xlu0 %8794
      %v8796 = vsel %vm1542, %v8728, -inf
      %8797 = vmax.xlane.f32.xlu0 %v8796
      %v8798 = vpop.xlane.xlu0 %8797
      %v8799 = vsel %vm1542, %v8729, -inf
      %8800 = vmax.xlane.f32.xlu0 %v8799
      %v8801 = vpop.xlane.xlu0 %8800
      %v8802 = vsel %vm1542, %v8730, -inf
      %8803 = vmax.xlane.f32.xlu0 %v8802
      %v8804 = vpop.xlane.xlu0 %8803
      %v8805 = vsel %vm1542, %v8731, -inf
      %8806 = vmax.xlane.f32.xlu0 %v8805
      %v8807 = vpop.xlane.xlu0 %8806
      %v8808 = vsel %vm1542, %v8732, -inf
      %8809 = vmax.xlane.f32.xlu0 %v8808
      %v8810 = vpop.xlane.xlu0 %8809
      %v8811 = vsel %vm1542, %v8733, -inf
      %8812 = vmax.xlane.f32.xlu0 %v8811
      %v8813 = vpop.xlane.xlu0 %8812
      %v8814 = vsel %vm1542, %v8734, -inf
      %8815 = vmax.xlane.f32.xlu0 %v8814
      %v8816 = vpop.xlane.xlu0 %8815
      %v8817 = vsel %vm1542, %v8735, -inf
      %8818 = vmax.xlane.f32.xlu0 %v8817
      %v8819 = vpop.xlane.xlu0 %8818
      %v8820 = vsel %vm1542, %v8736, -inf
      %8821 = vmax.xlane.f32.xlu0 %v8820
      %v8822 = vpop.xlane.xlu0 %8821
      %v8823 = vsel %vm1542, %v8737, -inf
      %8824 = vmax.xlane.f32.xlu0 %v8823
      %v8825 = vpop.xlane.xlu0 %8824
      %v8826 = vsel %vm1542, %v8738, -inf
      %8827 = vmax.xlane.f32.xlu0 %v8826
      %v8828 = vpop.xlane.xlu0 %8827
      %v8829 = vsel %vm1542, %v8739, -inf
      %8830 = vmax.xlane.f32.xlu0 %v8829
      %v8831 = vpop.xlane.xlu0 %8830
      %v8832 = vsel %vm1542, %v8740, -inf
      %8833 = vmax.xlane.f32.xlu0 %v8832
      %v8834 = vpop.xlane.xlu0 %8833
      %v8835 = vsel %vm1542, %v8741, -inf
      %8836 = vmax.xlane.f32.xlu0 %v8835
      %v8837 = vpop.xlane.xlu0 %8836
      %v8838 = vsub.f32 %v8710, %v8744
      %v8839 = vsub.f32 %v8711, %v8747
      %v8840 = vsub.f32 %v8712, %v8750
      %v8841 = vsub.f32 %v8713, %v8753
      %v8842 = vsub.f32 %v8714, %v8756
      %v8843 = vsub.f32 %v8715, %v8759
      %v8844 = vsub.f32 %v8716, %v8762
      %v8845 = vsub.f32 %v8717, %v8765
      %v8846 = vsub.f32 %v8718, %v8768
      %v8847 = vsub.f32 %v8719, %v8771
      %v8848 = vsub.f32 %v8720, %v8774
      %v8849 = vsub.f32 %v8721, %v8777
      %v8850 = vsub.f32 %v8722, %v8780
      %v8851 = vsub.f32 %v8723, %v8783
      %v8852 = vsub.f32 %v8724, %v8786
      %v8853 = vsub.f32 %v8725, %v8789
      %v8854 = vsub.f32 %v8726, %v8792
      %v8855 = vsub.f32 %v8727, %v8795
      %v8856 = vsub.f32 %v8728, %v8798
      %v8857 = vsub.f32 %v8729, %v8801
      %v8858 = vsub.f32 %v8730, %v8804
      %v8859 = vsub.f32 %v8731, %v8807
      %v8860 = vsub.f32 %v8732, %v8810
      %v8861 = vsub.f32 %v8733, %v8813
      %v8862 = vsub.f32 %v8734, %v8816
      %v8863 = vsub.f32 %v8735, %v8819
      %v8864 = vsub.f32 %v8736, %v8822
      %v8865 = vsub.f32 %v8737, %v8825
      %v8866 = vsub.f32 %v8738, %v8828
      %v8867 = vsub.f32 %v8739, %v8831
      %v8868 = vsub.f32 %v8740, %v8834
      %v8869 = vsub.f32 %v8741, %v8837
      %v8870 = vmul.f32 %v8838, 1.442695
      %v8871 = vpow.pop %v8870
      %v8872 = vmul.f32 %v8839, 1.442695
      %v8873 = vpow.pop %v8872
      %v8874 = vmul.f32 %v8840, 1.442695
      %v8875 = vpow.pop %v8874
      %v8876 = vmul.f32 %v8841, 1.442695
      %v8877 = vpow.pop %v8876
      %v8878 = vmul.f32 %v8842, 1.442695
      %v8879 = vpow.pop %v8878
      %v8880 = vmul.f32 %v8843, 1.442695
      %v8881 = vpow.pop %v8880
      %v8882 = vmul.f32 %v8844, 1.442695
      %v8883 = vpow.pop %v8882
      %v8884 = vmul.f32 %v8845, 1.442695
      %v8885 = vpow.pop %v8884
      %v8886 = vmul.f32 %v8846, 1.442695
      %v8887 = vpow.pop %v8886
      %v8888 = vmul.f32 %v8847, 1.442695
      %v8889 = vpow.pop %v8888
      %v8890 = vmul.f32 %v8848, 1.442695
      %v8891 = vpow.pop %v8890
      %v8892 = vmul.f32 %v8849, 1.442695
      %v8893 = vpow.pop %v8892
      %v8894 = vmul.f32 %v8850, 1.442695
      %v8895 = vpow.pop %v8894
      %v8896 = vmul.f32 %v8851, 1.442695
      %v8897 = vpow.pop %v8896
      %v8898 = vmul.f32 %v8852, 1.442695
      %v8899 = vpow.pop %v8898
      %v8900 = vmul.f32 %v8853, 1.442695
      %v8901 = vpow.pop %v8900
      %v8902 = vmul.f32 %v8854, 1.442695
      %v8903 = vpow.pop %v8902
      %v8904 = vmul.f32 %v8855, 1.442695
      %v8905 = vpow.pop %v8904
      %v8906 = vmul.f32 %v8856, 1.442695
      %v8907 = vpow.pop %v8906
      %v8908 = vmul.f32 %v8857, 1.442695
      %v8909 = vpow.pop %v8908
      %v8910 = vmul.f32 %v8858, 1.442695
      %v8911 = vpow.pop %v8910
      %v8912 = vmul.f32 %v8859, 1.442695
      %v8913 = vpow.pop %v8912
      %v8914 = vmul.f32 %v8860, 1.442695
      %v8915 = vpow.pop %v8914
      %v8916 = vmul.f32 %v8861, 1.442695
      %v8917 = vpow.pop %v8916
      %v8918 = vmul.f32 %v8862, 1.442695
      %v8919 = vpow.pop %v8918
      %v8920 = vmul.f32 %v8863, 1.442695
      %v8921 = vpow.pop %v8920
      %v8922 = vmul.f32 %v8864, 1.442695
      %v8923 = vpow.pop %v8922
      %v8924 = vmul.f32 %v8865, 1.442695
      %v8925 = vpow.pop %v8924
      %v8926 = vmul.f32 %v8866, 1.442695
      %v8927 = vpow.pop %v8926
      %v8928 = vmul.f32 %v8867, 1.442695
      %v8929 = vpow.pop %v8928
      %v8930 = vmul.f32 %v8868, 1.442695
      %v8931 = vpow.pop %v8930
      %v8932 = vmul.f32 %v8869, 1.442695
      %v8933 = vpow.pop %v8932
      %v8934 = vsel %vm1542, %v8871, 0.0
      %8935 = vadd.xlane.f32.xlu0 %v8934
      %v8936 = vpop.xlane.xlu0 %8935
      %v8937 = vsel %vm1542, %v8873, 0.0
      %8938 = vadd.xlane.f32.xlu0 %v8937
      %v8939 = vpop.xlane.xlu0 %8938
      %v8940 = vsel %vm1542, %v8875, 0.0
      %8941 = vadd.xlane.f32.xlu0 %v8940
      %v8942 = vpop.xlane.xlu0 %8941
      %v8943 = vsel %vm1542, %v8877, 0.0
      %8944 = vadd.xlane.f32.xlu0 %v8943
      %v8945 = vpop.xlane.xlu0 %8944
      %v8946 = vsel %vm1542, %v8879, 0.0
      %8947 = vadd.xlane.f32.xlu0 %v8946
      %v8948 = vpop.xlane.xlu0 %8947
      %v8949 = vsel %vm1542, %v8881, 0.0
      %8950 = vadd.xlane.f32.xlu0 %v8949
      %v8951 = vpop.xlane.xlu0 %8950
      %v8952 = vsel %vm1542, %v8883, 0.0
      %8953 = vadd.xlane.f32.xlu0 %v8952
      %v8954 = vpop.xlane.xlu0 %8953
      %v8955 = vsel %vm1542, %v8885, 0.0
      %8956 = vadd.xlane.f32.xlu0 %v8955
      %v8957 = vpop.xlane.xlu0 %8956
      %v8958 = vsel %vm1542, %v8887, 0.0
      %8959 = vadd.xlane.f32.xlu0 %v8958
      %v8960 = vpop.xlane.xlu0 %8959
      %v8961 = vsel %vm1542, %v8889, 0.0
      %8962 = vadd.xlane.f32.xlu0 %v8961
      %v8963 = vpop.xlane.xlu0 %8962
      %v8964 = vsel %vm1542, %v8891, 0.0
      %8965 = vadd.xlane.f32.xlu0 %v8964
      %v8966 = vpop.xlane.xlu0 %8965
      %v8967 = vsel %vm1542, %v8893, 0.0
      %8968 = vadd.xlane.f32.xlu0 %v8967
      %v8969 = vpop.xlane.xlu0 %8968
      %v8970 = vsel %vm1542, %v8895, 0.0
      %8971 = vadd.xlane.f32.xlu0 %v8970
      %v8972 = vpop.xlane.xlu0 %8971
      %v8973 = vsel %vm1542, %v8897, 0.0
      %8974 = vadd.xlane.f32.xlu0 %v8973
      %v8975 = vpop.xlane.xlu0 %8974
      %v8976 = vsel %vm1542, %v8899, 0.0
      %8977 = vadd.xlane.f32.xlu0 %v8976
      %v8978 = vpop.xlane.xlu0 %8977
      %v8979 = vsel %vm1542, %v8901, 0.0
      %8980 = vadd.xlane.f32.xlu0 %v8979
      %v8981 = vpop.xlane.xlu0 %8980
      %v8982 = vsel %vm1542, %v8903, 0.0
      %8983 = vadd.xlane.f32.xlu0 %v8982
      %v8984 = vpop.xlane.xlu0 %8983
      %v8985 = vsel %vm1542, %v8905, 0.0
      %8986 = vadd.xlane.f32.xlu0 %v8985
      %v8987 = vpop.xlane.xlu0 %8986
      %v8988 = vsel %vm1542, %v8907, 0.0
      %8989 = vadd.xlane.f32.xlu0 %v8988
      %v8990 = vpop.xlane.xlu0 %8989
      %v8991 = vsel %vm1542, %v8909, 0.0
      %8992 = vadd.xlane.f32.xlu0 %v8991
      %v8993 = vpop.xlane.xlu0 %8992
      %v8994 = vsel %vm1542, %v8911, 0.0
      %8995 = vadd.xlane.f32.xlu0 %v8994
      %v8996 = vpop.xlane.xlu0 %8995
      %v8997 = vsel %vm1542, %v8913, 0.0
      %8998 = vadd.xlane.f32.xlu0 %v8997
      %v8999 = vpop.xlane.xlu0 %8998
      %v9000 = vsel %vm1542, %v8915, 0.0
      %9001 = vadd.xlane.f32.xlu0 %v9000
      %v9002 = vpop.xlane.xlu0 %9001
      %v9003 = vsel %vm1542, %v8917, 0.0
      %9004 = vadd.xlane.f32.xlu0 %v9003
      %v9005 = vpop.xlane.xlu0 %9004
      %v9006 = vsel %vm1542, %v8919, 0.0
      %9007 = vadd.xlane.f32.xlu0 %v9006
      %v9008 = vpop.xlane.xlu0 %9007
      %v9009 = vsel %vm1542, %v8921, 0.0
      %9010 = vadd.xlane.f32.xlu0 %v9009
      %v9011 = vpop.xlane.xlu0 %9010
      %v9012 = vsel %vm1542, %v8923, 0.0
      %9013 = vadd.xlane.f32.xlu0 %v9012
      %v9014 = vpop.xlane.xlu0 %9013
      %v9015 = vsel %vm1542, %v8925, 0.0
      %9016 = vadd.xlane.f32.xlu0 %v9015
      %v9017 = vpop.xlane.xlu0 %9016
      %v9018 = vsel %vm1542, %v8927, 0.0
      %9019 = vadd.xlane.f32.xlu0 %v9018
      %v9020 = vpop.xlane.xlu0 %9019
      %v9021 = vsel %vm1542, %v8929, 0.0
      %9022 = vadd.xlane.f32.xlu0 %v9021
      %v9023 = vpop.xlane.xlu0 %9022
      %v9024 = vsel %vm1542, %v8931, 0.0
      %9025 = vadd.xlane.f32.xlu0 %v9024
      %v9026 = vpop.xlane.xlu0 %9025
      %v9027 = vsel %vm1542, %v8933, 0.0
      %9028 = vadd.xlane.f32.xlu0 %v9027
      %v9029 = vpop.xlane.xlu0 %9028
      %v9030 = vrcp.pop %v8936
      %v9031 = vrcp.pop %v8939
      %v9032 = vrcp.pop %v8942
      %v9033 = vrcp.pop %v8945
      %v9034 = vrcp.pop %v8948
      %v9035 = vrcp.pop %v8951
      %v9036 = vrcp.pop %v8954
      %v9037 = vrcp.pop %v8957
      %v9038 = vrcp.pop %v8960
      %v9039 = vrcp.pop %v8963
      %v9040 = vrcp.pop %v8966
      %v9041 = vrcp.pop %v8969
      %v9042 = vrcp.pop %v8972
      %v9043 = vrcp.pop %v8975
      %v9044 = vrcp.pop %v8978
      %v9045 = vrcp.pop %v8981
      %v9046 = vrcp.pop %v8984
      %v9047 = vrcp.pop %v8987
      %v9048 = vrcp.pop %v8990
      %v9049 = vrcp.pop %v8993
      %v9050 = vrcp.pop %v8996
      %v9051 = vrcp.pop %v8999
      %v9052 = vrcp.pop %v9002
      %v9053 = vrcp.pop %v9005
      %v9054 = vrcp.pop %v9008
      %v9055 = vrcp.pop %v9011
      %v9056 = vrcp.pop %v9014
      %v9057 = vrcp.pop %v9017
      %v9058 = vrcp.pop %v9020
      %v9059 = vrcp.pop %v9023
      %v9060 = vrcp.pop %v9026
      %v9061 = vrcp.pop %v9029
      %v9062 = vmul.f32 %v8936, %v9030
      %v9063 = vmul.f32 %v8939, %v9031
      %v9064 = vmul.f32 %v8942, %v9032
      %v9065 = vmul.f32 %v8945, %v9033
      %v9066 = vmul.f32 %v8948, %v9034
      %v9067 = vmul.f32 %v8951, %v9035
      %v9068 = vmul.f32 %v8954, %v9036
      %v9069 = vmul.f32 %v8957, %v9037
      %v9070 = vmul.f32 %v8960, %v9038
      %v9071 = vmul.f32 %v8963, %v9039
      %v9072 = vmul.f32 %v8966, %v9040
      %v9073 = vmul.f32 %v8969, %v9041
      %v9074 = vmul.f32 %v8972, %v9042
      %v9075 = vmul.f32 %v8975, %v9043
      %v9076 = vmul.f32 %v8978, %v9044
      %v9077 = vmul.f32 %v8981, %v9045
      %v9078 = vmul.f32 %v8984, %v9046
      %v9079 = vmul.f32 %v8987, %v9047
      %v9080 = vmul.f32 %v8990, %v9048
      %v9081 = vmul.f32 %v8993, %v9049
      %v9082 = vmul.f32 %v8996, %v9050
      %v9083 = vmul.f32 %v8999, %v9051
      %v9084 = vmul.f32 %v9002, %v9052
      %v9085 = vmul.f32 %v9005, %v9053
      %v9086 = vmul.f32 %v9008, %v9054
      %v9087 = vmul.f32 %v9011, %v9055
      %v9088 = vmul.f32 %v9014, %v9056
      %v9089 = vmul.f32 %v9017, %v9057
      %v9090 = vmul.f32 %v9020, %v9058
      %v9091 = vmul.f32 %v9023, %v9059
      %v9092 = vmul.f32 %v9026, %v9060
      %v9093 = vmul.f32 %v9029, %v9061
      %v9094 = vsub.f32 2.0, %v9062
      %v9095 = vsub.f32 2.0, %v9063
      %v9096 = vsub.f32 2.0, %v9064
      %v9097 = vsub.f32 2.0, %v9065
      %v9098 = vsub.f32 2.0, %v9066
      %v9099 = vsub.f32 2.0, %v9067
      %v9100 = vsub.f32 2.0, %v9068
      %v9101 = vsub.f32 2.0, %v9069
      %v9102 = vsub.f32 2.0, %v9070
      %v9103 = vsub.f32 2.0, %v9071
      %v9104 = vsub.f32 2.0, %v9072
      %v9105 = vsub.f32 2.0, %v9073
      %v9106 = vsub.f32 2.0, %v9074
      %v9107 = vsub.f32 2.0, %v9075
      %v9108 = vsub.f32 2.0, %v9076
      %v9109 = vsub.f32 2.0, %v9077
      %v9110 = vsub.f32 2.0, %v9078
      %v9111 = vsub.f32 2.0, %v9079
      %v9112 = vsub.f32 2.0, %v9080
      %v9113 = vsub.f32 2.0, %v9081
      %v9114 = vsub.f32 2.0, %v9082
      %v9115 = vsub.f32 2.0, %v9083
      %v9116 = vsub.f32 2.0, %v9084
      %v9117 = vsub.f32 2.0, %v9085
      %v9118 = vsub.f32 2.0, %v9086
      %v9119 = vsub.f32 2.0, %v9087
      %v9120 = vsub.f32 2.0, %v9088
      %v9121 = vsub.f32 2.0, %v9089
      %v9122 = vsub.f32 2.0, %v9090
      %v9123 = vsub.f32 2.0, %v9091
      %v9124 = vsub.f32 2.0, %v9092
      %v9125 = vsub.f32 2.0, %v9093
      %v9126 = vmul.f32 %v9030, %v9094
      %v9127 = vmul.f32 %v9031, %v9095
      %v9128 = vmul.f32 %v9032, %v9096
      %v9129 = vmul.f32 %v9033, %v9097
      %v9130 = vmul.f32 %v9034, %v9098
      %v9131 = vmul.f32 %v9035, %v9099
      %v9132 = vmul.f32 %v9036, %v9100
      %v9133 = vmul.f32 %v9037, %v9101
      %v9134 = vmul.f32 %v9038, %v9102
      %v9135 = vmul.f32 %v9039, %v9103
      %v9136 = vmul.f32 %v9040, %v9104
      %v9137 = vmul.f32 %v9041, %v9105
      %v9138 = vmul.f32 %v9042, %v9106
      %v9139 = vmul.f32 %v9043, %v9107
      %v9140 = vmul.f32 %v9044, %v9108
      %v9141 = vmul.f32 %v9045, %v9109
      %v9142 = vmul.f32 %v9046, %v9110
      %v9143 = vmul.f32 %v9047, %v9111
      %v9144 = vmul.f32 %v9048, %v9112
      %v9145 = vmul.f32 %v9049, %v9113
      %v9146 = vmul.f32 %v9050, %v9114
      %v9147 = vmul.f32 %v9051, %v9115
      %v9148 = vmul.f32 %v9052, %v9116
      %v9149 = vmul.f32 %v9053, %v9117
      %v9150 = vmul.f32 %v9054, %v9118
      %v9151 = vmul.f32 %v9055, %v9119
      %v9152 = vmul.f32 %v9056, %v9120
      %v9153 = vmul.f32 %v9057, %v9121
      %v9154 = vmul.f32 %v9058, %v9122
      %v9155 = vmul.f32 %v9059, %v9123
      %v9156 = vmul.f32 %v9060, %v9124
      %v9157 = vmul.f32 %v9061, %v9125
      %v9158 = vmul.f32 %v8871, %v9126
      %v9159 = vmul.f32 %v8873, %v9127
      %v9160 = vmul.f32 %v8875, %v9128
      %v9161 = vmul.f32 %v8877, %v9129
      %v9162 = vmul.f32 %v8879, %v9130
      %v9163 = vmul.f32 %v8881, %v9131
      %v9164 = vmul.f32 %v8883, %v9132
      %v9165 = vmul.f32 %v8885, %v9133
      %v9166 = vmul.f32 %v8887, %v9134
      %v9167 = vmul.f32 %v8889, %v9135
      %v9168 = vmul.f32 %v8891, %v9136
      %v9169 = vmul.f32 %v8893, %v9137
      %v9170 = vmul.f32 %v8895, %v9138
      %v9171 = vmul.f32 %v8897, %v9139
      %v9172 = vmul.f32 %v8899, %v9140
      %v9173 = vmul.f32 %v8901, %v9141
      %v9174 = vmul.f32 %v8903, %v9142
      %v9175 = vmul.f32 %v8905, %v9143
      %v9176 = vmul.f32 %v8907, %v9144
      %v9177 = vmul.f32 %v8909, %v9145
      %v9178 = vmul.f32 %v8911, %v9146
      %v9179 = vmul.f32 %v8913, %v9147
      %v9180 = vmul.f32 %v8915, %v9148
      %v9181 = vmul.f32 %v8917, %v9149
      %v9182 = vmul.f32 %v8919, %v9150
      %v9183 = vmul.f32 %v8921, %v9151
      %v9184 = vmul.f32 %v8923, %v9152
      %v9185 = vmul.f32 %v8925, %v9153
      %v9186 = vmul.f32 %v8927, %v9154
      %v9187 = vmul.f32 %v8929, %v9155
      %v9188 = vmul.f32 %v8931, %v9156
      %v9189 = vmul.f32 %v8933, %v9157
      %v9190 = vpack.c.bf16 %v9159, %v9158
      %v9191 = vpack.c.bf16 %v9161, %v9160
      %v9192 = vpack.c.bf16 %v9163, %v9162
      %v9193 = vpack.c.bf16 %v9165, %v9164
      %v9194 = vpack.c.bf16 %v9167, %v9166
      %v9195 = vpack.c.bf16 %v9169, %v9168
      %v9196 = vpack.c.bf16 %v9171, %v9170
      %v9197 = vpack.c.bf16 %v9173, %v9172
      %v9198 = vpack.c.bf16 %v9175, %v9174
      %v9199 = vpack.c.bf16 %v9177, %v9176
      %v9200 = vpack.c.bf16 %v9179, %v9178
      %v9201 = vpack.c.bf16 %v9181, %v9180
      %v9202 = vpack.c.bf16 %v9183, %v9182
      %v9203 = vpack.c.bf16 %v9185, %v9184
      %v9204 = vpack.c.bf16 %v9187, %v9186
      %v9205 = vpack.c.bf16 %v9189, %v9188
      %v9207 = vsel %vm1542, %v9190, 0
      %v9210 = vsel %vm1542, %v9191, 0
      %9212 = vmatprep.subr.bf16.mxu0 0
      %9213 = vmatpush1.bf16.msra.mxu0 0
      %9214 = vmatprep.subr.bf16.mxu0 0
      %9215 = vmatpush1.bf16.msra.mxu0 0
      %9216 = vmatprep.subr.bf16.mxu0 0
      %9217 = vmatpush1.bf16.msra.mxu0 0
      %9218 = vmatprep.subr.bf16.mxu0 0
      %9219 = vmatpush1.bf16.msra.mxu0 0
      %9220 = vmatprep.subr.bf16.mxu0 0
      %9221 = vmatpush1.bf16.msra.mxu0 0
      %9222 = vmatprep.subr.bf16.mxu0 0
      %9223 = vmatpush1.bf16.msra.mxu0 0
      %9224 = vmatprep.subr.bf16.mxu0 0
      %9225 = vmatpush1.bf16.msra.mxu0 %v7838
      %9226 = vmatprep.subr.bf16.mxu0 0
      %9227 = vmatpush1.bf16.msra.mxu0 %v7837
      %9228 = vmatprep.subr.bf16.mxu0 0
      %9229 = vmatpush2.bf16.msra.mxu0 0
      %9230 = vmatprep.subr.bf16.mxu0 0
      %9231 = vmatpush2.bf16.msra.mxu0 0
      %9232 = vmatprep.subr.bf16.mxu0 0
      %9233 = vmatpush2.bf16.msra.mxu0 0
      %9234 = vmatprep.subr.bf16.mxu0 0
      %9235 = vmatpush2.bf16.msra.mxu0 0
      %9236 = vmatprep.subr.bf16.mxu0 0
      %9237 = vmatpush2.bf16.msra.mxu0 0
      %9238 = vmatprep.subr.bf16.mxu0 0
      %9239 = vmatpush2.bf16.msra.mxu0 0
      %9240 = vmatprep.subr.bf16.mxu0 0
      %9241 = vmatpush2.bf16.msra.mxu0 0
      %9242 = vmatprep.subr.bf16.mxu0 0
      %9243 = vmatpush2.bf16.msra.mxu0 0
      %9244 = vmatprep.mubr.bf16.mxu0 0
      %9245 = vmatmul.mubr.bf16.gmra.mxu0 %v9207
      %v9246 = vpop.f32.mrf.mxu0
      %v9247 = vadd.f32 0.0, %v9246
      %v9248 = vpop.f32.mrf.mxu0
      %v9249 = vpop.f32.mrf.mxu0
      %v9250 = vadd.f32 0.0, %v9249
      %v9251 = vpop.f32.mrf.mxu0
      %9252 = vmatprep.mubr.bf16.mxu0 0
      %9253 = vmatmul.mubr.bf16.gmra.mxu0 %v9210
      %v9254 = vpop.f32.mrf.mxu0
      %v9255 = vadd.f32 0.0, %v9254
      %v9256 = vpop.f32.mrf.mxu0
      %v9257 = vpop.f32.mrf.mxu0
      %v9258 = vadd.f32 0.0, %v9257
      %v9259 = vpop.f32.mrf.mxu0
      %9260 = vdwg.mxu0
      %v9262 = vsel %vm1542, %v9192, 0
      %v9265 = vsel %vm1542, %v9193, 0
      %9267 = vmatprep.subr.bf16.mxu0 0
      %9268 = vmatpush1.bf16.msra.mxu0 0
      %9269 = vmatprep.subr.bf16.mxu0 0
      %9270 = vmatpush1.bf16.msra.mxu0 0
      %9271 = vmatprep.subr.bf16.mxu0 0
      %9272 = vmatpush1.bf16.msra.mxu0 0
      %9273 = vmatprep.subr.bf16.mxu0 0
      %9274 = vmatpush1.bf16.msra.mxu0 0
      %9275 = vmatprep.subr.bf16.mxu0 0
      %9276 = vmatpush1.bf16.msra.mxu0 0
      %9277 = vmatprep.subr.bf16.mxu0 0
      %9278 = vmatpush1.bf16.msra.mxu0 0
      %9279 = vmatprep.subr.bf16.mxu0 0
      %9280 = vmatpush1.bf16.msra.mxu0 %v7840
      %9281 = vmatprep.subr.bf16.mxu0 0
      %9282 = vmatpush1.bf16.msra.mxu0 %v7839
      %9283 = vmatprep.subr.bf16.mxu0 0
      %9284 = vmatpush2.bf16.msra.mxu0 0
      %9285 = vmatprep.subr.bf16.mxu0 0
      %9286 = vmatpush2.bf16.msra.mxu0 0
      %9287 = vmatprep.subr.bf16.mxu0 0
      %9288 = vmatpush2.bf16.msra.mxu0 0
      %9289 = vmatprep.subr.bf16.mxu0 0
      %9290 = vmatpush2.bf16.msra.mxu0 0
      %9291 = vmatprep.subr.bf16.mxu0 0
      %9292 = vmatpush2.bf16.msra.mxu0 0
      %9293 = vmatprep.subr.bf16.mxu0 0
      %9294 = vmatpush2.bf16.msra.mxu0 0
      %9295 = vmatprep.subr.bf16.mxu0 0
      %9296 = vmatpush2.bf16.msra.mxu0 0
      %9297 = vmatprep.subr.bf16.mxu0 0
      %9298 = vmatpush2.bf16.msra.mxu0 0
      %9299 = vmatprep.mubr.bf16.mxu0 0
      %9300 = vmatmul.mubr.bf16.gmra.mxu0 %v9262
      %v9301 = vpop.f32.mrf.mxu0
      %v9302 = vadd.f32 0.0, %v9301
      %v9303 = vpop.f32.mrf.mxu0
      %v9304 = vpop.f32.mrf.mxu0
      %v9305 = vadd.f32 0.0, %v9304
      %v9306 = vpop.f32.mrf.mxu0
      %9307 = vmatprep.mubr.bf16.mxu0 0
      %9308 = vmatmul.mubr.bf16.gmra.mxu0 %v9265
      %v9309 = vpop.f32.mrf.mxu0
      %v9310 = vadd.f32 0.0, %v9309
      %v9311 = vpop.f32.mrf.mxu0
      %v9312 = vpop.f32.mrf.mxu0
      %v9313 = vadd.f32 0.0, %v9312
      %v9314 = vpop.f32.mrf.mxu0
      %9315 = vdwg.mxu0
      %v9317 = vsel %vm1542, %v9194, 0
      %v9320 = vsel %vm1542, %v9195, 0
      %9322 = vmatprep.subr.bf16.mxu0 0
      %9323 = vmatpush1.bf16.msra.mxu0 0
      %9324 = vmatprep.subr.bf16.mxu0 0
      %9325 = vmatpush1.bf16.msra.mxu0 0
      %9326 = vmatprep.subr.bf16.mxu0 0
      %9327 = vmatpush1.bf16.msra.mxu0 0
      %9328 = vmatprep.subr.bf16.mxu0 0
      %9329 = vmatpush1.bf16.msra.mxu0 0
      %9330 = vmatprep.subr.bf16.mxu0 0
      %9331 = vmatpush1.bf16.msra.mxu0 0
      %9332 = vmatprep.subr.bf16.mxu0 0
      %9333 = vmatpush1.bf16.msra.mxu0 0
      %9334 = vmatprep.subr.bf16.mxu0 0
      %9335 = vmatpush1.bf16.msra.mxu0 %v7842
      %9336 = vmatprep.subr.bf16.mxu0 0
      %9337 = vmatpush1.bf16.msra.mxu0 %v7841
      %9338 = vmatprep.subr.bf16.mxu0 0
      %9339 = vmatpush2.bf16.msra.mxu0 0
      %9340 = vmatprep.subr.bf16.mxu0 0
      %9341 = vmatpush2.bf16.msra.mxu0 0
      %9342 = vmatprep.subr.bf16.mxu0 0
      %9343 = vmatpush2.bf16.msra.mxu0 0
      %9344 = vmatprep.subr.bf16.mxu0 0
      %9345 = vmatpush2.bf16.msra.mxu0 0
      %9346 = vmatprep.subr.bf16.mxu0 0
      %9347 = vmatpush2.bf16.msra.mxu0 0
      %9348 = vmatprep.subr.bf16.mxu0 0
      %9349 = vmatpush2.bf16.msra.mxu0 0
      %9350 = vmatprep.subr.bf16.mxu0 0
      %9351 = vmatpush2.bf16.msra.mxu0 0
      %9352 = vmatprep.subr.bf16.mxu0 0
      %9353 = vmatpush2.bf16.msra.mxu0 0
      %9354 = vmatprep.mubr.bf16.mxu0 0
      %9355 = vmatmul.mubr.bf16.gmra.mxu0 %v9317
      %v9356 = vpop.f32.mrf.mxu0
      %v9357 = vadd.f32 0.0, %v9356
      %v9358 = vpop.f32.mrf.mxu0
      %v9359 = vpop.f32.mrf.mxu0
      %v9360 = vadd.f32 0.0, %v9359
      %v9361 = vpop.f32.mrf.mxu0
      %9362 = vmatprep.mubr.bf16.mxu0 0
      %9363 = vmatmul.mubr.bf16.gmra.mxu0 %v9320
      %v9364 = vpop.f32.mrf.mxu0
      %v9365 = vadd.f32 0.0, %v9364
      %v9366 = vpop.f32.mrf.mxu0
      %v9367 = vpop.f32.mrf.mxu0
      %v9368 = vadd.f32 0.0, %v9367
      %v9369 = vpop.f32.mrf.mxu0
      %9370 = vdwg.mxu0
      %v9372 = vsel %vm1542, %v9196, 0
      %v9375 = vsel %vm1542, %v9197, 0
      %9377 = vmatprep.subr.bf16.mxu0 0
      %9378 = vmatpush1.bf16.msra.mxu0 0
      %9379 = vmatprep.subr.bf16.mxu0 0
      %9380 = vmatpush1.bf16.msra.mxu0 0
      %9381 = vmatprep.subr.bf16.mxu0 0
      %9382 = vmatpush1.bf16.msra.mxu0 0
      %9383 = vmatprep.subr.bf16.mxu0 0
      %9384 = vmatpush1.bf16.msra.mxu0 0
      %9385 = vmatprep.subr.bf16.mxu0 0
      %9386 = vmatpush1.bf16.msra.mxu0 0
      %9387 = vmatprep.subr.bf16.mxu0 0
      %9388 = vmatpush1.bf16.msra.mxu0 0
      %9389 = vmatprep.subr.bf16.mxu0 0
      %9390 = vmatpush1.bf16.msra.mxu0 %v7844
      %9391 = vmatprep.subr.bf16.mxu0 0
      %9392 = vmatpush1.bf16.msra.mxu0 %v7843
      %9393 = vmatprep.subr.bf16.mxu0 0
      %9394 = vmatpush2.bf16.msra.mxu0 0
      %9395 = vmatprep.subr.bf16.mxu0 0
      %9396 = vmatpush2.bf16.msra.mxu0 0
      %9397 = vmatprep.subr.bf16.mxu0 0
      %9398 = vmatpush2.bf16.msra.mxu0 0
      %9399 = vmatprep.subr.bf16.mxu0 0
      %9400 = vmatpush2.bf16.msra.mxu0 0
      %9401 = vmatprep.subr.bf16.mxu0 0
      %9402 = vmatpush2.bf16.msra.mxu0 0
      %9403 = vmatprep.subr.bf16.mxu0 0
      %9404 = vmatpush2.bf16.msra.mxu0 0
      %9405 = vmatprep.subr.bf16.mxu0 0
      %9406 = vmatpush2.bf16.msra.mxu0 0
      %9407 = vmatprep.subr.bf16.mxu0 0
      %9408 = vmatpush2.bf16.msra.mxu0 0
      %9409 = vmatprep.mubr.bf16.mxu0 0
      %9410 = vmatmul.mubr.bf16.gmra.mxu0 %v9372
      %v9411 = vpop.f32.mrf.mxu0
      %v9412 = vadd.f32 0.0, %v9411
      %v9413 = vpop.f32.mrf.mxu0
      %v9414 = vpop.f32.mrf.mxu0
      %v9415 = vadd.f32 0.0, %v9414
      %v9416 = vpop.f32.mrf.mxu0
      %9417 = vmatprep.mubr.bf16.mxu0 0
      %9418 = vmatmul.mubr.bf16.gmra.mxu0 %v9375
      %v9419 = vpop.f32.mrf.mxu0
      %v9420 = vadd.f32 0.0, %v9419
      %v9421 = vpop.f32.mrf.mxu0
      %v9422 = vpop.f32.mrf.mxu0
      %v9423 = vadd.f32 0.0, %v9422
      %v9424 = vpop.f32.mrf.mxu0
      %9425 = vdwg.mxu0
      %v9427 = vsel %vm1542, %v9198, 0
      %v9430 = vsel %vm1542, %v9199, 0
      %9432 = vmatprep.subr.bf16.mxu0 0
      %9433 = vmatpush1.bf16.msra.mxu0 0
      %9434 = vmatprep.subr.bf16.mxu0 0
      %9435 = vmatpush1.bf16.msra.mxu0 0
      %9436 = vmatprep.subr.bf16.mxu0 0
      %9437 = vmatpush1.bf16.msra.mxu0 0
      %9438 = vmatprep.subr.bf16.mxu0 0
      %9439 = vmatpush1.bf16.msra.mxu0 0
      %9440 = vmatprep.subr.bf16.mxu0 0
      %9441 = vmatpush1.bf16.msra.mxu0 0
      %9442 = vmatprep.subr.bf16.mxu0 0
      %9443 = vmatpush1.bf16.msra.mxu0 0
      %9444 = vmatprep.subr.bf16.mxu0 0
      %9445 = vmatpush1.bf16.msra.mxu0 %v7846
      %9446 = vmatprep.subr.bf16.mxu0 0
      %9447 = vmatpush1.bf16.msra.mxu0 %v7845
      %9448 = vmatprep.subr.bf16.mxu0 0
      %9449 = vmatpush2.bf16.msra.mxu0 0
      %9450 = vmatprep.subr.bf16.mxu0 0
      %9451 = vmatpush2.bf16.msra.mxu0 0
      %9452 = vmatprep.subr.bf16.mxu0 0
      %9453 = vmatpush2.bf16.msra.mxu0 0
      %9454 = vmatprep.subr.bf16.mxu0 0
      %9455 = vmatpush2.bf16.msra.mxu0 0
      %9456 = vmatprep.subr.bf16.mxu0 0
      %9457 = vmatpush2.bf16.msra.mxu0 0
      %9458 = vmatprep.subr.bf16.mxu0 0
      %9459 = vmatpush2.bf16.msra.mxu0 0
      %9460 = vmatprep.subr.bf16.mxu0 0
      %9461 = vmatpush2.bf16.msra.mxu0 0
      %9462 = vmatprep.subr.bf16.mxu0 0
      %9463 = vmatpush2.bf16.msra.mxu0 0
      %9464 = vmatprep.mubr.bf16.mxu0 0
      %9465 = vmatmul.mubr.bf16.gmra.mxu0 %v9427
      %v9466 = vpop.f32.mrf.mxu0
      %v9467 = vadd.f32 0.0, %v9466
      %v9468 = vpop.f32.mrf.mxu0
      %v9469 = vpop.f32.mrf.mxu0
      %v9470 = vadd.f32 0.0, %v9469
      %v9471 = vpop.f32.mrf.mxu0
      %9472 = vmatprep.mubr.bf16.mxu0 0
      %9473 = vmatmul.mubr.bf16.gmra.mxu0 %v9430
      %v9474 = vpop.f32.mrf.mxu0
      %v9475 = vadd.f32 0.0, %v9474
      %v9476 = vpop.f32.mrf.mxu0
      %v9477 = vpop.f32.mrf.mxu0
      %v9478 = vadd.f32 0.0, %v9477
      %v9479 = vpop.f32.mrf.mxu0
      %9480 = vdwg.mxu0
      %v9482 = vsel %vm1542, %v9200, 0
      %v9485 = vsel %vm1542, %v9201, 0
      %9487 = vmatprep.subr.bf16.mxu0 0
      %9488 = vmatpush1.bf16.msra.mxu0 0
      %9489 = vmatprep.subr.bf16.mxu0 0
      %9490 = vmatpush1.bf16.msra.mxu0 0
      %9491 = vmatprep.subr.bf16.mxu0 0
      %9492 = vmatpush1.bf16.msra.mxu0 0
      %9493 = vmatprep.subr.bf16.mxu0 0
      %9494 = vmatpush1.bf16.msra.mxu0 0
      %9495 = vmatprep.subr.bf16.mxu0 0
      %9496 = vmatpush1.bf16.msra.mxu0 0
      %9497 = vmatprep.subr.bf16.mxu0 0
      %9498 = vmatpush1.bf16.msra.mxu0 0
      %9499 = vmatprep.subr.bf16.mxu0 0
      %9500 = vmatpush1.bf16.msra.mxu0 %v7848
      %9501 = vmatprep.subr.bf16.mxu0 0
      %9502 = vmatpush1.bf16.msra.mxu0 %v7847
      %9503 = vmatprep.subr.bf16.mxu0 0
      %9504 = vmatpush2.bf16.msra.mxu0 0
      %9505 = vmatprep.subr.bf16.mxu0 0
      %9506 = vmatpush2.bf16.msra.mxu0 0
      %9507 = vmatprep.subr.bf16.mxu0 0
      %9508 = vmatpush2.bf16.msra.mxu0 0
      %9509 = vmatprep.subr.bf16.mxu0 0
      %9510 = vmatpush2.bf16.msra.mxu0 0
      %9511 = vmatprep.subr.bf16.mxu0 0
      %9512 = vmatpush2.bf16.msra.mxu0 0
      %9513 = vmatprep.subr.bf16.mxu0 0
      %9514 = vmatpush2.bf16.msra.mxu0 0
      %9515 = vmatprep.subr.bf16.mxu0 0
      %9516 = vmatpush2.bf16.msra.mxu0 0
      %9517 = vmatprep.subr.bf16.mxu0 0
      %9518 = vmatpush2.bf16.msra.mxu0 0
      %9519 = vmatprep.mubr.bf16.mxu0 0
      %9520 = vmatmul.mubr.bf16.gmra.mxu0 %v9482
      %v9521 = vpop.f32.mrf.mxu0
      %v9522 = vadd.f32 0.0, %v9521
      %v9523 = vpop.f32.mrf.mxu0
      %v9524 = vpop.f32.mrf.mxu0
      %v9525 = vadd.f32 0.0, %v9524
      %v9526 = vpop.f32.mrf.mxu0
      %9527 = vmatprep.mubr.bf16.mxu0 0
      %9528 = vmatmul.mubr.bf16.gmra.mxu0 %v9485
      %v9529 = vpop.f32.mrf.mxu0
      %v9530 = vadd.f32 0.0, %v9529
      %v9531 = vpop.f32.mrf.mxu0
      %v9532 = vpop.f32.mrf.mxu0
      %v9533 = vadd.f32 0.0, %v9532
      %v9534 = vpop.f32.mrf.mxu0
      %9535 = vdwg.mxu0
      %v9537 = vsel %vm1542, %v9202, 0
      %v9540 = vsel %vm1542, %v9203, 0
      %9542 = vmatprep.subr.bf16.mxu0 0
      %9543 = vmatpush1.bf16.msra.mxu0 0
      %9544 = vmatprep.subr.bf16.mxu0 0
      %9545 = vmatpush1.bf16.msra.mxu0 0
      %9546 = vmatprep.subr.bf16.mxu0 0
      %9547 = vmatpush1.bf16.msra.mxu0 0
      %9548 = vmatprep.subr.bf16.mxu0 0
      %9549 = vmatpush1.bf16.msra.mxu0 0
      %9550 = vmatprep.subr.bf16.mxu0 0
      %9551 = vmatpush1.bf16.msra.mxu0 0
      %9552 = vmatprep.subr.bf16.mxu0 0
      %9553 = vmatpush1.bf16.msra.mxu0 0
      %9554 = vmatprep.subr.bf16.mxu0 0
      %9555 = vmatpush1.bf16.msra.mxu0 %v7850
      %9556 = vmatprep.subr.bf16.mxu0 0
      %9557 = vmatpush1.bf16.msra.mxu0 %v7849
      %9558 = vmatprep.subr.bf16.mxu0 0
      %9559 = vmatpush2.bf16.msra.mxu0 0
      %9560 = vmatprep.subr.bf16.mxu0 0
      %9561 = vmatpush2.bf16.msra.mxu0 0
      %9562 = vmatprep.subr.bf16.mxu0 0
      %9563 = vmatpush2.bf16.msra.mxu0 0
      %9564 = vmatprep.subr.bf16.mxu0 0
      %9565 = vmatpush2.bf16.msra.mxu0 0
      %9566 = vmatprep.subr.bf16.mxu0 0
      %9567 = vmatpush2.bf16.msra.mxu0 0
      %9568 = vmatprep.subr.bf16.mxu0 0
      %9569 = vmatpush2.bf16.msra.mxu0 0
      %9570 = vmatprep.subr.bf16.mxu0 0
      %9571 = vmatpush2.bf16.msra.mxu0 0
      %9572 = vmatprep.subr.bf16.mxu0 0
      %9573 = vmatpush2.bf16.msra.mxu0 0
      %9574 = vmatprep.mubr.bf16.mxu0 0
      %9575 = vmatmul.mubr.bf16.gmra.mxu0 %v9537
      %v9576 = vpop.f32.mrf.mxu0
      %v9577 = vadd.f32 0.0, %v9576
      %v9578 = vpop.f32.mrf.mxu0
      %v9579 = vpop.f32.mrf.mxu0
      %v9580 = vadd.f32 0.0, %v9579
      %v9581 = vpop.f32.mrf.mxu0
      %9582 = vmatprep.mubr.bf16.mxu0 0
      %9583 = vmatmul.mubr.bf16.gmra.mxu0 %v9540
      %v9584 = vpop.f32.mrf.mxu0
      %v9585 = vadd.f32 0.0, %v9584
      %v9586 = vpop.f32.mrf.mxu0
      %v9587 = vpop.f32.mrf.mxu0
      %v9588 = vadd.f32 0.0, %v9587
      %v9589 = vpop.f32.mrf.mxu0
      %9590 = vdwg.mxu0
      %v9592 = vsel %vm1542, %v9204, 0
      %v9595 = vsel %vm1542, %v9205, 0
      %9597 = vmatprep.subr.bf16.mxu0 0
      %9598 = vmatpush1.bf16.msra.mxu0 0
      %9599 = vmatprep.subr.bf16.mxu0 0
      %9600 = vmatpush1.bf16.msra.mxu0 0
      %9601 = vmatprep.subr.bf16.mxu0 0
      %9602 = vmatpush1.bf16.msra.mxu0 0
      %9603 = vmatprep.subr.bf16.mxu0 0
      %9604 = vmatpush1.bf16.msra.mxu0 0
      %9605 = vmatprep.subr.bf16.mxu0 0
      %9606 = vmatpush1.bf16.msra.mxu0 0
      %9607 = vmatprep.subr.bf16.mxu0 0
      %9608 = vmatpush1.bf16.msra.mxu0 0
      %9609 = vmatprep.subr.bf16.mxu0 0
      %9610 = vmatpush1.bf16.msra.mxu0 %v7852
      %9611 = vmatprep.subr.bf16.mxu0 0
      %9612 = vmatpush1.bf16.msra.mxu0 %v7851
      %9613 = vmatprep.subr.bf16.mxu0 0
      %9614 = vmatpush2.bf16.msra.mxu0 0
      %9615 = vmatprep.subr.bf16.mxu0 0
      %9616 = vmatpush2.bf16.msra.mxu0 0
      %9617 = vmatprep.subr.bf16.mxu0 0
      %9618 = vmatpush2.bf16.msra.mxu0 0
      %9619 = vmatprep.subr.bf16.mxu0 0
      %9620 = vmatpush2.bf16.msra.mxu0 0
      %9621 = vmatprep.subr.bf16.mxu0 0
      %9622 = vmatpush2.bf16.msra.mxu0 0
      %9623 = vmatprep.subr.bf16.mxu0 0
      %9624 = vmatpush2.bf16.msra.mxu0 0
      %9625 = vmatprep.subr.bf16.mxu0 0
      %9626 = vmatpush2.bf16.msra.mxu0 0
      %9627 = vmatprep.subr.bf16.mxu0 0
      %9628 = vmatpush2.bf16.msra.mxu0 0
      %9629 = vmatprep.mubr.bf16.mxu0 0
      %9630 = vmatmul.mubr.bf16.gmra.mxu0 %v9592
      %v9631 = vpop.f32.mrf.mxu0
      %v9632 = vadd.f32 0.0, %v9631
      %v9633 = vpop.f32.mrf.mxu0
      %v9634 = vpop.f32.mrf.mxu0
      %v9635 = vadd.f32 0.0, %v9634
      %v9636 = vpop.f32.mrf.mxu0
      %9637 = vmatprep.mubr.bf16.mxu0 0
      %9638 = vmatmul.mubr.bf16.gmra.mxu0 %v9595
      %v9639 = vpop.f32.mrf.mxu0
      %v9640 = vadd.f32 0.0, %v9639
      %v9641 = vpop.f32.mrf.mxu0
      %v9642 = vpop.f32.mrf.mxu0
      %v9643 = vadd.f32 0.0, %v9642
      %v9644 = vpop.f32.mrf.mxu0
      %9645 = vdwg.mxu0
      %v9646 = vlaneseq
      %v9647 = vshrl.u32 %v9646, 7
      %v9648 = vsub.s32 0, %v9647
      %v9649 = vrot.slane %v7604, %v9648
      %v9650 = vmul.f32 %v9247, %v9649
      %v9651 = vmul.f32 %v9250, %v9649
      %v9652 = vmul.f32 %v9255, %v9649
      %v9653 = vmul.f32 %v9258, %v9649
      %v9654 = vmul.f32 %v9302, %v9649
      %v9655 = vmul.f32 %v9305, %v9649
      %v9656 = vmul.f32 %v9310, %v9649
      %v9657 = vmul.f32 %v9313, %v9649
      %v9658 = vmul.f32 %v9357, %v9649
      %v9659 = vmul.f32 %v9360, %v9649
      %v9660 = vmul.f32 %v9365, %v9649
      %v9661 = vmul.f32 %v9368, %v9649
      %v9662 = vmul.f32 %v9412, %v9649
      %v9663 = vmul.f32 %v9415, %v9649
      %v9664 = vmul.f32 %v9420, %v9649
      %v9665 = vmul.f32 %v9423, %v9649
      %v9666 = vmul.f32 %v9467, %v9649
      %v9667 = vmul.f32 %v9470, %v9649
      %v9668 = vmul.f32 %v9475, %v9649
      %v9669 = vmul.f32 %v9478, %v9649
      %v9670 = vmul.f32 %v9522, %v9649
      %v9671 = vmul.f32 %v9525, %v9649
      %v9672 = vmul.f32 %v9530, %v9649
      %v9673 = vmul.f32 %v9533, %v9649
      %v9674 = vmul.f32 %v9577, %v9649
      %v9675 = vmul.f32 %v9580, %v9649
      %v9676 = vmul.f32 %v9585, %v9649
      %v9677 = vmul.f32 %v9588, %v9649
      %v9678 = vmul.f32 %v9632, %v9649
      %v9679 = vmul.f32 %v9635, %v9649
      %v9680 = vmul.f32 %v9640, %v9649
      %v9681 = vmul.f32 %v9643, %v9649
      %v9682 = vlaneseq
      %v9683 = vshrl.u32 %v9682, 7
      %v9684 = vsub.s32 0, %v9683
      %v9685 = vrot.slane %v7605, %v9684
      %v9686 = vadd.f32 %v9650, %v9685
      %v9687 = vadd.f32 %v9651, %v9685
      %v9688 = vadd.f32 %v9652, %v9685
      %v9689 = vadd.f32 %v9653, %v9685
      %v9690 = vadd.f32 %v9654, %v9685
      %v9691 = vadd.f32 %v9655, %v9685
      %v9692 = vadd.f32 %v9656, %v9685
      %v9693 = vadd.f32 %v9657, %v9685
      %v9694 = vadd.f32 %v9658, %v9685
      %v9695 = vadd.f32 %v9659, %v9685
      %v9696 = vadd.f32 %v9660, %v9685
      %v9697 = vadd.f32 %v9661, %v9685
      %v9698 = vadd.f32 %v9662, %v9685
      %v9699 = vadd.f32 %v9663, %v9685
      %v9700 = vadd.f32 %v9664, %v9685
      %v9701 = vadd.f32 %v9665, %v9685
      %v9702 = vadd.f32 %v9666, %v9685
      %v9703 = vadd.f32 %v9667, %v9685
      %v9704 = vadd.f32 %v9668, %v9685
      %v9705 = vadd.f32 %v9669, %v9685
      %v9706 = vadd.f32 %v9670, %v9685
      %v9707 = vadd.f32 %v9671, %v9685
      %v9708 = vadd.f32 %v9672, %v9685
      %v9709 = vadd.f32 %v9673, %v9685
      %v9710 = vadd.f32 %v9674, %v9685
      %v9711 = vadd.f32 %v9675, %v9685
      %v9712 = vadd.f32 %v9676, %v9685
      %v9713 = vadd.f32 %v9677, %v9685
      %v9714 = vadd.f32 %v9678, %v9685
      %v9715 = vadd.f32 %v9679, %v9685
      %v9716 = vadd.f32 %v9680, %v9685
      %v9717 = vadd.f32 %v9681, %v9685
      %v9718 = vmax.f32 %v9686, 0.0
      %v9719 = vmax.f32 %v9687, 0.0
      %v9720 = vmax.f32 %v9688, 0.0
      %v9721 = vmax.f32 %v9689, 0.0
      %v9722 = vmax.f32 %v9690, 0.0
      %v9723 = vmax.f32 %v9691, 0.0
      %v9724 = vmax.f32 %v9692, 0.0
      %v9725 = vmax.f32 %v9693, 0.0
      %v9726 = vmax.f32 %v9694, 0.0
      %v9727 = vmax.f32 %v9695, 0.0
      %v9728 = vmax.f32 %v9696, 0.0
      %v9729 = vmax.f32 %v9697, 0.0
      %v9730 = vmax.f32 %v9698, 0.0
      %v9731 = vmax.f32 %v9699, 0.0
      %v9732 = vmax.f32 %v9700, 0.0
      %v9733 = vmax.f32 %v9701, 0.0
      %v9734 = vmax.f32 %v9702, 0.0
      %v9735 = vmax.f32 %v9703, 0.0
      %v9736 = vmax.f32 %v9704, 0.0
      %v9737 = vmax.f32 %v9705, 0.0
      %v9738 = vmax.f32 %v9706, 0.0
      %v9739 = vmax.f32 %v9707, 0.0
      %v9740 = vmax.f32 %v9708, 0.0
      %v9741 = vmax.f32 %v9709, 0.0
      %v9742 = vmax.f32 %v9710, 0.0
      %v9743 = vmax.f32 %v9711, 0.0
      %v9744 = vmax.f32 %v9712, 0.0
      %v9745 = vmax.f32 %v9713, 0.0
      %v9746 = vmax.f32 %v9714, 0.0
      %v9747 = vmax.f32 %v9715, 0.0
      %v9748 = vmax.f32 %v9716, 0.0
      %v9749 = vmax.f32 %v9717, 0.0
      %v9750 = vsel %vm7853, %v9718, -inf
      %9751 = vmax.xlane.f32.xlu0 %v9750
      %v9752 = vpop.xlane.xlu0 %9751
      %v9753 = vsel %vm7853, %v9719, -inf
      %9754 = vmax.xlane.f32.xlu0 %v9753
      %v9755 = vpop.xlane.xlu0 %9754
      %v9756 = vsel %vm7853, %v9720, -inf
      %9757 = vmax.xlane.f32.xlu0 %v9756
      %v9758 = vpop.xlane.xlu0 %9757
      %v9759 = vsel %vm7853, %v9721, -inf
      %9760 = vmax.xlane.f32.xlu0 %v9759
      %v9761 = vpop.xlane.xlu0 %9760
      %v9762 = vsel %vm7853, %v9722, -inf
      %9763 = vmax.xlane.f32.xlu0 %v9762
      %v9764 = vpop.xlane.xlu0 %9763
      %v9765 = vsel %vm7853, %v9723, -inf
      %9766 = vmax.xlane.f32.xlu0 %v9765
      %v9767 = vpop.xlane.xlu0 %9766
      %v9768 = vsel %vm7853, %v9724, -inf
      %9769 = vmax.xlane.f32.xlu0 %v9768
      %v9770 = vpop.xlane.xlu0 %9769
      %v9771 = vsel %vm7853, %v9725, -inf
      %9772 = vmax.xlane.f32.xlu0 %v9771
      %v9773 = vpop.xlane.xlu0 %9772
      %v9774 = vsel %vm7853, %v9726, -inf
      %9775 = vmax.xlane.f32.xlu0 %v9774
      %v9776 = vpop.xlane.xlu0 %9775
      %v9777 = vsel %vm7853, %v9727, -inf
      %9778 = vmax.xlane.f32.xlu0 %v9777
      %v9779 = vpop.xlane.xlu0 %9778
      %v9780 = vsel %vm7853, %v9728, -inf
      %9781 = vmax.xlane.f32.xlu0 %v9780
      %v9782 = vpop.xlane.xlu0 %9781
      %v9783 = vsel %vm7853, %v9729, -inf
      %9784 = vmax.xlane.f32.xlu0 %v9783
      %v9785 = vpop.xlane.xlu0 %9784
      %v9786 = vsel %vm7853, %v9730, -inf
      %9787 = vmax.xlane.f32.xlu0 %v9786
      %v9788 = vpop.xlane.xlu0 %9787
      %v9789 = vsel %vm7853, %v9731, -inf
      %9790 = vmax.xlane.f32.xlu0 %v9789
      %v9791 = vpop.xlane.xlu0 %9790
      %v9792 = vsel %vm7853, %v9732, -inf
      %9793 = vmax.xlane.f32.xlu0 %v9792
      %v9794 = vpop.xlane.xlu0 %9793
      %v9795 = vsel %vm7853, %v9733, -inf
      %9796 = vmax.xlane.f32.xlu0 %v9795
      %v9797 = vpop.xlane.xlu0 %9796
      %v9798 = vsel %vm7853, %v9734, -inf
      %9799 = vmax.xlane.f32.xlu0 %v9798
      %v9800 = vpop.xlane.xlu0 %9799
      %v9801 = vsel %vm7853, %v9735, -inf
      %9802 = vmax.xlane.f32.xlu0 %v9801
      %v9803 = vpop.xlane.xlu0 %9802
      %v9804 = vsel %vm7853, %v9736, -inf
      %9805 = vmax.xlane.f32.xlu0 %v9804
      %v9806 = vpop.xlane.xlu0 %9805
      %v9807 = vsel %vm7853, %v9737, -inf
      %9808 = vmax.xlane.f32.xlu0 %v9807
      %v9809 = vpop.xlane.xlu0 %9808
      %v9810 = vsel %vm7853, %v9738, -inf
      %9811 = vmax.xlane.f32.xlu0 %v9810
      %v9812 = vpop.xlane.xlu0 %9811
      %v9813 = vsel %vm7853, %v9739, -inf
      %9814 = vmax.xlane.f32.xlu0 %v9813
      %v9815 = vpop.xlane.xlu0 %9814
      %v9816 = vsel %vm7853, %v9740, -inf
      %9817 = vmax.xlane.f32.xlu0 %v9816
      %v9818 = vpop.xlane.xlu0 %9817
      %v9819 = vsel %vm7853, %v9741, -inf
      %9820 = vmax.xlane.f32.xlu0 %v9819
      %v9821 = vpop.xlane.xlu0 %9820
      %v9822 = vsel %vm7853, %v9742, -inf
      %9823 = vmax.xlane.f32.xlu0 %v9822
      %v9824 = vpop.xlane.xlu0 %9823
      %v9825 = vsel %vm7853, %v9743, -inf
      %9826 = vmax.xlane.f32.xlu0 %v9825
      %v9827 = vpop.xlane.xlu0 %9826
      %v9828 = vsel %vm7853, %v9744, -inf
      %9829 = vmax.xlane.f32.xlu0 %v9828
      %v9830 = vpop.xlane.xlu0 %9829
      %v9831 = vsel %vm7853, %v9745, -inf
      %9832 = vmax.xlane.f32.xlu0 %v9831
      %v9833 = vpop.xlane.xlu0 %9832
      %v9834 = vsel %vm7853, %v9746, -inf
      %9835 = vmax.xlane.f32.xlu0 %v9834
      %v9836 = vpop.xlane.xlu0 %9835
      %v9837 = vsel %vm7853, %v9747, -inf
      %9838 = vmax.xlane.f32.xlu0 %v9837
      %v9839 = vpop.xlane.xlu0 %9838
      %v9840 = vsel %vm7853, %v9748, -inf
      %9841 = vmax.xlane.f32.xlu0 %v9840
      %v9842 = vpop.xlane.xlu0 %9841
      %v9843 = vsel %vm7853, %v9749, -inf
      %9844 = vmax.xlane.f32.xlu0 %v9843
      %v9845 = vpop.xlane.xlu0 %9844
      %v9846 = vsub.f32 %v9718, %v9752
      %v9847 = vsub.f32 %v9719, %v9755
      %v9848 = vsub.f32 %v9720, %v9758
      %v9849 = vsub.f32 %v9721, %v9761
      %v9850 = vsub.f32 %v9722, %v9764
      %v9851 = vsub.f32 %v9723, %v9767
      %v9852 = vsub.f32 %v9724, %v9770
      %v9853 = vsub.f32 %v9725, %v9773
      %v9854 = vsub.f32 %v9726, %v9776
      %v9855 = vsub.f32 %v9727, %v9779
      %v9856 = vsub.f32 %v9728, %v9782
      %v9857 = vsub.f32 %v9729, %v9785
      %v9858 = vsub.f32 %v9730, %v9788
      %v9859 = vsub.f32 %v9731, %v9791
      %v9860 = vsub.f32 %v9732, %v9794
      %v9861 = vsub.f32 %v9733, %v9797
      %v9862 = vsub.f32 %v9734, %v9800
      %v9863 = vsub.f32 %v9735, %v9803
      %v9864 = vsub.f32 %v9736, %v9806
      %v9865 = vsub.f32 %v9737, %v9809
      %v9866 = vsub.f32 %v9738, %v9812
      %v9867 = vsub.f32 %v9739, %v9815
      %v9868 = vsub.f32 %v9740, %v9818
      %v9869 = vsub.f32 %v9741, %v9821
      %v9870 = vsub.f32 %v9742, %v9824
      %v9871 = vsub.f32 %v9743, %v9827
      %v9872 = vsub.f32 %v9744, %v9830
      %v9873 = vsub.f32 %v9745, %v9833
      %v9874 = vsub.f32 %v9746, %v9836
      %v9875 = vsub.f32 %v9747, %v9839
      %v9876 = vsub.f32 %v9748, %v9842
      %v9877 = vsub.f32 %v9749, %v9845
      %v9878 = vmul.f32 %v9846, 1.442695
      %v9879 = vpow.pop %v9878
      %v9880 = vmul.f32 %v9847, 1.442695
      %v9881 = vpow.pop %v9880
      %v9882 = vmul.f32 %v9848, 1.442695
      %v9883 = vpow.pop %v9882
      %v9884 = vmul.f32 %v9849, 1.442695
      %v9885 = vpow.pop %v9884
      %v9886 = vmul.f32 %v9850, 1.442695
      %v9887 = vpow.pop %v9886
      %v9888 = vmul.f32 %v9851, 1.442695
      %v9889 = vpow.pop %v9888
      %v9890 = vmul.f32 %v9852, 1.442695
      %v9891 = vpow.pop %v9890
      %v9892 = vmul.f32 %v9853, 1.442695
      %v9893 = vpow.pop %v9892
      %v9894 = vmul.f32 %v9854, 1.442695
      %v9895 = vpow.pop %v9894
      %v9896 = vmul.f32 %v9855, 1.442695
      %v9897 = vpow.pop %v9896
      %v9898 = vmul.f32 %v9856, 1.442695
      %v9899 = vpow.pop %v9898
      %v9900 = vmul.f32 %v9857, 1.442695
      %v9901 = vpow.pop %v9900
      %v9902 = vmul.f32 %v9858, 1.442695
      %v9903 = vpow.pop %v9902
      %v9904 = vmul.f32 %v9859, 1.442695
      %v9905 = vpow.pop %v9904
      %v9906 = vmul.f32 %v9860, 1.442695
      %v9907 = vpow.pop %v9906
      %v9908 = vmul.f32 %v9861, 1.442695
      %v9909 = vpow.pop %v9908
      %v9910 = vmul.f32 %v9862, 1.442695
      %v9911 = vpow.pop %v9910
      %v9912 = vmul.f32 %v9863, 1.442695
      %v9913 = vpow.pop %v9912
      %v9914 = vmul.f32 %v9864, 1.442695
      %v9915 = vpow.pop %v9914
      %v9916 = vmul.f32 %v9865, 1.442695
      %v9917 = vpow.pop %v9916
      %v9918 = vmul.f32 %v9866, 1.442695
      %v9919 = vpow.pop %v9918
      %v9920 = vmul.f32 %v9867, 1.442695
      %v9921 = vpow.pop %v9920
      %v9922 = vmul.f32 %v9868, 1.442695
      %v9923 = vpow.pop %v9922
      %v9924 = vmul.f32 %v9869, 1.442695
      %v9925 = vpow.pop %v9924
      %v9926 = vmul.f32 %v9870, 1.442695
      %v9927 = vpow.pop %v9926
      %v9928 = vmul.f32 %v9871, 1.442695
      %v9929 = vpow.pop %v9928
      %v9930 = vmul.f32 %v9872, 1.442695
      %v9931 = vpow.pop %v9930
      %v9932 = vmul.f32 %v9873, 1.442695
      %v9933 = vpow.pop %v9932
      %v9934 = vmul.f32 %v9874, 1.442695
      %v9935 = vpow.pop %v9934
      %v9936 = vmul.f32 %v9875, 1.442695
      %v9937 = vpow.pop %v9936
      %v9938 = vmul.f32 %v9876, 1.442695
      %v9939 = vpow.pop %v9938
      %v9940 = vmul.f32 %v9877, 1.442695
      %v9941 = vpow.pop %v9940
      %v9942 = vsel %vm7853, %v9879, 0.0
      %9943 = vadd.xlane.f32.xlu0 %v9942
      %v9944 = vpop.xlane.xlu0 %9943
      %v9945 = vsel %vm7853, %v9881, 0.0
      %9946 = vadd.xlane.f32.xlu0 %v9945
      %v9947 = vpop.xlane.xlu0 %9946
      %v9948 = vsel %vm7853, %v9883, 0.0
      %9949 = vadd.xlane.f32.xlu0 %v9948
      %v9950 = vpop.xlane.xlu0 %9949
      %v9951 = vsel %vm7853, %v9885, 0.0
      %9952 = vadd.xlane.f32.xlu0 %v9951
      %v9953 = vpop.xlane.xlu0 %9952
      %v9954 = vsel %vm7853, %v9887, 0.0
      %9955 = vadd.xlane.f32.xlu0 %v9954
      %v9956 = vpop.xlane.xlu0 %9955
      %v9957 = vsel %vm7853, %v9889, 0.0
      %9958 = vadd.xlane.f32.xlu0 %v9957
      %v9959 = vpop.xlane.xlu0 %9958
      %v9960 = vsel %vm7853, %v9891, 0.0
      %9961 = vadd.xlane.f32.xlu0 %v9960
      %v9962 = vpop.xlane.xlu0 %9961
      %v9963 = vsel %vm7853, %v9893, 0.0
      %9964 = vadd.xlane.f32.xlu0 %v9963
      %v9965 = vpop.xlane.xlu0 %9964
      %v9966 = vsel %vm7853, %v9895, 0.0
      %9967 = vadd.xlane.f32.xlu0 %v9966
      %v9968 = vpop.xlane.xlu0 %9967
      %v9969 = vsel %vm7853, %v9897, 0.0
      %9970 = vadd.xlane.f32.xlu0 %v9969
      %v9971 = vpop.xlane.xlu0 %9970
      %v9972 = vsel %vm7853, %v9899, 0.0
      %9973 = vadd.xlane.f32.xlu0 %v9972
      %v9974 = vpop.xlane.xlu0 %9973
      %v9975 = vsel %vm7853, %v9901, 0.0
      %9976 = vadd.xlane.f32.xlu0 %v9975
      %v9977 = vpop.xlane.xlu0 %9976
      %v9978 = vsel %vm7853, %v9903, 0.0
      %9979 = vadd.xlane.f32.xlu0 %v9978
      %v9980 = vpop.xlane.xlu0 %9979
      %v9981 = vsel %vm7853, %v9905, 0.0
      %9982 = vadd.xlane.f32.xlu0 %v9981
      %v9983 = vpop.xlane.xlu0 %9982
      %v9984 = vsel %vm7853, %v9907, 0.0
      %9985 = vadd.xlane.f32.xlu0 %v9984
      %v9986 = vpop.xlane.xlu0 %9985
      %v9987 = vsel %vm7853, %v9909, 0.0
      %9988 = vadd.xlane.f32.xlu0 %v9987
      %v9989 = vpop.xlane.xlu0 %9988
      %v9990 = vsel %vm7853, %v9911, 0.0
      %9991 = vadd.xlane.f32.xlu0 %v9990
      %v9992 = vpop.xlane.xlu0 %9991
      %v9993 = vsel %vm7853, %v9913, 0.0
      %9994 = vadd.xlane.f32.xlu0 %v9993
      %v9995 = vpop.xlane.xlu0 %9994
      %v9996 = vsel %vm7853, %v9915, 0.0
      %9997 = vadd.xlane.f32.xlu0 %v9996
      %v9998 = vpop.xlane.xlu0 %9997
      %v9999 = vsel %vm7853, %v9917, 0.0
      %10000 = vadd.xlane.f32.xlu0 %v9999
      %v10001 = vpop.xlane.xlu0 %10000
      %v10002 = vsel %vm7853, %v9919, 0.0
      %10003 = vadd.xlane.f32.xlu0 %v10002
      %v10004 = vpop.xlane.xlu0 %10003
      %v10005 = vsel %vm7853, %v9921, 0.0
      %10006 = vadd.xlane.f32.xlu0 %v10005
      %v10007 = vpop.xlane.xlu0 %10006
      %v10008 = vsel %vm7853, %v9923, 0.0
      %10009 = vadd.xlane.f32.xlu0 %v10008
      %v10010 = vpop.xlane.xlu0 %10009
      %v10011 = vsel %vm7853, %v9925, 0.0
      %10012 = vadd.xlane.f32.xlu0 %v10011
      %v10013 = vpop.xlane.xlu0 %10012
      %v10014 = vsel %vm7853, %v9927, 0.0
      %10015 = vadd.xlane.f32.xlu0 %v10014
      %v10016 = vpop.xlane.xlu0 %10015
      %v10017 = vsel %vm7853, %v9929, 0.0
      %10018 = vadd.xlane.f32.xlu0 %v10017
      %v10019 = vpop.xlane.xlu0 %10018
      %v10020 = vsel %vm7853, %v9931, 0.0
      %10021 = vadd.xlane.f32.xlu0 %v10020
      %v10022 = vpop.xlane.xlu0 %10021
      %v10023 = vsel %vm7853, %v9933, 0.0
      %10024 = vadd.xlane.f32.xlu0 %v10023
      %v10025 = vpop.xlane.xlu0 %10024
      %v10026 = vsel %vm7853, %v9935, 0.0
      %10027 = vadd.xlane.f32.xlu0 %v10026
      %v10028 = vpop.xlane.xlu0 %10027
      %v10029 = vsel %vm7853, %v9937, 0.0
      %10030 = vadd.xlane.f32.xlu0 %v10029
      %v10031 = vpop.xlane.xlu0 %10030
      %v10032 = vsel %vm7853, %v9939, 0.0
      %10033 = vadd.xlane.f32.xlu0 %v10032
      %v10034 = vpop.xlane.xlu0 %10033
      %v10035 = vsel %vm7853, %v9941, 0.0
      %10036 = vadd.xlane.f32.xlu0 %v10035
      %v10037 = vpop.xlane.xlu0 %10036
      %v10038 = vrcp.pop %v9944
      %v10039 = vmul.f32 %v9879, %v10038
      %v10040 = vrcp.pop %v9947
      %v10041 = vmul.f32 %v9881, %v10040
      %v10042 = vrcp.pop %v9950
      %v10043 = vmul.f32 %v9883, %v10042
      %v10044 = vrcp.pop %v9953
      %v10045 = vmul.f32 %v9885, %v10044
      %v10046 = vrcp.pop %v9956
      %v10047 = vmul.f32 %v9887, %v10046
      %v10048 = vrcp.pop %v9959
      %v10049 = vmul.f32 %v9889, %v10048
      %v10050 = vrcp.pop %v9962
      %v10051 = vmul.f32 %v9891, %v10050
      %v10052 = vrcp.pop %v9965
      %v10053 = vmul.f32 %v9893, %v10052
      %v10054 = vrcp.pop %v9968
      %v10055 = vmul.f32 %v9895, %v10054
      %v10056 = vrcp.pop %v9971
      %v10057 = vmul.f32 %v9897, %v10056
      %v10058 = vrcp.pop %v9974
      %v10059 = vmul.f32 %v9899, %v10058
      %v10060 = vrcp.pop %v9977
      %v10061 = vmul.f32 %v9901, %v10060
      %v10062 = vrcp.pop %v9980
      %v10063 = vmul.f32 %v9903, %v10062
      %v10064 = vrcp.pop %v9983
      %v10065 = vmul.f32 %v9905, %v10064
      %v10066 = vrcp.pop %v9986
      %v10067 = vmul.f32 %v9907, %v10066
      %v10068 = vrcp.pop %v9989
      %v10069 = vmul.f32 %v9909, %v10068
      %v10070 = vrcp.pop %v9992
      %v10071 = vmul.f32 %v9911, %v10070
      %v10072 = vrcp.pop %v9995
      %v10073 = vmul.f32 %v9913, %v10072
      %v10074 = vrcp.pop %v9998
      %v10075 = vmul.f32 %v9915, %v10074
      %v10076 = vrcp.pop %v10001
      %v10077 = vmul.f32 %v9917, %v10076
      %v10078 = vrcp.pop %v10004
      %v10079 = vmul.f32 %v9919, %v10078
      %v10080 = vrcp.pop %v10007
      %v10081 = vmul.f32 %v9921, %v10080
      %v10082 = vrcp.pop %v10010
      %v10083 = vmul.f32 %v9923, %v10082
      %v10084 = vrcp.pop %v10013
      %v10085 = vmul.f32 %v9925, %v10084
      %v10086 = vrcp.pop %v10016
      %v10087 = vmul.f32 %v9927, %v10086
      %v10088 = vrcp.pop %v10019
      %v10089 = vmul.f32 %v9929, %v10088
      %v10090 = vrcp.pop %v10022
      %v10091 = vmul.f32 %v9931, %v10090
      %v10092 = vrcp.pop %v10025
      %v10093 = vmul.f32 %v9933, %v10092
      %v10094 = vrcp.pop %v10028
      %v10095 = vmul.f32 %v9935, %v10094
      %v10096 = vrcp.pop %v10031
      %v10097 = vmul.f32 %v9937, %v10096
      %v10098 = vrcp.pop %v10034
      %v10099 = vmul.f32 %v9939, %v10098
      %v10100 = vrcp.pop %v10037
      %v10101 = vmul.f32 %v9941, %v10100
      %10102 = vst.msk [vmem:[%s226] sm:$0xff] %vm7853, %v10039
      %10103 = vst.msk [vmem:[%s226 + $0x8] sm:$0xff] %vm7853, %v10041
      %10104 = vst.msk [vmem:[%s226 + $0x10] sm:$0xff] %vm7853, %v10043
      %10105 = vst.msk [vmem:[%s226 + $0x18] sm:$0xff] %vm7853, %v10045
      %10106 = vst.msk [vmem:[%s226 + $0x20] sm:$0xff] %vm7853, %v10047
      %10107 = vst.msk [vmem:[%s226 + $0x28] sm:$0xff] %vm7853, %v10049
      %10108 = vst.msk [vmem:[%s226 + $0x30] sm:$0xff] %vm7853, %v10051
      %10109 = vst.msk [vmem:[%s226 + $0x38] sm:$0xff] %vm7853, %v10053
      %10110 = vst.msk [vmem:[%s226 + $0x40] sm:$0xff] %vm7853, %v10055
      %10111 = vst.msk [vmem:[%s226 + $0x48] sm:$0xff] %vm7853, %v10057
      %10112 = vst.msk [vmem:[%s226 + $0x50] sm:$0xff] %vm7853, %v10059
      %10113 = vst.msk [vmem:[%s226 + $0x58] sm:$0xff] %vm7853, %v10061
      %10114 = vst.msk [vmem:[%s226 + $0x60] sm:$0xff] %vm7853, %v10063
      %10115 = vst.msk [vmem:[%s226 + $0x68] sm:$0xff] %vm7853, %v10065
      %10116 = vst.msk [vmem:[%s226 + $0x70] sm:$0xff] %vm7853, %v10067
      %10117 = vst.msk [vmem:[%s226 + $0x78] sm:$0xff] %vm7853, %v10069
      %10118 = vst.msk [vmem:[%s226 + $0x80] sm:$0xff] %vm7853, %v10071
      %10119 = vst.msk [vmem:[%s226 + $0x88] sm:$0xff] %vm7853, %v10073
      %10120 = vst.msk [vmem:[%s226 + $0x90] sm:$0xff] %vm7853, %v10075
      %10121 = vst.msk [vmem:[%s226 + $0x98] sm:$0xff] %vm7853, %v10077
      %10122 = vst.msk [vmem:[%s226 + $0xa0] sm:$0xff] %vm7853, %v10079
      %10123 = vst.msk [vmem:[%s226 + $0xa8] sm:$0xff] %vm7853, %v10081
      %10124 = vst.msk [vmem:[%s226 + $0xb0] sm:$0xff] %vm7853, %v10083
      %10125 = vst.msk [vmem:[%s226 + $0xb8] sm:$0xff] %vm7853, %v10085
      %10126 = vst.msk [vmem:[%s226 + $0xc0] sm:$0xff] %vm7853, %v10087
      %10127 = vst.msk [vmem:[%s226 + $0xc8] sm:$0xff] %vm7853, %v10089
      %10128 = vst.msk [vmem:[%s226 + $0xd0] sm:$0xff] %vm7853, %v10091
      %10129 = vst.msk [vmem:[%s226 + $0xd8] sm:$0xff] %vm7853, %v10093
      %10130 = vst.msk [vmem:[%s226 + $0xe0] sm:$0xff] %vm7853, %v10095
      %10131 = vst.msk [vmem:[%s226 + $0xe8] sm:$0xff] %vm7853, %v10097
      %10132 = vst.msk [vmem:[%s226 + $0xf0] sm:$0xff] %vm7853, %v10099
      %10133 = vst.msk [vmem:[%s226 + $0xf8] sm:$0xff] %vm7853, %v10101
      %s10134 = smul.u32 8, %s15
      %p10135 = scmp.lt.s32.totalorder %s10134, 31
      %s10136 = scalar_select %p10135, %s10134, 31
      %s10137 = smul.addr %s10136, 4
      %s10138 = smul.addr %s10137, 8
      %s10139 = scalar_lea.vmem %s4, %s10138
      // Predicated region
      $region37: #{tpu_custom_call.1} parent=35 // pred_check
        %p10140 = pneg %p127
      $region38: #{tpu_custom_call.1} parent=35 // pred_check_branch
        %10142 = sbr.rel (%p10140) target = $region40
      $region39: #{tpu_custom_call.1} parent=35 // pred_region
        %s10143 = smul.u32 8, %s15
      $region40: #{tpu_custom_call.1} parent=35 // pred_fallthru
        _
    $region36: #{tpu_custom_call.1} parent=5 // pred_fallthru
      _
    %p10144 = scmp.le.s32.totalorder 2, %s10
    // Predicated region
    $region41: #{tpu_custom_call.1} parent=5 // pred_check
      %p10145 = pneg %p10144
    $region42: #{tpu_custom_call.1} parent=5 // pred_check_branch
      %10147 = sbr.rel (%p10145) target = $region44
    $region43: #{tpu_custom_call.1} parent=5 // pred_region
      %s10148 = ssub.s32 %s10, 2
      // Predicated region
      $region45: #{tpu_custom_call.1} parent=43 // pred_check
        %p10149 = pneg %p133
      $region46: #{tpu_custom_call.1} parent=43 // pred_check_branch
        %10151 = sbr.rel (%p10149) target = $region48
      $region47: #{tpu_custom_call.1} parent=43 // pred_region
        %s10152 = smul.u32 8, %s16
        %p10153 = scmp.lt.s32.totalorder %s10152, 31
        %s10154 = scalar_select %p10153, %s10152, 31
        %s10155 = smul.addr %s10154, 4
        %s10156 = smul.addr %s10155, 8
        %s10157 = scalar_lea.vmem %s4, %s10156
      $region48: #{tpu_custom_call.1} parent=43 // pred_fallthru
        _
    $region44: #{tpu_custom_call.1} parent=5 // pred_fallthru
      _
  $region6: #{tpu_custom_call.1} parent=0 // loop_footer
    %s14 = sadd.s32 1, %s10
  $region7: #{tpu_custom_call.1} parent=0 // loop_footer_branch
    %9 = sbr.rel target = $region3
  $region8: #{tpu_custom_call.1} parent=0 // loop_exit
    _

</llo_original>
